<compile_context>
chip_gen: v7x
topology: tpu7x:2x2x1
jax: 0.10.0
libtpu: 0.0.40
codegen_flags: <defaults>
</compile_context>

<pallas_src>
from functools import partial
from math import sqrt, pi

import jax
import jax.numpy as jnp
from jax import lax
from jax.experimental import pallas as pl
from jax.experimental.pallas import tpu as pltpu


def _softplus(x):
    # Matches torch.nn.functional.softplus(x, beta=1, threshold=20)
    return jnp.where(x > 20.0, x, jnp.log1p(jnp.exp(jnp.minimum(x, 20.0))))


def _as_i32(v):
    """Python int -> equivalent value representable as int32 (two's complement)."""
    v &= 0xFFFFFFFF
    return v - (1 << 32) if v & 0x80000000 else v


_MIX_M1 = _as_i32(0x85EBCA6B)
_MIX_M2 = _as_i32(0xC2B2AE35)
_U24_SCALE = 1.0 / 16777216.0     # 2**-24


def _mix32(h):
    """murmur3-style 32-bit finalizer on int32 arrays — plain VPU integer ops only
    (works on both Mosaic and the Pallas interpreter)."""
    s16 = jnp.full(h.shape, 16, h.dtype)
    s13 = jnp.full(h.shape, 13, h.dtype)
    h = h ^ lax.shift_right_logical(h, s16)
    h = h * _MIX_M1
    h = h ^ lax.shift_right_logical(h, s13)
    h = h * _MIX_M2
    h = h ^ lax.shift_right_logical(h, s16)
    return h


def _siren_fwd_kernel(seed_ref, x_ref, w_ref, bias_ref, out_ref, *, w0, fdo):
    TR = x_ref.shape[0]
    half = (TR + 1) // 2

    x = x_ref[...]                                                    # (TR, fdi)

    # Merged MXU call: [x | x^2] @ blockdiag(mu_w_blk, softplus(std_w)^2_blk)
    #   -> [act_mu | act_var] in adjacent 128-lane groups of one result.
    lhs = jnp.concatenate([x, x * x], axis=-1)                        # (TR, 2*fdi)
    res = jnp.dot(lhs, w_ref[...], preferred_element_type=jnp.float32)  # (TR, 2*fdo)
    act_mu = res[:, :fdo]
    act_std = jnp.sqrt(res[:, fdo:] + 1e-14)

    # ---- in-kernel N(0,1) noise: counter hash -> Box-Muller (both branches used) ----
    seed = seed_ref[0]
    pair_base = pl.program_id(0) * (half * fdo)                       # unique pairs per tile
    rid = lax.broadcasted_iota(jnp.int32, (half, fdo), 0)
    cid = lax.broadcasted_iota(jnp.int32, (half, fdo), 1)
    p = pair_base + rid * fdo + cid                                   # global pair index
    ctr = jnp.concatenate([p * 2, p * 2 + 1], axis=0)                 # (2*half, fdo)
    bits = _mix32(ctr ^ seed)
    m = jnp.bitwise_and(bits, 0x00FFFFFF).astype(jnp.float32)         # 24 random bits, exact in f32
    u1 = (m[:half] + 1.0) * _U24_SCALE                                # (0, 1]  (safe for log)
    u2 = m[half:] * _U24_SCALE                                        # [0, 1)
    r = jnp.sqrt(-2.0 * jnp.log(u1))
    th = (2.0 * pi) * u2
    eps = jnp.concatenate([r * jnp.cos(th), r * jnp.sin(th)], axis=0)[:TR]   # (TR, fdo)

    # bias_ref already holds the sampled bias: mu_b + softplus(std_b) * eps_b (tiled to fdo lanes)
    pre = act_mu + act_std * eps + bias_ref[...]
    out_ref[...] = jnp.sin(w0 * pre).astype(out_ref.dtype)


def _block_diag(w, F):
    """(di, do) -> (F*di, F*do) with w repeated on the diagonal blocks."""
    if F == 1:
        return w
    di, do = w.shape
    eye = jnp.eye(F, dtype=w.dtype)
    return jnp.einsum("ab,ij->aibj", eye, w).reshape(F * di, F * do)


def _fold_factor(N, dim_in, dim_out):
    """Fold F consecutive rows of x into the lane dimension when it makes both the input
    and output widths multiples of 128 (free row-major reshapes on both ends)."""
    if dim_in % 128 == 0 and dim_out % 128 == 0:
        return 1
    for F in (2, 4, 8, 16):
        if N % F == 0 and (F * dim_in) % 128 == 0 and (F * dim_out) % 128 == 0:
            return F
    return 1


def _prefer_even_grid():
    """True on parts with 2 TensorCores per chip (v7x); False on 1-TC parts / non-TPU."""
    try:
        d = jax.devices()[0]
        return d.platform == "tpu" and "v7" in str(d.device_kind).lower()
    except Exception:
        return False


def _pick_fold_tile(rows, fdi, fdo, even_grid):
    """Row tile (in folded rows). Budget keeps double-buffered x + out tiles ~<= 8 MiB,
    comfortably under the scoped-VMEM default on all generations (incl. v7x's 64 MiB)."""
    budget = 8 << 20
    cap = max(8, (budget // (8 * (fdi + fdo))) // 8 * 8)

    if rows <= cap and not even_grid:
        return rows                                   # 1-TC parts: single block, grid=(1,)

    def _search(max_tr, need_even_steps):
        for tr in range(min(max_tr, rows), 7, -1):
            if tr % 8 or rows % tr:
                continue
            if need_even_steps and (rows // tr) % 2:
                continue
            return tr
        return None

    if even_grid:
        tr = _search(min(cap, rows // 2), True)       # v7x: even #steps, balanced tiles
        if tr is not None:
            return tr
    tr = _search(cap, False)
    return tr if tr is not None else rows             # fallback: one full block


def var_siren_forward(x, mu, std, mu_prior, std_prior, key, *, w0=30.0):
    """Forward pass of VarSirenLayer with mask=None.  Returns (out, kld_cat).

    Gaussian noise is drawn deterministically from `key` (the torch reference used
    nondeterministic .normal_()): eps_w via an in-kernel counter-hash Box-Muller sampler,
    eps_b via jax.random (one draw shared across rows, as in the reference).
    """
    N, dim_in = x.shape
    dp1, dim_out = mu.shape
    assert dp1 == dim_in + 1

    k_seed, k_bias = jax.random.split(key)

    # ---- grid-invariant parameter transforms, hoisted out of the kernel ----
    std_sp = _softplus(std)                                  # (dim_in+1, dim_out)
    mu_w, mu_b = mu[:-1], mu[-1:]
    std_w_sq = std_sp[:-1] ** 2                              # softplus(std_w)^2
    std_b = std_sp[-1:]
    eps_b = jax.random.normal(k_bias, (1, dim_out), dtype=x.dtype)
    bias_sample = (mu_b + std_b * eps_b).astype(x.dtype)     # mu_b + softplus(std_b)*eps_b

    # ---- analytical Gaussian KL: tiny elementwise slab, plain jnp (fused by XLA) ----
    sigma1 = std_sp + 1e-10
    sigma2 = std_prior + 1e-10
    kl = (-0.5 + jnp.log(sigma2) - jnp.log(sigma1)
          + 0.5 * (sigma1 ** 2 + (mu - mu_prior) ** 2) / sigma2 ** 2)
    kld_cat = jnp.maximum(kl, 0.0)

    # ---- lane fold: view x as (N/F, F*dim_in); block-diag weights; tiled bias ----
    F = _fold_factor(N, dim_in, dim_out)
    rows = N // F
    fdi, fdo = F * dim_in, F * dim_out
    x_fold = x.reshape(rows, fdi)                            # free row-major view

    mu_blk = _block_diag(mu_w.astype(x.dtype), F)            # (fdi, fdo)
    var_blk = _block_diag(std_w_sq.astype(x.dtype), F)       # (fdi, fdo)
    w_merged = jnp.zeros((2 * fdi, 2 * fdo), x.dtype)        # [[mu_blk, 0], [0, var_blk]]
    w_merged = w_merged.at[:fdi, :fdo].set(mu_blk)
    w_merged = w_merged.at[fdi:, fdo:].set(var_blk)
    bias_fold = jnp.tile(bias_sample, (1, F))                # (1, fdo)

    # int32 seed for the in-kernel counter-hash PRNG.
    seed = jax.random.randint(k_seed, (1,), 0, jnp.iinfo(jnp.int32).max,
                              dtype=jnp.int32)

    TR = _pick_fold_tile(rows, fdi, fdo, _prefer_even_grid())
    grid = (rows // TR,)

    out_fold = pl.pallas_call(
        partial(_siren_fwd_kernel, w0=w0, fdo=fdo),
        out_shape=jax.ShapeDtypeStruct((rows, fdo), x.dtype),
        grid_spec=pltpu.PrefetchScalarGridSpec(
            num_scalar_prefetch=1,                                      # seed -> SMEM
            grid=grid,
            in_specs=[
                pl.BlockSpec((TR, fdi), lambda i, s: (i, 0)),           # x tile (lane-dense)
                pl.BlockSpec((2 * fdi, 2 * fdo), lambda i, s: (0, 0)),  # merged weights (resident)
                pl.BlockSpec((1, fdo), lambda i, s: (0, 0)),            # sampled bias (resident)
            ],
            out_specs=pl.BlockSpec((TR, fdo), lambda i, s: (i, 0)),     # lane-dense output
        ),
        compiler_params=pltpu.CompilerParams(dimension_semantics=("parallel",)),
    )(seed, x_fold, w_merged, bias_fold)

    out = out_fold.reshape(N, dim_out)                       # free row-major view back
    return out, kld_cat


if __name__ == "__main__":
    # Module hyperparameters (synthetic, deterministic init).
    dim_in, dim_out = 32, 32
    N = 1024                      # number of input points (rows of x)
    is_first = False
    w0, c = 30.0, 6.0
    std_init = -4.0
    w_std = (1.0 / dim_in) if is_first else sqrt(c / dim_in) / w0

    key = jax.random.PRNGKey(0)
    k_x, k_mu, k_noise = jax.random.split(key, 3)

    # Parameters (deterministic, mirroring __init__ shapes).
    mu = jax.random.uniform(k_mu, (dim_in + 1, dim_out), jnp.float32,
                            minval=-w_std / 12 * 11, maxval=w_std / 12 * 11)
    std = jnp.full((dim_in + 1, dim_out), std_init, dtype=jnp.float32)

    # Priors.
    mu_prior = jnp.zeros((dim_in + 1, dim_out), dtype=jnp.float32)
    std_prior = jnp.full((dim_in + 1, dim_out), 0.1, dtype=jnp.float32)

    # Input.
    x = jax.random.normal(k_x, (N, dim_in), dtype=jnp.float32)

    out, kld_cat = var_siren_forward(x, mu, std, mu_prior, std_prior, k_noise, w0=w0)
    jax.block_until_ready((out, kld_cat))

    assert out.shape == (N, dim_out)
    assert kld_cat.shape == (dim_in + 1, dim_out)
    assert bool(jnp.all(jnp.isfinite(out)))
    assert bool(jnp.all(jnp.abs(out) <= 1.0 + 1e-6))
    assert bool(jnp.all(kld_cat >= 0.0))

    # Deterministic-path sanity check: with std -> -40 (softplus ~ 4e-18) the noise
    # contribution vanishes, so the kernel must match sin(w0 * (x @ mu_w + mu_b)).
    std_tiny = jnp.full_like(std, -40.0)
    out_det, _ = var_siren_forward(x, mu, std_tiny, mu_prior, std_prior, k_noise, w0=w0)
    ref_det = jnp.sin(w0 * (jnp.dot(x, mu[:-1], precision=lax.Precision.HIGHEST) + mu[-1:]))
    assert bool(jnp.max(jnp.abs(out_det - ref_det)) < 5e-2)

    # KL reference check.
    s1 = _softplus(std) + 1e-10
    s2 = std_prior + 1e-10
    kl_ref = jnp.maximum(-0.5 + jnp.log(s2) - jnp.log(s1)
                         + 0.5 * (s1 ** 2 + (mu - mu_prior) ** 2) / s2 ** 2, 0.0)
    assert bool(jnp.max(jnp.abs(kld_cat - kl_ref)) < 1e-6)

    print("KERNEL_OK")
</pallas_src>

<mosaic_0001>
module attributes {stable_mosaic.version = 11 : i64} {
  func.func @_siren_fwd_kernel(%arg0: i32, %arg1: memref<1xi32, #tpu.memory_space<smem>>, %arg2: memref<256x128xf32, #tpu.memory_space<vmem>>, %arg3: memref<256x256xf32, #tpu.memory_space<vmem>>, %arg4: memref<1x128xf32, #tpu.memory_space<vmem>>, %arg5: memref<256x128xf32, #tpu.memory_space<vmem>>) attributes {dimension_semantics = [#tpu.dimension_semantics<parallel>], iteration_bounds = array<i64: 1>, scalar_prefetch = 1 : i64, scratch_operands = 0 : i64, tpu.core_type = #tpu.core_type<tc>, window_params = [{transform_indices = @transform_0, window_bounds = array<i64: 256, 128>}, {pipeline_mode = #tpu.pipeline_mode<synchronous>, transform_indices = @transform_1, window_bounds = array<i64: 256, 256>}, {pipeline_mode = #tpu.pipeline_mode<synchronous>, transform_indices = @transform_2, window_bounds = array<i64: 1, 128>}, {transform_indices = @transform_3, window_bounds = array<i64: 256, 128>}]} {
    %c0 = arith.constant 0 : index
    %c0_0 = arith.constant 0 : index
    %0 = vector.load %arg2[%c0, %c0_0] : memref<256x128xf32, #tpu.memory_space<vmem>>, vector<256x128xf32>
    %1 = arith.mulf %0, %0 : vector<256x128xf32>
    %2 = tpu.concatenate %0, %1 in 1 : vector<256x128xf32>, vector<256x128xf32> -> vector<256x256xf32>
    %c0_1 = arith.constant 0 : index
    %c0_2 = arith.constant 0 : index
    %3 = vector.load %arg3[%c0_1, %c0_2] : memref<256x256xf32, #tpu.memory_space<vmem>>, vector<256x256xf32>
    %cst = arith.constant dense<0.000000e+00> : vector<256x256xf32>
    %4 = tpu.matmul %2, %3, %cst {dimension_numbers = #tpu.dot_dimension_numbers<[1], [0], [0], [1], [0, 0, 1, 1], [], []>} : vector<256x256xf32>, vector<256x256xf32>, vector<256x256xf32> -> vector<256x256xf32>
    %5 = vector.extract_strided_slice %4 {offsets = [0, 0], sizes = [256, 128], strides = [1, 1]} : vector<256x256xf32> to vector<256x128xf32>
    %6 = vector.extract_strided_slice %4 {offsets = [0, 128], sizes = [256, 128], strides = [1, 1]} : vector<256x256xf32> to vector<256x128xf32>
    %cst_3 = arith.constant 9.99999982E-15 : f32
    %7 = vector.broadcast %cst_3 : f32 to vector<256x128xf32>
    %8 = arith.addf %6, %7 : vector<256x128xf32>
    %9 = math.sqrt %8 : vector<256x128xf32>
    %c0_4 = arith.constant 0 : index
    %10 = memref.load %arg1[%c0_4] : memref<1xi32, #tpu.memory_space<smem>>
    %c16384_i32 = arith.constant 16384 : i32
    %11 = arith.muli %arg0, %c16384_i32 : i32
    %12 = tpu.iota {dimensions = array<i32: 0>} : vector<128x128xi32>
    %13 = tpu.iota {dimensions = array<i32: 1>} : vector<128x128xi32>
    %c128_i32 = arith.constant 128 : i32
    %14 = vector.broadcast %c128_i32 : i32 to vector<128x128xi32>
    %15 = arith.muli %12, %14 : vector<128x128xi32>
    %16 = vector.broadcast %11 : i32 to vector<128x128xi32>
    %17 = arith.addi %16, %15 : vector<128x128xi32>
    %18 = arith.addi %17, %13 : vector<128x128xi32>
    %c2_i32 = arith.constant 2 : i32
    %19 = vector.broadcast %c2_i32 : i32 to vector<128x128xi32>
    %20 = arith.muli %18, %19 : vector<128x128xi32>
    %c2_i32_5 = arith.constant 2 : i32
    %21 = vector.broadcast %c2_i32_5 : i32 to vector<128x128xi32>
    %22 = arith.muli %18, %21 : vector<128x128xi32>
    %c1_i32 = arith.constant 1 : i32
    %23 = vector.broadcast %c1_i32 : i32 to vector<128x128xi32>
    %24 = arith.addi %22, %23 : vector<128x128xi32>
    %25 = tpu.concatenate %20, %24 in 0 : vector<128x128xi32>, vector<128x128xi32> -> vector<256x128xi32>
    %26 = vector.broadcast %10 : i32 to vector<256x128xi32>
    %27 = arith.xori %25, %26 : vector<256x128xi32>
    %c16_i32 = arith.constant 16 : i32
    %28 = vector.broadcast %c16_i32 : i32 to vector<256x128xi32>
    %c13_i32 = arith.constant 13 : i32
    %29 = vector.broadcast %c13_i32 : i32 to vector<256x128xi32>
    %30 = arith.shrui %27, %28 : vector<256x128xi32>
    %31 = arith.xori %27, %30 : vector<256x128xi32>
    %c-2048144789_i32 = arith.constant -2048144789 : i32
    %32 = vector.broadcast %c-2048144789_i32 : i32 to vector<256x128xi32>
    %33 = arith.muli %31, %32 : vector<256x128xi32>
    %34 = arith.shrui %33, %29 : vector<256x128xi32>
    %35 = arith.xori %33, %34 : vector<256x128xi32>
    %c-1028477387_i32 = arith.constant -1028477387 : i32
    %36 = vector.broadcast %c-1028477387_i32 : i32 to vector<256x128xi32>
    %37 = arith.muli %35, %36 : vector<256x128xi32>
    %38 = arith.shrui %37, %28 : vector<256x128xi32>
    %39 = arith.xori %37, %38 : vector<256x128xi32>
    %c16777215_i32 = arith.constant 16777215 : i32
    %40 = vector.broadcast %c16777215_i32 : i32 to vector<256x128xi32>
    %41 = arith.andi %39, %40 : vector<256x128xi32>
    %42 = arith.sitofp %41 : vector<256x128xi32> to vector<256x128xf32>
    %43 = vector.extract_strided_slice %42 {offsets = [0, 0], sizes = [128, 128], strides = [1, 1]} : vector<256x128xf32> to vector<128x128xf32>
    %cst_6 = arith.constant 1.000000e+00 : f32
    %44 = vector.broadcast %cst_6 : f32 to vector<128x128xf32>
    %45 = arith.addf %43, %44 : vector<128x128xf32>
    %cst_7 = arith.constant 5.96046448E-8 : f32
    %46 = vector.broadcast %cst_7 : f32 to vector<128x128xf32>
    %47 = arith.mulf %45, %46 : vector<128x128xf32>
    %48 = vector.extract_strided_slice %42 {offsets = [128, 0], sizes = [128, 128], strides = [1, 1]} : vector<256x128xf32> to vector<128x128xf32>
    %cst_8 = arith.constant 5.96046448E-8 : f32
    %49 = vector.broadcast %cst_8 : f32 to vector<128x128xf32>
    %50 = arith.mulf %48, %49 : vector<128x128xf32>
    %51 = math.log %47 : vector<128x128xf32>
    %cst_9 = arith.constant -2.000000e+00 : f32
    %52 = vector.broadcast %cst_9 : f32 to vector<128x128xf32>
    %53 = arith.mulf %52, %51 : vector<128x128xf32>
    %54 = math.sqrt %53 : vector<128x128xf32>
    %cst_10 = arith.constant 6.28318548 : f32
    %55 = vector.broadcast %cst_10 : f32 to vector<128x128xf32>
    %56 = arith.mulf %55, %50 : vector<128x128xf32>
    %57 = math.cos %56 : vector<128x128xf32>
    %58 = arith.mulf %54, %57 : vector<128x128xf32>
    %59 = math.sin %56 : vector<128x128xf32>
    %60 = arith.mulf %54, %59 : vector<128x128xf32>
    %61 = tpu.concatenate %58, %60 in 0 : vector<128x128xf32>, vector<128x128xf32> -> vector<256x128xf32>
    %62 = arith.mulf %9, %61 : vector<256x128xf32>
    %63 = arith.addf %5, %62 : vector<256x128xf32>
    %c0_11 = arith.constant 0 : index
    %c0_12 = arith.constant 0 : index
    %64 = vector.load %arg4[%c0_11, %c0_12] : memref<1x128xf32, #tpu.memory_space<vmem>>, vector<1x128xf32>
    %65 = vector.broadcast %64 : vector<1x128xf32> to vector<256x128xf32>
    %66 = arith.addf %63, %65 : vector<256x128xf32>
    %cst_13 = arith.constant 3.000000e+01 : f32
    %67 = vector.broadcast %cst_13 : f32 to vector<256x128xf32>
    %68 = arith.mulf %67, %66 : vector<256x128xf32>
    %69 = math.sin %68 : vector<256x128xf32>
    %c0_14 = arith.constant 0 : index
    %c0_15 = arith.constant 0 : index
    %70 = vector.load %arg5[%c0_14, %c0_15] : memref<256x128xf32, #tpu.memory_space<vmem>>, vector<256x128xf32>
    tpu.vector_store %arg5[%c0_14, %c0_15], %69 {strides = array<i32>} : memref<256x128xf32, #tpu.memory_space<vmem>>, vector<256x128xf32>,
    return
  }
  func.func @transform_0(%arg0: i32, %arg1: memref<1xi32, #tpu.memory_space<smem>>) -> (i32, i32) {
    %c0_i32 = arith.constant 0 : i32
    %c0_i32_0 = arith.constant 0 : i32
    return %arg0, %c0_i32 : i32, i32
  }
  func.func @transform_1(%arg0: i32, %arg1: memref<1xi32, #tpu.memory_space<smem>>) -> (i32, i32) {
    %c0_i32 = arith.constant 0 : i32
    %c0_i32_0 = arith.constant 0 : i32
    %c0_i32_1 = arith.constant 0 : i32
    return %c0_i32, %c0_i32_0 : i32, i32
  }
  func.func @transform_2(%arg0: i32, %arg1: memref<1xi32, #tpu.memory_space<smem>>) -> (i32, i32) {
    %c0_i32 = arith.constant 0 : i32
    %c0_i32_0 = arith.constant 0 : i32
    %c0_i32_1 = arith.constant 0 : i32
    return %c0_i32, %c0_i32_0 : i32, i32
  }
  func.func @transform_3(%arg0: i32, %arg1: memref<1xi32, #tpu.memory_space<smem>>) -> (i32, i32) {
    %c0_i32 = arith.constant 0 : i32
    %c0_i32_0 = arith.constant 0 : i32
    return %arg0, %c0_i32 : i32, i32
  }
}

</mosaic_0001>

<llo_original>
// kernel: tpu_custom_call.1
$region0: #{tpu_custom_call.1}
  #allocation0 [shape = 'u32[]', space=smem, size = 0x4, offset = 0x4, fixed_abs, tag = 'smem constant byte address 0x4 - core index']
  #allocation1 [shape = 'u32[144,128]{1,0:T(1,128)}', space=vmem, size = 0x12000, scoped, tag = 'internal scratch']
  #allocation2 [shape = 's32[1]{0}', space=sflag, size = 0x4, scoped, tag = 'scoped memory for tpu_custom_call.1']
  #allocation3 [shape = 's32[1]{0:T(128)S(6)}', space=smem, size = 0x200, scoped, tag = 'prefetched SMEM operand 0']
  %s0 = inlined_call_operand.<no memory space> [shape: s32[1], index: 0, kind: input, shape index: {}]
  %s1 = inlined_call_operand.hbm [shape: f32[256,128], index: 1, kind: input, shape index: {}]
  %s2 = inlined_call_operand.hbm [shape: f32[256,256], index: 2, kind: input, shape index: {}]
  %s3 = inlined_call_operand.vmem [shape: f32[1,128], index: 3, kind: input, shape index: {}]
  %s4 = inlined_call_operand.hbm [shape: f32[256,128], index: 4, kind: output, shape index: {}]
  %s5 = sld [smem:[#allocation0]]
  $region30: #{tpu_custom_call.1} parent=0
    _
  %s7 = ssub.s32 1, %s5
  %s8 = scalar_select 0, %s7, %s5
  %9 = sst [smem:[#allocation3]] %s0
  $region1: #{tpu_custom_call.1} parent=0
    #allocation4 [shape = 'u8[131072]{0}', space=vmem, size = 0x20000, scoped, tag = 'input window, operand 1, single buffered']
    #allocation5 [shape = 's32[1]{0}', space=sflag, size = 0x4, scoped, tag = 'scoped memory for tpu_custom_call.1']
    #allocation6 [shape = 's32[1]{0}', space=sflag, size = 0x4, scoped, tag = 'scoped memory for tpu_custom_call.1']
    #allocation7 [shape = 'u8[262144]{0}', space=vmem, size = 0x40000, scoped, tag = 'input window, operand 2, single buffered']
    #allocation8 [shape = 's32[1]{0}', space=sflag, size = 0x4, scoped, tag = 'scoped memory for tpu_custom_call.1']
    #allocation9 [shape = 'u8[131072]{0}', space=vmem, size = 0x20000, scoped, tag = 'output window, operand 0, single buffered']
    %10 = vsyncpa [#allocation5], 0
    %11 = vsyncpa [#allocation8], 0
    %12 = vsyncpa [#allocation6], 0
    // Predicated region
    $region2: #{tpu_custom_call.1} parent=1 // pred_check
      _
    $region3: #{tpu_custom_call.1} parent=1 // pred_check_branch
      %14 = sbr.rel (0) target = $region5
    $region4: #{tpu_custom_call.1} parent=1 // pred_region
      %s16 = ssub.s32 4096, 4096
      %17 = vsyncadd [#allocation5], %s16
      %s18 = sshll.u32 [#allocation4], 4
      %s19 = int_to_ptr.vmem [resolvable:$true] %s18
      %24 = dma.hbm_to_vmem [thread:$0]  %s1, 4096, %s19, [#allocation5], 128, 128, 8
    $region5: #{tpu_custom_call.1} parent=1 // pred_fallthru
      _
    // Predicated region
    $region6: #{tpu_custom_call.1} parent=1 // pred_check
      _
    $region7: #{tpu_custom_call.1} parent=1 // pred_check_branch
      %26 = sbr.rel (0) target = $region9
    $region8: #{tpu_custom_call.1} parent=1 // pred_region
      %s28 = ssub.s32 8192, 8192
      %29 = vsyncadd [#allocation8], %s28
      %s30 = sshll.u32 [#allocation7], 4
      %s31 = int_to_ptr.vmem [resolvable:$true] %s30
      %36 = dma.hbm_to_vmem [thread:$0]  %s2, 8192, %s31, [#allocation8], 256, 256, 16
    $region9: #{tpu_custom_call.1} parent=1 // pred_fallthru
      _
    // Predicated region
    $region10: #{tpu_custom_call.1} parent=1 // pred_check
      _
    $region11: #{tpu_custom_call.1} parent=1 // pred_check_branch
      %38 = sbr.rel (0) target = $region13
    $region12: #{tpu_custom_call.1} parent=1 // pred_region
      _
    $region13: #{tpu_custom_call.1} parent=1 // pred_fallthru
      _
    // Predicated region
    $region14: #{tpu_custom_call.1} parent=1 // pred_check
      _
    $region15: #{tpu_custom_call.1} parent=1 // pred_check_branch
      %40 = sbr.rel (0) target = $region17
    $region16: #{tpu_custom_call.1} parent=1 // pred_region
      %41 = dma.done [#allocation5], 4096
    $region17: #{tpu_custom_call.1} parent=1 // pred_fallthru
      _
    // Predicated region
    $region18: #{tpu_custom_call.1} parent=1 // pred_check
      _
    $region19: #{tpu_custom_call.1} parent=1 // pred_check_branch
      %43 = sbr.rel (0) target = $region21
    $region20: #{tpu_custom_call.1} parent=1 // pred_region
      %44 = dma.done [#allocation8], 8192
    $region21: #{tpu_custom_call.1} parent=1 // pred_fallthru
      _
    %v45 = vld [vmem:[#allocation4] sm:$0xff]
    %v46 = vld [vmem:[#allocation4 + $0x8] sm:$0xff]
    %v47 = vld [vmem:[#allocation4 + $0x10] sm:$0xff]
    %v48 = vld [vmem:[#allocation4 + $0x18] sm:$0xff]
    %v49 = vld [vmem:[#allocation4 + $0x20] sm:$0xff]
    %v50 = vld [vmem:[#allocation4 + $0x28] sm:$0xff]
    %v51 = vld [vmem:[#allocation4 + $0x30] sm:$0xff]
    %v52 = vld [vmem:[#allocation4 + $0x38] sm:$0xff]
    %v53 = vld [vmem:[#allocation4 + $0x40] sm:$0xff]
    %v54 = vld [vmem:[#allocation4 + $0x48] sm:$0xff]
    %v55 = vld [vmem:[#allocation4 + $0x50] sm:$0xff]
    %v56 = vld [vmem:[#allocation4 + $0x58] sm:$0xff]
    %v57 = vld [vmem:[#allocation4 + $0x60] sm:$0xff]
    %v58 = vld [vmem:[#allocation4 + $0x68] sm:$0xff]
    %v59 = vld [vmem:[#allocation4 + $0x70] sm:$0xff]
    %v60 = vld [vmem:[#allocation4 + $0x78] sm:$0xff]
    %v61 = vld [vmem:[#allocation4 + $0x80] sm:$0xff]
    %v62 = vld [vmem:[#allocation4 + $0x88] sm:$0xff]
    %v63 = vld [vmem:[#allocation4 + $0x90] sm:$0xff]
    %v64 = vld [vmem:[#allocation4 + $0x98] sm:$0xff]
    %v65 = vld [vmem:[#allocation4 + $0xa0] sm:$0xff]
    %v66 = vld [vmem:[#allocation4 + $0xa8] sm:$0xff]
    %v67 = vld [vmem:[#allocation4 + $0xb0] sm:$0xff]
    %v68 = vld [vmem:[#allocation4 + $0xb8] sm:$0xff]
    %v69 = vld [vmem:[#allocation4 + $0xc0] sm:$0xff]
    %v70 = vld [vmem:[#allocation4 + $0xc8] sm:$0xff]
    %v71 = vld [vmem:[#allocation4 + $0xd0] sm:$0xff]
    %v72 = vld [vmem:[#allocation4 + $0xd8] sm:$0xff]
    %v73 = vld [vmem:[#allocation4 + $0xe0] sm:$0xff]
    %v74 = vld [vmem:[#allocation4 + $0xe8] sm:$0xff]
    %v75 = vld [vmem:[#allocation4 + $0xf0] sm:$0xff]
    %v76 = vld [vmem:[#allocation4 + $0xf8] sm:$0xff]
    %v77 = vmul.f32 %v45, %v45
    %v78 = vmul.f32 %v46, %v46
    %v79 = vmul.f32 %v47, %v47
    %v80 = vmul.f32 %v48, %v48
    %v81 = vmul.f32 %v49, %v49
    %v82 = vmul.f32 %v50, %v50
    %v83 = vmul.f32 %v51, %v51
    %v84 = vmul.f32 %v52, %v52
    %v85 = vmul.f32 %v53, %v53
    %v86 = vmul.f32 %v54, %v54
    %v87 = vmul.f32 %v55, %v55
    %v88 = vmul.f32 %v56, %v56
    %v89 = vmul.f32 %v57, %v57
    %v90 = vmul.f32 %v58, %v58
    %v91 = vmul.f32 %v59, %v59
    %v92 = vmul.f32 %v60, %v60
    %v93 = vmul.f32 %v61, %v61
    %v94 = vmul.f32 %v62, %v62
    %v95 = vmul.f32 %v63, %v63
    %v96 = vmul.f32 %v64, %v64
    %v97 = vmul.f32 %v65, %v65
    %v98 = vmul.f32 %v66, %v66
    %v99 = vmul.f32 %v67, %v67
    %v100 = vmul.f32 %v68, %v68
    %v101 = vmul.f32 %v69, %v69
    %v102 = vmul.f32 %v70, %v70
    %v103 = vmul.f32 %v71, %v71
    %v104 = vmul.f32 %v72, %v72
    %v105 = vmul.f32 %v73, %v73
    %v106 = vmul.f32 %v74, %v74
    %v107 = vmul.f32 %v75, %v75
    %v108 = vmul.f32 %v76, %v76
    %v109 = vld [vmem:[#allocation7] sm:$0xff]
    %v110 = vld [vmem:[#allocation7 + $0x8] sm:$0xff]
    %v111 = vld [vmem:[#allocation7 + $0x10] sm:$0xff]
    %v112 = vld [vmem:[#allocation7 + $0x18] sm:$0xff]
    %v113 = vld [vmem:[#allocation7 + $0x20] sm:$0xff]
    %v114 = vld [vmem:[#allocation7 + $0x28] sm:$0xff]
    %v115 = vld [vmem:[#allocation7 + $0x30] sm:$0xff]
    %v116 = vld [vmem:[#allocation7 + $0x38] sm:$0xff]
    %v117 = vld [vmem:[#allocation7 + $0x40] sm:$0xff]
    %v118 = vld [vmem:[#allocation7 + $0x48] sm:$0xff]
    %v119 = vld [vmem:[#allocation7 + $0x50] sm:$0xff]
    %v120 = vld [vmem:[#allocation7 + $0x58] sm:$0xff]
    %v121 = vld [vmem:[#allocation7 + $0x60] sm:$0xff]
    %v122 = vld [vmem:[#allocation7 + $0x68] sm:$0xff]
    %v123 = vld [vmem:[#allocation7 + $0x70] sm:$0xff]
    %v124 = vld [vmem:[#allocation7 + $0x78] sm:$0xff]
    %v125 = vld [vmem:[#allocation7 + $0x80] sm:$0xff]
    %v126 = vld [vmem:[#allocation7 + $0x88] sm:$0xff]
    %v127 = vld [vmem:[#allocation7 + $0x90] sm:$0xff]
    %v128 = vld [vmem:[#allocation7 + $0x98] sm:$0xff]
    %v129 = vld [vmem:[#allocation7 + $0xa0] sm:$0xff]
    %v130 = vld [vmem:[#allocation7 + $0xa8] sm:$0xff]
    %v131 = vld [vmem:[#allocation7 + $0xb0] sm:$0xff]
    %v132 = vld [vmem:[#allocation7 + $0xb8] sm:$0xff]
    %v133 = vld [vmem:[#allocation7 + $0xc0] sm:$0xff]
    %v134 = vld [vmem:[#allocation7 + $0xc8] sm:$0xff]
    %v135 = vld [vmem:[#allocation7 + $0xd0] sm:$0xff]
    %v136 = vld [vmem:[#allocation7 + $0xd8] sm:$0xff]
    %v137 = vld [vmem:[#allocation7 + $0xe0] sm:$0xff]
    %v138 = vld [vmem:[#allocation7 + $0xe8] sm:$0xff]
    %v139 = vld [vmem:[#allocation7 + $0xf0] sm:$0xff]
    %v140 = vld [vmem:[#allocation7 + $0xf8] sm:$0xff]
    %v141 = vld [vmem:[#allocation7 + $0x100] sm:$0xff]
    %v142 = vld [vmem:[#allocation7 + $0x108] sm:$0xff]
    %v143 = vld [vmem:[#allocation7 + $0x110] sm:$0xff]
    %v144 = vld [vmem:[#allocation7 + $0x118] sm:$0xff]
    %v145 = vld [vmem:[#allocation7 + $0x120] sm:$0xff]
    %v146 = vld [vmem:[#allocation7 + $0x128] sm:$0xff]
    %v147 = vld [vmem:[#allocation7 + $0x130] sm:$0xff]
    %v148 = vld [vmem:[#allocation7 + $0x138] sm:$0xff]
    %v149 = vld [vmem:[#allocation7 + $0x140] sm:$0xff]
    %v150 = vld [vmem:[#allocation7 + $0x148] sm:$0xff]
    %v151 = vld [vmem:[#allocation7 + $0x150] sm:$0xff]
    %v152 = vld [vmem:[#allocation7 + $0x158] sm:$0xff]
    %v153 = vld [vmem:[#allocation7 + $0x160] sm:$0xff]
    %v154 = vld [vmem:[#allocation7 + $0x168] sm:$0xff]
    %v155 = vld [vmem:[#allocation7 + $0x170] sm:$0xff]
    %v156 = vld [vmem:[#allocation7 + $0x178] sm:$0xff]
    %v157 = vld [vmem:[#allocation7 + $0x180] sm:$0xff]
    %v158 = vld [vmem:[#allocation7 + $0x188] sm:$0xff]
    %v159 = vld [vmem:[#allocation7 + $0x190] sm:$0xff]
    %v160 = vld [vmem:[#allocation7 + $0x198] sm:$0xff]
    %v161 = vld [vmem:[#allocation7 + $0x1a0] sm:$0xff]
    %v162 = vld [vmem:[#allocation7 + $0x1a8] sm:$0xff]
    %v163 = vld [vmem:[#allocation7 + $0x1b0] sm:$0xff]
    %v164 = vld [vmem:[#allocation7 + $0x1b8] sm:$0xff]
    %v165 = vld [vmem:[#allocation7 + $0x1c0] sm:$0xff]
    %v166 = vld [vmem:[#allocation7 + $0x1c8] sm:$0xff]
    %v167 = vld [vmem:[#allocation7 + $0x1d0] sm:$0xff]
    %v168 = vld [vmem:[#allocation7 + $0x1d8] sm:$0xff]
    %v169 = vld [vmem:[#allocation7 + $0x1e0] sm:$0xff]
    %v170 = vld [vmem:[#allocation7 + $0x1e8] sm:$0xff]
    %v171 = vld [vmem:[#allocation7 + $0x1f0] sm:$0xff]
    %v172 = vld [vmem:[#allocation7 + $0x1f8] sm:$0xff]
    %173 = vmatprep.subr.mxu0 %v110
    %174 = vmatpush1.msra.mxu0 %v109
    %175 = vmatprep.subr.mxu0 %v112
    %176 = vmatpush1.msra.mxu0 %v111
    %177 = vmatprep.subr.mxu0 %v114
    %178 = vmatpush1.msra.mxu0 %v113
    %179 = vmatprep.subr.mxu0 %v116
    %180 = vmatpush1.msra.mxu0 %v115
    %181 = vmatprep.subr.mxu0 %v118
    %182 = vmatpush1.msra.mxu0 %v117
    %183 = vmatprep.subr.mxu0 %v120
    %184 = vmatpush1.msra.mxu0 %v119
    %185 = vmatprep.subr.mxu0 %v122
    %186 = vmatpush1.msra.mxu0 %v121
    %187 = vmatprep.subr.mxu0 %v124
    %188 = vmatpush1.msra.mxu0 %v123
    %189 = vmatprep.subr.mxu0 %v126
    %190 = vmatpush1.msra.mxu0 %v125
    %191 = vmatprep.subr.mxu0 %v128
    %192 = vmatpush1.msra.mxu0 %v127
    %193 = vmatprep.subr.mxu0 %v130
    %194 = vmatpush1.msra.mxu0 %v129
    %195 = vmatprep.subr.mxu0 %v132
    %196 = vmatpush1.msra.mxu0 %v131
    %197 = vmatprep.subr.mxu0 %v134
    %198 = vmatpush1.msra.mxu0 %v133
    %199 = vmatprep.subr.mxu0 %v136
    %200 = vmatpush1.msra.mxu0 %v135
    %201 = vmatprep.subr.mxu0 %v138
    %202 = vmatpush1.msra.mxu0 %v137
    %203 = vmatprep.subr.mxu0 %v140
    %204 = vmatpush1.msra.mxu0 %v139
    %205 = vmatprep.subr.mxu0 %v142
    %206 = vmatpush1.msra.mxu0 %v141
    %207 = vmatprep.subr.mxu0 %v144
    %208 = vmatpush1.msra.mxu0 %v143
    %209 = vmatprep.subr.mxu0 %v146
    %210 = vmatpush1.msra.mxu0 %v145
    %211 = vmatprep.subr.mxu0 %v148
    %212 = vmatpush1.msra.mxu0 %v147
    %213 = vmatprep.subr.mxu0 %v150
    %214 = vmatpush1.msra.mxu0 %v149
    %215 = vmatprep.subr.mxu0 %v152
    %216 = vmatpush1.msra.mxu0 %v151
    %217 = vmatprep.subr.mxu0 %v154
    %218 = vmatpush1.msra.mxu0 %v153
    %219 = vmatprep.subr.mxu0 %v156
    %220 = vmatpush1.msra.mxu0 %v155
    %221 = vmatprep.subr.mxu0 %v158
    %222 = vmatpush1.msra.mxu0 %v157
    %223 = vmatprep.subr.mxu0 %v160
    %224 = vmatpush1.msra.mxu0 %v159
    %225 = vmatprep.subr.mxu0 %v162
    %226 = vmatpush1.msra.mxu0 %v161
    %227 = vmatprep.subr.mxu0 %v164
    %228 = vmatpush1.msra.mxu0 %v163
    %229 = vmatprep.subr.mxu0 %v166
    %230 = vmatpush1.msra.mxu0 %v165
    %231 = vmatprep.subr.mxu0 %v168
    %232 = vmatpush1.msra.mxu0 %v167
    %233 = vmatprep.subr.mxu0 %v170
    %234 = vmatpush1.msra.mxu0 %v169
    %235 = vmatprep.subr.mxu0 %v172
    %236 = vmatpush1.msra.mxu0 %v171
    %237 = vmatprep.mubr.f32.mxu0 %v77
    %238 = vmatmul.mubr.f32.gmra.mrb[0].mxu0 %v45
    %v239 = vpop.f32.mrb[0].mxu0
    %v240 = vadd.f32 0.0, %v239
    %v241 = vpop.f32.mrb[0].mxu0
    %v242 = vadd.f32 0.0, %v241
    %243 = vmatprep.mubr.f32.mxu0 %v78
    %244 = vmatmul.mubr.f32.gmra.mrb[0].mxu0 %v46
    %v245 = vpop.f32.mrb[0].mxu0
    %v246 = vadd.f32 0.0, %v245
    %v247 = vpop.f32.mrb[0].mxu0
    %v248 = vadd.f32 0.0, %v247
    %249 = vmatprep.mubr.f32.mxu0 %v79
    %250 = vmatmul.mubr.f32.gmra.mrb[0].mxu0 %v47
    %v251 = vpop.f32.mrb[0].mxu0
    %v252 = vadd.f32 0.0, %v251
    %v253 = vpop.f32.mrb[0].mxu0
    %v254 = vadd.f32 0.0, %v253
    %255 = vmatprep.mubr.f32.mxu0 %v80
    %256 = vmatmul.mubr.f32.gmra.mrb[0].mxu0 %v48
    %v257 = vpop.f32.mrb[0].mxu0
    %v258 = vadd.f32 0.0, %v257
    %v259 = vpop.f32.mrb[0].mxu0
    %v260 = vadd.f32 0.0, %v259
    %261 = vmatprep.mubr.f32.mxu0 %v81
    %262 = vmatmul.mubr.f32.gmra.mrb[0].mxu0 %v49
    %v263 = vpop.f32.mrb[0].mxu0
    %v264 = vadd.f32 0.0, %v263
    %v265 = vpop.f32.mrb[0].mxu0
    %v266 = vadd.f32 0.0, %v265
    %267 = vmatprep.mubr.f32.mxu0 %v82
    %268 = vmatmul.mubr.f32.gmra.mrb[0].mxu0 %v50
    %v269 = vpop.f32.mrb[0].mxu0
    %v270 = vadd.f32 0.0, %v269
    %v271 = vpop.f32.mrb[0].mxu0
    %v272 = vadd.f32 0.0, %v271
    %273 = vmatprep.mubr.f32.mxu0 %v83
    %274 = vmatmul.mubr.f32.gmra.mrb[0].mxu0 %v51
    %v275 = vpop.f32.mrb[0].mxu0
    %v276 = vadd.f32 0.0, %v275
    %v277 = vpop.f32.mrb[0].mxu0
    %v278 = vadd.f32 0.0, %v277
    %279 = vmatprep.mubr.f32.mxu0 %v84
    %280 = vmatmul.mubr.f32.gmra.mrb[0].mxu0 %v52
    %v281 = vpop.f32.mrb[0].mxu0
    %v282 = vadd.f32 0.0, %v281
    %v283 = vpop.f32.mrb[0].mxu0
    %v284 = vadd.f32 0.0, %v283
    %285 = vmatprep.mubr.f32.mxu0 %v85
    %286 = vmatmul.mubr.f32.gmra.mrb[0].mxu0 %v53
    %v287 = vpop.f32.mrb[0].mxu0
    %v288 = vadd.f32 0.0, %v287
    %v289 = vpop.f32.mrb[0].mxu0
    %v290 = vadd.f32 0.0, %v289
    %291 = vmatprep.mubr.f32.mxu0 %v86
    %292 = vmatmul.mubr.f32.gmra.mrb[0].mxu0 %v54
    %v293 = vpop.f32.mrb[0].mxu0
    %v294 = vadd.f32 0.0, %v293
    %v295 = vpop.f32.mrb[0].mxu0
    %v296 = vadd.f32 0.0, %v295
    %297 = vmatprep.mubr.f32.mxu0 %v87
    %298 = vmatmul.mubr.f32.gmra.mrb[0].mxu0 %v55
    %v299 = vpop.f32.mrb[0].mxu0
    %v300 = vadd.f32 0.0, %v299
    %v301 = vpop.f32.mrb[0].mxu0
    %v302 = vadd.f32 0.0, %v301
    %303 = vmatprep.mubr.f32.mxu0 %v88
    %304 = vmatmul.mubr.f32.gmra.mrb[0].mxu0 %v56
    %v305 = vpop.f32.mrb[0].mxu0
    %v306 = vadd.f32 0.0, %v305
    %v307 = vpop.f32.mrb[0].mxu0
    %v308 = vadd.f32 0.0, %v307
    %309 = vmatprep.mubr.f32.mxu0 %v89
    %310 = vmatmul.mubr.f32.gmra.mrb[0].mxu0 %v57
    %v311 = vpop.f32.mrb[0].mxu0
    %v312 = vadd.f32 0.0, %v311
    %v313 = vpop.f32.mrb[0].mxu0
    %v314 = vadd.f32 0.0, %v313
    %315 = vmatprep.mubr.f32.mxu0 %v90
    %316 = vmatmul.mubr.f32.gmra.mrb[0].mxu0 %v58
    %v317 = vpop.f32.mrb[0].mxu0
    %v318 = vadd.f32 0.0, %v317
    %v319 = vpop.f32.mrb[0].mxu0
    %v320 = vadd.f32 0.0, %v319
    %321 = vmatprep.mubr.f32.mxu0 %v91
    %322 = vmatmul.mubr.f32.gmra.mrb[0].mxu0 %v59
    %v323 = vpop.f32.mrb[0].mxu0
    %v324 = vadd.f32 0.0, %v323
    %v325 = vpop.f32.mrb[0].mxu0
    %v326 = vadd.f32 0.0, %v325
    %327 = vmatprep.mubr.f32.mxu0 %v92
    %328 = vmatmul.mubr.f32.gmra.mrb[0].mxu0 %v60
    %v329 = vpop.f32.mrb[0].mxu0
    %v330 = vadd.f32 0.0, %v329
    %v331 = vpop.f32.mrb[0].mxu0
    %v332 = vadd.f32 0.0, %v331
    %333 = vmatprep.mubr.f32.mxu0 %v93
    %334 = vmatmul.mubr.f32.gmra.mrb[0].mxu0 %v61
    %v335 = vpop.f32.mrb[0].mxu0
    %v336 = vadd.f32 0.0, %v335
    %v337 = vpop.f32.mrb[0].mxu0
    %v338 = vadd.f32 0.0, %v337
    %339 = vmatprep.mubr.f32.mxu0 %v94
    %340 = vmatmul.mubr.f32.gmra.mrb[0].mxu0 %v62
    %v341 = vpop.f32.mrb[0].mxu0
    %v342 = vadd.f32 0.0, %v341
    %v343 = vpop.f32.mrb[0].mxu0
    %v344 = vadd.f32 0.0, %v343
    %345 = vmatprep.mubr.f32.mxu0 %v95
    %346 = vmatmul.mubr.f32.gmra.mrb[0].mxu0 %v63
    %v347 = vpop.f32.mrb[0].mxu0
    %v348 = vadd.f32 0.0, %v347
    %v349 = vpop.f32.mrb[0].mxu0
    %v350 = vadd.f32 0.0, %v349
    %351 = vmatprep.mubr.f32.mxu0 %v96
    %352 = vmatmul.mubr.f32.gmra.mrb[0].mxu0 %v64
    %v353 = vpop.f32.mrb[0].mxu0
    %v354 = vadd.f32 0.0, %v353
    %v355 = vpop.f32.mrb[0].mxu0
    %v356 = vadd.f32 0.0, %v355
    %357 = vmatprep.mubr.f32.mxu0 %v97
    %358 = vmatmul.mubr.f32.gmra.mrb[0].mxu0 %v65
    %v359 = vpop.f32.mrb[0].mxu0
    %v360 = vadd.f32 0.0, %v359
    %v361 = vpop.f32.mrb[0].mxu0
    %v362 = vadd.f32 0.0, %v361
    %363 = vmatprep.mubr.f32.mxu0 %v98
    %364 = vmatmul.mubr.f32.gmra.mrb[0].mxu0 %v66
    %v365 = vpop.f32.mrb[0].mxu0
    %v366 = vadd.f32 0.0, %v365
    %v367 = vpop.f32.mrb[0].mxu0
    %v368 = vadd.f32 0.0, %v367
    %369 = vmatprep.mubr.f32.mxu0 %v99
    %370 = vmatmul.mubr.f32.gmra.mrb[0].mxu0 %v67
    %v371 = vpop.f32.mrb[0].mxu0
    %v372 = vadd.f32 0.0, %v371
    %v373 = vpop.f32.mrb[0].mxu0
    %v374 = vadd.f32 0.0, %v373
    %375 = vmatprep.mubr.f32.mxu0 %v100
    %376 = vmatmul.mubr.f32.gmra.mrb[0].mxu0 %v68
    %v377 = vpop.f32.mrb[0].mxu0
    %v378 = vadd.f32 0.0, %v377
    %v379 = vpop.f32.mrb[0].mxu0
    %v380 = vadd.f32 0.0, %v379
    %381 = vmatprep.mubr.f32.mxu0 %v101
    %382 = vmatmul.mubr.f32.gmra.mrb[0].mxu0 %v69
    %v383 = vpop.f32.mrb[0].mxu0
    %v384 = vadd.f32 0.0, %v383
    %v385 = vpop.f32.mrb[0].mxu0
    %v386 = vadd.f32 0.0, %v385
    %387 = vmatprep.mubr.f32.mxu0 %v102
    %388 = vmatmul.mubr.f32.gmra.mrb[0].mxu0 %v70
    %v389 = vpop.f32.mrb[0].mxu0
    %v390 = vadd.f32 0.0, %v389
    %v391 = vpop.f32.mrb[0].mxu0
    %v392 = vadd.f32 0.0, %v391
    %393 = vmatprep.mubr.f32.mxu0 %v103
    %394 = vmatmul.mubr.f32.gmra.mrb[0].mxu0 %v71
    %v395 = vpop.f32.mrb[0].mxu0
    %v396 = vadd.f32 0.0, %v395
    %v397 = vpop.f32.mrb[0].mxu0
    %v398 = vadd.f32 0.0, %v397
    %399 = vmatprep.mubr.f32.mxu0 %v104
    %400 = vmatmul.mubr.f32.gmra.mrb[0].mxu0 %v72
    %v401 = vpop.f32.mrb[0].mxu0
    %v402 = vadd.f32 0.0, %v401
    %v403 = vpop.f32.mrb[0].mxu0
    %v404 = vadd.f32 0.0, %v403
    %405 = vmatprep.mubr.f32.mxu0 %v105
    %406 = vmatmul.mubr.f32.gmra.mrb[0].mxu0 %v73
    %v407 = vpop.f32.mrb[0].mxu0
    %v408 = vadd.f32 0.0, %v407
    %v409 = vpop.f32.mrb[0].mxu0
    %v410 = vadd.f32 0.0, %v409
    %411 = vmatprep.mubr.f32.mxu0 %v106
    %412 = vmatmul.mubr.f32.gmra.mrb[0].mxu0 %v74
    %v413 = vpop.f32.mrb[0].mxu0
    %v414 = vadd.f32 0.0, %v413
    %v415 = vpop.f32.mrb[0].mxu0
    %v416 = vadd.f32 0.0, %v415
    %417 = vmatprep.mubr.f32.mxu0 %v107
    %418 = vmatmul.mubr.f32.gmra.mrb[0].mxu0 %v75
    %v419 = vpop.f32.mrb[0].mxu0
    %v420 = vadd.f32 0.0, %v419
    %v421 = vpop.f32.mrb[0].mxu0
    %v422 = vadd.f32 0.0, %v421
    %423 = vmatprep.mubr.f32.mxu0 %v108
    %424 = vmatmul.mubr.f32.gmra.mrb[0].mxu0 %v76
    %v425 = vpop.f32.mrb[0].mxu0
    %v426 = vadd.f32 0.0, %v425
    %v427 = vpop.f32.mrb[0].mxu0
    %v428 = vadd.f32 0.0, %v427
    %429 = vdwg.mxu0
    %v430 = vadd.f32 %v242, 1e-14
    %v431 = vadd.f32 %v248, 1e-14
    %v432 = vadd.f32 %v254, 1e-14
    %v433 = vadd.f32 %v260, 1e-14
    %v434 = vadd.f32 %v266, 1e-14
    %v435 = vadd.f32 %v272, 1e-14
    %v436 = vadd.f32 %v278, 1e-14
    %v437 = vadd.f32 %v284, 1e-14
    %v438 = vadd.f32 %v290, 1e-14
    %v439 = vadd.f32 %v296, 1e-14
    %v440 = vadd.f32 %v302, 1e-14
    %v441 = vadd.f32 %v308, 1e-14
    %v442 = vadd.f32 %v314, 1e-14
    %v443 = vadd.f32 %v320, 1e-14
    %v444 = vadd.f32 %v326, 1e-14
    %v445 = vadd.f32 %v332, 1e-14
    %v446 = vadd.f32 %v338, 1e-14
    %v447 = vadd.f32 %v344, 1e-14
    %v448 = vadd.f32 %v350, 1e-14
    %v449 = vadd.f32 %v356, 1e-14
    %v450 = vadd.f32 %v362, 1e-14
    %v451 = vadd.f32 %v368, 1e-14
    %v452 = vadd.f32 %v374, 1e-14
    %v453 = vadd.f32 %v380, 1e-14
    %v454 = vadd.f32 %v386, 1e-14
    %v455 = vadd.f32 %v392, 1e-14
    %v456 = vadd.f32 %v398, 1e-14
    %v457 = vadd.f32 %v404, 1e-14
    %v458 = vadd.f32 %v410, 1e-14
    %v459 = vadd.f32 %v416, 1e-14
    %v460 = vadd.f32 %v422, 1e-14
    %v461 = vadd.f32 %v428, 1e-14
    %v462 = vrsqrt.pop %v430
    %v463 = vmul.f32 %v430, %v462
    %vm464 = vcmp.eq.f32.partialorder %v430, inf
    %v465 = vsel %vm464, %v430, %v463
    %vm466 = vcmp.eq.f32.partialorder %v430, 0.0
    %v467 = vand.u32 %v430, 2147483648
    %v468 = vsel %vm466, %v467, %v465
    %v469 = vrsqrt.pop %v431
    %v470 = vmul.f32 %v431, %v469
    %vm471 = vcmp.eq.f32.partialorder %v431, inf
    %v472 = vsel %vm471, %v431, %v470
    %vm473 = vcmp.eq.f32.partialorder %v431, 0.0
    %v474 = vand.u32 %v431, 2147483648
    %v475 = vsel %vm473, %v474, %v472
    %v476 = vrsqrt.pop %v432
    %v477 = vmul.f32 %v432, %v476
    %vm478 = vcmp.eq.f32.partialorder %v432, inf
    %v479 = vsel %vm478, %v432, %v477
    %vm480 = vcmp.eq.f32.partialorder %v432, 0.0
    %v481 = vand.u32 %v432, 2147483648
    %v482 = vsel %vm480, %v481, %v479
    %v483 = vrsqrt.pop %v433
    %v484 = vmul.f32 %v433, %v483
    %vm485 = vcmp.eq.f32.partialorder %v433, inf
    %v486 = vsel %vm485, %v433, %v484
    %vm487 = vcmp.eq.f32.partialorder %v433, 0.0
    %v488 = vand.u32 %v433, 2147483648
    %v489 = vsel %vm487, %v488, %v486
    %v490 = vrsqrt.pop %v434
    %v491 = vmul.f32 %v434, %v490
    %vm492 = vcmp.eq.f32.partialorder %v434, inf
    %v493 = vsel %vm492, %v434, %v491
    %vm494 = vcmp.eq.f32.partialorder %v434, 0.0
    %v495 = vand.u32 %v434, 2147483648
    %v496 = vsel %vm494, %v495, %v493
    %v497 = vrsqrt.pop %v435
    %v498 = vmul.f32 %v435, %v497
    %vm499 = vcmp.eq.f32.partialorder %v435, inf
    %v500 = vsel %vm499, %v435, %v498
    %vm501 = vcmp.eq.f32.partialorder %v435, 0.0
    %v502 = vand.u32 %v435, 2147483648
    %v503 = vsel %vm501, %v502, %v500
    %v504 = vrsqrt.pop %v436
    %v505 = vmul.f32 %v436, %v504
    %vm506 = vcmp.eq.f32.partialorder %v436, inf
    %v507 = vsel %vm506, %v436, %v505
    %vm508 = vcmp.eq.f32.partialorder %v436, 0.0
    %v509 = vand.u32 %v436, 2147483648
    %v510 = vsel %vm508, %v509, %v507
    %v511 = vrsqrt.pop %v437
    %v512 = vmul.f32 %v437, %v511
    %vm513 = vcmp.eq.f32.partialorder %v437, inf
    %v514 = vsel %vm513, %v437, %v512
    %vm515 = vcmp.eq.f32.partialorder %v437, 0.0
    %v516 = vand.u32 %v437, 2147483648
    %v517 = vsel %vm515, %v516, %v514
    %v518 = vrsqrt.pop %v438
    %v519 = vmul.f32 %v438, %v518
    %vm520 = vcmp.eq.f32.partialorder %v438, inf
    %v521 = vsel %vm520, %v438, %v519
    %vm522 = vcmp.eq.f32.partialorder %v438, 0.0
    %v523 = vand.u32 %v438, 2147483648
    %v524 = vsel %vm522, %v523, %v521
    %v525 = vrsqrt.pop %v439
    %v526 = vmul.f32 %v439, %v525
    %vm527 = vcmp.eq.f32.partialorder %v439, inf
    %v528 = vsel %vm527, %v439, %v526
    %vm529 = vcmp.eq.f32.partialorder %v439, 0.0
    %v530 = vand.u32 %v439, 2147483648
    %v531 = vsel %vm529, %v530, %v528
    %v532 = vrsqrt.pop %v440
    %v533 = vmul.f32 %v440, %v532
    %vm534 = vcmp.eq.f32.partialorder %v440, inf
    %v535 = vsel %vm534, %v440, %v533
    %vm536 = vcmp.eq.f32.partialorder %v440, 0.0
    %v537 = vand.u32 %v440, 2147483648
    %v538 = vsel %vm536, %v537, %v535
    %v539 = vrsqrt.pop %v441
    %v540 = vmul.f32 %v441, %v539
    %vm541 = vcmp.eq.f32.partialorder %v441, inf
    %v542 = vsel %vm541, %v441, %v540
    %vm543 = vcmp.eq.f32.partialorder %v441, 0.0
    %v544 = vand.u32 %v441, 2147483648
    %v545 = vsel %vm543, %v544, %v542
    %v546 = vrsqrt.pop %v442
    %v547 = vmul.f32 %v442, %v546
    %vm548 = vcmp.eq.f32.partialorder %v442, inf
    %v549 = vsel %vm548, %v442, %v547
    %vm550 = vcmp.eq.f32.partialorder %v442, 0.0
    %v551 = vand.u32 %v442, 2147483648
    %v552 = vsel %vm550, %v551, %v549
    %v553 = vrsqrt.pop %v443
    %v554 = vmul.f32 %v443, %v553
    %vm555 = vcmp.eq.f32.partialorder %v443, inf
    %v556 = vsel %vm555, %v443, %v554
    %vm557 = vcmp.eq.f32.partialorder %v443, 0.0
    %v558 = vand.u32 %v443, 2147483648
    %v559 = vsel %vm557, %v558, %v556
    %v560 = vrsqrt.pop %v444
    %v561 = vmul.f32 %v444, %v560
    %vm562 = vcmp.eq.f32.partialorder %v444, inf
    %v563 = vsel %vm562, %v444, %v561
    %vm564 = vcmp.eq.f32.partialorder %v444, 0.0
    %v565 = vand.u32 %v444, 2147483648
    %v566 = vsel %vm564, %v565, %v563
    %v567 = vrsqrt.pop %v445
    %v568 = vmul.f32 %v445, %v567
    %vm569 = vcmp.eq.f32.partialorder %v445, inf
    %v570 = vsel %vm569, %v445, %v568
    %vm571 = vcmp.eq.f32.partialorder %v445, 0.0
    %v572 = vand.u32 %v445, 2147483648
    %v573 = vsel %vm571, %v572, %v570
    %v574 = vrsqrt.pop %v446
    %v575 = vmul.f32 %v446, %v574
    %vm576 = vcmp.eq.f32.partialorder %v446, inf
    %v577 = vsel %vm576, %v446, %v575
    %vm578 = vcmp.eq.f32.partialorder %v446, 0.0
    %v579 = vand.u32 %v446, 2147483648
    %v580 = vsel %vm578, %v579, %v577
    %v581 = vrsqrt.pop %v447
    %v582 = vmul.f32 %v447, %v581
    %vm583 = vcmp.eq.f32.partialorder %v447, inf
    %v584 = vsel %vm583, %v447, %v582
    %vm585 = vcmp.eq.f32.partialorder %v447, 0.0
    %v586 = vand.u32 %v447, 2147483648
    %v587 = vsel %vm585, %v586, %v584
    %v588 = vrsqrt.pop %v448
    %v589 = vmul.f32 %v448, %v588
    %vm590 = vcmp.eq.f32.partialorder %v448, inf
    %v591 = vsel %vm590, %v448, %v589
    %vm592 = vcmp.eq.f32.partialorder %v448, 0.0
    %v593 = vand.u32 %v448, 2147483648
    %v594 = vsel %vm592, %v593, %v591
    %v595 = vrsqrt.pop %v449
    %v596 = vmul.f32 %v449, %v595
    %vm597 = vcmp.eq.f32.partialorder %v449, inf
    %v598 = vsel %vm597, %v449, %v596
    %vm599 = vcmp.eq.f32.partialorder %v449, 0.0
    %v600 = vand.u32 %v449, 2147483648
    %v601 = vsel %vm599, %v600, %v598
    %v602 = vrsqrt.pop %v450
    %v603 = vmul.f32 %v450, %v602
    %vm604 = vcmp.eq.f32.partialorder %v450, inf
    %v605 = vsel %vm604, %v450, %v603
    %vm606 = vcmp.eq.f32.partialorder %v450, 0.0
    %v607 = vand.u32 %v450, 2147483648
    %v608 = vsel %vm606, %v607, %v605
    %v609 = vrsqrt.pop %v451
    %v610 = vmul.f32 %v451, %v609
    %vm611 = vcmp.eq.f32.partialorder %v451, inf
    %v612 = vsel %vm611, %v451, %v610
    %vm613 = vcmp.eq.f32.partialorder %v451, 0.0
    %v614 = vand.u32 %v451, 2147483648
    %v615 = vsel %vm613, %v614, %v612
    %v616 = vrsqrt.pop %v452
    %v617 = vmul.f32 %v452, %v616
    %vm618 = vcmp.eq.f32.partialorder %v452, inf
    %v619 = vsel %vm618, %v452, %v617
    %vm620 = vcmp.eq.f32.partialorder %v452, 0.0
    %v621 = vand.u32 %v452, 2147483648
    %v622 = vsel %vm620, %v621, %v619
    %v623 = vrsqrt.pop %v453
    %v624 = vmul.f32 %v453, %v623
    %vm625 = vcmp.eq.f32.partialorder %v453, inf
    %v626 = vsel %vm625, %v453, %v624
    %vm627 = vcmp.eq.f32.partialorder %v453, 0.0
    %v628 = vand.u32 %v453, 2147483648
    %v629 = vsel %vm627, %v628, %v626
    %v630 = vrsqrt.pop %v454
    %v631 = vmul.f32 %v454, %v630
    %vm632 = vcmp.eq.f32.partialorder %v454, inf
    %v633 = vsel %vm632, %v454, %v631
    %vm634 = vcmp.eq.f32.partialorder %v454, 0.0
    %v635 = vand.u32 %v454, 2147483648
    %v636 = vsel %vm634, %v635, %v633
    %v637 = vrsqrt.pop %v455
    %v638 = vmul.f32 %v455, %v637
    %vm639 = vcmp.eq.f32.partialorder %v455, inf
    %v640 = vsel %vm639, %v455, %v638
    %vm641 = vcmp.eq.f32.partialorder %v455, 0.0
    %v642 = vand.u32 %v455, 2147483648
    %v643 = vsel %vm641, %v642, %v640
    %v644 = vrsqrt.pop %v456
    %v645 = vmul.f32 %v456, %v644
    %vm646 = vcmp.eq.f32.partialorder %v456, inf
    %v647 = vsel %vm646, %v456, %v645
    %vm648 = vcmp.eq.f32.partialorder %v456, 0.0
    %v649 = vand.u32 %v456, 2147483648
    %v650 = vsel %vm648, %v649, %v647
    %v651 = vrsqrt.pop %v457
    %v652 = vmul.f32 %v457, %v651
    %vm653 = vcmp.eq.f32.partialorder %v457, inf
    %v654 = vsel %vm653, %v457, %v652
    %vm655 = vcmp.eq.f32.partialorder %v457, 0.0
    %v656 = vand.u32 %v457, 2147483648
    %v657 = vsel %vm655, %v656, %v654
    %v658 = vrsqrt.pop %v458
    %v659 = vmul.f32 %v458, %v658
    %vm660 = vcmp.eq.f32.partialorder %v458, inf
    %v661 = vsel %vm660, %v458, %v659
    %vm662 = vcmp.eq.f32.partialorder %v458, 0.0
    %v663 = vand.u32 %v458, 2147483648
    %v664 = vsel %vm662, %v663, %v661
    %v665 = vrsqrt.pop %v459
    %v666 = vmul.f32 %v459, %v665
    %vm667 = vcmp.eq.f32.partialorder %v459, inf
    %v668 = vsel %vm667, %v459, %v666
    %vm669 = vcmp.eq.f32.partialorder %v459, 0.0
    %v670 = vand.u32 %v459, 2147483648
    %v671 = vsel %vm669, %v670, %v668
    %v672 = vrsqrt.pop %v460
    %v673 = vmul.f32 %v460, %v672
    %vm674 = vcmp.eq.f32.partialorder %v460, inf
    %v675 = vsel %vm674, %v460, %v673
    %vm676 = vcmp.eq.f32.partialorder %v460, 0.0
    %v677 = vand.u32 %v460, 2147483648
    %v678 = vsel %vm676, %v677, %v675
    %v679 = vrsqrt.pop %v461
    %v680 = vmul.f32 %v461, %v679
    %vm681 = vcmp.eq.f32.partialorder %v461, inf
    %v682 = vsel %vm681, %v461, %v680
    %vm683 = vcmp.eq.f32.partialorder %v461, 0.0
    %v684 = vand.u32 %v461, 2147483648
    %v685 = vsel %vm683, %v684, %v682
    %s686 = sld [smem:[#allocation3]]
    %s687 = smul.u32 0, 16384
    %v688 = vlaneseq
    %v689 = vshrl.u32 %v688, 7
    %v690 = vadd.s32 %v689, 8
    %v691 = vadd.s32 %v689, 16
    %v692 = vadd.s32 %v689, 24
    %v693 = vadd.s32 %v689, 32
    %v694 = vadd.s32 %v689, 40
    %v695 = vadd.s32 %v689, 48
    %v696 = vadd.s32 %v689, 56
    %v697 = vadd.s32 %v689, 64
    %v698 = vadd.s32 %v689, 72
    %v699 = vadd.s32 %v689, 80
    %v700 = vadd.s32 %v689, 88
    %v701 = vadd.s32 %v689, 96
    %v702 = vadd.s32 %v689, 104
    %v703 = vadd.s32 %v689, 112
    %v704 = vadd.s32 %v689, 120
    %v705 = vlaneseq
    %v706 = vand.u32 %v705, 127
    %v707 = vmul.u32 %v689, 128
    %v708 = vmul.u32 %v690, 128
    %v709 = vmul.u32 %v691, 128
    %v710 = vmul.u32 %v692, 128
    %v711 = vmul.u32 %v693, 128
    %v712 = vmul.u32 %v694, 128
    %v713 = vmul.u32 %v695, 128
    %v714 = vmul.u32 %v696, 128
    %v715 = vmul.u32 %v697, 128
    %v716 = vmul.u32 %v698, 128
    %v717 = vmul.u32 %v699, 128
    %v718 = vmul.u32 %v700, 128
    %v719 = vmul.u32 %v701, 128
    %v720 = vmul.u32 %v702, 128
    %v721 = vmul.u32 %v703, 128
    %v722 = vmul.u32 %v704, 128
    %v723 = vstv %s687
    %v724 = vadd.s32 %v723, %v707
    %v725 = vadd.s32 %v723, %v708
    %v726 = vadd.s32 %v723, %v709
    %v727 = vadd.s32 %v723, %v710
    %v728 = vadd.s32 %v723, %v711
    %v729 = vadd.s32 %v723, %v712
    %v730 = vadd.s32 %v723, %v713
    %v731 = vadd.s32 %v723, %v714
    %v732 = vadd.s32 %v723, %v715
    %v733 = vadd.s32 %v723, %v716
    %v734 = vadd.s32 %v723, %v717
    %v735 = vadd.s32 %v723, %v718
    %v736 = vadd.s32 %v723, %v719
    %v737 = vadd.s32 %v723, %v720
    %v738 = vadd.s32 %v723, %v721
    %v739 = vadd.s32 %v723, %v722
    %v740 = vadd.s32 %v724, %v706
    %v741 = vadd.s32 %v725, %v706
    %v742 = vadd.s32 %v726, %v706
    %v743 = vadd.s32 %v727, %v706
    %v744 = vadd.s32 %v728, %v706
    %v745 = vadd.s32 %v729, %v706
    %v746 = vadd.s32 %v730, %v706
    %v747 = vadd.s32 %v731, %v706
    %v748 = vadd.s32 %v732, %v706
    %v749 = vadd.s32 %v733, %v706
    %v750 = vadd.s32 %v734, %v706
    %v751 = vadd.s32 %v735, %v706
    %v752 = vadd.s32 %v736, %v706
    %v753 = vadd.s32 %v737, %v706
    %v754 = vadd.s32 %v738, %v706
    %v755 = vadd.s32 %v739, %v706
    %v756 = vmul.u32 %v740, 2
    %v757 = vmul.u32 %v741, 2
    %v758 = vmul.u32 %v742, 2
    %v759 = vmul.u32 %v743, 2
    %v760 = vmul.u32 %v744, 2
    %v761 = vmul.u32 %v745, 2
    %v762 = vmul.u32 %v746, 2
    %v763 = vmul.u32 %v747, 2
    %v764 = vmul.u32 %v748, 2
    %v765 = vmul.u32 %v749, 2
    %v766 = vmul.u32 %v750, 2
    %v767 = vmul.u32 %v751, 2
    %v768 = vmul.u32 %v752, 2
    %v769 = vmul.u32 %v753, 2
    %v770 = vmul.u32 %v754, 2
    %v771 = vmul.u32 %v755, 2
    %v772 = vadd.s32 %v756, 1
    %v773 = vadd.s32 %v757, 1
    %v774 = vadd.s32 %v758, 1
    %v775 = vadd.s32 %v759, 1
    %v776 = vadd.s32 %v760, 1
    %v777 = vadd.s32 %v761, 1
    %v778 = vadd.s32 %v762, 1
    %v779 = vadd.s32 %v763, 1
    %v780 = vadd.s32 %v764, 1
    %v781 = vadd.s32 %v765, 1
    %v782 = vadd.s32 %v766, 1
    %v783 = vadd.s32 %v767, 1
    %v784 = vadd.s32 %v768, 1
    %v785 = vadd.s32 %v769, 1
    %v786 = vadd.s32 %v770, 1
    %v787 = vadd.s32 %v771, 1
    %v788 = vstv %s686
    %v789 = vxor.u32 %v756, %v788
    %v790 = vxor.u32 %v757, %v788
    %v791 = vxor.u32 %v758, %v788
    %v792 = vxor.u32 %v759, %v788
    %v793 = vxor.u32 %v760, %v788
    %v794 = vxor.u32 %v761, %v788
    %v795 = vxor.u32 %v762, %v788
    %v796 = vxor.u32 %v763, %v788
    %v797 = vxor.u32 %v764, %v788
    %v798 = vxor.u32 %v765, %v788
    %v799 = vxor.u32 %v766, %v788
    %v800 = vxor.u32 %v767, %v788
    %v801 = vxor.u32 %v768, %v788
    %v802 = vxor.u32 %v769, %v788
    %v803 = vxor.u32 %v770, %v788
    %v804 = vxor.u32 %v771, %v788
    %v805 = vxor.u32 %v772, %v788
    %v806 = vxor.u32 %v773, %v788
    %v807 = vxor.u32 %v774, %v788
    %v808 = vxor.u32 %v775, %v788
    %v809 = vxor.u32 %v776, %v788
    %v810 = vxor.u32 %v777, %v788
    %v811 = vxor.u32 %v778, %v788
    %v812 = vxor.u32 %v779, %v788
    %v813 = vxor.u32 %v780, %v788
    %v814 = vxor.u32 %v781, %v788
    %v815 = vxor.u32 %v782, %v788
    %v816 = vxor.u32 %v783, %v788
    %v817 = vxor.u32 %v784, %v788
    %v818 = vxor.u32 %v785, %v788
    %v819 = vxor.u32 %v786, %v788
    %v820 = vxor.u32 %v787, %v788
    %v821 = vshrl.u32 %v789, 16
    %v822 = vshrl.u32 %v790, 16
    %v823 = vshrl.u32 %v791, 16
    %v824 = vshrl.u32 %v792, 16
    %v825 = vshrl.u32 %v793, 16
    %v826 = vshrl.u32 %v794, 16
    %v827 = vshrl.u32 %v795, 16
    %v828 = vshrl.u32 %v796, 16
    %v829 = vshrl.u32 %v797, 16
    %v830 = vshrl.u32 %v798, 16
    %v831 = vshrl.u32 %v799, 16
    %v832 = vshrl.u32 %v800, 16
    %v833 = vshrl.u32 %v801, 16
    %v834 = vshrl.u32 %v802, 16
    %v835 = vshrl.u32 %v803, 16
    %v836 = vshrl.u32 %v804, 16
    %v837 = vshrl.u32 %v805, 16
    %v838 = vshrl.u32 %v806, 16
    %v839 = vshrl.u32 %v807, 16
    %v840 = vshrl.u32 %v808, 16
    %v841 = vshrl.u32 %v809, 16
    %v842 = vshrl.u32 %v810, 16
    %v843 = vshrl.u32 %v811, 16
    %v844 = vshrl.u32 %v812, 16
    %v845 = vshrl.u32 %v813, 16
    %v846 = vshrl.u32 %v814, 16
    %v847 = vshrl.u32 %v815, 16
    %v848 = vshrl.u32 %v816, 16
    %v849 = vshrl.u32 %v817, 16
    %v850 = vshrl.u32 %v818, 16
    %v851 = vshrl.u32 %v819, 16
    %v852 = vshrl.u32 %v820, 16
    %v853 = vxor.u32 %v789, %v821
    %v854 = vxor.u32 %v790, %v822
    %v855 = vxor.u32 %v791, %v823
    %v856 = vxor.u32 %v792, %v824
    %v857 = vxor.u32 %v793, %v825
    %v858 = vxor.u32 %v794, %v826
    %v859 = vxor.u32 %v795, %v827
    %v860 = vxor.u32 %v796, %v828
    %v861 = vxor.u32 %v797, %v829
    %v862 = vxor.u32 %v798, %v830
    %v863 = vxor.u32 %v799, %v831
    %v864 = vxor.u32 %v800, %v832
    %v865 = vxor.u32 %v801, %v833
    %v866 = vxor.u32 %v802, %v834
    %v867 = vxor.u32 %v803, %v835
    %v868 = vxor.u32 %v804, %v836
    %v869 = vxor.u32 %v805, %v837
    %v870 = vxor.u32 %v806, %v838
    %v871 = vxor.u32 %v807, %v839
    %v872 = vxor.u32 %v808, %v840
    %v873 = vxor.u32 %v809, %v841
    %v874 = vxor.u32 %v810, %v842
    %v875 = vxor.u32 %v811, %v843
    %v876 = vxor.u32 %v812, %v844
    %v877 = vxor.u32 %v813, %v845
    %v878 = vxor.u32 %v814, %v846
    %v879 = vxor.u32 %v815, %v847
    %v880 = vxor.u32 %v816, %v848
    %v881 = vxor.u32 %v817, %v849
    %v882 = vxor.u32 %v818, %v850
    %v883 = vxor.u32 %v819, %v851
    %v884 = vxor.u32 %v820, %v852
    %v885 = vmul.u32 %v853, 2246822507
    %v886 = vmul.u32 %v854, 2246822507
    %v887 = vmul.u32 %v855, 2246822507
    %v888 = vmul.u32 %v856, 2246822507
    %v889 = vmul.u32 %v857, 2246822507
    %v890 = vmul.u32 %v858, 2246822507
    %v891 = vmul.u32 %v859, 2246822507
    %v892 = vmul.u32 %v860, 2246822507
    %v893 = vmul.u32 %v861, 2246822507
    %v894 = vmul.u32 %v862, 2246822507
    %v895 = vmul.u32 %v863, 2246822507
    %v896 = vmul.u32 %v864, 2246822507
    %v897 = vmul.u32 %v865, 2246822507
    %v898 = vmul.u32 %v866, 2246822507
    %v899 = vmul.u32 %v867, 2246822507
    %v900 = vmul.u32 %v868, 2246822507
    %v901 = vmul.u32 %v869, 2246822507
    %v902 = vmul.u32 %v870, 2246822507
    %v903 = vmul.u32 %v871, 2246822507
    %v904 = vmul.u32 %v872, 2246822507
    %v905 = vmul.u32 %v873, 2246822507
    %v906 = vmul.u32 %v874, 2246822507
    %v907 = vmul.u32 %v875, 2246822507
    %v908 = vmul.u32 %v876, 2246822507
    %v909 = vmul.u32 %v877, 2246822507
    %v910 = vmul.u32 %v878, 2246822507
    %v911 = vmul.u32 %v879, 2246822507
    %v912 = vmul.u32 %v880, 2246822507
    %v913 = vmul.u32 %v881, 2246822507
    %v914 = vmul.u32 %v882, 2246822507
    %v915 = vmul.u32 %v883, 2246822507
    %v916 = vmul.u32 %v884, 2246822507
    %v917 = vshrl.u32 %v885, 13
    %v918 = vshrl.u32 %v886, 13
    %v919 = vshrl.u32 %v887, 13
    %v920 = vshrl.u32 %v888, 13
    %v921 = vshrl.u32 %v889, 13
    %v922 = vshrl.u32 %v890, 13
    %v923 = vshrl.u32 %v891, 13
    %v924 = vshrl.u32 %v892, 13
    %v925 = vshrl.u32 %v893, 13
    %v926 = vshrl.u32 %v894, 13
    %v927 = vshrl.u32 %v895, 13
    %v928 = vshrl.u32 %v896, 13
    %v929 = vshrl.u32 %v897, 13
    %v930 = vshrl.u32 %v898, 13
    %v931 = vshrl.u32 %v899, 13
    %v932 = vshrl.u32 %v900, 13
    %v933 = vshrl.u32 %v901, 13
    %v934 = vshrl.u32 %v902, 13
    %v935 = vshrl.u32 %v903, 13
    %v936 = vshrl.u32 %v904, 13
    %v937 = vshrl.u32 %v905, 13
    %v938 = vshrl.u32 %v906, 13
    %v939 = vshrl.u32 %v907, 13
    %v940 = vshrl.u32 %v908, 13
    %v941 = vshrl.u32 %v909, 13
    %v942 = vshrl.u32 %v910, 13
    %v943 = vshrl.u32 %v911, 13
    %v944 = vshrl.u32 %v912, 13
    %v945 = vshrl.u32 %v913, 13
    %v946 = vshrl.u32 %v914, 13
    %v947 = vshrl.u32 %v915, 13
    %v948 = vshrl.u32 %v916, 13
    %v949 = vxor.u32 %v885, %v917
    %v950 = vxor.u32 %v886, %v918
    %v951 = vxor.u32 %v887, %v919
    %v952 = vxor.u32 %v888, %v920
    %v953 = vxor.u32 %v889, %v921
    %v954 = vxor.u32 %v890, %v922
    %v955 = vxor.u32 %v891, %v923
    %v956 = vxor.u32 %v892, %v924
    %v957 = vxor.u32 %v893, %v925
    %v958 = vxor.u32 %v894, %v926
    %v959 = vxor.u32 %v895, %v927
    %v960 = vxor.u32 %v896, %v928
    %v961 = vxor.u32 %v897, %v929
    %v962 = vxor.u32 %v898, %v930
    %v963 = vxor.u32 %v899, %v931
    %v964 = vxor.u32 %v900, %v932
    %v965 = vxor.u32 %v901, %v933
    %v966 = vxor.u32 %v902, %v934
    %v967 = vxor.u32 %v903, %v935
    %v968 = vxor.u32 %v904, %v936
    %v969 = vxor.u32 %v905, %v937
    %v970 = vxor.u32 %v906, %v938
    %v971 = vxor.u32 %v907, %v939
    %v972 = vxor.u32 %v908, %v940
    %v973 = vxor.u32 %v909, %v941
    %v974 = vxor.u32 %v910, %v942
    %v975 = vxor.u32 %v911, %v943
    %v976 = vxor.u32 %v912, %v944
    %v977 = vxor.u32 %v913, %v945
    %v978 = vxor.u32 %v914, %v946
    %v979 = vxor.u32 %v915, %v947
    %v980 = vxor.u32 %v916, %v948
    %v981 = vmul.u32 %v949, 3266489909
    %v982 = vmul.u32 %v950, 3266489909
    %v983 = vmul.u32 %v951, 3266489909
    %v984 = vmul.u32 %v952, 3266489909
    %v985 = vmul.u32 %v953, 3266489909
    %v986 = vmul.u32 %v954, 3266489909
    %v987 = vmul.u32 %v955, 3266489909
    %v988 = vmul.u32 %v956, 3266489909
    %v989 = vmul.u32 %v957, 3266489909
    %v990 = vmul.u32 %v958, 3266489909
    %v991 = vmul.u32 %v959, 3266489909
    %v992 = vmul.u32 %v960, 3266489909
    %v993 = vmul.u32 %v961, 3266489909
    %v994 = vmul.u32 %v962, 3266489909
    %v995 = vmul.u32 %v963, 3266489909
    %v996 = vmul.u32 %v964, 3266489909
    %v997 = vmul.u32 %v965, 3266489909
    %v998 = vmul.u32 %v966, 3266489909
    %v999 = vmul.u32 %v967, 3266489909
    %v1000 = vmul.u32 %v968, 3266489909
    %v1001 = vmul.u32 %v969, 3266489909
    %v1002 = vmul.u32 %v970, 3266489909
    %v1003 = vmul.u32 %v971, 3266489909
    %v1004 = vmul.u32 %v972, 3266489909
    %v1005 = vmul.u32 %v973, 3266489909
    %v1006 = vmul.u32 %v974, 3266489909
    %v1007 = vmul.u32 %v975, 3266489909
    %v1008 = vmul.u32 %v976, 3266489909
    %v1009 = vmul.u32 %v977, 3266489909
    %v1010 = vmul.u32 %v978, 3266489909
    %v1011 = vmul.u32 %v979, 3266489909
    %v1012 = vmul.u32 %v980, 3266489909
    %v1013 = vshrl.u32 %v981, 16
    %v1014 = vshrl.u32 %v982, 16
    %v1015 = vshrl.u32 %v983, 16
    %v1016 = vshrl.u32 %v984, 16
    %v1017 = vshrl.u32 %v985, 16
    %v1018 = vshrl.u32 %v986, 16
    %v1019 = vshrl.u32 %v987, 16
    %v1020 = vshrl.u32 %v988, 16
    %v1021 = vshrl.u32 %v989, 16
    %v1022 = vshrl.u32 %v990, 16
    %v1023 = vshrl.u32 %v991, 16
    %v1024 = vshrl.u32 %v992, 16
    %v1025 = vshrl.u32 %v993, 16
    %v1026 = vshrl.u32 %v994, 16
    %v1027 = vshrl.u32 %v995, 16
    %v1028 = vshrl.u32 %v996, 16
    %v1029 = vshrl.u32 %v997, 16
    %v1030 = vshrl.u32 %v998, 16
    %v1031 = vshrl.u32 %v999, 16
    %v1032 = vshrl.u32 %v1000, 16
    %v1033 = vshrl.u32 %v1001, 16
    %v1034 = vshrl.u32 %v1002, 16
    %v1035 = vshrl.u32 %v1003, 16
    %v1036 = vshrl.u32 %v1004, 16
    %v1037 = vshrl.u32 %v1005, 16
    %v1038 = vshrl.u32 %v1006, 16
    %v1039 = vshrl.u32 %v1007, 16
    %v1040 = vshrl.u32 %v1008, 16
    %v1041 = vshrl.u32 %v1009, 16
    %v1042 = vshrl.u32 %v1010, 16
    %v1043 = vshrl.u32 %v1011, 16
    %v1044 = vshrl.u32 %v1012, 16
    %v1045 = vxor.u32 %v981, %v1013
    %v1046 = vxor.u32 %v982, %v1014
    %v1047 = vxor.u32 %v983, %v1015
    %v1048 = vxor.u32 %v984, %v1016
    %v1049 = vxor.u32 %v985, %v1017
    %v1050 = vxor.u32 %v986, %v1018
    %v1051 = vxor.u32 %v987, %v1019
    %v1052 = vxor.u32 %v988, %v1020
    %v1053 = vxor.u32 %v989, %v1021
    %v1054 = vxor.u32 %v990, %v1022
    %v1055 = vxor.u32 %v991, %v1023
    %v1056 = vxor.u32 %v992, %v1024
    %v1057 = vxor.u32 %v993, %v1025
    %v1058 = vxor.u32 %v994, %v1026
    %v1059 = vxor.u32 %v995, %v1027
    %v1060 = vxor.u32 %v996, %v1028
    %v1061 = vxor.u32 %v997, %v1029
    %v1062 = vxor.u32 %v998, %v1030
    %v1063 = vxor.u32 %v999, %v1031
    %v1064 = vxor.u32 %v1000, %v1032
    %v1065 = vxor.u32 %v1001, %v1033
    %v1066 = vxor.u32 %v1002, %v1034
    %v1067 = vxor.u32 %v1003, %v1035
    %v1068 = vxor.u32 %v1004, %v1036
    %v1069 = vxor.u32 %v1005, %v1037
    %v1070 = vxor.u32 %v1006, %v1038
    %v1071 = vxor.u32 %v1007, %v1039
    %v1072 = vxor.u32 %v1008, %v1040
    %v1073 = vxor.u32 %v1009, %v1041
    %v1074 = vxor.u32 %v1010, %v1042
    %v1075 = vxor.u32 %v1011, %v1043
    %v1076 = vxor.u32 %v1012, %v1044
    %v1077 = vand.u32 %v1045, 16777215
    %v1078 = vand.u32 %v1046, 16777215
    %v1079 = vand.u32 %v1047, 16777215
    %v1080 = vand.u32 %v1048, 16777215
    %v1081 = vand.u32 %v1049, 16777215
    %v1082 = vand.u32 %v1050, 16777215
    %v1083 = vand.u32 %v1051, 16777215
    %v1084 = vand.u32 %v1052, 16777215
    %v1085 = vand.u32 %v1053, 16777215
    %v1086 = vand.u32 %v1054, 16777215
    %v1087 = vand.u32 %v1055, 16777215
    %v1088 = vand.u32 %v1056, 16777215
    %v1089 = vand.u32 %v1057, 16777215
    %v1090 = vand.u32 %v1058, 16777215
    %v1091 = vand.u32 %v1059, 16777215
    %v1092 = vand.u32 %v1060, 16777215
    %v1093 = vand.u32 %v1061, 16777215
    %v1094 = vand.u32 %v1062, 16777215
    %v1095 = vand.u32 %v1063, 16777215
    %v1096 = vand.u32 %v1064, 16777215
    %v1097 = vand.u32 %v1065, 16777215
    %v1098 = vand.u32 %v1066, 16777215
    %v1099 = vand.u32 %v1067, 16777215
    %v1100 = vand.u32 %v1068, 16777215
    %v1101 = vand.u32 %v1069, 16777215
    %v1102 = vand.u32 %v1070, 16777215
    %v1103 = vand.u32 %v1071, 16777215
    %v1104 = vand.u32 %v1072, 16777215
    %v1105 = vand.u32 %v1073, 16777215
    %v1106 = vand.u32 %v1074, 16777215
    %v1107 = vand.u32 %v1075, 16777215
    %v1108 = vand.u32 %v1076, 16777215
    %v1109 = vcvt.s32.f32 %v1077
    %v1110 = vcvt.s32.f32 %v1078
    %v1111 = vcvt.s32.f32 %v1079
    %v1112 = vcvt.s32.f32 %v1080
    %v1113 = vcvt.s32.f32 %v1081
    %v1114 = vcvt.s32.f32 %v1082
    %v1115 = vcvt.s32.f32 %v1083
    %v1116 = vcvt.s32.f32 %v1084
    %v1117 = vcvt.s32.f32 %v1085
    %v1118 = vcvt.s32.f32 %v1086
    %v1119 = vcvt.s32.f32 %v1087
    %v1120 = vcvt.s32.f32 %v1088
    %v1121 = vcvt.s32.f32 %v1089
    %v1122 = vcvt.s32.f32 %v1090
    %v1123 = vcvt.s32.f32 %v1091
    %v1124 = vcvt.s32.f32 %v1092
    %v1125 = vcvt.s32.f32 %v1093
    %v1126 = vcvt.s32.f32 %v1094
    %v1127 = vcvt.s32.f32 %v1095
    %v1128 = vcvt.s32.f32 %v1096
    %v1129 = vcvt.s32.f32 %v1097
    %v1130 = vcvt.s32.f32 %v1098
    %v1131 = vcvt.s32.f32 %v1099
    %v1132 = vcvt.s32.f32 %v1100
    %v1133 = vcvt.s32.f32 %v1101
    %v1134 = vcvt.s32.f32 %v1102
    %v1135 = vcvt.s32.f32 %v1103
    %v1136 = vcvt.s32.f32 %v1104
    %v1137 = vcvt.s32.f32 %v1105
    %v1138 = vcvt.s32.f32 %v1106
    %v1139 = vcvt.s32.f32 %v1107
    %v1140 = vcvt.s32.f32 %v1108
    %v1141 = vadd.f32 %v1109, 1.0
    %v1142 = vadd.f32 %v1110, 1.0
    %v1143 = vadd.f32 %v1111, 1.0
    %v1144 = vadd.f32 %v1112, 1.0
    %v1145 = vadd.f32 %v1113, 1.0
    %v1146 = vadd.f32 %v1114, 1.0
    %v1147 = vadd.f32 %v1115, 1.0
    %v1148 = vadd.f32 %v1116, 1.0
    %v1149 = vadd.f32 %v1117, 1.0
    %v1150 = vadd.f32 %v1118, 1.0
    %v1151 = vadd.f32 %v1119, 1.0
    %v1152 = vadd.f32 %v1120, 1.0
    %v1153 = vadd.f32 %v1121, 1.0
    %v1154 = vadd.f32 %v1122, 1.0
    %v1155 = vadd.f32 %v1123, 1.0
    %v1156 = vadd.f32 %v1124, 1.0
    %v1157 = vmul.f32 %v1141, 5.9604645e-08
    %v1158 = vmul.f32 %v1142, 5.9604645e-08
    %v1159 = vmul.f32 %v1143, 5.9604645e-08
    %v1160 = vmul.f32 %v1144, 5.9604645e-08
    %v1161 = vmul.f32 %v1145, 5.9604645e-08
    %v1162 = vmul.f32 %v1146, 5.9604645e-08
    %v1163 = vmul.f32 %v1147, 5.9604645e-08
    %v1164 = vmul.f32 %v1148, 5.9604645e-08
    %v1165 = vmul.f32 %v1149, 5.9604645e-08
    %v1166 = vmul.f32 %v1150, 5.9604645e-08
    %v1167 = vmul.f32 %v1151, 5.9604645e-08
    %v1168 = vmul.f32 %v1152, 5.9604645e-08
    %v1169 = vmul.f32 %v1153, 5.9604645e-08
    %v1170 = vmul.f32 %v1154, 5.9604645e-08
    %v1171 = vmul.f32 %v1155, 5.9604645e-08
    %v1172 = vmul.f32 %v1156, 5.9604645e-08
    %v1173 = vmul.f32 %v1125, 5.9604645e-08
    %v1174 = vmul.f32 %v1126, 5.9604645e-08
    %v1175 = vmul.f32 %v1127, 5.9604645e-08
    %v1176 = vmul.f32 %v1128, 5.9604645e-08
    %v1177 = vmul.f32 %v1129, 5.9604645e-08
    %v1178 = vmul.f32 %v1130, 5.9604645e-08
    %v1179 = vmul.f32 %v1131, 5.9604645e-08
    %v1180 = vmul.f32 %v1132, 5.9604645e-08
    %v1181 = vmul.f32 %v1133, 5.9604645e-08
    %v1182 = vmul.f32 %v1134, 5.9604645e-08
    %v1183 = vmul.f32 %v1135, 5.9604645e-08
    %v1184 = vmul.f32 %v1136, 5.9604645e-08
    %v1185 = vmul.f32 %v1137, 5.9604645e-08
    %v1186 = vmul.f32 %v1138, 5.9604645e-08
    %v1187 = vmul.f32 %v1139, 5.9604645e-08
    %v1188 = vmul.f32 %v1140, 5.9604645e-08
    %v1189 = vlog2.pop %v1157
    %v1190 = vmul.f32 %v1189, 0.6931472
    %v1191 = vlog2.pop %v1158
    %v1192 = vmul.f32 %v1191, 0.6931472
    %v1193 = vlog2.pop %v1159
    %v1194 = vmul.f32 %v1193, 0.6931472
    %v1195 = vlog2.pop %v1160
    %v1196 = vmul.f32 %v1195, 0.6931472
    %v1197 = vlog2.pop %v1161
    %v1198 = vmul.f32 %v1197, 0.6931472
    %v1199 = vlog2.pop %v1162
    %v1200 = vmul.f32 %v1199, 0.6931472
    %v1201 = vlog2.pop %v1163
    %v1202 = vmul.f32 %v1201, 0.6931472
    %v1203 = vlog2.pop %v1164
    %v1204 = vmul.f32 %v1203, 0.6931472
    %v1205 = vlog2.pop %v1165
    %v1206 = vmul.f32 %v1205, 0.6931472
    %v1207 = vlog2.pop %v1166
    %v1208 = vmul.f32 %v1207, 0.6931472
    %v1209 = vlog2.pop %v1167
    %v1210 = vmul.f32 %v1209, 0.6931472
    %v1211 = vlog2.pop %v1168
    %v1212 = vmul.f32 %v1211, 0.6931472
    %v1213 = vlog2.pop %v1169
    %v1214 = vmul.f32 %v1213, 0.6931472
    %v1215 = vlog2.pop %v1170
    %v1216 = vmul.f32 %v1215, 0.6931472
    %v1217 = vlog2.pop %v1171
    %v1218 = vmul.f32 %v1217, 0.6931472
    %v1219 = vlog2.pop %v1172
    %v1220 = vmul.f32 %v1219, 0.6931472
    %v1221 = vmul.f32 %v1190, -2.0
    %v1222 = vmul.f32 %v1192, -2.0
    %v1223 = vmul.f32 %v1194, -2.0
    %v1224 = vmul.f32 %v1196, -2.0
    %v1225 = vmul.f32 %v1198, -2.0
    %v1226 = vmul.f32 %v1200, -2.0
    %v1227 = vmul.f32 %v1202, -2.0
    %v1228 = vmul.f32 %v1204, -2.0
    %v1229 = vmul.f32 %v1206, -2.0
    %v1230 = vmul.f32 %v1208, -2.0
    %v1231 = vmul.f32 %v1210, -2.0
    %v1232 = vmul.f32 %v1212, -2.0
    %v1233 = vmul.f32 %v1214, -2.0
    %v1234 = vmul.f32 %v1216, -2.0
    %v1235 = vmul.f32 %v1218, -2.0
    %v1236 = vmul.f32 %v1220, -2.0
    %v1237 = vrsqrt.pop %v1221
    %v1238 = vmul.f32 %v1221, %v1237
    %vm1239 = vcmp.eq.f32.partialorder %v1221, inf
    %v1240 = vsel %vm1239, %v1221, %v1238
    %vm1241 = vcmp.eq.f32.partialorder %v1221, 0.0
    %v1242 = vand.u32 %v1221, 2147483648
    %v1243 = vsel %vm1241, %v1242, %v1240
    %v1244 = vrsqrt.pop %v1222
    %v1245 = vmul.f32 %v1222, %v1244
    %vm1246 = vcmp.eq.f32.partialorder %v1222, inf
    %v1247 = vsel %vm1246, %v1222, %v1245
    %vm1248 = vcmp.eq.f32.partialorder %v1222, 0.0
    %v1249 = vand.u32 %v1222, 2147483648
    %v1250 = vsel %vm1248, %v1249, %v1247
    %v1251 = vrsqrt.pop %v1223
    %v1252 = vmul.f32 %v1223, %v1251
    %vm1253 = vcmp.eq.f32.partialorder %v1223, inf
    %v1254 = vsel %vm1253, %v1223, %v1252
    %vm1255 = vcmp.eq.f32.partialorder %v1223, 0.0
    %v1256 = vand.u32 %v1223, 2147483648
    %v1257 = vsel %vm1255, %v1256, %v1254
    %v1258 = vrsqrt.pop %v1224
    %v1259 = vmul.f32 %v1224, %v1258
    %vm1260 = vcmp.eq.f32.partialorder %v1224, inf
    %v1261 = vsel %vm1260, %v1224, %v1259
    %vm1262 = vcmp.eq.f32.partialorder %v1224, 0.0
    %v1263 = vand.u32 %v1224, 2147483648
    %v1264 = vsel %vm1262, %v1263, %v1261
    %v1265 = vrsqrt.pop %v1225
    %v1266 = vmul.f32 %v1225, %v1265
    %vm1267 = vcmp.eq.f32.partialorder %v1225, inf
    %v1268 = vsel %vm1267, %v1225, %v1266
    %vm1269 = vcmp.eq.f32.partialorder %v1225, 0.0
    %v1270 = vand.u32 %v1225, 2147483648
    %v1271 = vsel %vm1269, %v1270, %v1268
    %v1272 = vrsqrt.pop %v1226
    %v1273 = vmul.f32 %v1226, %v1272
    %vm1274 = vcmp.eq.f32.partialorder %v1226, inf
    %v1275 = vsel %vm1274, %v1226, %v1273
    %vm1276 = vcmp.eq.f32.partialorder %v1226, 0.0
    %v1277 = vand.u32 %v1226, 2147483648
    %v1278 = vsel %vm1276, %v1277, %v1275
    %v1279 = vrsqrt.pop %v1227
    %v1280 = vmul.f32 %v1227, %v1279
    %vm1281 = vcmp.eq.f32.partialorder %v1227, inf
    %v1282 = vsel %vm1281, %v1227, %v1280
    %vm1283 = vcmp.eq.f32.partialorder %v1227, 0.0
    %v1284 = vand.u32 %v1227, 2147483648
    %v1285 = vsel %vm1283, %v1284, %v1282
    %v1286 = vrsqrt.pop %v1228
    %v1287 = vmul.f32 %v1228, %v1286
    %vm1288 = vcmp.eq.f32.partialorder %v1228, inf
    %v1289 = vsel %vm1288, %v1228, %v1287
    %vm1290 = vcmp.eq.f32.partialorder %v1228, 0.0
    %v1291 = vand.u32 %v1228, 2147483648
    %v1292 = vsel %vm1290, %v1291, %v1289
    %v1293 = vrsqrt.pop %v1229
    %v1294 = vmul.f32 %v1229, %v1293
    %vm1295 = vcmp.eq.f32.partialorder %v1229, inf
    %v1296 = vsel %vm1295, %v1229, %v1294
    %vm1297 = vcmp.eq.f32.partialorder %v1229, 0.0
    %v1298 = vand.u32 %v1229, 2147483648
    %v1299 = vsel %vm1297, %v1298, %v1296
    %v1300 = vrsqrt.pop %v1230
    %v1301 = vmul.f32 %v1230, %v1300
    %vm1302 = vcmp.eq.f32.partialorder %v1230, inf
    %v1303 = vsel %vm1302, %v1230, %v1301
    %vm1304 = vcmp.eq.f32.partialorder %v1230, 0.0
    %v1305 = vand.u32 %v1230, 2147483648
    %v1306 = vsel %vm1304, %v1305, %v1303
    %v1307 = vrsqrt.pop %v1231
    %v1308 = vmul.f32 %v1231, %v1307
    %vm1309 = vcmp.eq.f32.partialorder %v1231, inf
    %v1310 = vsel %vm1309, %v1231, %v1308
    %vm1311 = vcmp.eq.f32.partialorder %v1231, 0.0
    %v1312 = vand.u32 %v1231, 2147483648
    %v1313 = vsel %vm1311, %v1312, %v1310
    %v1314 = vrsqrt.pop %v1232
    %v1315 = vmul.f32 %v1232, %v1314
    %vm1316 = vcmp.eq.f32.partialorder %v1232, inf
    %v1317 = vsel %vm1316, %v1232, %v1315
    %vm1318 = vcmp.eq.f32.partialorder %v1232, 0.0
    %v1319 = vand.u32 %v1232, 2147483648
    %v1320 = vsel %vm1318, %v1319, %v1317
    %v1321 = vrsqrt.pop %v1233
    %v1322 = vmul.f32 %v1233, %v1321
    %vm1323 = vcmp.eq.f32.partialorder %v1233, inf
    %v1324 = vsel %vm1323, %v1233, %v1322
    %vm1325 = vcmp.eq.f32.partialorder %v1233, 0.0
    %v1326 = vand.u32 %v1233, 2147483648
    %v1327 = vsel %vm1325, %v1326, %v1324
    %v1328 = vrsqrt.pop %v1234
    %v1329 = vmul.f32 %v1234, %v1328
    %vm1330 = vcmp.eq.f32.partialorder %v1234, inf
    %v1331 = vsel %vm1330, %v1234, %v1329
    %vm1332 = vcmp.eq.f32.partialorder %v1234, 0.0
    %v1333 = vand.u32 %v1234, 2147483648
    %v1334 = vsel %vm1332, %v1333, %v1331
    %v1335 = vrsqrt.pop %v1235
    %v1336 = vmul.f32 %v1235, %v1335
    %vm1337 = vcmp.eq.f32.partialorder %v1235, inf
    %v1338 = vsel %vm1337, %v1235, %v1336
    %vm1339 = vcmp.eq.f32.partialorder %v1235, 0.0
    %v1340 = vand.u32 %v1235, 2147483648
    %v1341 = vsel %vm1339, %v1340, %v1338
    %v1342 = vrsqrt.pop %v1236
    %v1343 = vmul.f32 %v1236, %v1342
    %vm1344 = vcmp.eq.f32.partialorder %v1236, inf
    %v1345 = vsel %vm1344, %v1236, %v1343
    %vm1346 = vcmp.eq.f32.partialorder %v1236, 0.0
    %v1347 = vand.u32 %v1236, 2147483648
    %v1348 = vsel %vm1346, %v1347, %v1345
    %v1349 = vmul.f32 %v1173, 6.2831855
    %v1350 = vmul.f32 %v1174, 6.2831855
    %v1351 = vmul.f32 %v1175, 6.2831855
    %v1352 = vmul.f32 %v1176, 6.2831855
    %v1353 = vmul.f32 %v1177, 6.2831855
    %v1354 = vmul.f32 %v1178, 6.2831855
    %v1355 = vmul.f32 %v1179, 6.2831855
    %v1356 = vmul.f32 %v1180, 6.2831855
    %v1357 = vmul.f32 %v1181, 6.2831855
    %v1358 = vmul.f32 %v1182, 6.2831855
    %v1359 = vmul.f32 %v1183, 6.2831855
    %v1360 = vmul.f32 %v1184, 6.2831855
    %v1361 = vmul.f32 %v1185, 6.2831855
    %v1362 = vmul.f32 %v1186, 6.2831855
    %v1363 = vmul.f32 %v1187, 6.2831855
    %v1364 = vmul.f32 %v1188, 6.2831855
    %v1365 = vand.u32 2147483647, %v1349
    %vm1366 = vcmp.le.f32.partialorder %v1365, 0.7853982
    %vm1367 = vcmp.lt.s32.totalorder %v1349, 0
    %v1368 = vand.u32 %v1349, 2139095040
    %v1369 = vshrl.u32 %v1368, 23
    %v1370 = vsub.s32 %v1369, 127
    %v1371 = vand.u32 2147483647, %v1349
    %v1372 = vand.u32 %v1371, 8388607
    %v1373 = vor.u32 %v1372, 8388608
    %v1374 = vsub.s32 0, %v1373
    %v1375 = vadd.s32 %v1370, 1
    %vm1376 = vcmp.gt.s32.totalorder %v1375, 0
    %v1377 = vsel %vm1376, %v1375, 0
    %v1378 = vshrl.u32 %v1377, 5
    %v1379 = vand.u32 %v1377, 31
    %v1380 = vsub.s32 32, %v1379
    %v1381 = vshrl.u32 683565275, %v1380
    %v1382 = vshll.u32 683565275, %v1379
    %v1383 = vshrl.u32 2475754826, %v1380
    %v1384 = vor.u32 %v1382, %v1383
    %v1385 = vshll.u32 2475754826, %v1379
    %v1386 = vshrl.u32 2131351028, %v1380
    %v1387 = vor.u32 %v1385, %v1386
    %v1388 = vshll.u32 2131351028, %v1379
    %v1389 = vshrl.u32 2102212464, %v1380
    %v1390 = vor.u32 %v1388, %v1389
    %v1391 = vshll.u32 2102212464, %v1379
    %v1392 = vshrl.u32 920167782, %v1380
    %v1393 = vor.u32 %v1391, %v1392
    %v1394 = vshll.u32 920167782, %v1379
    %v1395 = vshrl.u32 1326507024, %v1380
    %v1396 = vor.u32 %v1394, %v1395
    %vm1397 = vcmp.lt.s32.totalorder %v1378, 1
    %vm1398 = vcmp.lt.s32.totalorder %v1378, 2
    %vm1399 = vcmp.lt.s32.totalorder %v1378, 3
    %vm1400 = vcmp.lt.s32.totalorder %v1378, 4
    %v1401 = vsel %vm1397, %v1381, %v1384
    %v1402 = vsel %vm1400, %v1390, 2102212464
    %v1403 = vsel %vm1399, %v1387, %v1402
    %v1404 = vsel %vm1398, %v1401, %v1403
    %v1405 = vsel %vm1397, %v1384, %v1387
    %v1406 = vsel %vm1400, %v1393, 920167782
    %v1407 = vsel %vm1399, %v1390, %v1406
    %v1408 = vsel %vm1398, %v1405, %v1407
    %v1409 = vsel %vm1397, %v1387, %v1390
    %v1410 = vsel %vm1400, %v1396, 1326507024
    %v1411 = vsel %vm1399, %v1393, %v1410
    %v1412 = vsel %vm1398, %v1409, %v1411
    %v1413 = vshll.u32 %v1373, 8
    %v1414 = vmul.u32.u64.compose %v1413, %v1412
    %v1415 = vextract.low.u32 %v1414
    %v1416 = vextract.high.u32 %v1414
    %v1417 = vmul.u32.u64.compose %v1413, %v1408
    %v1418 = vextract.low.u32 %v1417
    %v1419 = vextract.high.u32 %v1417
    %v1420 = vmul.u32 %v1413, %v1404
    %v1421 = vadd.s32 %v1416, %v1418
    %vm1422 = vc.u32 %v1416, %v1418
    %v1423 = vadd.s32 %v1419, 1
    %v1424 = vsel %vm1422, %v1423, %v1419
    %v1425 = vadd.s32 %v1420, %v1424
    %v1426 = vadd.s32 %v1425, 536870912
    %v1427 = vshrl.u32 %v1426, 30
    %v1428 = vshll.u32 %v1427, 30
    %v1429 = vsub.s32 %v1425, %v1428
    %vm1430 = vcmp.lt.s32.totalorder %v1429, 0
    %v1431 = vsub.s32 0, %v1429
    %v1432 = vsel %vm1430, %v1431, %v1429
    %v1433 = vclz %v1432
    %v1434 = vsub.s32 %v1433, 2
    %vm1435 = vcmp.gt.s32.totalorder 0, %v1434
    %v1436 = vsel %vm1435, 0, %v1434
    %v1437 = vsub.s32 32, %v1436
    %v1438 = vshll.u32 %v1429, %v1436
    %v1439 = vshrl.u32 %v1421, %v1437
    %v1440 = vor.u32 %v1438, %v1439
    %v1441 = vsub.s32 4294967266, %v1436
    %v1442 = vadd.s32 %v1441, 127
    %v1443 = vshll.u32 %v1442, 23
    %v1444 = vor.u32 4788187, %v1443
    %v1445 = vand.u32 2147483647, %v1444
    %v1447 = vcvt.s32.f32 %v1440
    %v1448 = vmul.f32 %v1447, %v1445
    %v1449 = vxor.u32 %v1448, 2147483648
    %v1450 = vsel %vm1367, %v1449, %v1448
    %v1451 = vsub.s32 4, %v1427
    %v1452 = vsel %vm1367, %v1451, %v1427
    %v1453 = vsel %vm1366, %v1349, %v1450
    %v1454 = vsel %vm1366, 0, %v1452
    %v1455 = vcosq.f32.pop %v1453
    %v1456 = vsinq.f32.pop %v1453
    %vm1457 = vweird.f32 %v1349
    %v1458 = vand.u32 %v1454, 3
    %vm1459 = vcmp.lt.s32.totalorder %v1458, 2
    %vm1460 = vcmp.eq.s32.totalorder %v1458, 0
    %v1461 = vxor.u32 %v1456, 2147483648
    %v1462 = vsel %vm1460, %v1455, %v1461
    %vm1463 = vcmp.eq.s32.totalorder %v1458, 2
    %v1464 = vxor.u32 %v1455, 2147483648
    %v1465 = vsel %vm1463, %v1464, %v1456
    %v1466 = vsel %vm1459, %v1462, %v1465
    %v1467 = vsel %vm1457, nan, %v1466
    %v1468 = vand.u32 2147483647, %v1350
    %vm1469 = vcmp.le.f32.partialorder %v1468, 0.7853982
    %vm1470 = vcmp.lt.s32.totalorder %v1350, 0
    %v1471 = vand.u32 %v1350, 2139095040
    %v1472 = vshrl.u32 %v1471, 23
    %v1473 = vsub.s32 %v1472, 127
    %v1474 = vand.u32 2147483647, %v1350
    %v1475 = vand.u32 %v1474, 8388607
    %v1476 = vor.u32 %v1475, 8388608
    %v1477 = vsub.s32 0, %v1476
    %v1478 = vadd.s32 %v1473, 1
    %vm1479 = vcmp.gt.s32.totalorder %v1478, 0
    %v1480 = vsel %vm1479, %v1478, 0
    %v1481 = vshrl.u32 %v1480, 5
    %v1482 = vand.u32 %v1480, 31
    %v1483 = vsub.s32 32, %v1482
    %v1484 = vshrl.u32 683565275, %v1483
    %v1485 = vshll.u32 683565275, %v1482
    %v1486 = vshrl.u32 2475754826, %v1483
    %v1487 = vor.u32 %v1485, %v1486
    %v1488 = vshll.u32 2475754826, %v1482
    %v1489 = vshrl.u32 2131351028, %v1483
    %v1490 = vor.u32 %v1488, %v1489
    %v1491 = vshll.u32 2131351028, %v1482
    %v1492 = vshrl.u32 2102212464, %v1483
    %v1493 = vor.u32 %v1491, %v1492
    %v1494 = vshll.u32 2102212464, %v1482
    %v1495 = vshrl.u32 920167782, %v1483
    %v1496 = vor.u32 %v1494, %v1495
    %v1497 = vshll.u32 920167782, %v1482
    %v1498 = vshrl.u32 1326507024, %v1483
    %v1499 = vor.u32 %v1497, %v1498
    %vm1500 = vcmp.lt.s32.totalorder %v1481, 1
    %vm1501 = vcmp.lt.s32.totalorder %v1481, 2
    %vm1502 = vcmp.lt.s32.totalorder %v1481, 3
    %vm1503 = vcmp.lt.s32.totalorder %v1481, 4
    %v1504 = vsel %vm1500, %v1484, %v1487
    %v1505 = vsel %vm1503, %v1493, 2102212464
    %v1506 = vsel %vm1502, %v1490, %v1505
    %v1507 = vsel %vm1501, %v1504, %v1506
    %v1508 = vsel %vm1500, %v1487, %v1490
    %v1509 = vsel %vm1503, %v1496, 920167782
    %v1510 = vsel %vm1502, %v1493, %v1509
    %v1511 = vsel %vm1501, %v1508, %v1510
    %v1512 = vsel %vm1500, %v1490, %v1493
    %v1513 = vsel %vm1503, %v1499, 1326507024
    %v1514 = vsel %vm1502, %v1496, %v1513
    %v1515 = vsel %vm1501, %v1512, %v1514
    %v1516 = vshll.u32 %v1476, 8
    %v1517 = vmul.u32.u64.compose %v1516, %v1515
    %v1518 = vextract.low.u32 %v1517
    %v1519 = vextract.high.u32 %v1517
    %v1520 = vmul.u32.u64.compose %v1516, %v1511
    %v1521 = vextract.low.u32 %v1520
    %v1522 = vextract.high.u32 %v1520
    %v1523 = vmul.u32 %v1516, %v1507
    %v1524 = vadd.s32 %v1519, %v1521
    %vm1525 = vc.u32 %v1519, %v1521
    %v1526 = vadd.s32 %v1522, 1
    %v1527 = vsel %vm1525, %v1526, %v1522
    %v1528 = vadd.s32 %v1523, %v1527
    %v1529 = vadd.s32 %v1528, 536870912
    %v1530 = vshrl.u32 %v1529, 30
    %v1531 = vshll.u32 %v1530, 30
    %v1532 = vsub.s32 %v1528, %v1531
    %vm1533 = vcmp.lt.s32.totalorder %v1532, 0
    %v1534 = vsub.s32 0, %v1532
    %v1535 = vsel %vm1533, %v1534, %v1532
    %v1536 = vclz %v1535
    %v1537 = vsub.s32 %v1536, 2
    %vm1538 = vcmp.gt.s32.totalorder 0, %v1537
    %v1539 = vsel %vm1538, 0, %v1537
    %v1540 = vsub.s32 32, %v1539
    %v1541 = vshll.u32 %v1532, %v1539
    %v1542 = vshrl.u32 %v1524, %v1540
    %v1543 = vor.u32 %v1541, %v1542
    %v1544 = vsub.s32 4294967266, %v1539
    %v1545 = vadd.s32 %v1544, 127
    %v1546 = vshll.u32 %v1545, 23
    %v1547 = vor.u32 4788187, %v1546
    %v1548 = vand.u32 2147483647, %v1547
    %v1550 = vcvt.s32.f32 %v1543
    %v1551 = vmul.f32 %v1550, %v1548
    %v1552 = vxor.u32 %v1551, 2147483648
    %v1553 = vsel %vm1470, %v1552, %v1551
    %v1554 = vsub.s32 4, %v1530
    %v1555 = vsel %vm1470, %v1554, %v1530
    %v1556 = vsel %vm1469, %v1350, %v1553
    %v1557 = vsel %vm1469, 0, %v1555
    %v1558 = vcosq.f32.pop %v1556
    %v1559 = vsinq.f32.pop %v1556
    %vm1560 = vweird.f32 %v1350
    %v1561 = vand.u32 %v1557, 3
    %vm1562 = vcmp.lt.s32.totalorder %v1561, 2
    %vm1563 = vcmp.eq.s32.totalorder %v1561, 0
    %v1564 = vxor.u32 %v1559, 2147483648
    %v1565 = vsel %vm1563, %v1558, %v1564
    %vm1566 = vcmp.eq.s32.totalorder %v1561, 2
    %v1567 = vxor.u32 %v1558, 2147483648
    %v1568 = vsel %vm1566, %v1567, %v1559
    %v1569 = vsel %vm1562, %v1565, %v1568
    %v1570 = vsel %vm1560, nan, %v1569
    %v1571 = vand.u32 2147483647, %v1351
    %vm1572 = vcmp.le.f32.partialorder %v1571, 0.7853982
    %vm1573 = vcmp.lt.s32.totalorder %v1351, 0
    %v1574 = vand.u32 %v1351, 2139095040
    %v1575 = vshrl.u32 %v1574, 23
    %v1576 = vsub.s32 %v1575, 127
    %v1577 = vand.u32 2147483647, %v1351
    %v1578 = vand.u32 %v1577, 8388607
    %v1579 = vor.u32 %v1578, 8388608
    %v1580 = vsub.s32 0, %v1579
    %v1581 = vadd.s32 %v1576, 1
    %vm1582 = vcmp.gt.s32.totalorder %v1581, 0
    %v1583 = vsel %vm1582, %v1581, 0
    %v1584 = vshrl.u32 %v1583, 5
    %v1585 = vand.u32 %v1583, 31
    %v1586 = vsub.s32 32, %v1585
    %v1587 = vshrl.u32 683565275, %v1586
    %v1588 = vshll.u32 683565275, %v1585
    %v1589 = vshrl.u32 2475754826, %v1586
    %v1590 = vor.u32 %v1588, %v1589
    %v1591 = vshll.u32 2475754826, %v1585
    %v1592 = vshrl.u32 2131351028, %v1586
    %v1593 = vor.u32 %v1591, %v1592
    %v1594 = vshll.u32 2131351028, %v1585
    %v1595 = vshrl.u32 2102212464, %v1586
    %v1596 = vor.u32 %v1594, %v1595
    %v1597 = vshll.u32 2102212464, %v1585
    %v1598 = vshrl.u32 920167782, %v1586
    %v1599 = vor.u32 %v1597, %v1598
    %v1600 = vshll.u32 920167782, %v1585
    %v1601 = vshrl.u32 1326507024, %v1586
    %v1602 = vor.u32 %v1600, %v1601
    %vm1603 = vcmp.lt.s32.totalorder %v1584, 1
    %vm1604 = vcmp.lt.s32.totalorder %v1584, 2
    %vm1605 = vcmp.lt.s32.totalorder %v1584, 3
    %vm1606 = vcmp.lt.s32.totalorder %v1584, 4
    %v1607 = vsel %vm1603, %v1587, %v1590
    %v1608 = vsel %vm1606, %v1596, 2102212464
    %v1609 = vsel %vm1605, %v1593, %v1608
    %v1610 = vsel %vm1604, %v1607, %v1609
    %v1611 = vsel %vm1603, %v1590, %v1593
    %v1612 = vsel %vm1606, %v1599, 920167782
    %v1613 = vsel %vm1605, %v1596, %v1612
    %v1614 = vsel %vm1604, %v1611, %v1613
    %v1615 = vsel %vm1603, %v1593, %v1596
    %v1616 = vsel %vm1606, %v1602, 1326507024
    %v1617 = vsel %vm1605, %v1599, %v1616
    %v1618 = vsel %vm1604, %v1615, %v1617
    %v1619 = vshll.u32 %v1579, 8
    %v1620 = vmul.u32.u64.compose %v1619, %v1618
    %v1621 = vextract.low.u32 %v1620
    %v1622 = vextract.high.u32 %v1620
    %v1623 = vmul.u32.u64.compose %v1619, %v1614
    %v1624 = vextract.low.u32 %v1623
    %v1625 = vextract.high.u32 %v1623
    %v1626 = vmul.u32 %v1619, %v1610
    %v1627 = vadd.s32 %v1622, %v1624
    %vm1628 = vc.u32 %v1622, %v1624
    %v1629 = vadd.s32 %v1625, 1
    %v1630 = vsel %vm1628, %v1629, %v1625
    %v1631 = vadd.s32 %v1626, %v1630
    %v1632 = vadd.s32 %v1631, 536870912
    %v1633 = vshrl.u32 %v1632, 30
    %v1634 = vshll.u32 %v1633, 30
    %v1635 = vsub.s32 %v1631, %v1634
    %vm1636 = vcmp.lt.s32.totalorder %v1635, 0
    %v1637 = vsub.s32 0, %v1635
    %v1638 = vsel %vm1636, %v1637, %v1635
    %v1639 = vclz %v1638
    %v1640 = vsub.s32 %v1639, 2
    %vm1641 = vcmp.gt.s32.totalorder 0, %v1640
    %v1642 = vsel %vm1641, 0, %v1640
    %v1643 = vsub.s32 32, %v1642
    %v1644 = vshll.u32 %v1635, %v1642
    %v1645 = vshrl.u32 %v1627, %v1643
    %v1646 = vor.u32 %v1644, %v1645
    %v1647 = vsub.s32 4294967266, %v1642
    %v1648 = vadd.s32 %v1647, 127
    %v1649 = vshll.u32 %v1648, 23
    %v1650 = vor.u32 4788187, %v1649
    %v1651 = vand.u32 2147483647, %v1650
    %v1653 = vcvt.s32.f32 %v1646
    %v1654 = vmul.f32 %v1653, %v1651
    %v1655 = vxor.u32 %v1654, 2147483648
    %v1656 = vsel %vm1573, %v1655, %v1654
    %v1657 = vsub.s32 4, %v1633
    %v1658 = vsel %vm1573, %v1657, %v1633
    %v1659 = vsel %vm1572, %v1351, %v1656
    %v1660 = vsel %vm1572, 0, %v1658
    %v1661 = vcosq.f32.pop %v1659
    %v1662 = vsinq.f32.pop %v1659
    %vm1663 = vweird.f32 %v1351
    %v1664 = vand.u32 %v1660, 3
    %vm1665 = vcmp.lt.s32.totalorder %v1664, 2
    %vm1666 = vcmp.eq.s32.totalorder %v1664, 0
    %v1667 = vxor.u32 %v1662, 2147483648
    %v1668 = vsel %vm1666, %v1661, %v1667
    %vm1669 = vcmp.eq.s32.totalorder %v1664, 2
    %v1670 = vxor.u32 %v1661, 2147483648
    %v1671 = vsel %vm1669, %v1670, %v1662
    %v1672 = vsel %vm1665, %v1668, %v1671
    %v1673 = vsel %vm1663, nan, %v1672
    %v1674 = vand.u32 2147483647, %v1352
    %vm1675 = vcmp.le.f32.partialorder %v1674, 0.7853982
    %vm1676 = vcmp.lt.s32.totalorder %v1352, 0
    %v1677 = vand.u32 %v1352, 2139095040
    %v1678 = vshrl.u32 %v1677, 23
    %v1679 = vsub.s32 %v1678, 127
    %v1680 = vand.u32 2147483647, %v1352
    %v1681 = vand.u32 %v1680, 8388607
    %v1682 = vor.u32 %v1681, 8388608
    %v1683 = vsub.s32 0, %v1682
    %v1684 = vadd.s32 %v1679, 1
    %vm1685 = vcmp.gt.s32.totalorder %v1684, 0
    %v1686 = vsel %vm1685, %v1684, 0
    %v1687 = vshrl.u32 %v1686, 5
    %v1688 = vand.u32 %v1686, 31
    %v1689 = vsub.s32 32, %v1688
    %v1690 = vshrl.u32 683565275, %v1689
    %v1691 = vshll.u32 683565275, %v1688
    %v1692 = vshrl.u32 2475754826, %v1689
    %v1693 = vor.u32 %v1691, %v1692
    %v1694 = vshll.u32 2475754826, %v1688
    %v1695 = vshrl.u32 2131351028, %v1689
    %v1696 = vor.u32 %v1694, %v1695
    %v1697 = vshll.u32 2131351028, %v1688
    %v1698 = vshrl.u32 2102212464, %v1689
    %v1699 = vor.u32 %v1697, %v1698
    %v1700 = vshll.u32 2102212464, %v1688
    %v1701 = vshrl.u32 920167782, %v1689
    %v1702 = vor.u32 %v1700, %v1701
    %v1703 = vshll.u32 920167782, %v1688
    %v1704 = vshrl.u32 1326507024, %v1689
    %v1705 = vor.u32 %v1703, %v1704
    %vm1706 = vcmp.lt.s32.totalorder %v1687, 1
    %vm1707 = vcmp.lt.s32.totalorder %v1687, 2
    %vm1708 = vcmp.lt.s32.totalorder %v1687, 3
    %vm1709 = vcmp.lt.s32.totalorder %v1687, 4
    %v1710 = vsel %vm1706, %v1690, %v1693
    %v1711 = vsel %vm1709, %v1699, 2102212464
    %v1712 = vsel %vm1708, %v1696, %v1711
    %v1713 = vsel %vm1707, %v1710, %v1712
    %v1714 = vsel %vm1706, %v1693, %v1696
    %v1715 = vsel %vm1709, %v1702, 920167782
    %v1716 = vsel %vm1708, %v1699, %v1715
    %v1717 = vsel %vm1707, %v1714, %v1716
    %v1718 = vsel %vm1706, %v1696, %v1699
    %v1719 = vsel %vm1709, %v1705, 1326507024
    %v1720 = vsel %vm1708, %v1702, %v1719
    %v1721 = vsel %vm1707, %v1718, %v1720
    %v1722 = vshll.u32 %v1682, 8
    %v1723 = vmul.u32.u64.compose %v1722, %v1721
    %v1724 = vextract.low.u32 %v1723
    %v1725 = vextract.high.u32 %v1723
    %v1726 = vmul.u32.u64.compose %v1722, %v1717
    %v1727 = vextract.low.u32 %v1726
    %v1728 = vextract.high.u32 %v1726
    %v1729 = vmul.u32 %v1722, %v1713
    %v1730 = vadd.s32 %v1725, %v1727
    %vm1731 = vc.u32 %v1725, %v1727
    %v1732 = vadd.s32 %v1728, 1
    %v1733 = vsel %vm1731, %v1732, %v1728
    %v1734 = vadd.s32 %v1729, %v1733
    %v1735 = vadd.s32 %v1734, 536870912
    %v1736 = vshrl.u32 %v1735, 30
    %v1737 = vshll.u32 %v1736, 30
    %v1738 = vsub.s32 %v1734, %v1737
    %vm1739 = vcmp.lt.s32.totalorder %v1738, 0
    %v1740 = vsub.s32 0, %v1738
    %v1741 = vsel %vm1739, %v1740, %v1738
    %v1742 = vclz %v1741
    %v1743 = vsub.s32 %v1742, 2
    %vm1744 = vcmp.gt.s32.totalorder 0, %v1743
    %v1745 = vsel %vm1744, 0, %v1743
    %v1746 = vsub.s32 32, %v1745
    %v1747 = vshll.u32 %v1738, %v1745
    %v1748 = vshrl.u32 %v1730, %v1746
    %v1749 = vor.u32 %v1747, %v1748
    %v1750 = vsub.s32 4294967266, %v1745
    %v1751 = vadd.s32 %v1750, 127
    %v1752 = vshll.u32 %v1751, 23
    %v1753 = vor.u32 4788187, %v1752
    %v1754 = vand.u32 2147483647, %v1753
    %v1756 = vcvt.s32.f32 %v1749
    %v1757 = vmul.f32 %v1756, %v1754
    %v1758 = vxor.u32 %v1757, 2147483648
    %v1759 = vsel %vm1676, %v1758, %v1757
    %v1760 = vsub.s32 4, %v1736
    %v1761 = vsel %vm1676, %v1760, %v1736
    %v1762 = vsel %vm1675, %v1352, %v1759
    %v1763 = vsel %vm1675, 0, %v1761
    %v1764 = vcosq.f32.pop %v1762
    %v1765 = vsinq.f32.pop %v1762
    %vm1766 = vweird.f32 %v1352
    %v1767 = vand.u32 %v1763, 3
    %vm1768 = vcmp.lt.s32.totalorder %v1767, 2
    %vm1769 = vcmp.eq.s32.totalorder %v1767, 0
    %v1770 = vxor.u32 %v1765, 2147483648
    %v1771 = vsel %vm1769, %v1764, %v1770
    %vm1772 = vcmp.eq.s32.totalorder %v1767, 2
    %v1773 = vxor.u32 %v1764, 2147483648
    %v1774 = vsel %vm1772, %v1773, %v1765
    %v1775 = vsel %vm1768, %v1771, %v1774
    %v1776 = vsel %vm1766, nan, %v1775
    %v1777 = vand.u32 2147483647, %v1353
    %vm1778 = vcmp.le.f32.partialorder %v1777, 0.7853982
    %vm1779 = vcmp.lt.s32.totalorder %v1353, 0
    %v1780 = vand.u32 %v1353, 2139095040
    %v1781 = vshrl.u32 %v1780, 23
    %v1782 = vsub.s32 %v1781, 127
    %v1783 = vand.u32 2147483647, %v1353
    %v1784 = vand.u32 %v1783, 8388607
    %v1785 = vor.u32 %v1784, 8388608
    %v1786 = vsub.s32 0, %v1785
    %v1787 = vadd.s32 %v1782, 1
    %vm1788 = vcmp.gt.s32.totalorder %v1787, 0
    %v1789 = vsel %vm1788, %v1787, 0
    %v1790 = vshrl.u32 %v1789, 5
    %v1791 = vand.u32 %v1789, 31
    %v1792 = vsub.s32 32, %v1791
    %v1793 = vshrl.u32 683565275, %v1792
    %v1794 = vshll.u32 683565275, %v1791
    %v1795 = vshrl.u32 2475754826, %v1792
    %v1796 = vor.u32 %v1794, %v1795
    %v1797 = vshll.u32 2475754826, %v1791
    %v1798 = vshrl.u32 2131351028, %v1792
    %v1799 = vor.u32 %v1797, %v1798
    %v1800 = vshll.u32 2131351028, %v1791
    %v1801 = vshrl.u32 2102212464, %v1792
    %v1802 = vor.u32 %v1800, %v1801
    %v1803 = vshll.u32 2102212464, %v1791
    %v1804 = vshrl.u32 920167782, %v1792
    %v1805 = vor.u32 %v1803, %v1804
    %v1806 = vshll.u32 920167782, %v1791
    %v1807 = vshrl.u32 1326507024, %v1792
    %v1808 = vor.u32 %v1806, %v1807
    %vm1809 = vcmp.lt.s32.totalorder %v1790, 1
    %vm1810 = vcmp.lt.s32.totalorder %v1790, 2
    %vm1811 = vcmp.lt.s32.totalorder %v1790, 3
    %vm1812 = vcmp.lt.s32.totalorder %v1790, 4
    %v1813 = vsel %vm1809, %v1793, %v1796
    %v1814 = vsel %vm1812, %v1802, 2102212464
    %v1815 = vsel %vm1811, %v1799, %v1814
    %v1816 = vsel %vm1810, %v1813, %v1815
    %v1817 = vsel %vm1809, %v1796, %v1799
    %v1818 = vsel %vm1812, %v1805, 920167782
    %v1819 = vsel %vm1811, %v1802, %v1818
    %v1820 = vsel %vm1810, %v1817, %v1819
    %v1821 = vsel %vm1809, %v1799, %v1802
    %v1822 = vsel %vm1812, %v1808, 1326507024
    %v1823 = vsel %vm1811, %v1805, %v1822
    %v1824 = vsel %vm1810, %v1821, %v1823
    %v1825 = vshll.u32 %v1785, 8
    %v1826 = vmul.u32.u64.compose %v1825, %v1824
    %v1827 = vextract.low.u32 %v1826
    %v1828 = vextract.high.u32 %v1826
    %v1829 = vmul.u32.u64.compose %v1825, %v1820
    %v1830 = vextract.low.u32 %v1829
    %v1831 = vextract.high.u32 %v1829
    %v1832 = vmul.u32 %v1825, %v1816
    %v1833 = vadd.s32 %v1828, %v1830
    %vm1834 = vc.u32 %v1828, %v1830
    %v1835 = vadd.s32 %v1831, 1
    %v1836 = vsel %vm1834, %v1835, %v1831
    %v1837 = vadd.s32 %v1832, %v1836
    %v1838 = vadd.s32 %v1837, 536870912
    %v1839 = vshrl.u32 %v1838, 30
    %v1840 = vshll.u32 %v1839, 30
    %v1841 = vsub.s32 %v1837, %v1840
    %vm1842 = vcmp.lt.s32.totalorder %v1841, 0
    %v1843 = vsub.s32 0, %v1841
    %v1844 = vsel %vm1842, %v1843, %v1841
    %v1845 = vclz %v1844
    %v1846 = vsub.s32 %v1845, 2
    %vm1847 = vcmp.gt.s32.totalorder 0, %v1846
    %v1848 = vsel %vm1847, 0, %v1846
    %v1849 = vsub.s32 32, %v1848
    %v1850 = vshll.u32 %v1841, %v1848
    %v1851 = vshrl.u32 %v1833, %v1849
    %v1852 = vor.u32 %v1850, %v1851
    %v1853 = vsub.s32 4294967266, %v1848
    %v1854 = vadd.s32 %v1853, 127
    %v1855 = vshll.u32 %v1854, 23
    %v1856 = vor.u32 4788187, %v1855
    %v1857 = vand.u32 2147483647, %v1856
    %v1859 = vcvt.s32.f32 %v1852
    %v1860 = vmul.f32 %v1859, %v1857
    %v1861 = vxor.u32 %v1860, 2147483648
    %v1862 = vsel %vm1779, %v1861, %v1860
    %v1863 = vsub.s32 4, %v1839
    %v1864 = vsel %vm1779, %v1863, %v1839
    %v1865 = vsel %vm1778, %v1353, %v1862
    %v1866 = vsel %vm1778, 0, %v1864
    %v1867 = vcosq.f32.pop %v1865
    %v1868 = vsinq.f32.pop %v1865
    %vm1869 = vweird.f32 %v1353
    %v1870 = vand.u32 %v1866, 3
    %vm1871 = vcmp.lt.s32.totalorder %v1870, 2
    %vm1872 = vcmp.eq.s32.totalorder %v1870, 0
    %v1873 = vxor.u32 %v1868, 2147483648
    %v1874 = vsel %vm1872, %v1867, %v1873
    %vm1875 = vcmp.eq.s32.totalorder %v1870, 2
    %v1876 = vxor.u32 %v1867, 2147483648
    %v1877 = vsel %vm1875, %v1876, %v1868
    %v1878 = vsel %vm1871, %v1874, %v1877
    %v1879 = vsel %vm1869, nan, %v1878
    %v1880 = vand.u32 2147483647, %v1354
    %vm1881 = vcmp.le.f32.partialorder %v1880, 0.7853982
    %vm1882 = vcmp.lt.s32.totalorder %v1354, 0
    %v1883 = vand.u32 %v1354, 2139095040
    %v1884 = vshrl.u32 %v1883, 23
    %v1885 = vsub.s32 %v1884, 127
    %v1886 = vand.u32 2147483647, %v1354
    %v1887 = vand.u32 %v1886, 8388607
    %v1888 = vor.u32 %v1887, 8388608
    %v1889 = vsub.s32 0, %v1888
    %v1890 = vadd.s32 %v1885, 1
    %vm1891 = vcmp.gt.s32.totalorder %v1890, 0
    %v1892 = vsel %vm1891, %v1890, 0
    %v1893 = vshrl.u32 %v1892, 5
    %v1894 = vand.u32 %v1892, 31
    %v1895 = vsub.s32 32, %v1894
    %v1896 = vshrl.u32 683565275, %v1895
    %v1897 = vshll.u32 683565275, %v1894
    %v1898 = vshrl.u32 2475754826, %v1895
    %v1899 = vor.u32 %v1897, %v1898
    %v1900 = vshll.u32 2475754826, %v1894
    %v1901 = vshrl.u32 2131351028, %v1895
    %v1902 = vor.u32 %v1900, %v1901
    %v1903 = vshll.u32 2131351028, %v1894
    %v1904 = vshrl.u32 2102212464, %v1895
    %v1905 = vor.u32 %v1903, %v1904
    %v1906 = vshll.u32 2102212464, %v1894
    %v1907 = vshrl.u32 920167782, %v1895
    %v1908 = vor.u32 %v1906, %v1907
    %v1909 = vshll.u32 920167782, %v1894
    %v1910 = vshrl.u32 1326507024, %v1895
    %v1911 = vor.u32 %v1909, %v1910
    %vm1912 = vcmp.lt.s32.totalorder %v1893, 1
    %vm1913 = vcmp.lt.s32.totalorder %v1893, 2
    %vm1914 = vcmp.lt.s32.totalorder %v1893, 3
    %vm1915 = vcmp.lt.s32.totalorder %v1893, 4
    %v1916 = vsel %vm1912, %v1896, %v1899
    %v1917 = vsel %vm1915, %v1905, 2102212464
    %v1918 = vsel %vm1914, %v1902, %v1917
    %v1919 = vsel %vm1913, %v1916, %v1918
    %v1920 = vsel %vm1912, %v1899, %v1902
    %v1921 = vsel %vm1915, %v1908, 920167782
    %v1922 = vsel %vm1914, %v1905, %v1921
    %v1923 = vsel %vm1913, %v1920, %v1922
    %v1924 = vsel %vm1912, %v1902, %v1905
    %v1925 = vsel %vm1915, %v1911, 1326507024
    %v1926 = vsel %vm1914, %v1908, %v1925
    %v1927 = vsel %vm1913, %v1924, %v1926
    %v1928 = vshll.u32 %v1888, 8
    %v1929 = vmul.u32.u64.compose %v1928, %v1927
    %v1930 = vextract.low.u32 %v1929
    %v1931 = vextract.high.u32 %v1929
    %v1932 = vmul.u32.u64.compose %v1928, %v1923
    %v1933 = vextract.low.u32 %v1932
    %v1934 = vextract.high.u32 %v1932
    %v1935 = vmul.u32 %v1928, %v1919
    %v1936 = vadd.s32 %v1931, %v1933
    %vm1937 = vc.u32 %v1931, %v1933
    %v1938 = vadd.s32 %v1934, 1
    %v1939 = vsel %vm1937, %v1938, %v1934
    %v1940 = vadd.s32 %v1935, %v1939
    %v1941 = vadd.s32 %v1940, 536870912
    %v1942 = vshrl.u32 %v1941, 30
    %v1943 = vshll.u32 %v1942, 30
    %v1944 = vsub.s32 %v1940, %v1943
    %vm1945 = vcmp.lt.s32.totalorder %v1944, 0
    %v1946 = vsub.s32 0, %v1944
    %v1947 = vsel %vm1945, %v1946, %v1944
    %v1948 = vclz %v1947
    %v1949 = vsub.s32 %v1948, 2
    %vm1950 = vcmp.gt.s32.totalorder 0, %v1949
    %v1951 = vsel %vm1950, 0, %v1949
    %v1952 = vsub.s32 32, %v1951
    %v1953 = vshll.u32 %v1944, %v1951
    %v1954 = vshrl.u32 %v1936, %v1952
    %v1955 = vor.u32 %v1953, %v1954
    %v1956 = vsub.s32 4294967266, %v1951
    %v1957 = vadd.s32 %v1956, 127
    %v1958 = vshll.u32 %v1957, 23
    %v1959 = vor.u32 4788187, %v1958
    %v1960 = vand.u32 2147483647, %v1959
    %v1962 = vcvt.s32.f32 %v1955
    %v1963 = vmul.f32 %v1962, %v1960
    %v1964 = vxor.u32 %v1963, 2147483648
    %v1965 = vsel %vm1882, %v1964, %v1963
    %v1966 = vsub.s32 4, %v1942
    %v1967 = vsel %vm1882, %v1966, %v1942
    %v1968 = vsel %vm1881, %v1354, %v1965
    %v1969 = vsel %vm1881, 0, %v1967
    %v1970 = vcosq.f32.pop %v1968
    %v1971 = vsinq.f32.pop %v1968
    %vm1972 = vweird.f32 %v1354
    %v1973 = vand.u32 %v1969, 3
    %vm1974 = vcmp.lt.s32.totalorder %v1973, 2
    %vm1975 = vcmp.eq.s32.totalorder %v1973, 0
    %v1976 = vxor.u32 %v1971, 2147483648
    %v1977 = vsel %vm1975, %v1970, %v1976
    %vm1978 = vcmp.eq.s32.totalorder %v1973, 2
    %v1979 = vxor.u32 %v1970, 2147483648
    %v1980 = vsel %vm1978, %v1979, %v1971
    %v1981 = vsel %vm1974, %v1977, %v1980
    %v1982 = vsel %vm1972, nan, %v1981
    %v1983 = vand.u32 2147483647, %v1355
    %vm1984 = vcmp.le.f32.partialorder %v1983, 0.7853982
    %vm1985 = vcmp.lt.s32.totalorder %v1355, 0
    %v1986 = vand.u32 %v1355, 2139095040
    %v1987 = vshrl.u32 %v1986, 23
    %v1988 = vsub.s32 %v1987, 127
    %v1989 = vand.u32 2147483647, %v1355
    %v1990 = vand.u32 %v1989, 8388607
    %v1991 = vor.u32 %v1990, 8388608
    %v1992 = vsub.s32 0, %v1991
    %v1993 = vadd.s32 %v1988, 1
    %vm1994 = vcmp.gt.s32.totalorder %v1993, 0
    %v1995 = vsel %vm1994, %v1993, 0
    %v1996 = vshrl.u32 %v1995, 5
    %v1997 = vand.u32 %v1995, 31
    %v1998 = vsub.s32 32, %v1997
    %v1999 = vshrl.u32 683565275, %v1998
    %v2000 = vshll.u32 683565275, %v1997
    %v2001 = vshrl.u32 2475754826, %v1998
    %v2002 = vor.u32 %v2000, %v2001
    %v2003 = vshll.u32 2475754826, %v1997
    %v2004 = vshrl.u32 2131351028, %v1998
    %v2005 = vor.u32 %v2003, %v2004
    %v2006 = vshll.u32 2131351028, %v1997
    %v2007 = vshrl.u32 2102212464, %v1998
    %v2008 = vor.u32 %v2006, %v2007
    %v2009 = vshll.u32 2102212464, %v1997
    %v2010 = vshrl.u32 920167782, %v1998
    %v2011 = vor.u32 %v2009, %v2010
    %v2012 = vshll.u32 920167782, %v1997
    %v2013 = vshrl.u32 1326507024, %v1998
    %v2014 = vor.u32 %v2012, %v2013
    %vm2015 = vcmp.lt.s32.totalorder %v1996, 1
    %vm2016 = vcmp.lt.s32.totalorder %v1996, 2
    %vm2017 = vcmp.lt.s32.totalorder %v1996, 3
    %vm2018 = vcmp.lt.s32.totalorder %v1996, 4
    %v2019 = vsel %vm2015, %v1999, %v2002
    %v2020 = vsel %vm2018, %v2008, 2102212464
    %v2021 = vsel %vm2017, %v2005, %v2020
    %v2022 = vsel %vm2016, %v2019, %v2021
    %v2023 = vsel %vm2015, %v2002, %v2005
    %v2024 = vsel %vm2018, %v2011, 920167782
    %v2025 = vsel %vm2017, %v2008, %v2024
    %v2026 = vsel %vm2016, %v2023, %v2025
    %v2027 = vsel %vm2015, %v2005, %v2008
    %v2028 = vsel %vm2018, %v2014, 1326507024
    %v2029 = vsel %vm2017, %v2011, %v2028
    %v2030 = vsel %vm2016, %v2027, %v2029
    %v2031 = vshll.u32 %v1991, 8
    %v2032 = vmul.u32.u64.compose %v2031, %v2030
    %v2033 = vextract.low.u32 %v2032
    %v2034 = vextract.high.u32 %v2032
    %v2035 = vmul.u32.u64.compose %v2031, %v2026
    %v2036 = vextract.low.u32 %v2035
    %v2037 = vextract.high.u32 %v2035
    %v2038 = vmul.u32 %v2031, %v2022
    %v2039 = vadd.s32 %v2034, %v2036
    %vm2040 = vc.u32 %v2034, %v2036
    %v2041 = vadd.s32 %v2037, 1
    %v2042 = vsel %vm2040, %v2041, %v2037
    %v2043 = vadd.s32 %v2038, %v2042
    %v2044 = vadd.s32 %v2043, 536870912
    %v2045 = vshrl.u32 %v2044, 30
    %v2046 = vshll.u32 %v2045, 30
    %v2047 = vsub.s32 %v2043, %v2046
    %vm2048 = vcmp.lt.s32.totalorder %v2047, 0
    %v2049 = vsub.s32 0, %v2047
    %v2050 = vsel %vm2048, %v2049, %v2047
    %v2051 = vclz %v2050
    %v2052 = vsub.s32 %v2051, 2
    %vm2053 = vcmp.gt.s32.totalorder 0, %v2052
    %v2054 = vsel %vm2053, 0, %v2052
    %v2055 = vsub.s32 32, %v2054
    %v2056 = vshll.u32 %v2047, %v2054
    %v2057 = vshrl.u32 %v2039, %v2055
    %v2058 = vor.u32 %v2056, %v2057
    %v2059 = vsub.s32 4294967266, %v2054
    %v2060 = vadd.s32 %v2059, 127
    %v2061 = vshll.u32 %v2060, 23
    %v2062 = vor.u32 4788187, %v2061
    %v2063 = vand.u32 2147483647, %v2062
    %v2065 = vcvt.s32.f32 %v2058
    %v2066 = vmul.f32 %v2065, %v2063
    %v2067 = vxor.u32 %v2066, 2147483648
    %v2068 = vsel %vm1985, %v2067, %v2066
    %v2069 = vsub.s32 4, %v2045
    %v2070 = vsel %vm1985, %v2069, %v2045
    %v2071 = vsel %vm1984, %v1355, %v2068
    %v2072 = vsel %vm1984, 0, %v2070
    %v2073 = vcosq.f32.pop %v2071
    %v2074 = vsinq.f32.pop %v2071
    %vm2075 = vweird.f32 %v1355
    %v2076 = vand.u32 %v2072, 3
    %vm2077 = vcmp.lt.s32.totalorder %v2076, 2
    %vm2078 = vcmp.eq.s32.totalorder %v2076, 0
    %v2079 = vxor.u32 %v2074, 2147483648
    %v2080 = vsel %vm2078, %v2073, %v2079
    %vm2081 = vcmp.eq.s32.totalorder %v2076, 2
    %v2082 = vxor.u32 %v2073, 2147483648
    %v2083 = vsel %vm2081, %v2082, %v2074
    %v2084 = vsel %vm2077, %v2080, %v2083
    %v2085 = vsel %vm2075, nan, %v2084
    %v2086 = vand.u32 2147483647, %v1356
    %vm2087 = vcmp.le.f32.partialorder %v2086, 0.7853982
    %vm2088 = vcmp.lt.s32.totalorder %v1356, 0
    %v2089 = vand.u32 %v1356, 2139095040
    %v2090 = vshrl.u32 %v2089, 23
    %v2091 = vsub.s32 %v2090, 127
    %v2092 = vand.u32 2147483647, %v1356
    %v2093 = vand.u32 %v2092, 8388607
    %v2094 = vor.u32 %v2093, 8388608
    %v2095 = vsub.s32 0, %v2094
    %v2096 = vadd.s32 %v2091, 1
    %vm2097 = vcmp.gt.s32.totalorder %v2096, 0
    %v2098 = vsel %vm2097, %v2096, 0
    %v2099 = vshrl.u32 %v2098, 5
    %v2100 = vand.u32 %v2098, 31
    %v2101 = vsub.s32 32, %v2100
    %v2102 = vshrl.u32 683565275, %v2101
    %v2103 = vshll.u32 683565275, %v2100
    %v2104 = vshrl.u32 2475754826, %v2101
    %v2105 = vor.u32 %v2103, %v2104
    %v2106 = vshll.u32 2475754826, %v2100
    %v2107 = vshrl.u32 2131351028, %v2101
    %v2108 = vor.u32 %v2106, %v2107
    %v2109 = vshll.u32 2131351028, %v2100
    %v2110 = vshrl.u32 2102212464, %v2101
    %v2111 = vor.u32 %v2109, %v2110
    %v2112 = vshll.u32 2102212464, %v2100
    %v2113 = vshrl.u32 920167782, %v2101
    %v2114 = vor.u32 %v2112, %v2113
    %v2115 = vshll.u32 920167782, %v2100
    %v2116 = vshrl.u32 1326507024, %v2101
    %v2117 = vor.u32 %v2115, %v2116
    %vm2118 = vcmp.lt.s32.totalorder %v2099, 1
    %vm2119 = vcmp.lt.s32.totalorder %v2099, 2
    %vm2120 = vcmp.lt.s32.totalorder %v2099, 3
    %vm2121 = vcmp.lt.s32.totalorder %v2099, 4
    %v2122 = vsel %vm2118, %v2102, %v2105
    %v2123 = vsel %vm2121, %v2111, 2102212464
    %v2124 = vsel %vm2120, %v2108, %v2123
    %v2125 = vsel %vm2119, %v2122, %v2124
    %v2126 = vsel %vm2118, %v2105, %v2108
    %v2127 = vsel %vm2121, %v2114, 920167782
    %v2128 = vsel %vm2120, %v2111, %v2127
    %v2129 = vsel %vm2119, %v2126, %v2128
    %v2130 = vsel %vm2118, %v2108, %v2111
    %v2131 = vsel %vm2121, %v2117, 1326507024
    %v2132 = vsel %vm2120, %v2114, %v2131
    %v2133 = vsel %vm2119, %v2130, %v2132
    %v2134 = vshll.u32 %v2094, 8
    %v2135 = vmul.u32.u64.compose %v2134, %v2133
    %v2136 = vextract.low.u32 %v2135
    %v2137 = vextract.high.u32 %v2135
    %v2138 = vmul.u32.u64.compose %v2134, %v2129
    %v2139 = vextract.low.u32 %v2138
    %v2140 = vextract.high.u32 %v2138
    %v2141 = vmul.u32 %v2134, %v2125
    %v2142 = vadd.s32 %v2137, %v2139
    %vm2143 = vc.u32 %v2137, %v2139
    %v2144 = vadd.s32 %v2140, 1
    %v2145 = vsel %vm2143, %v2144, %v2140
    %v2146 = vadd.s32 %v2141, %v2145
    %v2147 = vadd.s32 %v2146, 536870912
    %v2148 = vshrl.u32 %v2147, 30
    %v2149 = vshll.u32 %v2148, 30
    %v2150 = vsub.s32 %v2146, %v2149
    %vm2151 = vcmp.lt.s32.totalorder %v2150, 0
    %v2152 = vsub.s32 0, %v2150
    %v2153 = vsel %vm2151, %v2152, %v2150
    %v2154 = vclz %v2153
    %v2155 = vsub.s32 %v2154, 2
    %vm2156 = vcmp.gt.s32.totalorder 0, %v2155
    %v2157 = vsel %vm2156, 0, %v2155
    %v2158 = vsub.s32 32, %v2157
    %v2159 = vshll.u32 %v2150, %v2157
    %v2160 = vshrl.u32 %v2142, %v2158
    %v2161 = vor.u32 %v2159, %v2160
    %v2162 = vsub.s32 4294967266, %v2157
    %v2163 = vadd.s32 %v2162, 127
    %v2164 = vshll.u32 %v2163, 23
    %v2165 = vor.u32 4788187, %v2164
    %v2166 = vand.u32 2147483647, %v2165
    %v2168 = vcvt.s32.f32 %v2161
    %v2169 = vmul.f32 %v2168, %v2166
    %v2170 = vxor.u32 %v2169, 2147483648
    %v2171 = vsel %vm2088, %v2170, %v2169
    %v2172 = vsub.s32 4, %v2148
    %v2173 = vsel %vm2088, %v2172, %v2148
    %v2174 = vsel %vm2087, %v1356, %v2171
    %v2175 = vsel %vm2087, 0, %v2173
    %v2176 = vcosq.f32.pop %v2174
    %v2177 = vsinq.f32.pop %v2174
    %vm2178 = vweird.f32 %v1356
    %v2179 = vand.u32 %v2175, 3
    %vm2180 = vcmp.lt.s32.totalorder %v2179, 2
    %vm2181 = vcmp.eq.s32.totalorder %v2179, 0
    %v2182 = vxor.u32 %v2177, 2147483648
    %v2183 = vsel %vm2181, %v2176, %v2182
    %vm2184 = vcmp.eq.s32.totalorder %v2179, 2
    %v2185 = vxor.u32 %v2176, 2147483648
    %v2186 = vsel %vm2184, %v2185, %v2177
    %v2187 = vsel %vm2180, %v2183, %v2186
    %v2188 = vsel %vm2178, nan, %v2187
    %v2189 = vand.u32 2147483647, %v1357
    %vm2190 = vcmp.le.f32.partialorder %v2189, 0.7853982
    %vm2191 = vcmp.lt.s32.totalorder %v1357, 0
    %v2192 = vand.u32 %v1357, 2139095040
    %v2193 = vshrl.u32 %v2192, 23
    %v2194 = vsub.s32 %v2193, 127
    %v2195 = vand.u32 2147483647, %v1357
    %v2196 = vand.u32 %v2195, 8388607
    %v2197 = vor.u32 %v2196, 8388608
    %v2198 = vsub.s32 0, %v2197
    %v2199 = vadd.s32 %v2194, 1
    %vm2200 = vcmp.gt.s32.totalorder %v2199, 0
    %v2201 = vsel %vm2200, %v2199, 0
    %v2202 = vshrl.u32 %v2201, 5
    %v2203 = vand.u32 %v2201, 31
    %v2204 = vsub.s32 32, %v2203
    %v2205 = vshrl.u32 683565275, %v2204
    %v2206 = vshll.u32 683565275, %v2203
    %v2207 = vshrl.u32 2475754826, %v2204
    %v2208 = vor.u32 %v2206, %v2207
    %v2209 = vshll.u32 2475754826, %v2203
    %v2210 = vshrl.u32 2131351028, %v2204
    %v2211 = vor.u32 %v2209, %v2210
    %v2212 = vshll.u32 2131351028, %v2203
    %v2213 = vshrl.u32 2102212464, %v2204
    %v2214 = vor.u32 %v2212, %v2213
    %v2215 = vshll.u32 2102212464, %v2203
    %v2216 = vshrl.u32 920167782, %v2204
    %v2217 = vor.u32 %v2215, %v2216
    %v2218 = vshll.u32 920167782, %v2203
    %v2219 = vshrl.u32 1326507024, %v2204
    %v2220 = vor.u32 %v2218, %v2219
    %vm2221 = vcmp.lt.s32.totalorder %v2202, 1
    %vm2222 = vcmp.lt.s32.totalorder %v2202, 2
    %vm2223 = vcmp.lt.s32.totalorder %v2202, 3
    %vm2224 = vcmp.lt.s32.totalorder %v2202, 4
    %v2225 = vsel %vm2221, %v2205, %v2208
    %v2226 = vsel %vm2224, %v2214, 2102212464
    %v2227 = vsel %vm2223, %v2211, %v2226
    %v2228 = vsel %vm2222, %v2225, %v2227
    %v2229 = vsel %vm2221, %v2208, %v2211
    %v2230 = vsel %vm2224, %v2217, 920167782
    %v2231 = vsel %vm2223, %v2214, %v2230
    %v2232 = vsel %vm2222, %v2229, %v2231
    %v2233 = vsel %vm2221, %v2211, %v2214
    %v2234 = vsel %vm2224, %v2220, 1326507024
    %v2235 = vsel %vm2223, %v2217, %v2234
    %v2236 = vsel %vm2222, %v2233, %v2235
    %v2237 = vshll.u32 %v2197, 8
    %v2238 = vmul.u32.u64.compose %v2237, %v2236
    %v2239 = vextract.low.u32 %v2238
    %v2240 = vextract.high.u32 %v2238
    %v2241 = vmul.u32.u64.compose %v2237, %v2232
    %v2242 = vextract.low.u32 %v2241
    %v2243 = vextract.high.u32 %v2241
    %v2244 = vmul.u32 %v2237, %v2228
    %v2245 = vadd.s32 %v2240, %v2242
    %vm2246 = vc.u32 %v2240, %v2242
    %v2247 = vadd.s32 %v2243, 1
    %v2248 = vsel %vm2246, %v2247, %v2243
    %v2249 = vadd.s32 %v2244, %v2248
    %v2250 = vadd.s32 %v2249, 536870912
    %v2251 = vshrl.u32 %v2250, 30
    %v2252 = vshll.u32 %v2251, 30
    %v2253 = vsub.s32 %v2249, %v2252
    %vm2254 = vcmp.lt.s32.totalorder %v2253, 0
    %v2255 = vsub.s32 0, %v2253
    %v2256 = vsel %vm2254, %v2255, %v2253
    %v2257 = vclz %v2256
    %v2258 = vsub.s32 %v2257, 2
    %vm2259 = vcmp.gt.s32.totalorder 0, %v2258
    %v2260 = vsel %vm2259, 0, %v2258
    %v2261 = vsub.s32 32, %v2260
    %v2262 = vshll.u32 %v2253, %v2260
    %v2263 = vshrl.u32 %v2245, %v2261
    %v2264 = vor.u32 %v2262, %v2263
    %v2265 = vsub.s32 4294967266, %v2260
    %v2266 = vadd.s32 %v2265, 127
    %v2267 = vshll.u32 %v2266, 23
    %v2268 = vor.u32 4788187, %v2267
    %v2269 = vand.u32 2147483647, %v2268
    %v2271 = vcvt.s32.f32 %v2264
    %v2272 = vmul.f32 %v2271, %v2269
    %v2273 = vxor.u32 %v2272, 2147483648
    %v2274 = vsel %vm2191, %v2273, %v2272
    %v2275 = vsub.s32 4, %v2251
    %v2276 = vsel %vm2191, %v2275, %v2251
    %v2277 = vsel %vm2190, %v1357, %v2274
    %v2278 = vsel %vm2190, 0, %v2276
    %v2279 = vcosq.f32.pop %v2277
    %v2280 = vsinq.f32.pop %v2277
    %vm2281 = vweird.f32 %v1357
    %v2282 = vand.u32 %v2278, 3
    %vm2283 = vcmp.lt.s32.totalorder %v2282, 2
    %vm2284 = vcmp.eq.s32.totalorder %v2282, 0
    %v2285 = vxor.u32 %v2280, 2147483648
    %v2286 = vsel %vm2284, %v2279, %v2285
    %vm2287 = vcmp.eq.s32.totalorder %v2282, 2
    %v2288 = vxor.u32 %v2279, 2147483648
    %v2289 = vsel %vm2287, %v2288, %v2280
    %v2290 = vsel %vm2283, %v2286, %v2289
    %v2291 = vsel %vm2281, nan, %v2290
    %v2292 = vand.u32 2147483647, %v1358
    %vm2293 = vcmp.le.f32.partialorder %v2292, 0.7853982
    %vm2294 = vcmp.lt.s32.totalorder %v1358, 0
    %v2295 = vand.u32 %v1358, 2139095040
    %v2296 = vshrl.u32 %v2295, 23
    %v2297 = vsub.s32 %v2296, 127
    %v2298 = vand.u32 2147483647, %v1358
    %v2299 = vand.u32 %v2298, 8388607
    %v2300 = vor.u32 %v2299, 8388608
    %v2301 = vsub.s32 0, %v2300
    %v2302 = vadd.s32 %v2297, 1
    %vm2303 = vcmp.gt.s32.totalorder %v2302, 0
    %v2304 = vsel %vm2303, %v2302, 0
    %v2305 = vshrl.u32 %v2304, 5
    %v2306 = vand.u32 %v2304, 31
    %v2307 = vsub.s32 32, %v2306
    %v2308 = vshrl.u32 683565275, %v2307
    %v2309 = vshll.u32 683565275, %v2306
    %v2310 = vshrl.u32 2475754826, %v2307
    %v2311 = vor.u32 %v2309, %v2310
    %v2312 = vshll.u32 2475754826, %v2306
    %v2313 = vshrl.u32 2131351028, %v2307
    %v2314 = vor.u32 %v2312, %v2313
    %v2315 = vshll.u32 2131351028, %v2306
    %v2316 = vshrl.u32 2102212464, %v2307
    %v2317 = vor.u32 %v2315, %v2316
    %v2318 = vshll.u32 2102212464, %v2306
    %v2319 = vshrl.u32 920167782, %v2307
    %v2320 = vor.u32 %v2318, %v2319
    %v2321 = vshll.u32 920167782, %v2306
    %v2322 = vshrl.u32 1326507024, %v2307
    %v2323 = vor.u32 %v2321, %v2322
    %vm2324 = vcmp.lt.s32.totalorder %v2305, 1
    %vm2325 = vcmp.lt.s32.totalorder %v2305, 2
    %vm2326 = vcmp.lt.s32.totalorder %v2305, 3
    %vm2327 = vcmp.lt.s32.totalorder %v2305, 4
    %v2328 = vsel %vm2324, %v2308, %v2311
    %v2329 = vsel %vm2327, %v2317, 2102212464
    %v2330 = vsel %vm2326, %v2314, %v2329
    %v2331 = vsel %vm2325, %v2328, %v2330
    %v2332 = vsel %vm2324, %v2311, %v2314
    %v2333 = vsel %vm2327, %v2320, 920167782
    %v2334 = vsel %vm2326, %v2317, %v2333
    %v2335 = vsel %vm2325, %v2332, %v2334
    %v2336 = vsel %vm2324, %v2314, %v2317
    %v2337 = vsel %vm2327, %v2323, 1326507024
    %v2338 = vsel %vm2326, %v2320, %v2337
    %v2339 = vsel %vm2325, %v2336, %v2338
    %v2340 = vshll.u32 %v2300, 8
    %v2341 = vmul.u32.u64.compose %v2340, %v2339
    %v2342 = vextract.low.u32 %v2341
    %v2343 = vextract.high.u32 %v2341
    %v2344 = vmul.u32.u64.compose %v2340, %v2335
    %v2345 = vextract.low.u32 %v2344
    %v2346 = vextract.high.u32 %v2344
    %v2347 = vmul.u32 %v2340, %v2331
    %v2348 = vadd.s32 %v2343, %v2345
    %vm2349 = vc.u32 %v2343, %v2345
    %v2350 = vadd.s32 %v2346, 1
    %v2351 = vsel %vm2349, %v2350, %v2346
    %v2352 = vadd.s32 %v2347, %v2351
    %v2353 = vadd.s32 %v2352, 536870912
    %v2354 = vshrl.u32 %v2353, 30
    %v2355 = vshll.u32 %v2354, 30
    %v2356 = vsub.s32 %v2352, %v2355
    %vm2357 = vcmp.lt.s32.totalorder %v2356, 0
    %v2358 = vsub.s32 0, %v2356
    %v2359 = vsel %vm2357, %v2358, %v2356
    %v2360 = vclz %v2359
    %v2361 = vsub.s32 %v2360, 2
    %vm2362 = vcmp.gt.s32.totalorder 0, %v2361
    %v2363 = vsel %vm2362, 0, %v2361
    %v2364 = vsub.s32 32, %v2363
    %v2365 = vshll.u32 %v2356, %v2363
    %v2366 = vshrl.u32 %v2348, %v2364
    %v2367 = vor.u32 %v2365, %v2366
    %v2368 = vsub.s32 4294967266, %v2363
    %v2369 = vadd.s32 %v2368, 127
    %v2370 = vshll.u32 %v2369, 23
    %v2371 = vor.u32 4788187, %v2370
    %v2372 = vand.u32 2147483647, %v2371
    %v2374 = vcvt.s32.f32 %v2367
    %v2375 = vmul.f32 %v2374, %v2372
    %v2376 = vxor.u32 %v2375, 2147483648
    %v2377 = vsel %vm2294, %v2376, %v2375
    %v2378 = vsub.s32 4, %v2354
    %v2379 = vsel %vm2294, %v2378, %v2354
    %v2380 = vsel %vm2293, %v1358, %v2377
    %v2381 = vsel %vm2293, 0, %v2379
    %v2382 = vcosq.f32.pop %v2380
    %v2383 = vsinq.f32.pop %v2380
    %vm2384 = vweird.f32 %v1358
    %v2385 = vand.u32 %v2381, 3
    %vm2386 = vcmp.lt.s32.totalorder %v2385, 2
    %vm2387 = vcmp.eq.s32.totalorder %v2385, 0
    %v2388 = vxor.u32 %v2383, 2147483648
    %v2389 = vsel %vm2387, %v2382, %v2388
    %vm2390 = vcmp.eq.s32.totalorder %v2385, 2
    %v2391 = vxor.u32 %v2382, 2147483648
    %v2392 = vsel %vm2390, %v2391, %v2383
    %v2393 = vsel %vm2386, %v2389, %v2392
    %v2394 = vsel %vm2384, nan, %v2393
    %v2395 = vand.u32 2147483647, %v1359
    %vm2396 = vcmp.le.f32.partialorder %v2395, 0.7853982
    %vm2397 = vcmp.lt.s32.totalorder %v1359, 0
    %v2398 = vand.u32 %v1359, 2139095040
    %v2399 = vshrl.u32 %v2398, 23
    %v2400 = vsub.s32 %v2399, 127
    %v2401 = vand.u32 2147483647, %v1359
    %v2402 = vand.u32 %v2401, 8388607
    %v2403 = vor.u32 %v2402, 8388608
    %v2404 = vsub.s32 0, %v2403
    %v2405 = vadd.s32 %v2400, 1
    %vm2406 = vcmp.gt.s32.totalorder %v2405, 0
    %v2407 = vsel %vm2406, %v2405, 0
    %v2408 = vshrl.u32 %v2407, 5
    %v2409 = vand.u32 %v2407, 31
    %v2410 = vsub.s32 32, %v2409
    %v2411 = vshrl.u32 683565275, %v2410
    %v2412 = vshll.u32 683565275, %v2409
    %v2413 = vshrl.u32 2475754826, %v2410
    %v2414 = vor.u32 %v2412, %v2413
    %v2415 = vshll.u32 2475754826, %v2409
    %v2416 = vshrl.u32 2131351028, %v2410
    %v2417 = vor.u32 %v2415, %v2416
    %v2418 = vshll.u32 2131351028, %v2409
    %v2419 = vshrl.u32 2102212464, %v2410
    %v2420 = vor.u32 %v2418, %v2419
    %v2421 = vshll.u32 2102212464, %v2409
    %v2422 = vshrl.u32 920167782, %v2410
    %v2423 = vor.u32 %v2421, %v2422
    %v2424 = vshll.u32 920167782, %v2409
    %v2425 = vshrl.u32 1326507024, %v2410
    %v2426 = vor.u32 %v2424, %v2425
    %vm2427 = vcmp.lt.s32.totalorder %v2408, 1
    %vm2428 = vcmp.lt.s32.totalorder %v2408, 2
    %vm2429 = vcmp.lt.s32.totalorder %v2408, 3
    %vm2430 = vcmp.lt.s32.totalorder %v2408, 4
    %v2431 = vsel %vm2427, %v2411, %v2414
    %v2432 = vsel %vm2430, %v2420, 2102212464
    %v2433 = vsel %vm2429, %v2417, %v2432
    %v2434 = vsel %vm2428, %v2431, %v2433
    %v2435 = vsel %vm2427, %v2414, %v2417
    %v2436 = vsel %vm2430, %v2423, 920167782
    %v2437 = vsel %vm2429, %v2420, %v2436
    %v2438 = vsel %vm2428, %v2435, %v2437
    %v2439 = vsel %vm2427, %v2417, %v2420
    %v2440 = vsel %vm2430, %v2426, 1326507024
    %v2441 = vsel %vm2429, %v2423, %v2440
    %v2442 = vsel %vm2428, %v2439, %v2441
    %v2443 = vshll.u32 %v2403, 8
    %v2444 = vmul.u32.u64.compose %v2443, %v2442
    %v2445 = vextract.low.u32 %v2444
    %v2446 = vextract.high.u32 %v2444
    %v2447 = vmul.u32.u64.compose %v2443, %v2438
    %v2448 = vextract.low.u32 %v2447
    %v2449 = vextract.high.u32 %v2447
    %v2450 = vmul.u32 %v2443, %v2434
    %v2451 = vadd.s32 %v2446, %v2448
    %vm2452 = vc.u32 %v2446, %v2448
    %v2453 = vadd.s32 %v2449, 1
    %v2454 = vsel %vm2452, %v2453, %v2449
    %v2455 = vadd.s32 %v2450, %v2454
    %v2456 = vadd.s32 %v2455, 536870912
    %v2457 = vshrl.u32 %v2456, 30
    %v2458 = vshll.u32 %v2457, 30
    %v2459 = vsub.s32 %v2455, %v2458
    %vm2460 = vcmp.lt.s32.totalorder %v2459, 0
    %v2461 = vsub.s32 0, %v2459
    %v2462 = vsel %vm2460, %v2461, %v2459
    %v2463 = vclz %v2462
    %v2464 = vsub.s32 %v2463, 2
    %vm2465 = vcmp.gt.s32.totalorder 0, %v2464
    %v2466 = vsel %vm2465, 0, %v2464
    %v2467 = vsub.s32 32, %v2466
    %v2468 = vshll.u32 %v2459, %v2466
    %v2469 = vshrl.u32 %v2451, %v2467
    %v2470 = vor.u32 %v2468, %v2469
    %v2471 = vsub.s32 4294967266, %v2466
    %v2472 = vadd.s32 %v2471, 127
    %v2473 = vshll.u32 %v2472, 23
    %v2474 = vor.u32 4788187, %v2473
    %v2475 = vand.u32 2147483647, %v2474
    %v2477 = vcvt.s32.f32 %v2470
    %v2478 = vmul.f32 %v2477, %v2475
    %v2479 = vxor.u32 %v2478, 2147483648
    %v2480 = vsel %vm2397, %v2479, %v2478
    %v2481 = vsub.s32 4, %v2457
    %v2482 = vsel %vm2397, %v2481, %v2457
    %v2483 = vsel %vm2396, %v1359, %v2480
    %v2484 = vsel %vm2396, 0, %v2482
    %v2485 = vcosq.f32.pop %v2483
    %v2486 = vsinq.f32.pop %v2483
    %vm2487 = vweird.f32 %v1359
    %v2488 = vand.u32 %v2484, 3
    %vm2489 = vcmp.lt.s32.totalorder %v2488, 2
    %vm2490 = vcmp.eq.s32.totalorder %v2488, 0
    %v2491 = vxor.u32 %v2486, 2147483648
    %v2492 = vsel %vm2490, %v2485, %v2491
    %vm2493 = vcmp.eq.s32.totalorder %v2488, 2
    %v2494 = vxor.u32 %v2485, 2147483648
    %v2495 = vsel %vm2493, %v2494, %v2486
    %v2496 = vsel %vm2489, %v2492, %v2495
    %v2497 = vsel %vm2487, nan, %v2496
    %v2498 = vand.u32 2147483647, %v1360
    %vm2499 = vcmp.le.f32.partialorder %v2498, 0.7853982
    %vm2500 = vcmp.lt.s32.totalorder %v1360, 0
    %v2501 = vand.u32 %v1360, 2139095040
    %v2502 = vshrl.u32 %v2501, 23
    %v2503 = vsub.s32 %v2502, 127
    %v2504 = vand.u32 2147483647, %v1360
    %v2505 = vand.u32 %v2504, 8388607
    %v2506 = vor.u32 %v2505, 8388608
    %v2507 = vsub.s32 0, %v2506
    %v2508 = vadd.s32 %v2503, 1
    %vm2509 = vcmp.gt.s32.totalorder %v2508, 0
    %v2510 = vsel %vm2509, %v2508, 0
    %v2511 = vshrl.u32 %v2510, 5
    %v2512 = vand.u32 %v2510, 31
    %v2513 = vsub.s32 32, %v2512
    %v2514 = vshrl.u32 683565275, %v2513
    %v2515 = vshll.u32 683565275, %v2512
    %v2516 = vshrl.u32 2475754826, %v2513
    %v2517 = vor.u32 %v2515, %v2516
    %v2518 = vshll.u32 2475754826, %v2512
    %v2519 = vshrl.u32 2131351028, %v2513
    %v2520 = vor.u32 %v2518, %v2519
    %v2521 = vshll.u32 2131351028, %v2512
    %v2522 = vshrl.u32 2102212464, %v2513
    %v2523 = vor.u32 %v2521, %v2522
    %v2524 = vshll.u32 2102212464, %v2512
    %v2525 = vshrl.u32 920167782, %v2513
    %v2526 = vor.u32 %v2524, %v2525
    %v2527 = vshll.u32 920167782, %v2512
    %v2528 = vshrl.u32 1326507024, %v2513
    %v2529 = vor.u32 %v2527, %v2528
    %vm2530 = vcmp.lt.s32.totalorder %v2511, 1
    %vm2531 = vcmp.lt.s32.totalorder %v2511, 2
    %vm2532 = vcmp.lt.s32.totalorder %v2511, 3
    %vm2533 = vcmp.lt.s32.totalorder %v2511, 4
    %v2534 = vsel %vm2530, %v2514, %v2517
    %v2535 = vsel %vm2533, %v2523, 2102212464
    %v2536 = vsel %vm2532, %v2520, %v2535
    %v2537 = vsel %vm2531, %v2534, %v2536
    %v2538 = vsel %vm2530, %v2517, %v2520
    %v2539 = vsel %vm2533, %v2526, 920167782
    %v2540 = vsel %vm2532, %v2523, %v2539
    %v2541 = vsel %vm2531, %v2538, %v2540
    %v2542 = vsel %vm2530, %v2520, %v2523
    %v2543 = vsel %vm2533, %v2529, 1326507024
    %v2544 = vsel %vm2532, %v2526, %v2543
    %v2545 = vsel %vm2531, %v2542, %v2544
    %v2546 = vshll.u32 %v2506, 8
    %v2547 = vmul.u32.u64.compose %v2546, %v2545
    %v2548 = vextract.low.u32 %v2547
    %v2549 = vextract.high.u32 %v2547
    %v2550 = vmul.u32.u64.compose %v2546, %v2541
    %v2551 = vextract.low.u32 %v2550
    %v2552 = vextract.high.u32 %v2550
    %v2553 = vmul.u32 %v2546, %v2537
    %v2554 = vadd.s32 %v2549, %v2551
    %vm2555 = vc.u32 %v2549, %v2551
    %v2556 = vadd.s32 %v2552, 1
    %v2557 = vsel %vm2555, %v2556, %v2552
    %v2558 = vadd.s32 %v2553, %v2557
    %v2559 = vadd.s32 %v2558, 536870912
    %v2560 = vshrl.u32 %v2559, 30
    %v2561 = vshll.u32 %v2560, 30
    %v2562 = vsub.s32 %v2558, %v2561
    %vm2563 = vcmp.lt.s32.totalorder %v2562, 0
    %v2564 = vsub.s32 0, %v2562
    %v2565 = vsel %vm2563, %v2564, %v2562
    %v2566 = vclz %v2565
    %v2567 = vsub.s32 %v2566, 2
    %vm2568 = vcmp.gt.s32.totalorder 0, %v2567
    %v2569 = vsel %vm2568, 0, %v2567
    %v2570 = vsub.s32 32, %v2569
    %v2571 = vshll.u32 %v2562, %v2569
    %v2572 = vshrl.u32 %v2554, %v2570
    %v2573 = vor.u32 %v2571, %v2572
    %v2574 = vsub.s32 4294967266, %v2569
    %v2575 = vadd.s32 %v2574, 127
    %v2576 = vshll.u32 %v2575, 23
    %v2577 = vor.u32 4788187, %v2576
    %v2578 = vand.u32 2147483647, %v2577
    %v2580 = vcvt.s32.f32 %v2573
    %v2581 = vmul.f32 %v2580, %v2578
    %v2582 = vxor.u32 %v2581, 2147483648
    %v2583 = vsel %vm2500, %v2582, %v2581
    %v2584 = vsub.s32 4, %v2560
    %v2585 = vsel %vm2500, %v2584, %v2560
    %v2586 = vsel %vm2499, %v1360, %v2583
    %v2587 = vsel %vm2499, 0, %v2585
    %v2588 = vcosq.f32.pop %v2586
    %v2589 = vsinq.f32.pop %v2586
    %vm2590 = vweird.f32 %v1360
    %v2591 = vand.u32 %v2587, 3
    %vm2592 = vcmp.lt.s32.totalorder %v2591, 2
    %vm2593 = vcmp.eq.s32.totalorder %v2591, 0
    %v2594 = vxor.u32 %v2589, 2147483648
    %v2595 = vsel %vm2593, %v2588, %v2594
    %vm2596 = vcmp.eq.s32.totalorder %v2591, 2
    %v2597 = vxor.u32 %v2588, 2147483648
    %v2598 = vsel %vm2596, %v2597, %v2589
    %v2599 = vsel %vm2592, %v2595, %v2598
    %v2600 = vsel %vm2590, nan, %v2599
    %v2601 = vand.u32 2147483647, %v1361
    %vm2602 = vcmp.le.f32.partialorder %v2601, 0.7853982
    %vm2603 = vcmp.lt.s32.totalorder %v1361, 0
    %v2604 = vand.u32 %v1361, 2139095040
    %v2605 = vshrl.u32 %v2604, 23
    %v2606 = vsub.s32 %v2605, 127
    %v2607 = vand.u32 2147483647, %v1361
    %v2608 = vand.u32 %v2607, 8388607
    %v2609 = vor.u32 %v2608, 8388608
    %v2610 = vsub.s32 0, %v2609
    %v2611 = vadd.s32 %v2606, 1
    %vm2612 = vcmp.gt.s32.totalorder %v2611, 0
    %v2613 = vsel %vm2612, %v2611, 0
    %v2614 = vshrl.u32 %v2613, 5
    %v2615 = vand.u32 %v2613, 31
    %v2616 = vsub.s32 32, %v2615
    %v2617 = vshrl.u32 683565275, %v2616
    %v2618 = vshll.u32 683565275, %v2615
    %v2619 = vshrl.u32 2475754826, %v2616
    %v2620 = vor.u32 %v2618, %v2619
    %v2621 = vshll.u32 2475754826, %v2615
    %v2622 = vshrl.u32 2131351028, %v2616
    %v2623 = vor.u32 %v2621, %v2622
    %v2624 = vshll.u32 2131351028, %v2615
    %v2625 = vshrl.u32 2102212464, %v2616
    %v2626 = vor.u32 %v2624, %v2625
    %v2627 = vshll.u32 2102212464, %v2615
    %v2628 = vshrl.u32 920167782, %v2616
    %v2629 = vor.u32 %v2627, %v2628
    %v2630 = vshll.u32 920167782, %v2615
    %v2631 = vshrl.u32 1326507024, %v2616
    %v2632 = vor.u32 %v2630, %v2631
    %vm2633 = vcmp.lt.s32.totalorder %v2614, 1
    %vm2634 = vcmp.lt.s32.totalorder %v2614, 2
    %vm2635 = vcmp.lt.s32.totalorder %v2614, 3
    %vm2636 = vcmp.lt.s32.totalorder %v2614, 4
    %v2637 = vsel %vm2633, %v2617, %v2620
    %v2638 = vsel %vm2636, %v2626, 2102212464
    %v2639 = vsel %vm2635, %v2623, %v2638
    %v2640 = vsel %vm2634, %v2637, %v2639
    %v2641 = vsel %vm2633, %v2620, %v2623
    %v2642 = vsel %vm2636, %v2629, 920167782
    %v2643 = vsel %vm2635, %v2626, %v2642
    %v2644 = vsel %vm2634, %v2641, %v2643
    %v2645 = vsel %vm2633, %v2623, %v2626
    %v2646 = vsel %vm2636, %v2632, 1326507024
    %v2647 = vsel %vm2635, %v2629, %v2646
    %v2648 = vsel %vm2634, %v2645, %v2647
    %v2649 = vshll.u32 %v2609, 8
    %v2650 = vmul.u32.u64.compose %v2649, %v2648
    %v2651 = vextract.low.u32 %v2650
    %v2652 = vextract.high.u32 %v2650
    %v2653 = vmul.u32.u64.compose %v2649, %v2644
    %v2654 = vextract.low.u32 %v2653
    %v2655 = vextract.high.u32 %v2653
    %v2656 = vmul.u32 %v2649, %v2640
    %v2657 = vadd.s32 %v2652, %v2654
    %vm2658 = vc.u32 %v2652, %v2654
    %v2659 = vadd.s32 %v2655, 1
    %v2660 = vsel %vm2658, %v2659, %v2655
    %v2661 = vadd.s32 %v2656, %v2660
    %v2662 = vadd.s32 %v2661, 536870912
    %v2663 = vshrl.u32 %v2662, 30
    %v2664 = vshll.u32 %v2663, 30
    %v2665 = vsub.s32 %v2661, %v2664
    %vm2666 = vcmp.lt.s32.totalorder %v2665, 0
    %v2667 = vsub.s32 0, %v2665
    %v2668 = vsel %vm2666, %v2667, %v2665
    %v2669 = vclz %v2668
    %v2670 = vsub.s32 %v2669, 2
    %vm2671 = vcmp.gt.s32.totalorder 0, %v2670
    %v2672 = vsel %vm2671, 0, %v2670
    %v2673 = vsub.s32 32, %v2672
    %v2674 = vshll.u32 %v2665, %v2672
    %v2675 = vshrl.u32 %v2657, %v2673
    %v2676 = vor.u32 %v2674, %v2675
    %v2677 = vsub.s32 4294967266, %v2672
    %v2678 = vadd.s32 %v2677, 127
    %v2679 = vshll.u32 %v2678, 23
    %v2680 = vor.u32 4788187, %v2679
    %v2681 = vand.u32 2147483647, %v2680
    %v2683 = vcvt.s32.f32 %v2676
    %v2684 = vmul.f32 %v2683, %v2681
    %v2685 = vxor.u32 %v2684, 2147483648
    %v2686 = vsel %vm2603, %v2685, %v2684
    %v2687 = vsub.s32 4, %v2663
    %v2688 = vsel %vm2603, %v2687, %v2663
    %v2689 = vsel %vm2602, %v1361, %v2686
    %v2690 = vsel %vm2602, 0, %v2688
    %v2691 = vcosq.f32.pop %v2689
    %v2692 = vsinq.f32.pop %v2689
    %vm2693 = vweird.f32 %v1361
    %v2694 = vand.u32 %v2690, 3
    %vm2695 = vcmp.lt.s32.totalorder %v2694, 2
    %vm2696 = vcmp.eq.s32.totalorder %v2694, 0
    %v2697 = vxor.u32 %v2692, 2147483648
    %v2698 = vsel %vm2696, %v2691, %v2697
    %vm2699 = vcmp.eq.s32.totalorder %v2694, 2
    %v2700 = vxor.u32 %v2691, 2147483648
    %v2701 = vsel %vm2699, %v2700, %v2692
    %v2702 = vsel %vm2695, %v2698, %v2701
    %v2703 = vsel %vm2693, nan, %v2702
    %v2704 = vand.u32 2147483647, %v1362
    %vm2705 = vcmp.le.f32.partialorder %v2704, 0.7853982
    %vm2706 = vcmp.lt.s32.totalorder %v1362, 0
    %v2707 = vand.u32 %v1362, 2139095040
    %v2708 = vshrl.u32 %v2707, 23
    %v2709 = vsub.s32 %v2708, 127
    %v2710 = vand.u32 2147483647, %v1362
    %v2711 = vand.u32 %v2710, 8388607
    %v2712 = vor.u32 %v2711, 8388608
    %v2713 = vsub.s32 0, %v2712
    %v2714 = vadd.s32 %v2709, 1
    %vm2715 = vcmp.gt.s32.totalorder %v2714, 0
    %v2716 = vsel %vm2715, %v2714, 0
    %v2717 = vshrl.u32 %v2716, 5
    %v2718 = vand.u32 %v2716, 31
    %v2719 = vsub.s32 32, %v2718
    %v2720 = vshrl.u32 683565275, %v2719
    %v2721 = vshll.u32 683565275, %v2718
    %v2722 = vshrl.u32 2475754826, %v2719
    %v2723 = vor.u32 %v2721, %v2722
    %v2724 = vshll.u32 2475754826, %v2718
    %v2725 = vshrl.u32 2131351028, %v2719
    %v2726 = vor.u32 %v2724, %v2725
    %v2727 = vshll.u32 2131351028, %v2718
    %v2728 = vshrl.u32 2102212464, %v2719
    %v2729 = vor.u32 %v2727, %v2728
    %v2730 = vshll.u32 2102212464, %v2718
    %v2731 = vshrl.u32 920167782, %v2719
    %v2732 = vor.u32 %v2730, %v2731
    %v2733 = vshll.u32 920167782, %v2718
    %v2734 = vshrl.u32 1326507024, %v2719
    %v2735 = vor.u32 %v2733, %v2734
    %vm2736 = vcmp.lt.s32.totalorder %v2717, 1
    %vm2737 = vcmp.lt.s32.totalorder %v2717, 2
    %vm2738 = vcmp.lt.s32.totalorder %v2717, 3
    %vm2739 = vcmp.lt.s32.totalorder %v2717, 4
    %v2740 = vsel %vm2736, %v2720, %v2723
    %v2741 = vsel %vm2739, %v2729, 2102212464
    %v2742 = vsel %vm2738, %v2726, %v2741
    %v2743 = vsel %vm2737, %v2740, %v2742
    %v2744 = vsel %vm2736, %v2723, %v2726
    %v2745 = vsel %vm2739, %v2732, 920167782
    %v2746 = vsel %vm2738, %v2729, %v2745
    %v2747 = vsel %vm2737, %v2744, %v2746
    %v2748 = vsel %vm2736, %v2726, %v2729
    %v2749 = vsel %vm2739, %v2735, 1326507024
    %v2750 = vsel %vm2738, %v2732, %v2749
    %v2751 = vsel %vm2737, %v2748, %v2750
    %v2752 = vshll.u32 %v2712, 8
    %v2753 = vmul.u32.u64.compose %v2752, %v2751
    %v2754 = vextract.low.u32 %v2753
    %v2755 = vextract.high.u32 %v2753
    %v2756 = vmul.u32.u64.compose %v2752, %v2747
    %v2757 = vextract.low.u32 %v2756
    %v2758 = vextract.high.u32 %v2756
    %v2759 = vmul.u32 %v2752, %v2743
    %v2760 = vadd.s32 %v2755, %v2757
    %vm2761 = vc.u32 %v2755, %v2757
    %v2762 = vadd.s32 %v2758, 1
    %v2763 = vsel %vm2761, %v2762, %v2758
    %v2764 = vadd.s32 %v2759, %v2763
    %v2765 = vadd.s32 %v2764, 536870912
    %v2766 = vshrl.u32 %v2765, 30
    %v2767 = vshll.u32 %v2766, 30
    %v2768 = vsub.s32 %v2764, %v2767
    %vm2769 = vcmp.lt.s32.totalorder %v2768, 0
    %v2770 = vsub.s32 0, %v2768
    %v2771 = vsel %vm2769, %v2770, %v2768
    %v2772 = vclz %v2771
    %v2773 = vsub.s32 %v2772, 2
    %vm2774 = vcmp.gt.s32.totalorder 0, %v2773
    %v2775 = vsel %vm2774, 0, %v2773
    %v2776 = vsub.s32 32, %v2775
    %v2777 = vshll.u32 %v2768, %v2775
    %v2778 = vshrl.u32 %v2760, %v2776
    %v2779 = vor.u32 %v2777, %v2778
    %v2780 = vsub.s32 4294967266, %v2775
    %v2781 = vadd.s32 %v2780, 127
    %v2782 = vshll.u32 %v2781, 23
    %v2783 = vor.u32 4788187, %v2782
    %v2784 = vand.u32 2147483647, %v2783
    %v2786 = vcvt.s32.f32 %v2779
    %v2787 = vmul.f32 %v2786, %v2784
    %v2788 = vxor.u32 %v2787, 2147483648
    %v2789 = vsel %vm2706, %v2788, %v2787
    %v2790 = vsub.s32 4, %v2766
    %v2791 = vsel %vm2706, %v2790, %v2766
    %v2792 = vsel %vm2705, %v1362, %v2789
    %v2793 = vsel %vm2705, 0, %v2791
    %v2794 = vcosq.f32.pop %v2792
    %v2795 = vsinq.f32.pop %v2792
    %vm2796 = vweird.f32 %v1362
    %v2797 = vand.u32 %v2793, 3
    %vm2798 = vcmp.lt.s32.totalorder %v2797, 2
    %vm2799 = vcmp.eq.s32.totalorder %v2797, 0
    %v2800 = vxor.u32 %v2795, 2147483648
    %v2801 = vsel %vm2799, %v2794, %v2800
    %vm2802 = vcmp.eq.s32.totalorder %v2797, 2
    %v2803 = vxor.u32 %v2794, 2147483648
    %v2804 = vsel %vm2802, %v2803, %v2795
    %v2805 = vsel %vm2798, %v2801, %v2804
    %v2806 = vsel %vm2796, nan, %v2805
    %v2807 = vand.u32 2147483647, %v1363
    %vm2808 = vcmp.le.f32.partialorder %v2807, 0.7853982
    %vm2809 = vcmp.lt.s32.totalorder %v1363, 0
    %v2810 = vand.u32 %v1363, 2139095040
    %v2811 = vshrl.u32 %v2810, 23
    %v2812 = vsub.s32 %v2811, 127
    %v2813 = vand.u32 2147483647, %v1363
    %v2814 = vand.u32 %v2813, 8388607
    %v2815 = vor.u32 %v2814, 8388608
    %v2816 = vsub.s32 0, %v2815
    %v2817 = vadd.s32 %v2812, 1
    %vm2818 = vcmp.gt.s32.totalorder %v2817, 0
    %v2819 = vsel %vm2818, %v2817, 0
    %v2820 = vshrl.u32 %v2819, 5
    %v2821 = vand.u32 %v2819, 31
    %v2822 = vsub.s32 32, %v2821
    %v2823 = vshrl.u32 683565275, %v2822
    %v2824 = vshll.u32 683565275, %v2821
    %v2825 = vshrl.u32 2475754826, %v2822
    %v2826 = vor.u32 %v2824, %v2825
    %v2827 = vshll.u32 2475754826, %v2821
    %v2828 = vshrl.u32 2131351028, %v2822
    %v2829 = vor.u32 %v2827, %v2828
    %v2830 = vshll.u32 2131351028, %v2821
    %v2831 = vshrl.u32 2102212464, %v2822
    %v2832 = vor.u32 %v2830, %v2831
    %v2833 = vshll.u32 2102212464, %v2821
    %v2834 = vshrl.u32 920167782, %v2822
    %v2835 = vor.u32 %v2833, %v2834
    %v2836 = vshll.u32 920167782, %v2821
    %v2837 = vshrl.u32 1326507024, %v2822
    %v2838 = vor.u32 %v2836, %v2837
    %vm2839 = vcmp.lt.s32.totalorder %v2820, 1
    %vm2840 = vcmp.lt.s32.totalorder %v2820, 2
    %vm2841 = vcmp.lt.s32.totalorder %v2820, 3
    %vm2842 = vcmp.lt.s32.totalorder %v2820, 4
    %v2843 = vsel %vm2839, %v2823, %v2826
    %v2844 = vsel %vm2842, %v2832, 2102212464
    %v2845 = vsel %vm2841, %v2829, %v2844
    %v2846 = vsel %vm2840, %v2843, %v2845
    %v2847 = vsel %vm2839, %v2826, %v2829
    %v2848 = vsel %vm2842, %v2835, 920167782
    %v2849 = vsel %vm2841, %v2832, %v2848
    %v2850 = vsel %vm2840, %v2847, %v2849
    %v2851 = vsel %vm2839, %v2829, %v2832
    %v2852 = vsel %vm2842, %v2838, 1326507024
    %v2853 = vsel %vm2841, %v2835, %v2852
    %v2854 = vsel %vm2840, %v2851, %v2853
    %v2855 = vshll.u32 %v2815, 8
    %v2856 = vmul.u32.u64.compose %v2855, %v2854
    %v2857 = vextract.low.u32 %v2856
    %v2858 = vextract.high.u32 %v2856
    %v2859 = vmul.u32.u64.compose %v2855, %v2850
    %v2860 = vextract.low.u32 %v2859
    %v2861 = vextract.high.u32 %v2859
    %v2862 = vmul.u32 %v2855, %v2846
    %v2863 = vadd.s32 %v2858, %v2860
    %vm2864 = vc.u32 %v2858, %v2860
    %v2865 = vadd.s32 %v2861, 1
    %v2866 = vsel %vm2864, %v2865, %v2861
    %v2867 = vadd.s32 %v2862, %v2866
    %v2868 = vadd.s32 %v2867, 536870912
    %v2869 = vshrl.u32 %v2868, 30
    %v2870 = vshll.u32 %v2869, 30
    %v2871 = vsub.s32 %v2867, %v2870
    %vm2872 = vcmp.lt.s32.totalorder %v2871, 0
    %v2873 = vsub.s32 0, %v2871
    %v2874 = vsel %vm2872, %v2873, %v2871
    %v2875 = vclz %v2874
    %v2876 = vsub.s32 %v2875, 2
    %vm2877 = vcmp.gt.s32.totalorder 0, %v2876
    %v2878 = vsel %vm2877, 0, %v2876
    %v2879 = vsub.s32 32, %v2878
    %v2880 = vshll.u32 %v2871, %v2878
    %v2881 = vshrl.u32 %v2863, %v2879
    %v2882 = vor.u32 %v2880, %v2881
    %v2883 = vsub.s32 4294967266, %v2878
    %v2884 = vadd.s32 %v2883, 127
    %v2885 = vshll.u32 %v2884, 23
    %v2886 = vor.u32 4788187, %v2885
    %v2887 = vand.u32 2147483647, %v2886
    %v2889 = vcvt.s32.f32 %v2882
    %v2890 = vmul.f32 %v2889, %v2887
    %v2891 = vxor.u32 %v2890, 2147483648
    %v2892 = vsel %vm2809, %v2891, %v2890
    %v2893 = vsub.s32 4, %v2869
    %v2894 = vsel %vm2809, %v2893, %v2869
    %v2895 = vsel %vm2808, %v1363, %v2892
    %v2896 = vsel %vm2808, 0, %v2894
    %v2897 = vcosq.f32.pop %v2895
    %v2898 = vsinq.f32.pop %v2895
    %vm2899 = vweird.f32 %v1363
    %v2900 = vand.u32 %v2896, 3
    %vm2901 = vcmp.lt.s32.totalorder %v2900, 2
    %vm2902 = vcmp.eq.s32.totalorder %v2900, 0
    %v2903 = vxor.u32 %v2898, 2147483648
    %v2904 = vsel %vm2902, %v2897, %v2903
    %vm2905 = vcmp.eq.s32.totalorder %v2900, 2
    %v2906 = vxor.u32 %v2897, 2147483648
    %v2907 = vsel %vm2905, %v2906, %v2898
    %v2908 = vsel %vm2901, %v2904, %v2907
    %v2909 = vsel %vm2899, nan, %v2908
    %v2910 = vand.u32 2147483647, %v1364
    %vm2911 = vcmp.le.f32.partialorder %v2910, 0.7853982
    %vm2912 = vcmp.lt.s32.totalorder %v1364, 0
    %v2913 = vand.u32 %v1364, 2139095040
    %v2914 = vshrl.u32 %v2913, 23
    %v2915 = vsub.s32 %v2914, 127
    %v2916 = vand.u32 2147483647, %v1364
    %v2917 = vand.u32 %v2916, 8388607
    %v2918 = vor.u32 %v2917, 8388608
    %v2919 = vsub.s32 0, %v2918
    %v2920 = vadd.s32 %v2915, 1
    %vm2921 = vcmp.gt.s32.totalorder %v2920, 0
    %v2922 = vsel %vm2921, %v2920, 0
    %v2923 = vshrl.u32 %v2922, 5
    %v2924 = vand.u32 %v2922, 31
    %v2925 = vsub.s32 32, %v2924
    %v2926 = vshrl.u32 683565275, %v2925
    %v2927 = vshll.u32 683565275, %v2924
    %v2928 = vshrl.u32 2475754826, %v2925
    %v2929 = vor.u32 %v2927, %v2928
    %v2930 = vshll.u32 2475754826, %v2924
    %v2931 = vshrl.u32 2131351028, %v2925
    %v2932 = vor.u32 %v2930, %v2931
    %v2933 = vshll.u32 2131351028, %v2924
    %v2934 = vshrl.u32 2102212464, %v2925
    %v2935 = vor.u32 %v2933, %v2934
    %v2936 = vshll.u32 2102212464, %v2924
    %v2937 = vshrl.u32 920167782, %v2925
    %v2938 = vor.u32 %v2936, %v2937
    %v2939 = vshll.u32 920167782, %v2924
    %v2940 = vshrl.u32 1326507024, %v2925
    %v2941 = vor.u32 %v2939, %v2940
    %vm2942 = vcmp.lt.s32.totalorder %v2923, 1
    %vm2943 = vcmp.lt.s32.totalorder %v2923, 2
    %vm2944 = vcmp.lt.s32.totalorder %v2923, 3
    %vm2945 = vcmp.lt.s32.totalorder %v2923, 4
    %v2946 = vsel %vm2942, %v2926, %v2929
    %v2947 = vsel %vm2945, %v2935, 2102212464
    %v2948 = vsel %vm2944, %v2932, %v2947
    %v2949 = vsel %vm2943, %v2946, %v2948
    %v2950 = vsel %vm2942, %v2929, %v2932
    %v2951 = vsel %vm2945, %v2938, 920167782
    %v2952 = vsel %vm2944, %v2935, %v2951
    %v2953 = vsel %vm2943, %v2950, %v2952
    %v2954 = vsel %vm2942, %v2932, %v2935
    %v2955 = vsel %vm2945, %v2941, 1326507024
    %v2956 = vsel %vm2944, %v2938, %v2955
    %v2957 = vsel %vm2943, %v2954, %v2956
    %v2958 = vshll.u32 %v2918, 8
    %v2959 = vmul.u32.u64.compose %v2958, %v2957
    %v2960 = vextract.low.u32 %v2959
    %v2961 = vextract.high.u32 %v2959
    %v2962 = vmul.u32.u64.compose %v2958, %v2953
    %v2963 = vextract.low.u32 %v2962
    %v2964 = vextract.high.u32 %v2962
    %v2965 = vmul.u32 %v2958, %v2949
    %v2966 = vadd.s32 %v2961, %v2963
    %vm2967 = vc.u32 %v2961, %v2963
    %v2968 = vadd.s32 %v2964, 1
    %v2969 = vsel %vm2967, %v2968, %v2964
    %v2970 = vadd.s32 %v2965, %v2969
    %v2971 = vadd.s32 %v2970, 536870912
    %v2972 = vshrl.u32 %v2971, 30
    %v2973 = vshll.u32 %v2972, 30
    %v2974 = vsub.s32 %v2970, %v2973
    %vm2975 = vcmp.lt.s32.totalorder %v2974, 0
    %v2976 = vsub.s32 0, %v2974
    %v2977 = vsel %vm2975, %v2976, %v2974
    %v2978 = vclz %v2977
    %v2979 = vsub.s32 %v2978, 2
    %vm2980 = vcmp.gt.s32.totalorder 0, %v2979
    %v2981 = vsel %vm2980, 0, %v2979
    %v2982 = vsub.s32 32, %v2981
    %v2983 = vshll.u32 %v2974, %v2981
    %v2984 = vshrl.u32 %v2966, %v2982
    %v2985 = vor.u32 %v2983, %v2984
    %v2986 = vsub.s32 4294967266, %v2981
    %v2987 = vadd.s32 %v2986, 127
    %v2988 = vshll.u32 %v2987, 23
    %v2989 = vor.u32 4788187, %v2988
    %v2990 = vand.u32 2147483647, %v2989
    %v2992 = vcvt.s32.f32 %v2985
    %v2993 = vmul.f32 %v2992, %v2990
    %v2994 = vxor.u32 %v2993, 2147483648
    %v2995 = vsel %vm2912, %v2994, %v2993
    %v2996 = vsub.s32 4, %v2972
    %v2997 = vsel %vm2912, %v2996, %v2972
    %v2998 = vsel %vm2911, %v1364, %v2995
    %v2999 = vsel %vm2911, 0, %v2997
    %v3000 = vcosq.f32.pop %v2998
    %v3001 = vsinq.f32.pop %v2998
    %vm3002 = vweird.f32 %v1364
    %v3003 = vand.u32 %v2999, 3
    %vm3004 = vcmp.lt.s32.totalorder %v3003, 2
    %vm3005 = vcmp.eq.s32.totalorder %v3003, 0
    %v3006 = vxor.u32 %v3001, 2147483648
    %v3007 = vsel %vm3005, %v3000, %v3006
    %vm3008 = vcmp.eq.s32.totalorder %v3003, 2
    %v3009 = vxor.u32 %v3000, 2147483648
    %v3010 = vsel %vm3008, %v3009, %v3001
    %v3011 = vsel %vm3004, %v3007, %v3010
    %v3012 = vsel %vm3002, nan, %v3011
    %v3013 = vmul.f32 %v1243, %v1467
    %v3014 = vmul.f32 %v1250, %v1570
    %v3015 = vmul.f32 %v1257, %v1673
    %v3016 = vmul.f32 %v1264, %v1776
    %v3017 = vmul.f32 %v1271, %v1879
    %v3018 = vmul.f32 %v1278, %v1982
    %v3019 = vmul.f32 %v1285, %v2085
    %v3020 = vmul.f32 %v1292, %v2188
    %v3021 = vmul.f32 %v1299, %v2291
    %v3022 = vmul.f32 %v1306, %v2394
    %v3023 = vmul.f32 %v1313, %v2497
    %v3024 = vmul.f32 %v1320, %v2600
    %v3025 = vmul.f32 %v1327, %v2703
    %v3026 = vmul.f32 %v1334, %v2806
    %v3027 = vmul.f32 %v1341, %v2909
    %v3028 = vmul.f32 %v1348, %v3012
    %v3029 = vand.u32 2147483647, %v1349
    %vm3030 = vcmp.le.f32.partialorder %v3029, 0.7853982
    %vm3031 = vcmp.lt.s32.totalorder %v1349, 0
    %v3032 = vand.u32 %v1349, 2139095040
    %v3033 = vshrl.u32 %v3032, 23
    %v3034 = vsub.s32 %v3033, 127
    %v3035 = vand.u32 2147483647, %v1349
    %v3036 = vand.u32 %v3035, 8388607
    %v3037 = vor.u32 %v3036, 8388608
    %v3038 = vsub.s32 0, %v3037
    %v3039 = vadd.s32 %v3034, 1
    %vm3040 = vcmp.gt.s32.totalorder %v3039, 0
    %v3041 = vsel %vm3040, %v3039, 0
    %v3042 = vshrl.u32 %v3041, 5
    %v3043 = vand.u32 %v3041, 31
    %v3044 = vsub.s32 32, %v3043
    %v3045 = vshrl.u32 683565275, %v3044
    %v3046 = vshll.u32 683565275, %v3043
    %v3047 = vshrl.u32 2475754826, %v3044
    %v3048 = vor.u32 %v3046, %v3047
    %v3049 = vshll.u32 2475754826, %v3043
    %v3050 = vshrl.u32 2131351028, %v3044
    %v3051 = vor.u32 %v3049, %v3050
    %v3052 = vshll.u32 2131351028, %v3043
    %v3053 = vshrl.u32 2102212464, %v3044
    %v3054 = vor.u32 %v3052, %v3053
    %v3055 = vshll.u32 2102212464, %v3043
    %v3056 = vshrl.u32 920167782, %v3044
    %v3057 = vor.u32 %v3055, %v3056
    %v3058 = vshll.u32 920167782, %v3043
    %v3059 = vshrl.u32 1326507024, %v3044
    %v3060 = vor.u32 %v3058, %v3059
    %vm3061 = vcmp.lt.s32.totalorder %v3042, 1
    %vm3062 = vcmp.lt.s32.totalorder %v3042, 2
    %vm3063 = vcmp.lt.s32.totalorder %v3042, 3
    %vm3064 = vcmp.lt.s32.totalorder %v3042, 4
    %v3065 = vsel %vm3061, %v3045, %v3048
    %v3066 = vsel %vm3064, %v3054, 2102212464
    %v3067 = vsel %vm3063, %v3051, %v3066
    %v3068 = vsel %vm3062, %v3065, %v3067
    %v3069 = vsel %vm3061, %v3048, %v3051
    %v3070 = vsel %vm3064, %v3057, 920167782
    %v3071 = vsel %vm3063, %v3054, %v3070
    %v3072 = vsel %vm3062, %v3069, %v3071
    %v3073 = vsel %vm3061, %v3051, %v3054
    %v3074 = vsel %vm3064, %v3060, 1326507024
    %v3075 = vsel %vm3063, %v3057, %v3074
    %v3076 = vsel %vm3062, %v3073, %v3075
    %v3077 = vshll.u32 %v3037, 8
    %v3078 = vmul.u32.u64.compose %v3077, %v3076
    %v3079 = vextract.low.u32 %v3078
    %v3080 = vextract.high.u32 %v3078
    %v3081 = vmul.u32.u64.compose %v3077, %v3072
    %v3082 = vextract.low.u32 %v3081
    %v3083 = vextract.high.u32 %v3081
    %v3084 = vmul.u32 %v3077, %v3068
    %v3085 = vadd.s32 %v3080, %v3082
    %vm3086 = vc.u32 %v3080, %v3082
    %v3087 = vadd.s32 %v3083, 1
    %v3088 = vsel %vm3086, %v3087, %v3083
    %v3089 = vadd.s32 %v3084, %v3088
    %v3090 = vadd.s32 %v3089, 536870912
    %v3091 = vshrl.u32 %v3090, 30
    %v3092 = vshll.u32 %v3091, 30
    %v3093 = vsub.s32 %v3089, %v3092
    %vm3094 = vcmp.lt.s32.totalorder %v3093, 0
    %v3095 = vsub.s32 0, %v3093
    %v3096 = vsel %vm3094, %v3095, %v3093
    %v3097 = vclz %v3096
    %v3098 = vsub.s32 %v3097, 2
    %vm3099 = vcmp.gt.s32.totalorder 0, %v3098
    %v3100 = vsel %vm3099, 0, %v3098
    %v3101 = vsub.s32 32, %v3100
    %v3102 = vshll.u32 %v3093, %v3100
    %v3103 = vshrl.u32 %v3085, %v3101
    %v3104 = vor.u32 %v3102, %v3103
    %v3105 = vsub.s32 4294967266, %v3100
    %v3106 = vadd.s32 %v3105, 127
    %v3107 = vshll.u32 %v3106, 23
    %v3108 = vor.u32 4788187, %v3107
    %v3109 = vand.u32 2147483647, %v3108
    %v3111 = vcvt.s32.f32 %v3104
    %v3112 = vmul.f32 %v3111, %v3109
    %v3113 = vxor.u32 %v3112, 2147483648
    %v3114 = vsel %vm3031, %v3113, %v3112
    %v3115 = vsub.s32 4, %v3091
    %v3116 = vsel %vm3031, %v3115, %v3091
    %v3117 = vsel %vm3030, %v1349, %v3114
    %v3118 = vsel %vm3030, 0, %v3116
    %v3119 = vcosq.f32.pop %v3117
    %v3120 = vsinq.f32.pop %v3117
    %vm3121 = vweird.f32 %v1349
    %v3122 = vadd.s32 %v3118, 3
    %v3123 = vand.u32 %v3122, 3
    %vm3124 = vcmp.lt.s32.totalorder %v3123, 2
    %vm3125 = vcmp.eq.s32.totalorder %v3123, 0
    %v3126 = vxor.u32 %v3120, 2147483648
    %v3127 = vsel %vm3125, %v3119, %v3126
    %vm3128 = vcmp.eq.s32.totalorder %v3123, 2
    %v3129 = vxor.u32 %v3119, 2147483648
    %v3130 = vsel %vm3128, %v3129, %v3120
    %v3131 = vsel %vm3124, %v3127, %v3130
    %v3132 = vsel %vm3121, nan, %v3131
    %v3133 = vand.u32 2147483647, %v1350
    %vm3134 = vcmp.le.f32.partialorder %v3133, 0.7853982
    %vm3135 = vcmp.lt.s32.totalorder %v1350, 0
    %v3136 = vand.u32 %v1350, 2139095040
    %v3137 = vshrl.u32 %v3136, 23
    %v3138 = vsub.s32 %v3137, 127
    %v3139 = vand.u32 2147483647, %v1350
    %v3140 = vand.u32 %v3139, 8388607
    %v3141 = vor.u32 %v3140, 8388608
    %v3142 = vsub.s32 0, %v3141
    %v3143 = vadd.s32 %v3138, 1
    %vm3144 = vcmp.gt.s32.totalorder %v3143, 0
    %v3145 = vsel %vm3144, %v3143, 0
    %v3146 = vshrl.u32 %v3145, 5
    %v3147 = vand.u32 %v3145, 31
    %v3148 = vsub.s32 32, %v3147
    %v3149 = vshrl.u32 683565275, %v3148
    %v3150 = vshll.u32 683565275, %v3147
    %v3151 = vshrl.u32 2475754826, %v3148
    %v3152 = vor.u32 %v3150, %v3151
    %v3153 = vshll.u32 2475754826, %v3147
    %v3154 = vshrl.u32 2131351028, %v3148
    %v3155 = vor.u32 %v3153, %v3154
    %v3156 = vshll.u32 2131351028, %v3147
    %v3157 = vshrl.u32 2102212464, %v3148
    %v3158 = vor.u32 %v3156, %v3157
    %v3159 = vshll.u32 2102212464, %v3147
    %v3160 = vshrl.u32 920167782, %v3148
    %v3161 = vor.u32 %v3159, %v3160
    %v3162 = vshll.u32 920167782, %v3147
    %v3163 = vshrl.u32 1326507024, %v3148
    %v3164 = vor.u32 %v3162, %v3163
    %vm3165 = vcmp.lt.s32.totalorder %v3146, 1
    %vm3166 = vcmp.lt.s32.totalorder %v3146, 2
    %vm3167 = vcmp.lt.s32.totalorder %v3146, 3
    %vm3168 = vcmp.lt.s32.totalorder %v3146, 4
    %v3169 = vsel %vm3165, %v3149, %v3152
    %v3170 = vsel %vm3168, %v3158, 2102212464
    %v3171 = vsel %vm3167, %v3155, %v3170
    %v3172 = vsel %vm3166, %v3169, %v3171
    %v3173 = vsel %vm3165, %v3152, %v3155
    %v3174 = vsel %vm3168, %v3161, 920167782
    %v3175 = vsel %vm3167, %v3158, %v3174
    %v3176 = vsel %vm3166, %v3173, %v3175
    %v3177 = vsel %vm3165, %v3155, %v3158
    %v3178 = vsel %vm3168, %v3164, 1326507024
    %v3179 = vsel %vm3167, %v3161, %v3178
    %v3180 = vsel %vm3166, %v3177, %v3179
    %v3181 = vshll.u32 %v3141, 8
    %v3182 = vmul.u32.u64.compose %v3181, %v3180
    %v3183 = vextract.low.u32 %v3182
    %v3184 = vextract.high.u32 %v3182
    %v3185 = vmul.u32.u64.compose %v3181, %v3176
    %v3186 = vextract.low.u32 %v3185
    %v3187 = vextract.high.u32 %v3185
    %v3188 = vmul.u32 %v3181, %v3172
    %v3189 = vadd.s32 %v3184, %v3186
    %vm3190 = vc.u32 %v3184, %v3186
    %v3191 = vadd.s32 %v3187, 1
    %v3192 = vsel %vm3190, %v3191, %v3187
    %v3193 = vadd.s32 %v3188, %v3192
    %v3194 = vadd.s32 %v3193, 536870912
    %v3195 = vshrl.u32 %v3194, 30
    %v3196 = vshll.u32 %v3195, 30
    %v3197 = vsub.s32 %v3193, %v3196
    %vm3198 = vcmp.lt.s32.totalorder %v3197, 0
    %v3199 = vsub.s32 0, %v3197
    %v3200 = vsel %vm3198, %v3199, %v3197
    %v3201 = vclz %v3200
    %v3202 = vsub.s32 %v3201, 2
    %vm3203 = vcmp.gt.s32.totalorder 0, %v3202
    %v3204 = vsel %vm3203, 0, %v3202
    %v3205 = vsub.s32 32, %v3204
    %v3206 = vshll.u32 %v3197, %v3204
    %v3207 = vshrl.u32 %v3189, %v3205
    %v3208 = vor.u32 %v3206, %v3207
    %v3209 = vsub.s32 4294967266, %v3204
    %v3210 = vadd.s32 %v3209, 127
    %v3211 = vshll.u32 %v3210, 23
    %v3212 = vor.u32 4788187, %v3211
    %v3213 = vand.u32 2147483647, %v3212
    %v3215 = vcvt.s32.f32 %v3208
    %v3216 = vmul.f32 %v3215, %v3213
    %v3217 = vxor.u32 %v3216, 2147483648
    %v3218 = vsel %vm3135, %v3217, %v3216
    %v3219 = vsub.s32 4, %v3195
    %v3220 = vsel %vm3135, %v3219, %v3195
    %v3221 = vsel %vm3134, %v1350, %v3218
    %v3222 = vsel %vm3134, 0, %v3220
    %v3223 = vcosq.f32.pop %v3221
    %v3224 = vsinq.f32.pop %v3221
    %vm3225 = vweird.f32 %v1350
    %v3226 = vadd.s32 %v3222, 3
    %v3227 = vand.u32 %v3226, 3
    %vm3228 = vcmp.lt.s32.totalorder %v3227, 2
    %vm3229 = vcmp.eq.s32.totalorder %v3227, 0
    %v3230 = vxor.u32 %v3224, 2147483648
    %v3231 = vsel %vm3229, %v3223, %v3230
    %vm3232 = vcmp.eq.s32.totalorder %v3227, 2
    %v3233 = vxor.u32 %v3223, 2147483648
    %v3234 = vsel %vm3232, %v3233, %v3224
    %v3235 = vsel %vm3228, %v3231, %v3234
    %v3236 = vsel %vm3225, nan, %v3235
    %v3237 = vand.u32 2147483647, %v1351
    %vm3238 = vcmp.le.f32.partialorder %v3237, 0.7853982
    %vm3239 = vcmp.lt.s32.totalorder %v1351, 0
    %v3240 = vand.u32 %v1351, 2139095040
    %v3241 = vshrl.u32 %v3240, 23
    %v3242 = vsub.s32 %v3241, 127
    %v3243 = vand.u32 2147483647, %v1351
    %v3244 = vand.u32 %v3243, 8388607
    %v3245 = vor.u32 %v3244, 8388608
    %v3246 = vsub.s32 0, %v3245
    %v3247 = vadd.s32 %v3242, 1
    %vm3248 = vcmp.gt.s32.totalorder %v3247, 0
    %v3249 = vsel %vm3248, %v3247, 0
    %v3250 = vshrl.u32 %v3249, 5
    %v3251 = vand.u32 %v3249, 31
    %v3252 = vsub.s32 32, %v3251
    %v3253 = vshrl.u32 683565275, %v3252
    %v3254 = vshll.u32 683565275, %v3251
    %v3255 = vshrl.u32 2475754826, %v3252
    %v3256 = vor.u32 %v3254, %v3255
    %v3257 = vshll.u32 2475754826, %v3251
    %v3258 = vshrl.u32 2131351028, %v3252
    %v3259 = vor.u32 %v3257, %v3258
    %v3260 = vshll.u32 2131351028, %v3251
    %v3261 = vshrl.u32 2102212464, %v3252
    %v3262 = vor.u32 %v3260, %v3261
    %v3263 = vshll.u32 2102212464, %v3251
    %v3264 = vshrl.u32 920167782, %v3252
    %v3265 = vor.u32 %v3263, %v3264
    %v3266 = vshll.u32 920167782, %v3251
    %v3267 = vshrl.u32 1326507024, %v3252
    %v3268 = vor.u32 %v3266, %v3267
    %vm3269 = vcmp.lt.s32.totalorder %v3250, 1
    %vm3270 = vcmp.lt.s32.totalorder %v3250, 2
    %vm3271 = vcmp.lt.s32.totalorder %v3250, 3
    %vm3272 = vcmp.lt.s32.totalorder %v3250, 4
    %v3273 = vsel %vm3269, %v3253, %v3256
    %v3274 = vsel %vm3272, %v3262, 2102212464
    %v3275 = vsel %vm3271, %v3259, %v3274
    %v3276 = vsel %vm3270, %v3273, %v3275
    %v3277 = vsel %vm3269, %v3256, %v3259
    %v3278 = vsel %vm3272, %v3265, 920167782
    %v3279 = vsel %vm3271, %v3262, %v3278
    %v3280 = vsel %vm3270, %v3277, %v3279
    %v3281 = vsel %vm3269, %v3259, %v3262
    %v3282 = vsel %vm3272, %v3268, 1326507024
    %v3283 = vsel %vm3271, %v3265, %v3282
    %v3284 = vsel %vm3270, %v3281, %v3283
    %v3285 = vshll.u32 %v3245, 8
    %v3286 = vmul.u32.u64.compose %v3285, %v3284
    %v3287 = vextract.low.u32 %v3286
    %v3288 = vextract.high.u32 %v3286
    %v3289 = vmul.u32.u64.compose %v3285, %v3280
    %v3290 = vextract.low.u32 %v3289
    %v3291 = vextract.high.u32 %v3289
    %v3292 = vmul.u32 %v3285, %v3276
    %v3293 = vadd.s32 %v3288, %v3290
    %vm3294 = vc.u32 %v3288, %v3290
    %v3295 = vadd.s32 %v3291, 1
    %v3296 = vsel %vm3294, %v3295, %v3291
    %v3297 = vadd.s32 %v3292, %v3296
    %v3298 = vadd.s32 %v3297, 536870912
    %v3299 = vshrl.u32 %v3298, 30
    %v3300 = vshll.u32 %v3299, 30
    %v3301 = vsub.s32 %v3297, %v3300
    %vm3302 = vcmp.lt.s32.totalorder %v3301, 0
    %v3303 = vsub.s32 0, %v3301
    %v3304 = vsel %vm3302, %v3303, %v3301
    %v3305 = vclz %v3304
    %v3306 = vsub.s32 %v3305, 2
    %vm3307 = vcmp.gt.s32.totalorder 0, %v3306
    %v3308 = vsel %vm3307, 0, %v3306
    %v3309 = vsub.s32 32, %v3308
    %v3310 = vshll.u32 %v3301, %v3308
    %v3311 = vshrl.u32 %v3293, %v3309
    %v3312 = vor.u32 %v3310, %v3311
    %v3313 = vsub.s32 4294967266, %v3308
    %v3314 = vadd.s32 %v3313, 127
    %v3315 = vshll.u32 %v3314, 23
    %v3316 = vor.u32 4788187, %v3315
    %v3317 = vand.u32 2147483647, %v3316
    %v3319 = vcvt.s32.f32 %v3312
    %v3320 = vmul.f32 %v3319, %v3317
    %v3321 = vxor.u32 %v3320, 2147483648
    %v3322 = vsel %vm3239, %v3321, %v3320
    %v3323 = vsub.s32 4, %v3299
    %v3324 = vsel %vm3239, %v3323, %v3299
    %v3325 = vsel %vm3238, %v1351, %v3322
    %v3326 = vsel %vm3238, 0, %v3324
    %v3327 = vcosq.f32.pop %v3325
    %v3328 = vsinq.f32.pop %v3325
    %vm3329 = vweird.f32 %v1351
    %v3330 = vadd.s32 %v3326, 3
    %v3331 = vand.u32 %v3330, 3
    %vm3332 = vcmp.lt.s32.totalorder %v3331, 2
    %vm3333 = vcmp.eq.s32.totalorder %v3331, 0
    %v3334 = vxor.u32 %v3328, 2147483648
    %v3335 = vsel %vm3333, %v3327, %v3334
    %vm3336 = vcmp.eq.s32.totalorder %v3331, 2
    %v3337 = vxor.u32 %v3327, 2147483648
    %v3338 = vsel %vm3336, %v3337, %v3328
    %v3339 = vsel %vm3332, %v3335, %v3338
    %v3340 = vsel %vm3329, nan, %v3339
    %v3341 = vand.u32 2147483647, %v1352
    %vm3342 = vcmp.le.f32.partialorder %v3341, 0.7853982
    %vm3343 = vcmp.lt.s32.totalorder %v1352, 0
    %v3344 = vand.u32 %v1352, 2139095040
    %v3345 = vshrl.u32 %v3344, 23
    %v3346 = vsub.s32 %v3345, 127
    %v3347 = vand.u32 2147483647, %v1352
    %v3348 = vand.u32 %v3347, 8388607
    %v3349 = vor.u32 %v3348, 8388608
    %v3350 = vsub.s32 0, %v3349
    %v3351 = vadd.s32 %v3346, 1
    %vm3352 = vcmp.gt.s32.totalorder %v3351, 0
    %v3353 = vsel %vm3352, %v3351, 0
    %v3354 = vshrl.u32 %v3353, 5
    %v3355 = vand.u32 %v3353, 31
    %v3356 = vsub.s32 32, %v3355
    %v3357 = vshrl.u32 683565275, %v3356
    %v3358 = vshll.u32 683565275, %v3355
    %v3359 = vshrl.u32 2475754826, %v3356
    %v3360 = vor.u32 %v3358, %v3359
    %v3361 = vshll.u32 2475754826, %v3355
    %v3362 = vshrl.u32 2131351028, %v3356
    %v3363 = vor.u32 %v3361, %v3362
    %v3364 = vshll.u32 2131351028, %v3355
    %v3365 = vshrl.u32 2102212464, %v3356
    %v3366 = vor.u32 %v3364, %v3365
    %v3367 = vshll.u32 2102212464, %v3355
    %v3368 = vshrl.u32 920167782, %v3356
    %v3369 = vor.u32 %v3367, %v3368
    %v3370 = vshll.u32 920167782, %v3355
    %v3371 = vshrl.u32 1326507024, %v3356
    %v3372 = vor.u32 %v3370, %v3371
    %vm3373 = vcmp.lt.s32.totalorder %v3354, 1
    %vm3374 = vcmp.lt.s32.totalorder %v3354, 2
    %vm3375 = vcmp.lt.s32.totalorder %v3354, 3
    %vm3376 = vcmp.lt.s32.totalorder %v3354, 4
    %v3377 = vsel %vm3373, %v3357, %v3360
    %v3378 = vsel %vm3376, %v3366, 2102212464
    %v3379 = vsel %vm3375, %v3363, %v3378
    %v3380 = vsel %vm3374, %v3377, %v3379
    %v3381 = vsel %vm3373, %v3360, %v3363
    %v3382 = vsel %vm3376, %v3369, 920167782
    %v3383 = vsel %vm3375, %v3366, %v3382
    %v3384 = vsel %vm3374, %v3381, %v3383
    %v3385 = vsel %vm3373, %v3363, %v3366
    %v3386 = vsel %vm3376, %v3372, 1326507024
    %v3387 = vsel %vm3375, %v3369, %v3386
    %v3388 = vsel %vm3374, %v3385, %v3387
    %v3389 = vshll.u32 %v3349, 8
    %v3390 = vmul.u32.u64.compose %v3389, %v3388
    %v3391 = vextract.low.u32 %v3390
    %v3392 = vextract.high.u32 %v3390
    %v3393 = vmul.u32.u64.compose %v3389, %v3384
    %v3394 = vextract.low.u32 %v3393
    %v3395 = vextract.high.u32 %v3393
    %v3396 = vmul.u32 %v3389, %v3380
    %v3397 = vadd.s32 %v3392, %v3394
    %vm3398 = vc.u32 %v3392, %v3394
    %v3399 = vadd.s32 %v3395, 1
    %v3400 = vsel %vm3398, %v3399, %v3395
    %v3401 = vadd.s32 %v3396, %v3400
    %v3402 = vadd.s32 %v3401, 536870912
    %v3403 = vshrl.u32 %v3402, 30
    %v3404 = vshll.u32 %v3403, 30
    %v3405 = vsub.s32 %v3401, %v3404
    %vm3406 = vcmp.lt.s32.totalorder %v3405, 0
    %v3407 = vsub.s32 0, %v3405
    %v3408 = vsel %vm3406, %v3407, %v3405
    %v3409 = vclz %v3408
    %v3410 = vsub.s32 %v3409, 2
    %vm3411 = vcmp.gt.s32.totalorder 0, %v3410
    %v3412 = vsel %vm3411, 0, %v3410
    %v3413 = vsub.s32 32, %v3412
    %v3414 = vshll.u32 %v3405, %v3412
    %v3415 = vshrl.u32 %v3397, %v3413
    %v3416 = vor.u32 %v3414, %v3415
    %v3417 = vsub.s32 4294967266, %v3412
    %v3418 = vadd.s32 %v3417, 127
    %v3419 = vshll.u32 %v3418, 23
    %v3420 = vor.u32 4788187, %v3419
    %v3421 = vand.u32 2147483647, %v3420
    %v3423 = vcvt.s32.f32 %v3416
    %v3424 = vmul.f32 %v3423, %v3421
    %v3425 = vxor.u32 %v3424, 2147483648
    %v3426 = vsel %vm3343, %v3425, %v3424
    %v3427 = vsub.s32 4, %v3403
    %v3428 = vsel %vm3343, %v3427, %v3403
    %v3429 = vsel %vm3342, %v1352, %v3426
    %v3430 = vsel %vm3342, 0, %v3428
    %v3431 = vcosq.f32.pop %v3429
    %v3432 = vsinq.f32.pop %v3429
    %vm3433 = vweird.f32 %v1352
    %v3434 = vadd.s32 %v3430, 3
    %v3435 = vand.u32 %v3434, 3
    %vm3436 = vcmp.lt.s32.totalorder %v3435, 2
    %vm3437 = vcmp.eq.s32.totalorder %v3435, 0
    %v3438 = vxor.u32 %v3432, 2147483648
    %v3439 = vsel %vm3437, %v3431, %v3438
    %vm3440 = vcmp.eq.s32.totalorder %v3435, 2
    %v3441 = vxor.u32 %v3431, 2147483648
    %v3442 = vsel %vm3440, %v3441, %v3432
    %v3443 = vsel %vm3436, %v3439, %v3442
    %v3444 = vsel %vm3433, nan, %v3443
    %v3445 = vand.u32 2147483647, %v1353
    %vm3446 = vcmp.le.f32.partialorder %v3445, 0.7853982
    %vm3447 = vcmp.lt.s32.totalorder %v1353, 0
    %v3448 = vand.u32 %v1353, 2139095040
    %v3449 = vshrl.u32 %v3448, 23
    %v3450 = vsub.s32 %v3449, 127
    %v3451 = vand.u32 2147483647, %v1353
    %v3452 = vand.u32 %v3451, 8388607
    %v3453 = vor.u32 %v3452, 8388608
    %v3454 = vsub.s32 0, %v3453
    %v3455 = vadd.s32 %v3450, 1
    %vm3456 = vcmp.gt.s32.totalorder %v3455, 0
    %v3457 = vsel %vm3456, %v3455, 0
    %v3458 = vshrl.u32 %v3457, 5
    %v3459 = vand.u32 %v3457, 31
    %v3460 = vsub.s32 32, %v3459
    %v3461 = vshrl.u32 683565275, %v3460
    %v3462 = vshll.u32 683565275, %v3459
    %v3463 = vshrl.u32 2475754826, %v3460
    %v3464 = vor.u32 %v3462, %v3463
    %v3465 = vshll.u32 2475754826, %v3459
    %v3466 = vshrl.u32 2131351028, %v3460
    %v3467 = vor.u32 %v3465, %v3466
    %v3468 = vshll.u32 2131351028, %v3459
    %v3469 = vshrl.u32 2102212464, %v3460
    %v3470 = vor.u32 %v3468, %v3469
    %v3471 = vshll.u32 2102212464, %v3459
    %v3472 = vshrl.u32 920167782, %v3460
    %v3473 = vor.u32 %v3471, %v3472
    %v3474 = vshll.u32 920167782, %v3459
    %v3475 = vshrl.u32 1326507024, %v3460
    %v3476 = vor.u32 %v3474, %v3475
    %vm3477 = vcmp.lt.s32.totalorder %v3458, 1
    %vm3478 = vcmp.lt.s32.totalorder %v3458, 2
    %vm3479 = vcmp.lt.s32.totalorder %v3458, 3
    %vm3480 = vcmp.lt.s32.totalorder %v3458, 4
    %v3481 = vsel %vm3477, %v3461, %v3464
    %v3482 = vsel %vm3480, %v3470, 2102212464
    %v3483 = vsel %vm3479, %v3467, %v3482
    %v3484 = vsel %vm3478, %v3481, %v3483
    %v3485 = vsel %vm3477, %v3464, %v3467
    %v3486 = vsel %vm3480, %v3473, 920167782
    %v3487 = vsel %vm3479, %v3470, %v3486
    %v3488 = vsel %vm3478, %v3485, %v3487
    %v3489 = vsel %vm3477, %v3467, %v3470
    %v3490 = vsel %vm3480, %v3476, 1326507024
    %v3491 = vsel %vm3479, %v3473, %v3490
    %v3492 = vsel %vm3478, %v3489, %v3491
    %v3493 = vshll.u32 %v3453, 8
    %v3494 = vmul.u32.u64.compose %v3493, %v3492
    %v3495 = vextract.low.u32 %v3494
    %v3496 = vextract.high.u32 %v3494
    %v3497 = vmul.u32.u64.compose %v3493, %v3488
    %v3498 = vextract.low.u32 %v3497
    %v3499 = vextract.high.u32 %v3497
    %v3500 = vmul.u32 %v3493, %v3484
    %v3501 = vadd.s32 %v3496, %v3498
    %vm3502 = vc.u32 %v3496, %v3498
    %v3503 = vadd.s32 %v3499, 1
    %v3504 = vsel %vm3502, %v3503, %v3499
    %v3505 = vadd.s32 %v3500, %v3504
    %v3506 = vadd.s32 %v3505, 536870912
    %v3507 = vshrl.u32 %v3506, 30
    %v3508 = vshll.u32 %v3507, 30
    %v3509 = vsub.s32 %v3505, %v3508
    %vm3510 = vcmp.lt.s32.totalorder %v3509, 0
    %v3511 = vsub.s32 0, %v3509
    %v3512 = vsel %vm3510, %v3511, %v3509
    %v3513 = vclz %v3512
    %v3514 = vsub.s32 %v3513, 2
    %vm3515 = vcmp.gt.s32.totalorder 0, %v3514
    %v3516 = vsel %vm3515, 0, %v3514
    %v3517 = vsub.s32 32, %v3516
    %v3518 = vshll.u32 %v3509, %v3516
    %v3519 = vshrl.u32 %v3501, %v3517
    %v3520 = vor.u32 %v3518, %v3519
    %v3521 = vsub.s32 4294967266, %v3516
    %v3522 = vadd.s32 %v3521, 127
    %v3523 = vshll.u32 %v3522, 23
    %v3524 = vor.u32 4788187, %v3523
    %v3525 = vand.u32 2147483647, %v3524
    %v3527 = vcvt.s32.f32 %v3520
    %v3528 = vmul.f32 %v3527, %v3525
    %v3529 = vxor.u32 %v3528, 2147483648
    %v3530 = vsel %vm3447, %v3529, %v3528
    %v3531 = vsub.s32 4, %v3507
    %v3532 = vsel %vm3447, %v3531, %v3507
    %v3533 = vsel %vm3446, %v1353, %v3530
    %v3534 = vsel %vm3446, 0, %v3532
    %v3535 = vcosq.f32.pop %v3533
    %v3536 = vsinq.f32.pop %v3533
    %vm3537 = vweird.f32 %v1353
    %v3538 = vadd.s32 %v3534, 3
    %v3539 = vand.u32 %v3538, 3
    %vm3540 = vcmp.lt.s32.totalorder %v3539, 2
    %vm3541 = vcmp.eq.s32.totalorder %v3539, 0
    %v3542 = vxor.u32 %v3536, 2147483648
    %v3543 = vsel %vm3541, %v3535, %v3542
    %vm3544 = vcmp.eq.s32.totalorder %v3539, 2
    %v3545 = vxor.u32 %v3535, 2147483648
    %v3546 = vsel %vm3544, %v3545, %v3536
    %v3547 = vsel %vm3540, %v3543, %v3546
    %v3548 = vsel %vm3537, nan, %v3547
    %v3549 = vand.u32 2147483647, %v1354
    %vm3550 = vcmp.le.f32.partialorder %v3549, 0.7853982
    %vm3551 = vcmp.lt.s32.totalorder %v1354, 0
    %v3552 = vand.u32 %v1354, 2139095040
    %v3553 = vshrl.u32 %v3552, 23
    %v3554 = vsub.s32 %v3553, 127
    %v3555 = vand.u32 2147483647, %v1354
    %v3556 = vand.u32 %v3555, 8388607
    %v3557 = vor.u32 %v3556, 8388608
    %v3558 = vsub.s32 0, %v3557
    %v3559 = vadd.s32 %v3554, 1
    %vm3560 = vcmp.gt.s32.totalorder %v3559, 0
    %v3561 = vsel %vm3560, %v3559, 0
    %v3562 = vshrl.u32 %v3561, 5
    %v3563 = vand.u32 %v3561, 31
    %v3564 = vsub.s32 32, %v3563
    %v3565 = vshrl.u32 683565275, %v3564
    %v3566 = vshll.u32 683565275, %v3563
    %v3567 = vshrl.u32 2475754826, %v3564
    %v3568 = vor.u32 %v3566, %v3567
    %v3569 = vshll.u32 2475754826, %v3563
    %v3570 = vshrl.u32 2131351028, %v3564
    %v3571 = vor.u32 %v3569, %v3570
    %v3572 = vshll.u32 2131351028, %v3563
    %v3573 = vshrl.u32 2102212464, %v3564
    %v3574 = vor.u32 %v3572, %v3573
    %v3575 = vshll.u32 2102212464, %v3563
    %v3576 = vshrl.u32 920167782, %v3564
    %v3577 = vor.u32 %v3575, %v3576
    %v3578 = vshll.u32 920167782, %v3563
    %v3579 = vshrl.u32 1326507024, %v3564
    %v3580 = vor.u32 %v3578, %v3579
    %vm3581 = vcmp.lt.s32.totalorder %v3562, 1
    %vm3582 = vcmp.lt.s32.totalorder %v3562, 2
    %vm3583 = vcmp.lt.s32.totalorder %v3562, 3
    %vm3584 = vcmp.lt.s32.totalorder %v3562, 4
    %v3585 = vsel %vm3581, %v3565, %v3568
    %v3586 = vsel %vm3584, %v3574, 2102212464
    %v3587 = vsel %vm3583, %v3571, %v3586
    %v3588 = vsel %vm3582, %v3585, %v3587
    %v3589 = vsel %vm3581, %v3568, %v3571
    %v3590 = vsel %vm3584, %v3577, 920167782
    %v3591 = vsel %vm3583, %v3574, %v3590
    %v3592 = vsel %vm3582, %v3589, %v3591
    %v3593 = vsel %vm3581, %v3571, %v3574
    %v3594 = vsel %vm3584, %v3580, 1326507024
    %v3595 = vsel %vm3583, %v3577, %v3594
    %v3596 = vsel %vm3582, %v3593, %v3595
    %v3597 = vshll.u32 %v3557, 8
    %v3598 = vmul.u32.u64.compose %v3597, %v3596
    %v3599 = vextract.low.u32 %v3598
    %v3600 = vextract.high.u32 %v3598
    %v3601 = vmul.u32.u64.compose %v3597, %v3592
    %v3602 = vextract.low.u32 %v3601
    %v3603 = vextract.high.u32 %v3601
    %v3604 = vmul.u32 %v3597, %v3588
    %v3605 = vadd.s32 %v3600, %v3602
    %vm3606 = vc.u32 %v3600, %v3602
    %v3607 = vadd.s32 %v3603, 1
    %v3608 = vsel %vm3606, %v3607, %v3603
    %v3609 = vadd.s32 %v3604, %v3608
    %v3610 = vadd.s32 %v3609, 536870912
    %v3611 = vshrl.u32 %v3610, 30
    %v3612 = vshll.u32 %v3611, 30
    %v3613 = vsub.s32 %v3609, %v3612
    %vm3614 = vcmp.lt.s32.totalorder %v3613, 0
    %v3615 = vsub.s32 0, %v3613
    %v3616 = vsel %vm3614, %v3615, %v3613
    %v3617 = vclz %v3616
    %v3618 = vsub.s32 %v3617, 2
    %vm3619 = vcmp.gt.s32.totalorder 0, %v3618
    %v3620 = vsel %vm3619, 0, %v3618
    %v3621 = vsub.s32 32, %v3620
    %v3622 = vshll.u32 %v3613, %v3620
    %v3623 = vshrl.u32 %v3605, %v3621
    %v3624 = vor.u32 %v3622, %v3623
    %v3625 = vsub.s32 4294967266, %v3620
    %v3626 = vadd.s32 %v3625, 127
    %v3627 = vshll.u32 %v3626, 23
    %v3628 = vor.u32 4788187, %v3627
    %v3629 = vand.u32 2147483647, %v3628
    %v3631 = vcvt.s32.f32 %v3624
    %v3632 = vmul.f32 %v3631, %v3629
    %v3633 = vxor.u32 %v3632, 2147483648
    %v3634 = vsel %vm3551, %v3633, %v3632
    %v3635 = vsub.s32 4, %v3611
    %v3636 = vsel %vm3551, %v3635, %v3611
    %v3637 = vsel %vm3550, %v1354, %v3634
    %v3638 = vsel %vm3550, 0, %v3636
    %v3639 = vcosq.f32.pop %v3637
    %v3640 = vsinq.f32.pop %v3637
    %vm3641 = vweird.f32 %v1354
    %v3642 = vadd.s32 %v3638, 3
    %v3643 = vand.u32 %v3642, 3
    %vm3644 = vcmp.lt.s32.totalorder %v3643, 2
    %vm3645 = vcmp.eq.s32.totalorder %v3643, 0
    %v3646 = vxor.u32 %v3640, 2147483648
    %v3647 = vsel %vm3645, %v3639, %v3646
    %vm3648 = vcmp.eq.s32.totalorder %v3643, 2
    %v3649 = vxor.u32 %v3639, 2147483648
    %v3650 = vsel %vm3648, %v3649, %v3640
    %v3651 = vsel %vm3644, %v3647, %v3650
    %v3652 = vsel %vm3641, nan, %v3651
    %v3653 = vand.u32 2147483647, %v1355
    %vm3654 = vcmp.le.f32.partialorder %v3653, 0.7853982
    %vm3655 = vcmp.lt.s32.totalorder %v1355, 0
    %v3656 = vand.u32 %v1355, 2139095040
    %v3657 = vshrl.u32 %v3656, 23
    %v3658 = vsub.s32 %v3657, 127
    %v3659 = vand.u32 2147483647, %v1355
    %v3660 = vand.u32 %v3659, 8388607
    %v3661 = vor.u32 %v3660, 8388608
    %v3662 = vsub.s32 0, %v3661
    %v3663 = vadd.s32 %v3658, 1
    %vm3664 = vcmp.gt.s32.totalorder %v3663, 0
    %v3665 = vsel %vm3664, %v3663, 0
    %v3666 = vshrl.u32 %v3665, 5
    %v3667 = vand.u32 %v3665, 31
    %v3668 = vsub.s32 32, %v3667
    %v3669 = vshrl.u32 683565275, %v3668
    %v3670 = vshll.u32 683565275, %v3667
    %v3671 = vshrl.u32 2475754826, %v3668
    %v3672 = vor.u32 %v3670, %v3671
    %v3673 = vshll.u32 2475754826, %v3667
    %v3674 = vshrl.u32 2131351028, %v3668
    %v3675 = vor.u32 %v3673, %v3674
    %v3676 = vshll.u32 2131351028, %v3667
    %v3677 = vshrl.u32 2102212464, %v3668
    %v3678 = vor.u32 %v3676, %v3677
    %v3679 = vshll.u32 2102212464, %v3667
    %v3680 = vshrl.u32 920167782, %v3668
    %v3681 = vor.u32 %v3679, %v3680
    %v3682 = vshll.u32 920167782, %v3667
    %v3683 = vshrl.u32 1326507024, %v3668
    %v3684 = vor.u32 %v3682, %v3683
    %vm3685 = vcmp.lt.s32.totalorder %v3666, 1
    %vm3686 = vcmp.lt.s32.totalorder %v3666, 2
    %vm3687 = vcmp.lt.s32.totalorder %v3666, 3
    %vm3688 = vcmp.lt.s32.totalorder %v3666, 4
    %v3689 = vsel %vm3685, %v3669, %v3672
    %v3690 = vsel %vm3688, %v3678, 2102212464
    %v3691 = vsel %vm3687, %v3675, %v3690
    %v3692 = vsel %vm3686, %v3689, %v3691
    %v3693 = vsel %vm3685, %v3672, %v3675
    %v3694 = vsel %vm3688, %v3681, 920167782
    %v3695 = vsel %vm3687, %v3678, %v3694
    %v3696 = vsel %vm3686, %v3693, %v3695
    %v3697 = vsel %vm3685, %v3675, %v3678
    %v3698 = vsel %vm3688, %v3684, 1326507024
    %v3699 = vsel %vm3687, %v3681, %v3698
    %v3700 = vsel %vm3686, %v3697, %v3699
    %v3701 = vshll.u32 %v3661, 8
    %v3702 = vmul.u32.u64.compose %v3701, %v3700
    %v3703 = vextract.low.u32 %v3702
    %v3704 = vextract.high.u32 %v3702
    %v3705 = vmul.u32.u64.compose %v3701, %v3696
    %v3706 = vextract.low.u32 %v3705
    %v3707 = vextract.high.u32 %v3705
    %v3708 = vmul.u32 %v3701, %v3692
    %v3709 = vadd.s32 %v3704, %v3706
    %vm3710 = vc.u32 %v3704, %v3706
    %v3711 = vadd.s32 %v3707, 1
    %v3712 = vsel %vm3710, %v3711, %v3707
    %v3713 = vadd.s32 %v3708, %v3712
    %v3714 = vadd.s32 %v3713, 536870912
    %v3715 = vshrl.u32 %v3714, 30
    %v3716 = vshll.u32 %v3715, 30
    %v3717 = vsub.s32 %v3713, %v3716
    %vm3718 = vcmp.lt.s32.totalorder %v3717, 0
    %v3719 = vsub.s32 0, %v3717
    %v3720 = vsel %vm3718, %v3719, %v3717
    %v3721 = vclz %v3720
    %v3722 = vsub.s32 %v3721, 2
    %vm3723 = vcmp.gt.s32.totalorder 0, %v3722
    %v3724 = vsel %vm3723, 0, %v3722
    %v3725 = vsub.s32 32, %v3724
    %v3726 = vshll.u32 %v3717, %v3724
    %v3727 = vshrl.u32 %v3709, %v3725
    %v3728 = vor.u32 %v3726, %v3727
    %v3729 = vsub.s32 4294967266, %v3724
    %v3730 = vadd.s32 %v3729, 127
    %v3731 = vshll.u32 %v3730, 23
    %v3732 = vor.u32 4788187, %v3731
    %v3733 = vand.u32 2147483647, %v3732
    %v3735 = vcvt.s32.f32 %v3728
    %v3736 = vmul.f32 %v3735, %v3733
    %v3737 = vxor.u32 %v3736, 2147483648
    %v3738 = vsel %vm3655, %v3737, %v3736
    %v3739 = vsub.s32 4, %v3715
    %v3740 = vsel %vm3655, %v3739, %v3715
    %v3741 = vsel %vm3654, %v1355, %v3738
    %v3742 = vsel %vm3654, 0, %v3740
    %v3743 = vcosq.f32.pop %v3741
    %v3744 = vsinq.f32.pop %v3741
    %vm3745 = vweird.f32 %v1355
    %v3746 = vadd.s32 %v3742, 3
    %v3747 = vand.u32 %v3746, 3
    %vm3748 = vcmp.lt.s32.totalorder %v3747, 2
    %vm3749 = vcmp.eq.s32.totalorder %v3747, 0
    %v3750 = vxor.u32 %v3744, 2147483648
    %v3751 = vsel %vm3749, %v3743, %v3750
    %vm3752 = vcmp.eq.s32.totalorder %v3747, 2
    %v3753 = vxor.u32 %v3743, 2147483648
    %v3754 = vsel %vm3752, %v3753, %v3744
    %v3755 = vsel %vm3748, %v3751, %v3754
    %v3756 = vsel %vm3745, nan, %v3755
    %v3757 = vand.u32 2147483647, %v1356
    %vm3758 = vcmp.le.f32.partialorder %v3757, 0.7853982
    %vm3759 = vcmp.lt.s32.totalorder %v1356, 0
    %v3760 = vand.u32 %v1356, 2139095040
    %v3761 = vshrl.u32 %v3760, 23
    %v3762 = vsub.s32 %v3761, 127
    %v3763 = vand.u32 2147483647, %v1356
    %v3764 = vand.u32 %v3763, 8388607
    %v3765 = vor.u32 %v3764, 8388608
    %v3766 = vsub.s32 0, %v3765
    %v3767 = vadd.s32 %v3762, 1
    %vm3768 = vcmp.gt.s32.totalorder %v3767, 0
    %v3769 = vsel %vm3768, %v3767, 0
    %v3770 = vshrl.u32 %v3769, 5
    %v3771 = vand.u32 %v3769, 31
    %v3772 = vsub.s32 32, %v3771
    %v3773 = vshrl.u32 683565275, %v3772
    %v3774 = vshll.u32 683565275, %v3771
    %v3775 = vshrl.u32 2475754826, %v3772
    %v3776 = vor.u32 %v3774, %v3775
    %v3777 = vshll.u32 2475754826, %v3771
    %v3778 = vshrl.u32 2131351028, %v3772
    %v3779 = vor.u32 %v3777, %v3778
    %v3780 = vshll.u32 2131351028, %v3771
    %v3781 = vshrl.u32 2102212464, %v3772
    %v3782 = vor.u32 %v3780, %v3781
    %v3783 = vshll.u32 2102212464, %v3771
    %v3784 = vshrl.u32 920167782, %v3772
    %v3785 = vor.u32 %v3783, %v3784
    %v3786 = vshll.u32 920167782, %v3771
    %v3787 = vshrl.u32 1326507024, %v3772
    %v3788 = vor.u32 %v3786, %v3787
    %vm3789 = vcmp.lt.s32.totalorder %v3770, 1
    %vm3790 = vcmp.lt.s32.totalorder %v3770, 2
    %vm3791 = vcmp.lt.s32.totalorder %v3770, 3
    %vm3792 = vcmp.lt.s32.totalorder %v3770, 4
    %v3793 = vsel %vm3789, %v3773, %v3776
    %v3794 = vsel %vm3792, %v3782, 2102212464
    %v3795 = vsel %vm3791, %v3779, %v3794
    %v3796 = vsel %vm3790, %v3793, %v3795
    %v3797 = vsel %vm3789, %v3776, %v3779
    %v3798 = vsel %vm3792, %v3785, 920167782
    %v3799 = vsel %vm3791, %v3782, %v3798
    %v3800 = vsel %vm3790, %v3797, %v3799
    %v3801 = vsel %vm3789, %v3779, %v3782
    %v3802 = vsel %vm3792, %v3788, 1326507024
    %v3803 = vsel %vm3791, %v3785, %v3802
    %v3804 = vsel %vm3790, %v3801, %v3803
    %v3805 = vshll.u32 %v3765, 8
    %v3806 = vmul.u32.u64.compose %v3805, %v3804
    %v3807 = vextract.low.u32 %v3806
    %v3808 = vextract.high.u32 %v3806
    %v3809 = vmul.u32.u64.compose %v3805, %v3800
    %v3810 = vextract.low.u32 %v3809
    %v3811 = vextract.high.u32 %v3809
    %v3812 = vmul.u32 %v3805, %v3796
    %v3813 = vadd.s32 %v3808, %v3810
    %vm3814 = vc.u32 %v3808, %v3810
    %v3815 = vadd.s32 %v3811, 1
    %v3816 = vsel %vm3814, %v3815, %v3811
    %v3817 = vadd.s32 %v3812, %v3816
    %v3818 = vadd.s32 %v3817, 536870912
    %v3819 = vshrl.u32 %v3818, 30
    %v3820 = vshll.u32 %v3819, 30
    %v3821 = vsub.s32 %v3817, %v3820
    %vm3822 = vcmp.lt.s32.totalorder %v3821, 0
    %v3823 = vsub.s32 0, %v3821
    %v3824 = vsel %vm3822, %v3823, %v3821
    %v3825 = vclz %v3824
    %v3826 = vsub.s32 %v3825, 2
    %vm3827 = vcmp.gt.s32.totalorder 0, %v3826
    %v3828 = vsel %vm3827, 0, %v3826
    %v3829 = vsub.s32 32, %v3828
    %v3830 = vshll.u32 %v3821, %v3828
    %v3831 = vshrl.u32 %v3813, %v3829
    %v3832 = vor.u32 %v3830, %v3831
    %v3833 = vsub.s32 4294967266, %v3828
    %v3834 = vadd.s32 %v3833, 127
    %v3835 = vshll.u32 %v3834, 23
    %v3836 = vor.u32 4788187, %v3835
    %v3837 = vand.u32 2147483647, %v3836
    %v3839 = vcvt.s32.f32 %v3832
    %v3840 = vmul.f32 %v3839, %v3837
    %v3841 = vxor.u32 %v3840, 2147483648
    %v3842 = vsel %vm3759, %v3841, %v3840
    %v3843 = vsub.s32 4, %v3819
    %v3844 = vsel %vm3759, %v3843, %v3819
    %v3845 = vsel %vm3758, %v1356, %v3842
    %v3846 = vsel %vm3758, 0, %v3844
    %v3847 = vcosq.f32.pop %v3845
    %v3848 = vsinq.f32.pop %v3845
    %vm3849 = vweird.f32 %v1356
    %v3850 = vadd.s32 %v3846, 3
    %v3851 = vand.u32 %v3850, 3
    %vm3852 = vcmp.lt.s32.totalorder %v3851, 2
    %vm3853 = vcmp.eq.s32.totalorder %v3851, 0
    %v3854 = vxor.u32 %v3848, 2147483648
    %v3855 = vsel %vm3853, %v3847, %v3854
    %vm3856 = vcmp.eq.s32.totalorder %v3851, 2
    %v3857 = vxor.u32 %v3847, 2147483648
    %v3858 = vsel %vm3856, %v3857, %v3848
    %v3859 = vsel %vm3852, %v3855, %v3858
    %v3860 = vsel %vm3849, nan, %v3859
    %v3861 = vand.u32 2147483647, %v1357
    %vm3862 = vcmp.le.f32.partialorder %v3861, 0.7853982
    %vm3863 = vcmp.lt.s32.totalorder %v1357, 0
    %v3864 = vand.u32 %v1357, 2139095040
    %v3865 = vshrl.u32 %v3864, 23
    %v3866 = vsub.s32 %v3865, 127
    %v3867 = vand.u32 2147483647, %v1357
    %v3868 = vand.u32 %v3867, 8388607
    %v3869 = vor.u32 %v3868, 8388608
    %v3870 = vsub.s32 0, %v3869
    %v3871 = vadd.s32 %v3866, 1
    %vm3872 = vcmp.gt.s32.totalorder %v3871, 0
    %v3873 = vsel %vm3872, %v3871, 0
    %v3874 = vshrl.u32 %v3873, 5
    %v3875 = vand.u32 %v3873, 31
    %v3876 = vsub.s32 32, %v3875
    %v3877 = vshrl.u32 683565275, %v3876
    %v3878 = vshll.u32 683565275, %v3875
    %v3879 = vshrl.u32 2475754826, %v3876
    %v3880 = vor.u32 %v3878, %v3879
    %v3881 = vshll.u32 2475754826, %v3875
    %v3882 = vshrl.u32 2131351028, %v3876
    %v3883 = vor.u32 %v3881, %v3882
    %v3884 = vshll.u32 2131351028, %v3875
    %v3885 = vshrl.u32 2102212464, %v3876
    %v3886 = vor.u32 %v3884, %v3885
    %v3887 = vshll.u32 2102212464, %v3875
    %v3888 = vshrl.u32 920167782, %v3876
    %v3889 = vor.u32 %v3887, %v3888
    %v3890 = vshll.u32 920167782, %v3875
    %v3891 = vshrl.u32 1326507024, %v3876
    %v3892 = vor.u32 %v3890, %v3891
    %vm3893 = vcmp.lt.s32.totalorder %v3874, 1
    %vm3894 = vcmp.lt.s32.totalorder %v3874, 2
    %vm3895 = vcmp.lt.s32.totalorder %v3874, 3
    %vm3896 = vcmp.lt.s32.totalorder %v3874, 4
    %v3897 = vsel %vm3893, %v3877, %v3880
    %v3898 = vsel %vm3896, %v3886, 2102212464
    %v3899 = vsel %vm3895, %v3883, %v3898
    %v3900 = vsel %vm3894, %v3897, %v3899
    %v3901 = vsel %vm3893, %v3880, %v3883
    %v3902 = vsel %vm3896, %v3889, 920167782
    %v3903 = vsel %vm3895, %v3886, %v3902
    %v3904 = vsel %vm3894, %v3901, %v3903
    %v3905 = vsel %vm3893, %v3883, %v3886
    %v3906 = vsel %vm3896, %v3892, 1326507024
    %v3907 = vsel %vm3895, %v3889, %v3906
    %v3908 = vsel %vm3894, %v3905, %v3907
    %v3909 = vshll.u32 %v3869, 8
    %v3910 = vmul.u32.u64.compose %v3909, %v3908
    %v3911 = vextract.low.u32 %v3910
    %v3912 = vextract.high.u32 %v3910
    %v3913 = vmul.u32.u64.compose %v3909, %v3904
    %v3914 = vextract.low.u32 %v3913
    %v3915 = vextract.high.u32 %v3913
    %v3916 = vmul.u32 %v3909, %v3900
    %v3917 = vadd.s32 %v3912, %v3914
    %vm3918 = vc.u32 %v3912, %v3914
    %v3919 = vadd.s32 %v3915, 1
    %v3920 = vsel %vm3918, %v3919, %v3915
    %v3921 = vadd.s32 %v3916, %v3920
    %v3922 = vadd.s32 %v3921, 536870912
    %v3923 = vshrl.u32 %v3922, 30
    %v3924 = vshll.u32 %v3923, 30
    %v3925 = vsub.s32 %v3921, %v3924
    %vm3926 = vcmp.lt.s32.totalorder %v3925, 0
    %v3927 = vsub.s32 0, %v3925
    %v3928 = vsel %vm3926, %v3927, %v3925
    %v3929 = vclz %v3928
    %v3930 = vsub.s32 %v3929, 2
    %vm3931 = vcmp.gt.s32.totalorder 0, %v3930
    %v3932 = vsel %vm3931, 0, %v3930
    %v3933 = vsub.s32 32, %v3932
    %v3934 = vshll.u32 %v3925, %v3932
    %v3935 = vshrl.u32 %v3917, %v3933
    %v3936 = vor.u32 %v3934, %v3935
    %v3937 = vsub.s32 4294967266, %v3932
    %v3938 = vadd.s32 %v3937, 127
    %v3939 = vshll.u32 %v3938, 23
    %v3940 = vor.u32 4788187, %v3939
    %v3941 = vand.u32 2147483647, %v3940
    %v3943 = vcvt.s32.f32 %v3936
    %v3944 = vmul.f32 %v3943, %v3941
    %v3945 = vxor.u32 %v3944, 2147483648
    %v3946 = vsel %vm3863, %v3945, %v3944
    %v3947 = vsub.s32 4, %v3923
    %v3948 = vsel %vm3863, %v3947, %v3923
    %v3949 = vsel %vm3862, %v1357, %v3946
    %v3950 = vsel %vm3862, 0, %v3948
    %v3951 = vcosq.f32.pop %v3949
    %v3952 = vsinq.f32.pop %v3949
    %vm3953 = vweird.f32 %v1357
    %v3954 = vadd.s32 %v3950, 3
    %v3955 = vand.u32 %v3954, 3
    %vm3956 = vcmp.lt.s32.totalorder %v3955, 2
    %vm3957 = vcmp.eq.s32.totalorder %v3955, 0
    %v3958 = vxor.u32 %v3952, 2147483648
    %v3959 = vsel %vm3957, %v3951, %v3958
    %vm3960 = vcmp.eq.s32.totalorder %v3955, 2
    %v3961 = vxor.u32 %v3951, 2147483648
    %v3962 = vsel %vm3960, %v3961, %v3952
    %v3963 = vsel %vm3956, %v3959, %v3962
    %v3964 = vsel %vm3953, nan, %v3963
    %v3965 = vand.u32 2147483647, %v1358
    %vm3966 = vcmp.le.f32.partialorder %v3965, 0.7853982
    %vm3967 = vcmp.lt.s32.totalorder %v1358, 0
    %v3968 = vand.u32 %v1358, 2139095040
    %v3969 = vshrl.u32 %v3968, 23
    %v3970 = vsub.s32 %v3969, 127
    %v3971 = vand.u32 2147483647, %v1358
    %v3972 = vand.u32 %v3971, 8388607
    %v3973 = vor.u32 %v3972, 8388608
    %v3974 = vsub.s32 0, %v3973
    %v3975 = vadd.s32 %v3970, 1
    %vm3976 = vcmp.gt.s32.totalorder %v3975, 0
    %v3977 = vsel %vm3976, %v3975, 0
    %v3978 = vshrl.u32 %v3977, 5
    %v3979 = vand.u32 %v3977, 31
    %v3980 = vsub.s32 32, %v3979
    %v3981 = vshrl.u32 683565275, %v3980
    %v3982 = vshll.u32 683565275, %v3979
    %v3983 = vshrl.u32 2475754826, %v3980
    %v3984 = vor.u32 %v3982, %v3983
    %v3985 = vshll.u32 2475754826, %v3979
    %v3986 = vshrl.u32 2131351028, %v3980
    %v3987 = vor.u32 %v3985, %v3986
    %v3988 = vshll.u32 2131351028, %v3979
    %v3989 = vshrl.u32 2102212464, %v3980
    %v3990 = vor.u32 %v3988, %v3989
    %v3991 = vshll.u32 2102212464, %v3979
    %v3992 = vshrl.u32 920167782, %v3980
    %v3993 = vor.u32 %v3991, %v3992
    %v3994 = vshll.u32 920167782, %v3979
    %v3995 = vshrl.u32 1326507024, %v3980
    %v3996 = vor.u32 %v3994, %v3995
    %vm3997 = vcmp.lt.s32.totalorder %v3978, 1
    %vm3998 = vcmp.lt.s32.totalorder %v3978, 2
    %vm3999 = vcmp.lt.s32.totalorder %v3978, 3
    %vm4000 = vcmp.lt.s32.totalorder %v3978, 4
    %v4001 = vsel %vm3997, %v3981, %v3984
    %v4002 = vsel %vm4000, %v3990, 2102212464
    %v4003 = vsel %vm3999, %v3987, %v4002
    %v4004 = vsel %vm3998, %v4001, %v4003
    %v4005 = vsel %vm3997, %v3984, %v3987
    %v4006 = vsel %vm4000, %v3993, 920167782
    %v4007 = vsel %vm3999, %v3990, %v4006
    %v4008 = vsel %vm3998, %v4005, %v4007
    %v4009 = vsel %vm3997, %v3987, %v3990
    %v4010 = vsel %vm4000, %v3996, 1326507024
    %v4011 = vsel %vm3999, %v3993, %v4010
    %v4012 = vsel %vm3998, %v4009, %v4011
    %v4013 = vshll.u32 %v3973, 8
    %v4014 = vmul.u32.u64.compose %v4013, %v4012
    %v4015 = vextract.low.u32 %v4014
    %v4016 = vextract.high.u32 %v4014
    %v4017 = vmul.u32.u64.compose %v4013, %v4008
    %v4018 = vextract.low.u32 %v4017
    %v4019 = vextract.high.u32 %v4017
    %v4020 = vmul.u32 %v4013, %v4004
    %v4021 = vadd.s32 %v4016, %v4018
    %vm4022 = vc.u32 %v4016, %v4018
    %v4023 = vadd.s32 %v4019, 1
    %v4024 = vsel %vm4022, %v4023, %v4019
    %v4025 = vadd.s32 %v4020, %v4024
    %v4026 = vadd.s32 %v4025, 536870912
    %v4027 = vshrl.u32 %v4026, 30
    %v4028 = vshll.u32 %v4027, 30
    %v4029 = vsub.s32 %v4025, %v4028
    %vm4030 = vcmp.lt.s32.totalorder %v4029, 0
    %v4031 = vsub.s32 0, %v4029
    %v4032 = vsel %vm4030, %v4031, %v4029
    %v4033 = vclz %v4032
    %v4034 = vsub.s32 %v4033, 2
    %vm4035 = vcmp.gt.s32.totalorder 0, %v4034
    %v4036 = vsel %vm4035, 0, %v4034
    %v4037 = vsub.s32 32, %v4036
    %v4038 = vshll.u32 %v4029, %v4036
    %v4039 = vshrl.u32 %v4021, %v4037
    %v4040 = vor.u32 %v4038, %v4039
    %v4041 = vsub.s32 4294967266, %v4036
    %v4042 = vadd.s32 %v4041, 127
    %v4043 = vshll.u32 %v4042, 23
    %v4044 = vor.u32 4788187, %v4043
    %v4045 = vand.u32 2147483647, %v4044
    %v4047 = vcvt.s32.f32 %v4040
    %v4048 = vmul.f32 %v4047, %v4045
    %v4049 = vxor.u32 %v4048, 2147483648
    %v4050 = vsel %vm3967, %v4049, %v4048
    %v4051 = vsub.s32 4, %v4027
    %v4052 = vsel %vm3967, %v4051, %v4027
    %v4053 = vsel %vm3966, %v1358, %v4050
    %v4054 = vsel %vm3966, 0, %v4052
    %v4055 = vcosq.f32.pop %v4053
    %v4056 = vsinq.f32.pop %v4053
    %vm4057 = vweird.f32 %v1358
    %v4058 = vadd.s32 %v4054, 3
    %v4059 = vand.u32 %v4058, 3
    %vm4060 = vcmp.lt.s32.totalorder %v4059, 2
    %vm4061 = vcmp.eq.s32.totalorder %v4059, 0
    %v4062 = vxor.u32 %v4056, 2147483648
    %v4063 = vsel %vm4061, %v4055, %v4062
    %vm4064 = vcmp.eq.s32.totalorder %v4059, 2
    %v4065 = vxor.u32 %v4055, 2147483648
    %v4066 = vsel %vm4064, %v4065, %v4056
    %v4067 = vsel %vm4060, %v4063, %v4066
    %v4068 = vsel %vm4057, nan, %v4067
    %v4069 = vand.u32 2147483647, %v1359
    %vm4070 = vcmp.le.f32.partialorder %v4069, 0.7853982
    %vm4071 = vcmp.lt.s32.totalorder %v1359, 0
    %v4072 = vand.u32 %v1359, 2139095040
    %v4073 = vshrl.u32 %v4072, 23
    %v4074 = vsub.s32 %v4073, 127
    %v4075 = vand.u32 2147483647, %v1359
    %v4076 = vand.u32 %v4075, 8388607
    %v4077 = vor.u32 %v4076, 8388608
    %v4078 = vsub.s32 0, %v4077
    %v4079 = vadd.s32 %v4074, 1
    %vm4080 = vcmp.gt.s32.totalorder %v4079, 0
    %v4081 = vsel %vm4080, %v4079, 0
    %v4082 = vshrl.u32 %v4081, 5
    %v4083 = vand.u32 %v4081, 31
    %v4084 = vsub.s32 32, %v4083
    %v4085 = vshrl.u32 683565275, %v4084
    %v4086 = vshll.u32 683565275, %v4083
    %v4087 = vshrl.u32 2475754826, %v4084
    %v4088 = vor.u32 %v4086, %v4087
    %v4089 = vshll.u32 2475754826, %v4083
    %v4090 = vshrl.u32 2131351028, %v4084
    %v4091 = vor.u32 %v4089, %v4090
    %v4092 = vshll.u32 2131351028, %v4083
    %v4093 = vshrl.u32 2102212464, %v4084
    %v4094 = vor.u32 %v4092, %v4093
    %v4095 = vshll.u32 2102212464, %v4083
    %v4096 = vshrl.u32 920167782, %v4084
    %v4097 = vor.u32 %v4095, %v4096
    %v4098 = vshll.u32 920167782, %v4083
    %v4099 = vshrl.u32 1326507024, %v4084
    %v4100 = vor.u32 %v4098, %v4099
    %vm4101 = vcmp.lt.s32.totalorder %v4082, 1
    %vm4102 = vcmp.lt.s32.totalorder %v4082, 2
    %vm4103 = vcmp.lt.s32.totalorder %v4082, 3
    %vm4104 = vcmp.lt.s32.totalorder %v4082, 4
    %v4105 = vsel %vm4101, %v4085, %v4088
    %v4106 = vsel %vm4104, %v4094, 2102212464
    %v4107 = vsel %vm4103, %v4091, %v4106
    %v4108 = vsel %vm4102, %v4105, %v4107
    %v4109 = vsel %vm4101, %v4088, %v4091
    %v4110 = vsel %vm4104, %v4097, 920167782
    %v4111 = vsel %vm4103, %v4094, %v4110
    %v4112 = vsel %vm4102, %v4109, %v4111
    %v4113 = vsel %vm4101, %v4091, %v4094
    %v4114 = vsel %vm4104, %v4100, 1326507024
    %v4115 = vsel %vm4103, %v4097, %v4114
    %v4116 = vsel %vm4102, %v4113, %v4115
    %v4117 = vshll.u32 %v4077, 8
    %v4118 = vmul.u32.u64.compose %v4117, %v4116
    %v4119 = vextract.low.u32 %v4118
    %v4120 = vextract.high.u32 %v4118
    %v4121 = vmul.u32.u64.compose %v4117, %v4112
    %v4122 = vextract.low.u32 %v4121
    %v4123 = vextract.high.u32 %v4121
    %v4124 = vmul.u32 %v4117, %v4108
    %v4125 = vadd.s32 %v4120, %v4122
    %vm4126 = vc.u32 %v4120, %v4122
    %v4127 = vadd.s32 %v4123, 1
    %v4128 = vsel %vm4126, %v4127, %v4123
    %v4129 = vadd.s32 %v4124, %v4128
    %v4130 = vadd.s32 %v4129, 536870912
    %v4131 = vshrl.u32 %v4130, 30
    %v4132 = vshll.u32 %v4131, 30
    %v4133 = vsub.s32 %v4129, %v4132
    %vm4134 = vcmp.lt.s32.totalorder %v4133, 0
    %v4135 = vsub.s32 0, %v4133
    %v4136 = vsel %vm4134, %v4135, %v4133
    %v4137 = vclz %v4136
    %v4138 = vsub.s32 %v4137, 2
    %vm4139 = vcmp.gt.s32.totalorder 0, %v4138
    %v4140 = vsel %vm4139, 0, %v4138
    %v4141 = vsub.s32 32, %v4140
    %v4142 = vshll.u32 %v4133, %v4140
    %v4143 = vshrl.u32 %v4125, %v4141
    %v4144 = vor.u32 %v4142, %v4143
    %v4145 = vsub.s32 4294967266, %v4140
    %v4146 = vadd.s32 %v4145, 127
    %v4147 = vshll.u32 %v4146, 23
    %v4148 = vor.u32 4788187, %v4147
    %v4149 = vand.u32 2147483647, %v4148
    %v4151 = vcvt.s32.f32 %v4144
    %v4152 = vmul.f32 %v4151, %v4149
    %v4153 = vxor.u32 %v4152, 2147483648
    %v4154 = vsel %vm4071, %v4153, %v4152
    %v4155 = vsub.s32 4, %v4131
    %v4156 = vsel %vm4071, %v4155, %v4131
    %v4157 = vsel %vm4070, %v1359, %v4154
    %v4158 = vsel %vm4070, 0, %v4156
    %v4159 = vcosq.f32.pop %v4157
    %v4160 = vsinq.f32.pop %v4157
    %vm4161 = vweird.f32 %v1359
    %v4162 = vadd.s32 %v4158, 3
    %v4163 = vand.u32 %v4162, 3
    %vm4164 = vcmp.lt.s32.totalorder %v4163, 2
    %vm4165 = vcmp.eq.s32.totalorder %v4163, 0
    %v4166 = vxor.u32 %v4160, 2147483648
    %v4167 = vsel %vm4165, %v4159, %v4166
    %vm4168 = vcmp.eq.s32.totalorder %v4163, 2
    %v4169 = vxor.u32 %v4159, 2147483648
    %v4170 = vsel %vm4168, %v4169, %v4160
    %v4171 = vsel %vm4164, %v4167, %v4170
    %v4172 = vsel %vm4161, nan, %v4171
    %v4173 = vand.u32 2147483647, %v1360
    %vm4174 = vcmp.le.f32.partialorder %v4173, 0.7853982
    %vm4175 = vcmp.lt.s32.totalorder %v1360, 0
    %v4176 = vand.u32 %v1360, 2139095040
    %v4177 = vshrl.u32 %v4176, 23
    %v4178 = vsub.s32 %v4177, 127
    %v4179 = vand.u32 2147483647, %v1360
    %v4180 = vand.u32 %v4179, 8388607
    %v4181 = vor.u32 %v4180, 8388608
    %v4182 = vsub.s32 0, %v4181
    %v4183 = vadd.s32 %v4178, 1
    %vm4184 = vcmp.gt.s32.totalorder %v4183, 0
    %v4185 = vsel %vm4184, %v4183, 0
    %v4186 = vshrl.u32 %v4185, 5
    %v4187 = vand.u32 %v4185, 31
    %v4188 = vsub.s32 32, %v4187
    %v4189 = vshrl.u32 683565275, %v4188
    %v4190 = vshll.u32 683565275, %v4187
    %v4191 = vshrl.u32 2475754826, %v4188
    %v4192 = vor.u32 %v4190, %v4191
    %v4193 = vshll.u32 2475754826, %v4187
    %v4194 = vshrl.u32 2131351028, %v4188
    %v4195 = vor.u32 %v4193, %v4194
    %v4196 = vshll.u32 2131351028, %v4187
    %v4197 = vshrl.u32 2102212464, %v4188
    %v4198 = vor.u32 %v4196, %v4197
    %v4199 = vshll.u32 2102212464, %v4187
    %v4200 = vshrl.u32 920167782, %v4188
    %v4201 = vor.u32 %v4199, %v4200
    %v4202 = vshll.u32 920167782, %v4187
    %v4203 = vshrl.u32 1326507024, %v4188
    %v4204 = vor.u32 %v4202, %v4203
    %vm4205 = vcmp.lt.s32.totalorder %v4186, 1
    %vm4206 = vcmp.lt.s32.totalorder %v4186, 2
    %vm4207 = vcmp.lt.s32.totalorder %v4186, 3
    %vm4208 = vcmp.lt.s32.totalorder %v4186, 4
    %v4209 = vsel %vm4205, %v4189, %v4192
    %v4210 = vsel %vm4208, %v4198, 2102212464
    %v4211 = vsel %vm4207, %v4195, %v4210
    %v4212 = vsel %vm4206, %v4209, %v4211
    %v4213 = vsel %vm4205, %v4192, %v4195
    %v4214 = vsel %vm4208, %v4201, 920167782
    %v4215 = vsel %vm4207, %v4198, %v4214
    %v4216 = vsel %vm4206, %v4213, %v4215
    %v4217 = vsel %vm4205, %v4195, %v4198
    %v4218 = vsel %vm4208, %v4204, 1326507024
    %v4219 = vsel %vm4207, %v4201, %v4218
    %v4220 = vsel %vm4206, %v4217, %v4219
    %v4221 = vshll.u32 %v4181, 8
    %v4222 = vmul.u32.u64.compose %v4221, %v4220
    %v4223 = vextract.low.u32 %v4222
    %v4224 = vextract.high.u32 %v4222
    %v4225 = vmul.u32.u64.compose %v4221, %v4216
    %v4226 = vextract.low.u32 %v4225
    %v4227 = vextract.high.u32 %v4225
    %v4228 = vmul.u32 %v4221, %v4212
    %v4229 = vadd.s32 %v4224, %v4226
    %vm4230 = vc.u32 %v4224, %v4226
    %v4231 = vadd.s32 %v4227, 1
    %v4232 = vsel %vm4230, %v4231, %v4227
    %v4233 = vadd.s32 %v4228, %v4232
    %v4234 = vadd.s32 %v4233, 536870912
    %v4235 = vshrl.u32 %v4234, 30
    %v4236 = vshll.u32 %v4235, 30
    %v4237 = vsub.s32 %v4233, %v4236
    %vm4238 = vcmp.lt.s32.totalorder %v4237, 0
    %v4239 = vsub.s32 0, %v4237
    %v4240 = vsel %vm4238, %v4239, %v4237
    %v4241 = vclz %v4240
    %v4242 = vsub.s32 %v4241, 2
    %vm4243 = vcmp.gt.s32.totalorder 0, %v4242
    %v4244 = vsel %vm4243, 0, %v4242
    %v4245 = vsub.s32 32, %v4244
    %v4246 = vshll.u32 %v4237, %v4244
    %v4247 = vshrl.u32 %v4229, %v4245
    %v4248 = vor.u32 %v4246, %v4247
    %v4249 = vsub.s32 4294967266, %v4244
    %v4250 = vadd.s32 %v4249, 127
    %v4251 = vshll.u32 %v4250, 23
    %v4252 = vor.u32 4788187, %v4251
    %v4253 = vand.u32 2147483647, %v4252
    %v4255 = vcvt.s32.f32 %v4248
    %v4256 = vmul.f32 %v4255, %v4253
    %v4257 = vxor.u32 %v4256, 2147483648
    %v4258 = vsel %vm4175, %v4257, %v4256
    %v4259 = vsub.s32 4, %v4235
    %v4260 = vsel %vm4175, %v4259, %v4235
    %v4261 = vsel %vm4174, %v1360, %v4258
    %v4262 = vsel %vm4174, 0, %v4260
    %v4263 = vcosq.f32.pop %v4261
    %v4264 = vsinq.f32.pop %v4261
    %vm4265 = vweird.f32 %v1360
    %v4266 = vadd.s32 %v4262, 3
    %v4267 = vand.u32 %v4266, 3
    %vm4268 = vcmp.lt.s32.totalorder %v4267, 2
    %vm4269 = vcmp.eq.s32.totalorder %v4267, 0
    %v4270 = vxor.u32 %v4264, 2147483648
    %v4271 = vsel %vm4269, %v4263, %v4270
    %vm4272 = vcmp.eq.s32.totalorder %v4267, 2
    %v4273 = vxor.u32 %v4263, 2147483648
    %v4274 = vsel %vm4272, %v4273, %v4264
    %v4275 = vsel %vm4268, %v4271, %v4274
    %v4276 = vsel %vm4265, nan, %v4275
    %v4277 = vand.u32 2147483647, %v1361
    %vm4278 = vcmp.le.f32.partialorder %v4277, 0.7853982
    %vm4279 = vcmp.lt.s32.totalorder %v1361, 0
    %v4280 = vand.u32 %v1361, 2139095040
    %v4281 = vshrl.u32 %v4280, 23
    %v4282 = vsub.s32 %v4281, 127
    %v4283 = vand.u32 2147483647, %v1361
    %v4284 = vand.u32 %v4283, 8388607
    %v4285 = vor.u32 %v4284, 8388608
    %v4286 = vsub.s32 0, %v4285
    %v4287 = vadd.s32 %v4282, 1
    %vm4288 = vcmp.gt.s32.totalorder %v4287, 0
    %v4289 = vsel %vm4288, %v4287, 0
    %v4290 = vshrl.u32 %v4289, 5
    %v4291 = vand.u32 %v4289, 31
    %v4292 = vsub.s32 32, %v4291
    %v4293 = vshrl.u32 683565275, %v4292
    %v4294 = vshll.u32 683565275, %v4291
    %v4295 = vshrl.u32 2475754826, %v4292
    %v4296 = vor.u32 %v4294, %v4295
    %v4297 = vshll.u32 2475754826, %v4291
    %v4298 = vshrl.u32 2131351028, %v4292
    %v4299 = vor.u32 %v4297, %v4298
    %v4300 = vshll.u32 2131351028, %v4291
    %v4301 = vshrl.u32 2102212464, %v4292
    %v4302 = vor.u32 %v4300, %v4301
    %v4303 = vshll.u32 2102212464, %v4291
    %v4304 = vshrl.u32 920167782, %v4292
    %v4305 = vor.u32 %v4303, %v4304
    %v4306 = vshll.u32 920167782, %v4291
    %v4307 = vshrl.u32 1326507024, %v4292
    %v4308 = vor.u32 %v4306, %v4307
    %vm4309 = vcmp.lt.s32.totalorder %v4290, 1
    %vm4310 = vcmp.lt.s32.totalorder %v4290, 2
    %vm4311 = vcmp.lt.s32.totalorder %v4290, 3
    %vm4312 = vcmp.lt.s32.totalorder %v4290, 4
    %v4313 = vsel %vm4309, %v4293, %v4296
    %v4314 = vsel %vm4312, %v4302, 2102212464
    %v4315 = vsel %vm4311, %v4299, %v4314
    %v4316 = vsel %vm4310, %v4313, %v4315
    %v4317 = vsel %vm4309, %v4296, %v4299
    %v4318 = vsel %vm4312, %v4305, 920167782
    %v4319 = vsel %vm4311, %v4302, %v4318
    %v4320 = vsel %vm4310, %v4317, %v4319
    %v4321 = vsel %vm4309, %v4299, %v4302
    %v4322 = vsel %vm4312, %v4308, 1326507024
    %v4323 = vsel %vm4311, %v4305, %v4322
    %v4324 = vsel %vm4310, %v4321, %v4323
    %v4325 = vshll.u32 %v4285, 8
    %v4326 = vmul.u32.u64.compose %v4325, %v4324
    %v4327 = vextract.low.u32 %v4326
    %v4328 = vextract.high.u32 %v4326
    %v4329 = vmul.u32.u64.compose %v4325, %v4320
    %v4330 = vextract.low.u32 %v4329
    %v4331 = vextract.high.u32 %v4329
    %v4332 = vmul.u32 %v4325, %v4316
    %v4333 = vadd.s32 %v4328, %v4330
    %vm4334 = vc.u32 %v4328, %v4330
    %v4335 = vadd.s32 %v4331, 1
    %v4336 = vsel %vm4334, %v4335, %v4331
    %v4337 = vadd.s32 %v4332, %v4336
    %v4338 = vadd.s32 %v4337, 536870912
    %v4339 = vshrl.u32 %v4338, 30
    %v4340 = vshll.u32 %v4339, 30
    %v4341 = vsub.s32 %v4337, %v4340
    %vm4342 = vcmp.lt.s32.totalorder %v4341, 0
    %v4343 = vsub.s32 0, %v4341
    %v4344 = vsel %vm4342, %v4343, %v4341
    %v4345 = vclz %v4344
    %v4346 = vsub.s32 %v4345, 2
    %vm4347 = vcmp.gt.s32.totalorder 0, %v4346
    %v4348 = vsel %vm4347, 0, %v4346
    %v4349 = vsub.s32 32, %v4348
    %v4350 = vshll.u32 %v4341, %v4348
    %v4351 = vshrl.u32 %v4333, %v4349
    %v4352 = vor.u32 %v4350, %v4351
    %v4353 = vsub.s32 4294967266, %v4348
    %v4354 = vadd.s32 %v4353, 127
    %v4355 = vshll.u32 %v4354, 23
    %v4356 = vor.u32 4788187, %v4355
    %v4357 = vand.u32 2147483647, %v4356
    %v4359 = vcvt.s32.f32 %v4352
    %v4360 = vmul.f32 %v4359, %v4357
    %v4361 = vxor.u32 %v4360, 2147483648
    %v4362 = vsel %vm4279, %v4361, %v4360
    %v4363 = vsub.s32 4, %v4339
    %v4364 = vsel %vm4279, %v4363, %v4339
    %v4365 = vsel %vm4278, %v1361, %v4362
    %v4366 = vsel %vm4278, 0, %v4364
    %v4367 = vcosq.f32.pop %v4365
    %v4368 = vsinq.f32.pop %v4365
    %vm4369 = vweird.f32 %v1361
    %v4370 = vadd.s32 %v4366, 3
    %v4371 = vand.u32 %v4370, 3
    %vm4372 = vcmp.lt.s32.totalorder %v4371, 2
    %vm4373 = vcmp.eq.s32.totalorder %v4371, 0
    %v4374 = vxor.u32 %v4368, 2147483648
    %v4375 = vsel %vm4373, %v4367, %v4374
    %vm4376 = vcmp.eq.s32.totalorder %v4371, 2
    %v4377 = vxor.u32 %v4367, 2147483648
    %v4378 = vsel %vm4376, %v4377, %v4368
    %v4379 = vsel %vm4372, %v4375, %v4378
    %v4380 = vsel %vm4369, nan, %v4379
    %v4381 = vand.u32 2147483647, %v1362
    %vm4382 = vcmp.le.f32.partialorder %v4381, 0.7853982
    %vm4383 = vcmp.lt.s32.totalorder %v1362, 0
    %v4384 = vand.u32 %v1362, 2139095040
    %v4385 = vshrl.u32 %v4384, 23
    %v4386 = vsub.s32 %v4385, 127
    %v4387 = vand.u32 2147483647, %v1362
    %v4388 = vand.u32 %v4387, 8388607
    %v4389 = vor.u32 %v4388, 8388608
    %v4390 = vsub.s32 0, %v4389
    %v4391 = vadd.s32 %v4386, 1
    %vm4392 = vcmp.gt.s32.totalorder %v4391, 0
    %v4393 = vsel %vm4392, %v4391, 0
    %v4394 = vshrl.u32 %v4393, 5
    %v4395 = vand.u32 %v4393, 31
    %v4396 = vsub.s32 32, %v4395
    %v4397 = vshrl.u32 683565275, %v4396
    %v4398 = vshll.u32 683565275, %v4395
    %v4399 = vshrl.u32 2475754826, %v4396
    %v4400 = vor.u32 %v4398, %v4399
    %v4401 = vshll.u32 2475754826, %v4395
    %v4402 = vshrl.u32 2131351028, %v4396
    %v4403 = vor.u32 %v4401, %v4402
    %v4404 = vshll.u32 2131351028, %v4395
    %v4405 = vshrl.u32 2102212464, %v4396
    %v4406 = vor.u32 %v4404, %v4405
    %v4407 = vshll.u32 2102212464, %v4395
    %v4408 = vshrl.u32 920167782, %v4396
    %v4409 = vor.u32 %v4407, %v4408
    %v4410 = vshll.u32 920167782, %v4395
    %v4411 = vshrl.u32 1326507024, %v4396
    %v4412 = vor.u32 %v4410, %v4411
    %vm4413 = vcmp.lt.s32.totalorder %v4394, 1
    %vm4414 = vcmp.lt.s32.totalorder %v4394, 2
    %vm4415 = vcmp.lt.s32.totalorder %v4394, 3
    %vm4416 = vcmp.lt.s32.totalorder %v4394, 4
    %v4417 = vsel %vm4413, %v4397, %v4400
    %v4418 = vsel %vm4416, %v4406, 2102212464
    %v4419 = vsel %vm4415, %v4403, %v4418
    %v4420 = vsel %vm4414, %v4417, %v4419
    %v4421 = vsel %vm4413, %v4400, %v4403
    %v4422 = vsel %vm4416, %v4409, 920167782
    %v4423 = vsel %vm4415, %v4406, %v4422
    %v4424 = vsel %vm4414, %v4421, %v4423
    %v4425 = vsel %vm4413, %v4403, %v4406
    %v4426 = vsel %vm4416, %v4412, 1326507024
    %v4427 = vsel %vm4415, %v4409, %v4426
    %v4428 = vsel %vm4414, %v4425, %v4427
    %v4429 = vshll.u32 %v4389, 8
    %v4430 = vmul.u32.u64.compose %v4429, %v4428
    %v4431 = vextract.low.u32 %v4430
    %v4432 = vextract.high.u32 %v4430
    %v4433 = vmul.u32.u64.compose %v4429, %v4424
    %v4434 = vextract.low.u32 %v4433
    %v4435 = vextract.high.u32 %v4433
    %v4436 = vmul.u32 %v4429, %v4420
    %v4437 = vadd.s32 %v4432, %v4434
    %vm4438 = vc.u32 %v4432, %v4434
    %v4439 = vadd.s32 %v4435, 1
    %v4440 = vsel %vm4438, %v4439, %v4435
    %v4441 = vadd.s32 %v4436, %v4440
    %v4442 = vadd.s32 %v4441, 536870912
    %v4443 = vshrl.u32 %v4442, 30
    %v4444 = vshll.u32 %v4443, 30
    %v4445 = vsub.s32 %v4441, %v4444
    %vm4446 = vcmp.lt.s32.totalorder %v4445, 0
    %v4447 = vsub.s32 0, %v4445
    %v4448 = vsel %vm4446, %v4447, %v4445
    %v4449 = vclz %v4448
    %v4450 = vsub.s32 %v4449, 2
    %vm4451 = vcmp.gt.s32.totalorder 0, %v4450
    %v4452 = vsel %vm4451, 0, %v4450
    %v4453 = vsub.s32 32, %v4452
    %v4454 = vshll.u32 %v4445, %v4452
    %v4455 = vshrl.u32 %v4437, %v4453
    %v4456 = vor.u32 %v4454, %v4455
    %v4457 = vsub.s32 4294967266, %v4452
    %v4458 = vadd.s32 %v4457, 127
    %v4459 = vshll.u32 %v4458, 23
    %v4460 = vor.u32 4788187, %v4459
    %v4461 = vand.u32 2147483647, %v4460
    %v4463 = vcvt.s32.f32 %v4456
    %v4464 = vmul.f32 %v4463, %v4461
    %v4465 = vxor.u32 %v4464, 2147483648
    %v4466 = vsel %vm4383, %v4465, %v4464
    %v4467 = vsub.s32 4, %v4443
    %v4468 = vsel %vm4383, %v4467, %v4443
    %v4469 = vsel %vm4382, %v1362, %v4466
    %v4470 = vsel %vm4382, 0, %v4468
    %v4471 = vcosq.f32.pop %v4469
    %v4472 = vsinq.f32.pop %v4469
    %vm4473 = vweird.f32 %v1362
    %v4474 = vadd.s32 %v4470, 3
    %v4475 = vand.u32 %v4474, 3
    %vm4476 = vcmp.lt.s32.totalorder %v4475, 2
    %vm4477 = vcmp.eq.s32.totalorder %v4475, 0
    %v4478 = vxor.u32 %v4472, 2147483648
    %v4479 = vsel %vm4477, %v4471, %v4478
    %vm4480 = vcmp.eq.s32.totalorder %v4475, 2
    %v4481 = vxor.u32 %v4471, 2147483648
    %v4482 = vsel %vm4480, %v4481, %v4472
    %v4483 = vsel %vm4476, %v4479, %v4482
    %v4484 = vsel %vm4473, nan, %v4483
    %v4485 = vand.u32 2147483647, %v1363
    %vm4486 = vcmp.le.f32.partialorder %v4485, 0.7853982
    %vm4487 = vcmp.lt.s32.totalorder %v1363, 0
    %v4488 = vand.u32 %v1363, 2139095040
    %v4489 = vshrl.u32 %v4488, 23
    %v4490 = vsub.s32 %v4489, 127
    %v4491 = vand.u32 2147483647, %v1363
    %v4492 = vand.u32 %v4491, 8388607
    %v4493 = vor.u32 %v4492, 8388608
    %v4494 = vsub.s32 0, %v4493
    %v4495 = vadd.s32 %v4490, 1
    %vm4496 = vcmp.gt.s32.totalorder %v4495, 0
    %v4497 = vsel %vm4496, %v4495, 0
    %v4498 = vshrl.u32 %v4497, 5
    %v4499 = vand.u32 %v4497, 31
    %v4500 = vsub.s32 32, %v4499
    %v4501 = vshrl.u32 683565275, %v4500
    %v4502 = vshll.u32 683565275, %v4499
    %v4503 = vshrl.u32 2475754826, %v4500
    %v4504 = vor.u32 %v4502, %v4503
    %v4505 = vshll.u32 2475754826, %v4499
    %v4506 = vshrl.u32 2131351028, %v4500
    %v4507 = vor.u32 %v4505, %v4506
    %v4508 = vshll.u32 2131351028, %v4499
    %v4509 = vshrl.u32 2102212464, %v4500
    %v4510 = vor.u32 %v4508, %v4509
    %v4511 = vshll.u32 2102212464, %v4499
    %v4512 = vshrl.u32 920167782, %v4500
    %v4513 = vor.u32 %v4511, %v4512
    %v4514 = vshll.u32 920167782, %v4499
    %v4515 = vshrl.u32 1326507024, %v4500
    %v4516 = vor.u32 %v4514, %v4515
    %vm4517 = vcmp.lt.s32.totalorder %v4498, 1
    %vm4518 = vcmp.lt.s32.totalorder %v4498, 2
    %vm4519 = vcmp.lt.s32.totalorder %v4498, 3
    %vm4520 = vcmp.lt.s32.totalorder %v4498, 4
    %v4521 = vsel %vm4517, %v4501, %v4504
    %v4522 = vsel %vm4520, %v4510, 2102212464
    %v4523 = vsel %vm4519, %v4507, %v4522
    %v4524 = vsel %vm4518, %v4521, %v4523
    %v4525 = vsel %vm4517, %v4504, %v4507
    %v4526 = vsel %vm4520, %v4513, 920167782
    %v4527 = vsel %vm4519, %v4510, %v4526
    %v4528 = vsel %vm4518, %v4525, %v4527
    %v4529 = vsel %vm4517, %v4507, %v4510
    %v4530 = vsel %vm4520, %v4516, 1326507024
    %v4531 = vsel %vm4519, %v4513, %v4530
    %v4532 = vsel %vm4518, %v4529, %v4531
    %v4533 = vshll.u32 %v4493, 8
    %v4534 = vmul.u32.u64.compose %v4533, %v4532
    %v4535 = vextract.low.u32 %v4534
    %v4536 = vextract.high.u32 %v4534
    %v4537 = vmul.u32.u64.compose %v4533, %v4528
    %v4538 = vextract.low.u32 %v4537
    %v4539 = vextract.high.u32 %v4537
    %v4540 = vmul.u32 %v4533, %v4524
    %v4541 = vadd.s32 %v4536, %v4538
    %vm4542 = vc.u32 %v4536, %v4538
    %v4543 = vadd.s32 %v4539, 1
    %v4544 = vsel %vm4542, %v4543, %v4539
    %v4545 = vadd.s32 %v4540, %v4544
    %v4546 = vadd.s32 %v4545, 536870912
    %v4547 = vshrl.u32 %v4546, 30
    %v4548 = vshll.u32 %v4547, 30
    %v4549 = vsub.s32 %v4545, %v4548
    %vm4550 = vcmp.lt.s32.totalorder %v4549, 0
    %v4551 = vsub.s32 0, %v4549
    %v4552 = vsel %vm4550, %v4551, %v4549
    %v4553 = vclz %v4552
    %v4554 = vsub.s32 %v4553, 2
    %vm4555 = vcmp.gt.s32.totalorder 0, %v4554
    %v4556 = vsel %vm4555, 0, %v4554
    %v4557 = vsub.s32 32, %v4556
    %v4558 = vshll.u32 %v4549, %v4556
    %v4559 = vshrl.u32 %v4541, %v4557
    %v4560 = vor.u32 %v4558, %v4559
    %v4561 = vsub.s32 4294967266, %v4556
    %v4562 = vadd.s32 %v4561, 127
    %v4563 = vshll.u32 %v4562, 23
    %v4564 = vor.u32 4788187, %v4563
    %v4565 = vand.u32 2147483647, %v4564
    %v4567 = vcvt.s32.f32 %v4560
    %v4568 = vmul.f32 %v4567, %v4565
    %v4569 = vxor.u32 %v4568, 2147483648
    %v4570 = vsel %vm4487, %v4569, %v4568
    %v4571 = vsub.s32 4, %v4547
    %v4572 = vsel %vm4487, %v4571, %v4547
    %v4573 = vsel %vm4486, %v1363, %v4570
    %v4574 = vsel %vm4486, 0, %v4572
    %v4575 = vcosq.f32.pop %v4573
    %v4576 = vsinq.f32.pop %v4573
    %vm4577 = vweird.f32 %v1363
    %v4578 = vadd.s32 %v4574, 3
    %v4579 = vand.u32 %v4578, 3
    %vm4580 = vcmp.lt.s32.totalorder %v4579, 2
    %vm4581 = vcmp.eq.s32.totalorder %v4579, 0
    %v4582 = vxor.u32 %v4576, 2147483648
    %v4583 = vsel %vm4581, %v4575, %v4582
    %vm4584 = vcmp.eq.s32.totalorder %v4579, 2
    %v4585 = vxor.u32 %v4575, 2147483648
    %v4586 = vsel %vm4584, %v4585, %v4576
    %v4587 = vsel %vm4580, %v4583, %v4586
    %v4588 = vsel %vm4577, nan, %v4587
    %v4589 = vand.u32 2147483647, %v1364
    %vm4590 = vcmp.le.f32.partialorder %v4589, 0.7853982
    %vm4591 = vcmp.lt.s32.totalorder %v1364, 0
    %v4592 = vand.u32 %v1364, 2139095040
    %v4593 = vshrl.u32 %v4592, 23
    %v4594 = vsub.s32 %v4593, 127
    %v4595 = vand.u32 2147483647, %v1364
    %v4596 = vand.u32 %v4595, 8388607
    %v4597 = vor.u32 %v4596, 8388608
    %v4598 = vsub.s32 0, %v4597
    %v4599 = vadd.s32 %v4594, 1
    %vm4600 = vcmp.gt.s32.totalorder %v4599, 0
    %v4601 = vsel %vm4600, %v4599, 0
    %v4602 = vshrl.u32 %v4601, 5
    %v4603 = vand.u32 %v4601, 31
    %v4604 = vsub.s32 32, %v4603
    %v4605 = vshrl.u32 683565275, %v4604
    %v4606 = vshll.u32 683565275, %v4603
    %v4607 = vshrl.u32 2475754826, %v4604
    %v4608 = vor.u32 %v4606, %v4607
    %v4609 = vshll.u32 2475754826, %v4603
    %v4610 = vshrl.u32 2131351028, %v4604
    %v4611 = vor.u32 %v4609, %v4610
    %v4612 = vshll.u32 2131351028, %v4603
    %v4613 = vshrl.u32 2102212464, %v4604
    %v4614 = vor.u32 %v4612, %v4613
    %v4615 = vshll.u32 2102212464, %v4603
    %v4616 = vshrl.u32 920167782, %v4604
    %v4617 = vor.u32 %v4615, %v4616
    %v4618 = vshll.u32 920167782, %v4603
    %v4619 = vshrl.u32 1326507024, %v4604
    %v4620 = vor.u32 %v4618, %v4619
    %vm4621 = vcmp.lt.s32.totalorder %v4602, 1
    %vm4622 = vcmp.lt.s32.totalorder %v4602, 2
    %vm4623 = vcmp.lt.s32.totalorder %v4602, 3
    %vm4624 = vcmp.lt.s32.totalorder %v4602, 4
    %v4625 = vsel %vm4621, %v4605, %v4608
    %v4626 = vsel %vm4624, %v4614, 2102212464
    %v4627 = vsel %vm4623, %v4611, %v4626
    %v4628 = vsel %vm4622, %v4625, %v4627
    %v4629 = vsel %vm4621, %v4608, %v4611
    %v4630 = vsel %vm4624, %v4617, 920167782
    %v4631 = vsel %vm4623, %v4614, %v4630
    %v4632 = vsel %vm4622, %v4629, %v4631
    %v4633 = vsel %vm4621, %v4611, %v4614
    %v4634 = vsel %vm4624, %v4620, 1326507024
    %v4635 = vsel %vm4623, %v4617, %v4634
    %v4636 = vsel %vm4622, %v4633, %v4635
    %v4637 = vshll.u32 %v4597, 8
    %v4638 = vmul.u32.u64.compose %v4637, %v4636
    %v4639 = vextract.low.u32 %v4638
    %v4640 = vextract.high.u32 %v4638
    %v4641 = vmul.u32.u64.compose %v4637, %v4632
    %v4642 = vextract.low.u32 %v4641
    %v4643 = vextract.high.u32 %v4641
    %v4644 = vmul.u32 %v4637, %v4628
    %v4645 = vadd.s32 %v4640, %v4642
    %vm4646 = vc.u32 %v4640, %v4642
    %v4647 = vadd.s32 %v4643, 1
    %v4648 = vsel %vm4646, %v4647, %v4643
    %v4649 = vadd.s32 %v4644, %v4648
    %v4650 = vadd.s32 %v4649, 536870912
    %v4651 = vshrl.u32 %v4650, 30
    %v4652 = vshll.u32 %v4651, 30
    %v4653 = vsub.s32 %v4649, %v4652
    %vm4654 = vcmp.lt.s32.totalorder %v4653, 0
    %v4655 = vsub.s32 0, %v4653
    %v4656 = vsel %vm4654, %v4655, %v4653
    %v4657 = vclz %v4656
    %v4658 = vsub.s32 %v4657, 2
    %vm4659 = vcmp.gt.s32.totalorder 0, %v4658
    %v4660 = vsel %vm4659, 0, %v4658
    %v4661 = vsub.s32 32, %v4660
    %v4662 = vshll.u32 %v4653, %v4660
    %v4663 = vshrl.u32 %v4645, %v4661
    %v4664 = vor.u32 %v4662, %v4663
    %v4665 = vsub.s32 4294967266, %v4660
    %v4666 = vadd.s32 %v4665, 127
    %v4667 = vshll.u32 %v4666, 23
    %v4668 = vor.u32 4788187, %v4667
    %v4669 = vand.u32 2147483647, %v4668
    %v4671 = vcvt.s32.f32 %v4664
    %v4672 = vmul.f32 %v4671, %v4669
    %v4673 = vxor.u32 %v4672, 2147483648
    %v4674 = vsel %vm4591, %v4673, %v4672
    %v4675 = vsub.s32 4, %v4651
    %v4676 = vsel %vm4591, %v4675, %v4651
    %v4677 = vsel %vm4590, %v1364, %v4674
    %v4678 = vsel %vm4590, 0, %v4676
    %v4679 = vcosq.f32.pop %v4677
    %v4680 = vsinq.f32.pop %v4677
    %vm4681 = vweird.f32 %v1364
    %v4682 = vadd.s32 %v4678, 3
    %v4683 = vand.u32 %v4682, 3
    %vm4684 = vcmp.lt.s32.totalorder %v4683, 2
    %vm4685 = vcmp.eq.s32.totalorder %v4683, 0
    %v4686 = vxor.u32 %v4680, 2147483648
    %v4687 = vsel %vm4685, %v4679, %v4686
    %vm4688 = vcmp.eq.s32.totalorder %v4683, 2
    %v4689 = vxor.u32 %v4679, 2147483648
    %v4690 = vsel %vm4688, %v4689, %v4680
    %v4691 = vsel %vm4684, %v4687, %v4690
    %v4692 = vsel %vm4681, nan, %v4691
    %v4693 = vmul.f32 %v1243, %v3132
    %v4694 = vmul.f32 %v1250, %v3236
    %v4695 = vmul.f32 %v1257, %v3340
    %v4696 = vmul.f32 %v1264, %v3444
    %v4697 = vmul.f32 %v1271, %v3548
    %v4698 = vmul.f32 %v1278, %v3652
    %v4699 = vmul.f32 %v1285, %v3756
    %v4700 = vmul.f32 %v1292, %v3860
    %v4701 = vmul.f32 %v1299, %v3964
    %v4702 = vmul.f32 %v1306, %v4068
    %v4703 = vmul.f32 %v1313, %v4172
    %v4704 = vmul.f32 %v1320, %v4276
    %v4705 = vmul.f32 %v1327, %v4380
    %v4706 = vmul.f32 %v1334, %v4484
    %v4707 = vmul.f32 %v1341, %v4588
    %v4708 = vmul.f32 %v1348, %v4692
    %v4709 = vmul.f32 %v468, %v3013
    %v4710 = vmul.f32 %v475, %v3014
    %v4711 = vmul.f32 %v482, %v3015
    %v4712 = vmul.f32 %v489, %v3016
    %v4713 = vmul.f32 %v496, %v3017
    %v4714 = vmul.f32 %v503, %v3018
    %v4715 = vmul.f32 %v510, %v3019
    %v4716 = vmul.f32 %v517, %v3020
    %v4717 = vmul.f32 %v524, %v3021
    %v4718 = vmul.f32 %v531, %v3022
    %v4719 = vmul.f32 %v538, %v3023
    %v4720 = vmul.f32 %v545, %v3024
    %v4721 = vmul.f32 %v552, %v3025
    %v4722 = vmul.f32 %v559, %v3026
    %v4723 = vmul.f32 %v566, %v3027
    %v4724 = vmul.f32 %v573, %v3028
    %v4725 = vmul.f32 %v580, %v4693
    %v4726 = vmul.f32 %v587, %v4694
    %v4727 = vmul.f32 %v594, %v4695
    %v4728 = vmul.f32 %v601, %v4696
    %v4729 = vmul.f32 %v608, %v4697
    %v4730 = vmul.f32 %v615, %v4698
    %v4731 = vmul.f32 %v622, %v4699
    %v4732 = vmul.f32 %v629, %v4700
    %v4733 = vmul.f32 %v636, %v4701
    %v4734 = vmul.f32 %v643, %v4702
    %v4735 = vmul.f32 %v650, %v4703
    %v4736 = vmul.f32 %v657, %v4704
    %v4737 = vmul.f32 %v664, %v4705
    %v4738 = vmul.f32 %v671, %v4706
    %v4739 = vmul.f32 %v678, %v4707
    %v4740 = vmul.f32 %v685, %v4708
    %v4741 = vadd.f32 %v240, %v4709
    %v4742 = vadd.f32 %v246, %v4710
    %v4743 = vadd.f32 %v252, %v4711
    %v4744 = vadd.f32 %v258, %v4712
    %v4745 = vadd.f32 %v264, %v4713
    %v4746 = vadd.f32 %v270, %v4714
    %v4747 = vadd.f32 %v276, %v4715
    %v4748 = vadd.f32 %v282, %v4716
    %v4749 = vadd.f32 %v288, %v4717
    %v4750 = vadd.f32 %v294, %v4718
    %v4751 = vadd.f32 %v300, %v4719
    %v4752 = vadd.f32 %v306, %v4720
    %v4753 = vadd.f32 %v312, %v4721
    %v4754 = vadd.f32 %v318, %v4722
    %v4755 = vadd.f32 %v324, %v4723
    %v4756 = vadd.f32 %v330, %v4724
    %v4757 = vadd.f32 %v336, %v4725
    %v4758 = vadd.f32 %v342, %v4726
    %v4759 = vadd.f32 %v348, %v4727
    %v4760 = vadd.f32 %v354, %v4728
    %v4761 = vadd.f32 %v360, %v4729
    %v4762 = vadd.f32 %v366, %v4730
    %v4763 = vadd.f32 %v372, %v4731
    %v4764 = vadd.f32 %v378, %v4732
    %v4765 = vadd.f32 %v384, %v4733
    %v4766 = vadd.f32 %v390, %v4734
    %v4767 = vadd.f32 %v396, %v4735
    %v4768 = vadd.f32 %v402, %v4736
    %v4769 = vadd.f32 %v408, %v4737
    %v4770 = vadd.f32 %v414, %v4738
    %v4771 = vadd.f32 %v420, %v4739
    %v4772 = vadd.f32 %v426, %v4740
    %v4773 = vld [vmem:[%s3] sm:$0x1]
    %v4775 = vlaneseq
    %v4776 = vshrl.u32 %v4775, 7
    %v4777 = vsub.s32 0, %v4776
    %v4778 = vrot.slane %v4773, %v4777
    %v4780 = vadd.f32 %v4741, %v4778
    %v4781 = vadd.f32 %v4742, %v4778
    %v4782 = vadd.f32 %v4743, %v4778
    %v4783 = vadd.f32 %v4744, %v4778
    %v4784 = vadd.f32 %v4745, %v4778
    %v4785 = vadd.f32 %v4746, %v4778
    %v4786 = vadd.f32 %v4747, %v4778
    %v4787 = vadd.f32 %v4748, %v4778
    %v4788 = vadd.f32 %v4749, %v4778
    %v4789 = vadd.f32 %v4750, %v4778
    %v4790 = vadd.f32 %v4751, %v4778
    %v4791 = vadd.f32 %v4752, %v4778
    %v4792 = vadd.f32 %v4753, %v4778
    %v4793 = vadd.f32 %v4754, %v4778
    %v4794 = vadd.f32 %v4755, %v4778
    %v4795 = vadd.f32 %v4756, %v4778
    %v4796 = vadd.f32 %v4757, %v4778
    %v4797 = vadd.f32 %v4758, %v4778
    %v4798 = vadd.f32 %v4759, %v4778
    %v4799 = vadd.f32 %v4760, %v4778
    %v4800 = vadd.f32 %v4761, %v4778
    %v4801 = vadd.f32 %v4762, %v4778
    %v4802 = vadd.f32 %v4763, %v4778
    %v4803 = vadd.f32 %v4764, %v4778
    %v4804 = vadd.f32 %v4765, %v4778
    %v4805 = vadd.f32 %v4766, %v4778
    %v4806 = vadd.f32 %v4767, %v4778
    %v4807 = vadd.f32 %v4768, %v4778
    %v4808 = vadd.f32 %v4769, %v4778
    %v4809 = vadd.f32 %v4770, %v4778
    %v4810 = vadd.f32 %v4771, %v4778
    %v4811 = vadd.f32 %v4772, %v4778
    %v4812 = vmul.f32 %v4780, 30.0
    %v4813 = vmul.f32 %v4781, 30.0
    %v4814 = vmul.f32 %v4782, 30.0
    %v4815 = vmul.f32 %v4783, 30.0
    %v4816 = vmul.f32 %v4784, 30.0
    %v4817 = vmul.f32 %v4785, 30.0
    %v4818 = vmul.f32 %v4786, 30.0
    %v4819 = vmul.f32 %v4787, 30.0
    %v4820 = vmul.f32 %v4788, 30.0
    %v4821 = vmul.f32 %v4789, 30.0
    %v4822 = vmul.f32 %v4790, 30.0
    %v4823 = vmul.f32 %v4791, 30.0
    %v4824 = vmul.f32 %v4792, 30.0
    %v4825 = vmul.f32 %v4793, 30.0
    %v4826 = vmul.f32 %v4794, 30.0
    %v4827 = vmul.f32 %v4795, 30.0
    %v4828 = vmul.f32 %v4796, 30.0
    %v4829 = vmul.f32 %v4797, 30.0
    %v4830 = vmul.f32 %v4798, 30.0
    %v4831 = vmul.f32 %v4799, 30.0
    %v4832 = vmul.f32 %v4800, 30.0
    %v4833 = vmul.f32 %v4801, 30.0
    %v4834 = vmul.f32 %v4802, 30.0
    %v4835 = vmul.f32 %v4803, 30.0
    %v4836 = vmul.f32 %v4804, 30.0
    %v4837 = vmul.f32 %v4805, 30.0
    %v4838 = vmul.f32 %v4806, 30.0
    %v4839 = vmul.f32 %v4807, 30.0
    %v4840 = vmul.f32 %v4808, 30.0
    %v4841 = vmul.f32 %v4809, 30.0
    %v4842 = vmul.f32 %v4810, 30.0
    %v4843 = vmul.f32 %v4811, 30.0
    %v4844 = vand.u32 2147483647, %v4812
    %vm4845 = vcmp.le.f32.partialorder %v4844, 0.7853982
    %vm4846 = vcmp.lt.s32.totalorder %v4812, 0
    %v4847 = vand.u32 %v4812, 2139095040
    %v4848 = vshrl.u32 %v4847, 23
    %v4849 = vsub.s32 %v4848, 127
    %v4850 = vand.u32 2147483647, %v4812
    %v4851 = vand.u32 %v4850, 8388607
    %v4852 = vor.u32 %v4851, 8388608
    %v4853 = vsub.s32 0, %v4852
    %v4854 = vadd.s32 %v4849, 1
    %vm4855 = vcmp.gt.s32.totalorder %v4854, 0
    %v4856 = vsel %vm4855, %v4854, 0
    %v4857 = vshrl.u32 %v4856, 5
    %v4858 = vand.u32 %v4856, 31
    %v4859 = vsub.s32 32, %v4858
    %v4860 = vshrl.u32 683565275, %v4859
    %v4861 = vshll.u32 683565275, %v4858
    %v4862 = vshrl.u32 2475754826, %v4859
    %v4863 = vor.u32 %v4861, %v4862
    %v4864 = vshll.u32 2475754826, %v4858
    %v4865 = vshrl.u32 2131351028, %v4859
    %v4866 = vor.u32 %v4864, %v4865
    %v4867 = vshll.u32 2131351028, %v4858
    %v4868 = vshrl.u32 2102212464, %v4859
    %v4869 = vor.u32 %v4867, %v4868
    %v4870 = vshll.u32 2102212464, %v4858
    %v4871 = vshrl.u32 920167782, %v4859
    %v4872 = vor.u32 %v4870, %v4871
    %v4873 = vshll.u32 920167782, %v4858
    %v4874 = vshrl.u32 1326507024, %v4859
    %v4875 = vor.u32 %v4873, %v4874
    %vm4876 = vcmp.lt.s32.totalorder %v4857, 1
    %vm4877 = vcmp.lt.s32.totalorder %v4857, 2
    %vm4878 = vcmp.lt.s32.totalorder %v4857, 3
    %vm4879 = vcmp.lt.s32.totalorder %v4857, 4
    %v4880 = vsel %vm4876, %v4860, %v4863
    %v4881 = vsel %vm4879, %v4869, 2102212464
    %v4882 = vsel %vm4878, %v4866, %v4881
    %v4883 = vsel %vm4877, %v4880, %v4882
    %v4884 = vsel %vm4876, %v4863, %v4866
    %v4885 = vsel %vm4879, %v4872, 920167782
    %v4886 = vsel %vm4878, %v4869, %v4885
    %v4887 = vsel %vm4877, %v4884, %v4886
    %v4888 = vsel %vm4876, %v4866, %v4869
    %v4889 = vsel %vm4879, %v4875, 1326507024
    %v4890 = vsel %vm4878, %v4872, %v4889
    %v4891 = vsel %vm4877, %v4888, %v4890
    %v4892 = vshll.u32 %v4852, 8
    %v4893 = vmul.u32.u64.compose %v4892, %v4891
    %v4894 = vextract.low.u32 %v4893
    %v4895 = vextract.high.u32 %v4893
    %v4896 = vmul.u32.u64.compose %v4892, %v4887
    %v4897 = vextract.low.u32 %v4896
    %v4898 = vextract.high.u32 %v4896
    %v4899 = vmul.u32 %v4892, %v4883
    %v4900 = vadd.s32 %v4895, %v4897
    %vm4901 = vc.u32 %v4895, %v4897
    %v4902 = vadd.s32 %v4898, 1
    %v4903 = vsel %vm4901, %v4902, %v4898
    %v4904 = vadd.s32 %v4899, %v4903
    %v4905 = vadd.s32 %v4904, 536870912
    %v4906 = vshrl.u32 %v4905, 30
    %v4907 = vshll.u32 %v4906, 30
    %v4908 = vsub.s32 %v4904, %v4907
    %vm4909 = vcmp.lt.s32.totalorder %v4908, 0
    %v4910 = vsub.s32 0, %v4908
    %v4911 = vsel %vm4909, %v4910, %v4908
    %v4912 = vclz %v4911
    %v4913 = vsub.s32 %v4912, 2
    %vm4914 = vcmp.gt.s32.totalorder 0, %v4913
    %v4915 = vsel %vm4914, 0, %v4913
    %v4916 = vsub.s32 32, %v4915
    %v4917 = vshll.u32 %v4908, %v4915
    %v4918 = vshrl.u32 %v4900, %v4916
    %v4919 = vor.u32 %v4917, %v4918
    %v4920 = vsub.s32 4294967266, %v4915
    %v4921 = vadd.s32 %v4920, 127
    %v4922 = vshll.u32 %v4921, 23
    %v4923 = vor.u32 4788187, %v4922
    %v4924 = vand.u32 2147483647, %v4923
    %v4926 = vcvt.s32.f32 %v4919
    %v4927 = vmul.f32 %v4926, %v4924
    %v4928 = vxor.u32 %v4927, 2147483648
    %v4929 = vsel %vm4846, %v4928, %v4927
    %v4930 = vsub.s32 4, %v4906
    %v4931 = vsel %vm4846, %v4930, %v4906
    %v4932 = vsel %vm4845, %v4812, %v4929
    %v4933 = vsel %vm4845, 0, %v4931
    %v4934 = vcosq.f32.pop %v4932
    %v4935 = vsinq.f32.pop %v4932
    %vm4936 = vweird.f32 %v4812
    %v4937 = vadd.s32 %v4933, 3
    %v4938 = vand.u32 %v4937, 3
    %vm4939 = vcmp.lt.s32.totalorder %v4938, 2
    %vm4940 = vcmp.eq.s32.totalorder %v4938, 0
    %v4941 = vxor.u32 %v4935, 2147483648
    %v4942 = vsel %vm4940, %v4934, %v4941
    %vm4943 = vcmp.eq.s32.totalorder %v4938, 2
    %v4944 = vxor.u32 %v4934, 2147483648
    %v4945 = vsel %vm4943, %v4944, %v4935
    %v4946 = vsel %vm4939, %v4942, %v4945
    %v4947 = vsel %vm4936, nan, %v4946
    %v4948 = vand.u32 2147483647, %v4813
    %vm4949 = vcmp.le.f32.partialorder %v4948, 0.7853982
    %vm4950 = vcmp.lt.s32.totalorder %v4813, 0
    %v4951 = vand.u32 %v4813, 2139095040
    %v4952 = vshrl.u32 %v4951, 23
    %v4953 = vsub.s32 %v4952, 127
    %v4954 = vand.u32 2147483647, %v4813
    %v4955 = vand.u32 %v4954, 8388607
    %v4956 = vor.u32 %v4955, 8388608
    %v4957 = vsub.s32 0, %v4956
    %v4958 = vadd.s32 %v4953, 1
    %vm4959 = vcmp.gt.s32.totalorder %v4958, 0
    %v4960 = vsel %vm4959, %v4958, 0
    %v4961 = vshrl.u32 %v4960, 5
    %v4962 = vand.u32 %v4960, 31
    %v4963 = vsub.s32 32, %v4962
    %v4964 = vshrl.u32 683565275, %v4963
    %v4965 = vshll.u32 683565275, %v4962
    %v4966 = vshrl.u32 2475754826, %v4963
    %v4967 = vor.u32 %v4965, %v4966
    %v4968 = vshll.u32 2475754826, %v4962
    %v4969 = vshrl.u32 2131351028, %v4963
    %v4970 = vor.u32 %v4968, %v4969
    %v4971 = vshll.u32 2131351028, %v4962
    %v4972 = vshrl.u32 2102212464, %v4963
    %v4973 = vor.u32 %v4971, %v4972
    %v4974 = vshll.u32 2102212464, %v4962
    %v4975 = vshrl.u32 920167782, %v4963
    %v4976 = vor.u32 %v4974, %v4975
    %v4977 = vshll.u32 920167782, %v4962
    %v4978 = vshrl.u32 1326507024, %v4963
    %v4979 = vor.u32 %v4977, %v4978
    %vm4980 = vcmp.lt.s32.totalorder %v4961, 1
    %vm4981 = vcmp.lt.s32.totalorder %v4961, 2
    %vm4982 = vcmp.lt.s32.totalorder %v4961, 3
    %vm4983 = vcmp.lt.s32.totalorder %v4961, 4
    %v4984 = vsel %vm4980, %v4964, %v4967
    %v4985 = vsel %vm4983, %v4973, 2102212464
    %v4986 = vsel %vm4982, %v4970, %v4985
    %v4987 = vsel %vm4981, %v4984, %v4986
    %v4988 = vsel %vm4980, %v4967, %v4970
    %v4989 = vsel %vm4983, %v4976, 920167782
    %v4990 = vsel %vm4982, %v4973, %v4989
    %v4991 = vsel %vm4981, %v4988, %v4990
    %v4992 = vsel %vm4980, %v4970, %v4973
    %v4993 = vsel %vm4983, %v4979, 1326507024
    %v4994 = vsel %vm4982, %v4976, %v4993
    %v4995 = vsel %vm4981, %v4992, %v4994
    %v4996 = vshll.u32 %v4956, 8
    %v4997 = vmul.u32.u64.compose %v4996, %v4995
    %v4998 = vextract.low.u32 %v4997
    %v4999 = vextract.high.u32 %v4997
    %v5000 = vmul.u32.u64.compose %v4996, %v4991
    %v5001 = vextract.low.u32 %v5000
    %v5002 = vextract.high.u32 %v5000
    %v5003 = vmul.u32 %v4996, %v4987
    %v5004 = vadd.s32 %v4999, %v5001
    %vm5005 = vc.u32 %v4999, %v5001
    %v5006 = vadd.s32 %v5002, 1
    %v5007 = vsel %vm5005, %v5006, %v5002
    %v5008 = vadd.s32 %v5003, %v5007
    %v5009 = vadd.s32 %v5008, 536870912
    %v5010 = vshrl.u32 %v5009, 30
    %v5011 = vshll.u32 %v5010, 30
    %v5012 = vsub.s32 %v5008, %v5011
    %vm5013 = vcmp.lt.s32.totalorder %v5012, 0
    %v5014 = vsub.s32 0, %v5012
    %v5015 = vsel %vm5013, %v5014, %v5012
    %v5016 = vclz %v5015
    %v5017 = vsub.s32 %v5016, 2
    %vm5018 = vcmp.gt.s32.totalorder 0, %v5017
    %v5019 = vsel %vm5018, 0, %v5017
    %v5020 = vsub.s32 32, %v5019
    %v5021 = vshll.u32 %v5012, %v5019
    %v5022 = vshrl.u32 %v5004, %v5020
    %v5023 = vor.u32 %v5021, %v5022
    %v5024 = vsub.s32 4294967266, %v5019
    %v5025 = vadd.s32 %v5024, 127
    %v5026 = vshll.u32 %v5025, 23
    %v5027 = vor.u32 4788187, %v5026
    %v5028 = vand.u32 2147483647, %v5027
    %v5030 = vcvt.s32.f32 %v5023
    %v5031 = vmul.f32 %v5030, %v5028
    %v5032 = vxor.u32 %v5031, 2147483648
    %v5033 = vsel %vm4950, %v5032, %v5031
    %v5034 = vsub.s32 4, %v5010
    %v5035 = vsel %vm4950, %v5034, %v5010
    %v5036 = vsel %vm4949, %v4813, %v5033
    %v5037 = vsel %vm4949, 0, %v5035
    %v5038 = vcosq.f32.pop %v5036
    %v5039 = vsinq.f32.pop %v5036
    %vm5040 = vweird.f32 %v4813
    %v5041 = vadd.s32 %v5037, 3
    %v5042 = vand.u32 %v5041, 3
    %vm5043 = vcmp.lt.s32.totalorder %v5042, 2
    %vm5044 = vcmp.eq.s32.totalorder %v5042, 0
    %v5045 = vxor.u32 %v5039, 2147483648
    %v5046 = vsel %vm5044, %v5038, %v5045
    %vm5047 = vcmp.eq.s32.totalorder %v5042, 2
    %v5048 = vxor.u32 %v5038, 2147483648
    %v5049 = vsel %vm5047, %v5048, %v5039
    %v5050 = vsel %vm5043, %v5046, %v5049
    %v5051 = vsel %vm5040, nan, %v5050
    %v5052 = vand.u32 2147483647, %v4814
    %vm5053 = vcmp.le.f32.partialorder %v5052, 0.7853982
    %vm5054 = vcmp.lt.s32.totalorder %v4814, 0
    %v5055 = vand.u32 %v4814, 2139095040
    %v5056 = vshrl.u32 %v5055, 23
    %v5057 = vsub.s32 %v5056, 127
    %v5058 = vand.u32 2147483647, %v4814
    %v5059 = vand.u32 %v5058, 8388607
    %v5060 = vor.u32 %v5059, 8388608
    %v5061 = vsub.s32 0, %v5060
    %v5062 = vadd.s32 %v5057, 1
    %vm5063 = vcmp.gt.s32.totalorder %v5062, 0
    %v5064 = vsel %vm5063, %v5062, 0
    %v5065 = vshrl.u32 %v5064, 5
    %v5066 = vand.u32 %v5064, 31
    %v5067 = vsub.s32 32, %v5066
    %v5068 = vshrl.u32 683565275, %v5067
    %v5069 = vshll.u32 683565275, %v5066
    %v5070 = vshrl.u32 2475754826, %v5067
    %v5071 = vor.u32 %v5069, %v5070
    %v5072 = vshll.u32 2475754826, %v5066
    %v5073 = vshrl.u32 2131351028, %v5067
    %v5074 = vor.u32 %v5072, %v5073
    %v5075 = vshll.u32 2131351028, %v5066
    %v5076 = vshrl.u32 2102212464, %v5067
    %v5077 = vor.u32 %v5075, %v5076
    %v5078 = vshll.u32 2102212464, %v5066
    %v5079 = vshrl.u32 920167782, %v5067
    %v5080 = vor.u32 %v5078, %v5079
    %v5081 = vshll.u32 920167782, %v5066
    %v5082 = vshrl.u32 1326507024, %v5067
    %v5083 = vor.u32 %v5081, %v5082
    %vm5084 = vcmp.lt.s32.totalorder %v5065, 1
    %vm5085 = vcmp.lt.s32.totalorder %v5065, 2
    %vm5086 = vcmp.lt.s32.totalorder %v5065, 3
    %vm5087 = vcmp.lt.s32.totalorder %v5065, 4
    %v5088 = vsel %vm5084, %v5068, %v5071
    %v5089 = vsel %vm5087, %v5077, 2102212464
    %v5090 = vsel %vm5086, %v5074, %v5089
    %v5091 = vsel %vm5085, %v5088, %v5090
    %v5092 = vsel %vm5084, %v5071, %v5074
    %v5093 = vsel %vm5087, %v5080, 920167782
    %v5094 = vsel %vm5086, %v5077, %v5093
    %v5095 = vsel %vm5085, %v5092, %v5094
    %v5096 = vsel %vm5084, %v5074, %v5077
    %v5097 = vsel %vm5087, %v5083, 1326507024
    %v5098 = vsel %vm5086, %v5080, %v5097
    %v5099 = vsel %vm5085, %v5096, %v5098
    %v5100 = vshll.u32 %v5060, 8
    %v5101 = vmul.u32.u64.compose %v5100, %v5099
    %v5102 = vextract.low.u32 %v5101
    %v5103 = vextract.high.u32 %v5101
    %v5104 = vmul.u32.u64.compose %v5100, %v5095
    %v5105 = vextract.low.u32 %v5104
    %v5106 = vextract.high.u32 %v5104
    %v5107 = vmul.u32 %v5100, %v5091
    %v5108 = vadd.s32 %v5103, %v5105
    %vm5109 = vc.u32 %v5103, %v5105
    %v5110 = vadd.s32 %v5106, 1
    %v5111 = vsel %vm5109, %v5110, %v5106
    %v5112 = vadd.s32 %v5107, %v5111
    %v5113 = vadd.s32 %v5112, 536870912
    %v5114 = vshrl.u32 %v5113, 30
    %v5115 = vshll.u32 %v5114, 30
    %v5116 = vsub.s32 %v5112, %v5115
    %vm5117 = vcmp.lt.s32.totalorder %v5116, 0
    %v5118 = vsub.s32 0, %v5116
    %v5119 = vsel %vm5117, %v5118, %v5116
    %v5120 = vclz %v5119
    %v5121 = vsub.s32 %v5120, 2
    %vm5122 = vcmp.gt.s32.totalorder 0, %v5121
    %v5123 = vsel %vm5122, 0, %v5121
    %v5124 = vsub.s32 32, %v5123
    %v5125 = vshll.u32 %v5116, %v5123
    %v5126 = vshrl.u32 %v5108, %v5124
    %v5127 = vor.u32 %v5125, %v5126
    %v5128 = vsub.s32 4294967266, %v5123
    %v5129 = vadd.s32 %v5128, 127
    %v5130 = vshll.u32 %v5129, 23
    %v5131 = vor.u32 4788187, %v5130
    %v5132 = vand.u32 2147483647, %v5131
    %v5134 = vcvt.s32.f32 %v5127
    %v5135 = vmul.f32 %v5134, %v5132
    %v5136 = vxor.u32 %v5135, 2147483648
    %v5137 = vsel %vm5054, %v5136, %v5135
    %v5138 = vsub.s32 4, %v5114
    %v5139 = vsel %vm5054, %v5138, %v5114
    %v5140 = vsel %vm5053, %v4814, %v5137
    %v5141 = vsel %vm5053, 0, %v5139
    %v5142 = vcosq.f32.pop %v5140
    %v5143 = vsinq.f32.pop %v5140
    %vm5144 = vweird.f32 %v4814
    %v5145 = vadd.s32 %v5141, 3
    %v5146 = vand.u32 %v5145, 3
    %vm5147 = vcmp.lt.s32.totalorder %v5146, 2
    %vm5148 = vcmp.eq.s32.totalorder %v5146, 0
    %v5149 = vxor.u32 %v5143, 2147483648
    %v5150 = vsel %vm5148, %v5142, %v5149
    %vm5151 = vcmp.eq.s32.totalorder %v5146, 2
    %v5152 = vxor.u32 %v5142, 2147483648
    %v5153 = vsel %vm5151, %v5152, %v5143
    %v5154 = vsel %vm5147, %v5150, %v5153
    %v5155 = vsel %vm5144, nan, %v5154
    %v5156 = vand.u32 2147483647, %v4815
    %vm5157 = vcmp.le.f32.partialorder %v5156, 0.7853982
    %vm5158 = vcmp.lt.s32.totalorder %v4815, 0
    %v5159 = vand.u32 %v4815, 2139095040
    %v5160 = vshrl.u32 %v5159, 23
    %v5161 = vsub.s32 %v5160, 127
    %v5162 = vand.u32 2147483647, %v4815
    %v5163 = vand.u32 %v5162, 8388607
    %v5164 = vor.u32 %v5163, 8388608
    %v5165 = vsub.s32 0, %v5164
    %v5166 = vadd.s32 %v5161, 1
    %vm5167 = vcmp.gt.s32.totalorder %v5166, 0
    %v5168 = vsel %vm5167, %v5166, 0
    %v5169 = vshrl.u32 %v5168, 5
    %v5170 = vand.u32 %v5168, 31
    %v5171 = vsub.s32 32, %v5170
    %v5172 = vshrl.u32 683565275, %v5171
    %v5173 = vshll.u32 683565275, %v5170
    %v5174 = vshrl.u32 2475754826, %v5171
    %v5175 = vor.u32 %v5173, %v5174
    %v5176 = vshll.u32 2475754826, %v5170
    %v5177 = vshrl.u32 2131351028, %v5171
    %v5178 = vor.u32 %v5176, %v5177
    %v5179 = vshll.u32 2131351028, %v5170
    %v5180 = vshrl.u32 2102212464, %v5171
    %v5181 = vor.u32 %v5179, %v5180
    %v5182 = vshll.u32 2102212464, %v5170
    %v5183 = vshrl.u32 920167782, %v5171
    %v5184 = vor.u32 %v5182, %v5183
    %v5185 = vshll.u32 920167782, %v5170
    %v5186 = vshrl.u32 1326507024, %v5171
    %v5187 = vor.u32 %v5185, %v5186
    %vm5188 = vcmp.lt.s32.totalorder %v5169, 1
    %vm5189 = vcmp.lt.s32.totalorder %v5169, 2
    %vm5190 = vcmp.lt.s32.totalorder %v5169, 3
    %vm5191 = vcmp.lt.s32.totalorder %v5169, 4
    %v5192 = vsel %vm5188, %v5172, %v5175
    %v5193 = vsel %vm5191, %v5181, 2102212464
    %v5194 = vsel %vm5190, %v5178, %v5193
    %v5195 = vsel %vm5189, %v5192, %v5194
    %v5196 = vsel %vm5188, %v5175, %v5178
    %v5197 = vsel %vm5191, %v5184, 920167782
    %v5198 = vsel %vm5190, %v5181, %v5197
    %v5199 = vsel %vm5189, %v5196, %v5198
    %v5200 = vsel %vm5188, %v5178, %v5181
    %v5201 = vsel %vm5191, %v5187, 1326507024
    %v5202 = vsel %vm5190, %v5184, %v5201
    %v5203 = vsel %vm5189, %v5200, %v5202
    %v5204 = vshll.u32 %v5164, 8
    %v5205 = vmul.u32.u64.compose %v5204, %v5203
    %v5206 = vextract.low.u32 %v5205
    %v5207 = vextract.high.u32 %v5205
    %v5208 = vmul.u32.u64.compose %v5204, %v5199
    %v5209 = vextract.low.u32 %v5208
    %v5210 = vextract.high.u32 %v5208
    %v5211 = vmul.u32 %v5204, %v5195
    %v5212 = vadd.s32 %v5207, %v5209
    %vm5213 = vc.u32 %v5207, %v5209
    %v5214 = vadd.s32 %v5210, 1
    %v5215 = vsel %vm5213, %v5214, %v5210
    %v5216 = vadd.s32 %v5211, %v5215
    %v5217 = vadd.s32 %v5216, 536870912
    %v5218 = vshrl.u32 %v5217, 30
    %v5219 = vshll.u32 %v5218, 30
    %v5220 = vsub.s32 %v5216, %v5219
    %vm5221 = vcmp.lt.s32.totalorder %v5220, 0
    %v5222 = vsub.s32 0, %v5220
    %v5223 = vsel %vm5221, %v5222, %v5220
    %v5224 = vclz %v5223
    %v5225 = vsub.s32 %v5224, 2
    %vm5226 = vcmp.gt.s32.totalorder 0, %v5225
    %v5227 = vsel %vm5226, 0, %v5225
    %v5228 = vsub.s32 32, %v5227
    %v5229 = vshll.u32 %v5220, %v5227
    %v5230 = vshrl.u32 %v5212, %v5228
    %v5231 = vor.u32 %v5229, %v5230
    %v5232 = vsub.s32 4294967266, %v5227
    %v5233 = vadd.s32 %v5232, 127
    %v5234 = vshll.u32 %v5233, 23
    %v5235 = vor.u32 4788187, %v5234
    %v5236 = vand.u32 2147483647, %v5235
    %v5238 = vcvt.s32.f32 %v5231
    %v5239 = vmul.f32 %v5238, %v5236
    %v5240 = vxor.u32 %v5239, 2147483648
    %v5241 = vsel %vm5158, %v5240, %v5239
    %v5242 = vsub.s32 4, %v5218
    %v5243 = vsel %vm5158, %v5242, %v5218
    %v5244 = vsel %vm5157, %v4815, %v5241
    %v5245 = vsel %vm5157, 0, %v5243
    %v5246 = vcosq.f32.pop %v5244
    %v5247 = vsinq.f32.pop %v5244
    %vm5248 = vweird.f32 %v4815
    %v5249 = vadd.s32 %v5245, 3
    %v5250 = vand.u32 %v5249, 3
    %vm5251 = vcmp.lt.s32.totalorder %v5250, 2
    %vm5252 = vcmp.eq.s32.totalorder %v5250, 0
    %v5253 = vxor.u32 %v5247, 2147483648
    %v5254 = vsel %vm5252, %v5246, %v5253
    %vm5255 = vcmp.eq.s32.totalorder %v5250, 2
    %v5256 = vxor.u32 %v5246, 2147483648
    %v5257 = vsel %vm5255, %v5256, %v5247
    %v5258 = vsel %vm5251, %v5254, %v5257
    %v5259 = vsel %vm5248, nan, %v5258
    %v5260 = vand.u32 2147483647, %v4816
    %vm5261 = vcmp.le.f32.partialorder %v5260, 0.7853982
    %vm5262 = vcmp.lt.s32.totalorder %v4816, 0
    %v5263 = vand.u32 %v4816, 2139095040
    %v5264 = vshrl.u32 %v5263, 23
    %v5265 = vsub.s32 %v5264, 127
    %v5266 = vand.u32 2147483647, %v4816
    %v5267 = vand.u32 %v5266, 8388607
    %v5268 = vor.u32 %v5267, 8388608
    %v5269 = vsub.s32 0, %v5268
    %v5270 = vadd.s32 %v5265, 1
    %vm5271 = vcmp.gt.s32.totalorder %v5270, 0
    %v5272 = vsel %vm5271, %v5270, 0
    %v5273 = vshrl.u32 %v5272, 5
    %v5274 = vand.u32 %v5272, 31
    %v5275 = vsub.s32 32, %v5274
    %v5276 = vshrl.u32 683565275, %v5275
    %v5277 = vshll.u32 683565275, %v5274
    %v5278 = vshrl.u32 2475754826, %v5275
    %v5279 = vor.u32 %v5277, %v5278
    %v5280 = vshll.u32 2475754826, %v5274
    %v5281 = vshrl.u32 2131351028, %v5275
    %v5282 = vor.u32 %v5280, %v5281
    %v5283 = vshll.u32 2131351028, %v5274
    %v5284 = vshrl.u32 2102212464, %v5275
    %v5285 = vor.u32 %v5283, %v5284
    %v5286 = vshll.u32 2102212464, %v5274
    %v5287 = vshrl.u32 920167782, %v5275
    %v5288 = vor.u32 %v5286, %v5287
    %v5289 = vshll.u32 920167782, %v5274
    %v5290 = vshrl.u32 1326507024, %v5275
    %v5291 = vor.u32 %v5289, %v5290
    %vm5292 = vcmp.lt.s32.totalorder %v5273, 1
    %vm5293 = vcmp.lt.s32.totalorder %v5273, 2
    %vm5294 = vcmp.lt.s32.totalorder %v5273, 3
    %vm5295 = vcmp.lt.s32.totalorder %v5273, 4
    %v5296 = vsel %vm5292, %v5276, %v5279
    %v5297 = vsel %vm5295, %v5285, 2102212464
    %v5298 = vsel %vm5294, %v5282, %v5297
    %v5299 = vsel %vm5293, %v5296, %v5298
    %v5300 = vsel %vm5292, %v5279, %v5282
    %v5301 = vsel %vm5295, %v5288, 920167782
    %v5302 = vsel %vm5294, %v5285, %v5301
    %v5303 = vsel %vm5293, %v5300, %v5302
    %v5304 = vsel %vm5292, %v5282, %v5285
    %v5305 = vsel %vm5295, %v5291, 1326507024
    %v5306 = vsel %vm5294, %v5288, %v5305
    %v5307 = vsel %vm5293, %v5304, %v5306
    %v5308 = vshll.u32 %v5268, 8
    %v5309 = vmul.u32.u64.compose %v5308, %v5307
    %v5310 = vextract.low.u32 %v5309
    %v5311 = vextract.high.u32 %v5309
    %v5312 = vmul.u32.u64.compose %v5308, %v5303
    %v5313 = vextract.low.u32 %v5312
    %v5314 = vextract.high.u32 %v5312
    %v5315 = vmul.u32 %v5308, %v5299
    %v5316 = vadd.s32 %v5311, %v5313
    %vm5317 = vc.u32 %v5311, %v5313
    %v5318 = vadd.s32 %v5314, 1
    %v5319 = vsel %vm5317, %v5318, %v5314
    %v5320 = vadd.s32 %v5315, %v5319
    %v5321 = vadd.s32 %v5320, 536870912
    %v5322 = vshrl.u32 %v5321, 30
    %v5323 = vshll.u32 %v5322, 30
    %v5324 = vsub.s32 %v5320, %v5323
    %vm5325 = vcmp.lt.s32.totalorder %v5324, 0
    %v5326 = vsub.s32 0, %v5324
    %v5327 = vsel %vm5325, %v5326, %v5324
    %v5328 = vclz %v5327
    %v5329 = vsub.s32 %v5328, 2
    %vm5330 = vcmp.gt.s32.totalorder 0, %v5329
    %v5331 = vsel %vm5330, 0, %v5329
    %v5332 = vsub.s32 32, %v5331
    %v5333 = vshll.u32 %v5324, %v5331
    %v5334 = vshrl.u32 %v5316, %v5332
    %v5335 = vor.u32 %v5333, %v5334
    %v5336 = vsub.s32 4294967266, %v5331
    %v5337 = vadd.s32 %v5336, 127
    %v5338 = vshll.u32 %v5337, 23
    %v5339 = vor.u32 4788187, %v5338
    %v5340 = vand.u32 2147483647, %v5339
    %v5342 = vcvt.s32.f32 %v5335
    %v5343 = vmul.f32 %v5342, %v5340
    %v5344 = vxor.u32 %v5343, 2147483648
    %v5345 = vsel %vm5262, %v5344, %v5343
    %v5346 = vsub.s32 4, %v5322
    %v5347 = vsel %vm5262, %v5346, %v5322
    %v5348 = vsel %vm5261, %v4816, %v5345
    %v5349 = vsel %vm5261, 0, %v5347
    %v5350 = vcosq.f32.pop %v5348
    %v5351 = vsinq.f32.pop %v5348
    %vm5352 = vweird.f32 %v4816
    %v5353 = vadd.s32 %v5349, 3
    %v5354 = vand.u32 %v5353, 3
    %vm5355 = vcmp.lt.s32.totalorder %v5354, 2
    %vm5356 = vcmp.eq.s32.totalorder %v5354, 0
    %v5357 = vxor.u32 %v5351, 2147483648
    %v5358 = vsel %vm5356, %v5350, %v5357
    %vm5359 = vcmp.eq.s32.totalorder %v5354, 2
    %v5360 = vxor.u32 %v5350, 2147483648
    %v5361 = vsel %vm5359, %v5360, %v5351
    %v5362 = vsel %vm5355, %v5358, %v5361
    %v5363 = vsel %vm5352, nan, %v5362
    %v5364 = vand.u32 2147483647, %v4817
    %vm5365 = vcmp.le.f32.partialorder %v5364, 0.7853982
    %vm5366 = vcmp.lt.s32.totalorder %v4817, 0
    %v5367 = vand.u32 %v4817, 2139095040
    %v5368 = vshrl.u32 %v5367, 23
    %v5369 = vsub.s32 %v5368, 127
    %v5370 = vand.u32 2147483647, %v4817
    %v5371 = vand.u32 %v5370, 8388607
    %v5372 = vor.u32 %v5371, 8388608
    %v5373 = vsub.s32 0, %v5372
    %v5374 = vadd.s32 %v5369, 1
    %vm5375 = vcmp.gt.s32.totalorder %v5374, 0
    %v5376 = vsel %vm5375, %v5374, 0
    %v5377 = vshrl.u32 %v5376, 5
    %v5378 = vand.u32 %v5376, 31
    %v5379 = vsub.s32 32, %v5378
    %v5380 = vshrl.u32 683565275, %v5379
    %v5381 = vshll.u32 683565275, %v5378
    %v5382 = vshrl.u32 2475754826, %v5379
    %v5383 = vor.u32 %v5381, %v5382
    %v5384 = vshll.u32 2475754826, %v5378
    %v5385 = vshrl.u32 2131351028, %v5379
    %v5386 = vor.u32 %v5384, %v5385
    %v5387 = vshll.u32 2131351028, %v5378
    %v5388 = vshrl.u32 2102212464, %v5379
    %v5389 = vor.u32 %v5387, %v5388
    %v5390 = vshll.u32 2102212464, %v5378
    %v5391 = vshrl.u32 920167782, %v5379
    %v5392 = vor.u32 %v5390, %v5391
    %v5393 = vshll.u32 920167782, %v5378
    %v5394 = vshrl.u32 1326507024, %v5379
    %v5395 = vor.u32 %v5393, %v5394
    %vm5396 = vcmp.lt.s32.totalorder %v5377, 1
    %vm5397 = vcmp.lt.s32.totalorder %v5377, 2
    %vm5398 = vcmp.lt.s32.totalorder %v5377, 3
    %vm5399 = vcmp.lt.s32.totalorder %v5377, 4
    %v5400 = vsel %vm5396, %v5380, %v5383
    %v5401 = vsel %vm5399, %v5389, 2102212464
    %v5402 = vsel %vm5398, %v5386, %v5401
    %v5403 = vsel %vm5397, %v5400, %v5402
    %v5404 = vsel %vm5396, %v5383, %v5386
    %v5405 = vsel %vm5399, %v5392, 920167782
    %v5406 = vsel %vm5398, %v5389, %v5405
    %v5407 = vsel %vm5397, %v5404, %v5406
    %v5408 = vsel %vm5396, %v5386, %v5389
    %v5409 = vsel %vm5399, %v5395, 1326507024
    %v5410 = vsel %vm5398, %v5392, %v5409
    %v5411 = vsel %vm5397, %v5408, %v5410
    %v5412 = vshll.u32 %v5372, 8
    %v5413 = vmul.u32.u64.compose %v5412, %v5411
    %v5414 = vextract.low.u32 %v5413
    %v5415 = vextract.high.u32 %v5413
    %v5416 = vmul.u32.u64.compose %v5412, %v5407
    %v5417 = vextract.low.u32 %v5416
    %v5418 = vextract.high.u32 %v5416
    %v5419 = vmul.u32 %v5412, %v5403
    %v5420 = vadd.s32 %v5415, %v5417
    %vm5421 = vc.u32 %v5415, %v5417
    %v5422 = vadd.s32 %v5418, 1
    %v5423 = vsel %vm5421, %v5422, %v5418
    %v5424 = vadd.s32 %v5419, %v5423
    %v5425 = vadd.s32 %v5424, 536870912
    %v5426 = vshrl.u32 %v5425, 30
    %v5427 = vshll.u32 %v5426, 30
    %v5428 = vsub.s32 %v5424, %v5427
    %vm5429 = vcmp.lt.s32.totalorder %v5428, 0
    %v5430 = vsub.s32 0, %v5428
    %v5431 = vsel %vm5429, %v5430, %v5428
    %v5432 = vclz %v5431
    %v5433 = vsub.s32 %v5432, 2
    %vm5434 = vcmp.gt.s32.totalorder 0, %v5433
    %v5435 = vsel %vm5434, 0, %v5433
    %v5436 = vsub.s32 32, %v5435
    %v5437 = vshll.u32 %v5428, %v5435
    %v5438 = vshrl.u32 %v5420, %v5436
    %v5439 = vor.u32 %v5437, %v5438
    %v5440 = vsub.s32 4294967266, %v5435
    %v5441 = vadd.s32 %v5440, 127
    %v5442 = vshll.u32 %v5441, 23
    %v5443 = vor.u32 4788187, %v5442
    %v5444 = vand.u32 2147483647, %v5443
    %v5446 = vcvt.s32.f32 %v5439
    %v5447 = vmul.f32 %v5446, %v5444
    %v5448 = vxor.u32 %v5447, 2147483648
    %v5449 = vsel %vm5366, %v5448, %v5447
    %v5450 = vsub.s32 4, %v5426
    %v5451 = vsel %vm5366, %v5450, %v5426
    %v5452 = vsel %vm5365, %v4817, %v5449
    %v5453 = vsel %vm5365, 0, %v5451
    %v5454 = vcosq.f32.pop %v5452
    %v5455 = vsinq.f32.pop %v5452
    %vm5456 = vweird.f32 %v4817
    %v5457 = vadd.s32 %v5453, 3
    %v5458 = vand.u32 %v5457, 3
    %vm5459 = vcmp.lt.s32.totalorder %v5458, 2
    %vm5460 = vcmp.eq.s32.totalorder %v5458, 0
    %v5461 = vxor.u32 %v5455, 2147483648
    %v5462 = vsel %vm5460, %v5454, %v5461
    %vm5463 = vcmp.eq.s32.totalorder %v5458, 2
    %v5464 = vxor.u32 %v5454, 2147483648
    %v5465 = vsel %vm5463, %v5464, %v5455
    %v5466 = vsel %vm5459, %v5462, %v5465
    %v5467 = vsel %vm5456, nan, %v5466
    %v5468 = vand.u32 2147483647, %v4818
    %vm5469 = vcmp.le.f32.partialorder %v5468, 0.7853982
    %vm5470 = vcmp.lt.s32.totalorder %v4818, 0
    %v5471 = vand.u32 %v4818, 2139095040
    %v5472 = vshrl.u32 %v5471, 23
    %v5473 = vsub.s32 %v5472, 127
    %v5474 = vand.u32 2147483647, %v4818
    %v5475 = vand.u32 %v5474, 8388607
    %v5476 = vor.u32 %v5475, 8388608
    %v5477 = vsub.s32 0, %v5476
    %v5478 = vadd.s32 %v5473, 1
    %vm5479 = vcmp.gt.s32.totalorder %v5478, 0
    %v5480 = vsel %vm5479, %v5478, 0
    %v5481 = vshrl.u32 %v5480, 5
    %v5482 = vand.u32 %v5480, 31
    %v5483 = vsub.s32 32, %v5482
    %v5484 = vshrl.u32 683565275, %v5483
    %v5485 = vshll.u32 683565275, %v5482
    %v5486 = vshrl.u32 2475754826, %v5483
    %v5487 = vor.u32 %v5485, %v5486
    %v5488 = vshll.u32 2475754826, %v5482
    %v5489 = vshrl.u32 2131351028, %v5483
    %v5490 = vor.u32 %v5488, %v5489
    %v5491 = vshll.u32 2131351028, %v5482
    %v5492 = vshrl.u32 2102212464, %v5483
    %v5493 = vor.u32 %v5491, %v5492
    %v5494 = vshll.u32 2102212464, %v5482
    %v5495 = vshrl.u32 920167782, %v5483
    %v5496 = vor.u32 %v5494, %v5495
    %v5497 = vshll.u32 920167782, %v5482
    %v5498 = vshrl.u32 1326507024, %v5483
    %v5499 = vor.u32 %v5497, %v5498
    %vm5500 = vcmp.lt.s32.totalorder %v5481, 1
    %vm5501 = vcmp.lt.s32.totalorder %v5481, 2
    %vm5502 = vcmp.lt.s32.totalorder %v5481, 3
    %vm5503 = vcmp.lt.s32.totalorder %v5481, 4
    %v5504 = vsel %vm5500, %v5484, %v5487
    %v5505 = vsel %vm5503, %v5493, 2102212464
    %v5506 = vsel %vm5502, %v5490, %v5505
    %v5507 = vsel %vm5501, %v5504, %v5506
    %v5508 = vsel %vm5500, %v5487, %v5490
    %v5509 = vsel %vm5503, %v5496, 920167782
    %v5510 = vsel %vm5502, %v5493, %v5509
    %v5511 = vsel %vm5501, %v5508, %v5510
    %v5512 = vsel %vm5500, %v5490, %v5493
    %v5513 = vsel %vm5503, %v5499, 1326507024
    %v5514 = vsel %vm5502, %v5496, %v5513
    %v5515 = vsel %vm5501, %v5512, %v5514
    %v5516 = vshll.u32 %v5476, 8
    %v5517 = vmul.u32.u64.compose %v5516, %v5515
    %v5518 = vextract.low.u32 %v5517
    %v5519 = vextract.high.u32 %v5517
    %v5520 = vmul.u32.u64.compose %v5516, %v5511
    %v5521 = vextract.low.u32 %v5520
    %v5522 = vextract.high.u32 %v5520
    %v5523 = vmul.u32 %v5516, %v5507
    %v5524 = vadd.s32 %v5519, %v5521
    %vm5525 = vc.u32 %v5519, %v5521
    %v5526 = vadd.s32 %v5522, 1
    %v5527 = vsel %vm5525, %v5526, %v5522
    %v5528 = vadd.s32 %v5523, %v5527
    %v5529 = vadd.s32 %v5528, 536870912
    %v5530 = vshrl.u32 %v5529, 30
    %v5531 = vshll.u32 %v5530, 30
    %v5532 = vsub.s32 %v5528, %v5531
    %vm5533 = vcmp.lt.s32.totalorder %v5532, 0
    %v5534 = vsub.s32 0, %v5532
    %v5535 = vsel %vm5533, %v5534, %v5532
    %v5536 = vclz %v5535
    %v5537 = vsub.s32 %v5536, 2
    %vm5538 = vcmp.gt.s32.totalorder 0, %v5537
    %v5539 = vsel %vm5538, 0, %v5537
    %v5540 = vsub.s32 32, %v5539
    %v5541 = vshll.u32 %v5532, %v5539
    %v5542 = vshrl.u32 %v5524, %v5540
    %v5543 = vor.u32 %v5541, %v5542
    %v5544 = vsub.s32 4294967266, %v5539
    %v5545 = vadd.s32 %v5544, 127
    %v5546 = vshll.u32 %v5545, 23
    %v5547 = vor.u32 4788187, %v5546
    %v5548 = vand.u32 2147483647, %v5547
    %v5550 = vcvt.s32.f32 %v5543
    %v5551 = vmul.f32 %v5550, %v5548
    %v5552 = vxor.u32 %v5551, 2147483648
    %v5553 = vsel %vm5470, %v5552, %v5551
    %v5554 = vsub.s32 4, %v5530
    %v5555 = vsel %vm5470, %v5554, %v5530
    %v5556 = vsel %vm5469, %v4818, %v5553
    %v5557 = vsel %vm5469, 0, %v5555
    %v5558 = vcosq.f32.pop %v5556
    %v5559 = vsinq.f32.pop %v5556
    %vm5560 = vweird.f32 %v4818
    %v5561 = vadd.s32 %v5557, 3
    %v5562 = vand.u32 %v5561, 3
    %vm5563 = vcmp.lt.s32.totalorder %v5562, 2
    %vm5564 = vcmp.eq.s32.totalorder %v5562, 0
    %v5565 = vxor.u32 %v5559, 2147483648
    %v5566 = vsel %vm5564, %v5558, %v5565
    %vm5567 = vcmp.eq.s32.totalorder %v5562, 2
    %v5568 = vxor.u32 %v5558, 2147483648
    %v5569 = vsel %vm5567, %v5568, %v5559
    %v5570 = vsel %vm5563, %v5566, %v5569
    %v5571 = vsel %vm5560, nan, %v5570
    %v5572 = vand.u32 2147483647, %v4819
    %vm5573 = vcmp.le.f32.partialorder %v5572, 0.7853982
    %vm5574 = vcmp.lt.s32.totalorder %v4819, 0
    %v5575 = vand.u32 %v4819, 2139095040
    %v5576 = vshrl.u32 %v5575, 23
    %v5577 = vsub.s32 %v5576, 127
    %v5578 = vand.u32 2147483647, %v4819
    %v5579 = vand.u32 %v5578, 8388607
    %v5580 = vor.u32 %v5579, 8388608
    %v5581 = vsub.s32 0, %v5580
    %v5582 = vadd.s32 %v5577, 1
    %vm5583 = vcmp.gt.s32.totalorder %v5582, 0
    %v5584 = vsel %vm5583, %v5582, 0
    %v5585 = vshrl.u32 %v5584, 5
    %v5586 = vand.u32 %v5584, 31
    %v5587 = vsub.s32 32, %v5586
    %v5588 = vshrl.u32 683565275, %v5587
    %v5589 = vshll.u32 683565275, %v5586
    %v5590 = vshrl.u32 2475754826, %v5587
    %v5591 = vor.u32 %v5589, %v5590
    %v5592 = vshll.u32 2475754826, %v5586
    %v5593 = vshrl.u32 2131351028, %v5587
    %v5594 = vor.u32 %v5592, %v5593
    %v5595 = vshll.u32 2131351028, %v5586
    %v5596 = vshrl.u32 2102212464, %v5587
    %v5597 = vor.u32 %v5595, %v5596
    %v5598 = vshll.u32 2102212464, %v5586
    %v5599 = vshrl.u32 920167782, %v5587
    %v5600 = vor.u32 %v5598, %v5599
    %v5601 = vshll.u32 920167782, %v5586
    %v5602 = vshrl.u32 1326507024, %v5587
    %v5603 = vor.u32 %v5601, %v5602
    %vm5604 = vcmp.lt.s32.totalorder %v5585, 1
    %vm5605 = vcmp.lt.s32.totalorder %v5585, 2
    %vm5606 = vcmp.lt.s32.totalorder %v5585, 3
    %vm5607 = vcmp.lt.s32.totalorder %v5585, 4
    %v5608 = vsel %vm5604, %v5588, %v5591
    %v5609 = vsel %vm5607, %v5597, 2102212464
    %v5610 = vsel %vm5606, %v5594, %v5609
    %v5611 = vsel %vm5605, %v5608, %v5610
    %v5612 = vsel %vm5604, %v5591, %v5594
    %v5613 = vsel %vm5607, %v5600, 920167782
    %v5614 = vsel %vm5606, %v5597, %v5613
    %v5615 = vsel %vm5605, %v5612, %v5614
    %v5616 = vsel %vm5604, %v5594, %v5597
    %v5617 = vsel %vm5607, %v5603, 1326507024
    %v5618 = vsel %vm5606, %v5600, %v5617
    %v5619 = vsel %vm5605, %v5616, %v5618
    %v5620 = vshll.u32 %v5580, 8
    %v5621 = vmul.u32.u64.compose %v5620, %v5619
    %v5622 = vextract.low.u32 %v5621
    %v5623 = vextract.high.u32 %v5621
    %v5624 = vmul.u32.u64.compose %v5620, %v5615
    %v5625 = vextract.low.u32 %v5624
    %v5626 = vextract.high.u32 %v5624
    %v5627 = vmul.u32 %v5620, %v5611
    %v5628 = vadd.s32 %v5623, %v5625
    %vm5629 = vc.u32 %v5623, %v5625
    %v5630 = vadd.s32 %v5626, 1
    %v5631 = vsel %vm5629, %v5630, %v5626
    %v5632 = vadd.s32 %v5627, %v5631
    %v5633 = vadd.s32 %v5632, 536870912
    %v5634 = vshrl.u32 %v5633, 30
    %v5635 = vshll.u32 %v5634, 30
    %v5636 = vsub.s32 %v5632, %v5635
    %vm5637 = vcmp.lt.s32.totalorder %v5636, 0
    %v5638 = vsub.s32 0, %v5636
    %v5639 = vsel %vm5637, %v5638, %v5636
    %v5640 = vclz %v5639
    %v5641 = vsub.s32 %v5640, 2
    %vm5642 = vcmp.gt.s32.totalorder 0, %v5641
    %v5643 = vsel %vm5642, 0, %v5641
    %v5644 = vsub.s32 32, %v5643
    %v5645 = vshll.u32 %v5636, %v5643
    %v5646 = vshrl.u32 %v5628, %v5644
    %v5647 = vor.u32 %v5645, %v5646
    %v5648 = vsub.s32 4294967266, %v5643
    %v5649 = vadd.s32 %v5648, 127
    %v5650 = vshll.u32 %v5649, 23
    %v5651 = vor.u32 4788187, %v5650
    %v5652 = vand.u32 2147483647, %v5651
    %v5654 = vcvt.s32.f32 %v5647
    %v5655 = vmul.f32 %v5654, %v5652
    %v5656 = vxor.u32 %v5655, 2147483648
    %v5657 = vsel %vm5574, %v5656, %v5655
    %v5658 = vsub.s32 4, %v5634
    %v5659 = vsel %vm5574, %v5658, %v5634
    %v5660 = vsel %vm5573, %v4819, %v5657
    %v5661 = vsel %vm5573, 0, %v5659
    %v5662 = vcosq.f32.pop %v5660
    %v5663 = vsinq.f32.pop %v5660
    %vm5664 = vweird.f32 %v4819
    %v5665 = vadd.s32 %v5661, 3
    %v5666 = vand.u32 %v5665, 3
    %vm5667 = vcmp.lt.s32.totalorder %v5666, 2
    %vm5668 = vcmp.eq.s32.totalorder %v5666, 0
    %v5669 = vxor.u32 %v5663, 2147483648
    %v5670 = vsel %vm5668, %v5662, %v5669
    %vm5671 = vcmp.eq.s32.totalorder %v5666, 2
    %v5672 = vxor.u32 %v5662, 2147483648
    %v5673 = vsel %vm5671, %v5672, %v5663
    %v5674 = vsel %vm5667, %v5670, %v5673
    %v5675 = vsel %vm5664, nan, %v5674
    %v5676 = vand.u32 2147483647, %v4820
    %vm5677 = vcmp.le.f32.partialorder %v5676, 0.7853982
    %vm5678 = vcmp.lt.s32.totalorder %v4820, 0
    %v5679 = vand.u32 %v4820, 2139095040
    %v5680 = vshrl.u32 %v5679, 23
    %v5681 = vsub.s32 %v5680, 127
    %v5682 = vand.u32 2147483647, %v4820
    %v5683 = vand.u32 %v5682, 8388607
    %v5684 = vor.u32 %v5683, 8388608
    %v5685 = vsub.s32 0, %v5684
    %v5686 = vadd.s32 %v5681, 1
    %vm5687 = vcmp.gt.s32.totalorder %v5686, 0
    %v5688 = vsel %vm5687, %v5686, 0
    %v5689 = vshrl.u32 %v5688, 5
    %v5690 = vand.u32 %v5688, 31
    %v5691 = vsub.s32 32, %v5690
    %v5692 = vshrl.u32 683565275, %v5691
    %v5693 = vshll.u32 683565275, %v5690
    %v5694 = vshrl.u32 2475754826, %v5691
    %v5695 = vor.u32 %v5693, %v5694
    %v5696 = vshll.u32 2475754826, %v5690
    %v5697 = vshrl.u32 2131351028, %v5691
    %v5698 = vor.u32 %v5696, %v5697
    %v5699 = vshll.u32 2131351028, %v5690
    %v5700 = vshrl.u32 2102212464, %v5691
    %v5701 = vor.u32 %v5699, %v5700
    %v5702 = vshll.u32 2102212464, %v5690
    %v5703 = vshrl.u32 920167782, %v5691
    %v5704 = vor.u32 %v5702, %v5703
    %v5705 = vshll.u32 920167782, %v5690
    %v5706 = vshrl.u32 1326507024, %v5691
    %v5707 = vor.u32 %v5705, %v5706
    %vm5708 = vcmp.lt.s32.totalorder %v5689, 1
    %vm5709 = vcmp.lt.s32.totalorder %v5689, 2
    %vm5710 = vcmp.lt.s32.totalorder %v5689, 3
    %vm5711 = vcmp.lt.s32.totalorder %v5689, 4
    %v5712 = vsel %vm5708, %v5692, %v5695
    %v5713 = vsel %vm5711, %v5701, 2102212464
    %v5714 = vsel %vm5710, %v5698, %v5713
    %v5715 = vsel %vm5709, %v5712, %v5714
    %v5716 = vsel %vm5708, %v5695, %v5698
    %v5717 = vsel %vm5711, %v5704, 920167782
    %v5718 = vsel %vm5710, %v5701, %v5717
    %v5719 = vsel %vm5709, %v5716, %v5718
    %v5720 = vsel %vm5708, %v5698, %v5701
    %v5721 = vsel %vm5711, %v5707, 1326507024
    %v5722 = vsel %vm5710, %v5704, %v5721
    %v5723 = vsel %vm5709, %v5720, %v5722
    %v5724 = vshll.u32 %v5684, 8
    %v5725 = vmul.u32.u64.compose %v5724, %v5723
    %v5726 = vextract.low.u32 %v5725
    %v5727 = vextract.high.u32 %v5725
    %v5728 = vmul.u32.u64.compose %v5724, %v5719
    %v5729 = vextract.low.u32 %v5728
    %v5730 = vextract.high.u32 %v5728
    %v5731 = vmul.u32 %v5724, %v5715
    %v5732 = vadd.s32 %v5727, %v5729
    %vm5733 = vc.u32 %v5727, %v5729
    %v5734 = vadd.s32 %v5730, 1
    %v5735 = vsel %vm5733, %v5734, %v5730
    %v5736 = vadd.s32 %v5731, %v5735
    %v5737 = vadd.s32 %v5736, 536870912
    %v5738 = vshrl.u32 %v5737, 30
    %v5739 = vshll.u32 %v5738, 30
    %v5740 = vsub.s32 %v5736, %v5739
    %vm5741 = vcmp.lt.s32.totalorder %v5740, 0
    %v5742 = vsub.s32 0, %v5740
    %v5743 = vsel %vm5741, %v5742, %v5740
    %v5744 = vclz %v5743
    %v5745 = vsub.s32 %v5744, 2
    %vm5746 = vcmp.gt.s32.totalorder 0, %v5745
    %v5747 = vsel %vm5746, 0, %v5745
    %v5748 = vsub.s32 32, %v5747
    %v5749 = vshll.u32 %v5740, %v5747
    %v5750 = vshrl.u32 %v5732, %v5748
    %v5751 = vor.u32 %v5749, %v5750
    %v5752 = vsub.s32 4294967266, %v5747
    %v5753 = vadd.s32 %v5752, 127
    %v5754 = vshll.u32 %v5753, 23
    %v5755 = vor.u32 4788187, %v5754
    %v5756 = vand.u32 2147483647, %v5755
    %v5758 = vcvt.s32.f32 %v5751
    %v5759 = vmul.f32 %v5758, %v5756
    %v5760 = vxor.u32 %v5759, 2147483648
    %v5761 = vsel %vm5678, %v5760, %v5759
    %v5762 = vsub.s32 4, %v5738
    %v5763 = vsel %vm5678, %v5762, %v5738
    %v5764 = vsel %vm5677, %v4820, %v5761
    %v5765 = vsel %vm5677, 0, %v5763
    %v5766 = vcosq.f32.pop %v5764
    %v5767 = vsinq.f32.pop %v5764
    %vm5768 = vweird.f32 %v4820
    %v5769 = vadd.s32 %v5765, 3
    %v5770 = vand.u32 %v5769, 3
    %vm5771 = vcmp.lt.s32.totalorder %v5770, 2
    %vm5772 = vcmp.eq.s32.totalorder %v5770, 0
    %v5773 = vxor.u32 %v5767, 2147483648
    %v5774 = vsel %vm5772, %v5766, %v5773
    %vm5775 = vcmp.eq.s32.totalorder %v5770, 2
    %v5776 = vxor.u32 %v5766, 2147483648
    %v5777 = vsel %vm5775, %v5776, %v5767
    %v5778 = vsel %vm5771, %v5774, %v5777
    %v5779 = vsel %vm5768, nan, %v5778
    %v5780 = vand.u32 2147483647, %v4821
    %vm5781 = vcmp.le.f32.partialorder %v5780, 0.7853982
    %vm5782 = vcmp.lt.s32.totalorder %v4821, 0
    %v5783 = vand.u32 %v4821, 2139095040
    %v5784 = vshrl.u32 %v5783, 23
    %v5785 = vsub.s32 %v5784, 127
    %v5786 = vand.u32 2147483647, %v4821
    %v5787 = vand.u32 %v5786, 8388607
    %v5788 = vor.u32 %v5787, 8388608
    %v5789 = vsub.s32 0, %v5788
    %v5790 = vadd.s32 %v5785, 1
    %vm5791 = vcmp.gt.s32.totalorder %v5790, 0
    %v5792 = vsel %vm5791, %v5790, 0
    %v5793 = vshrl.u32 %v5792, 5
    %v5794 = vand.u32 %v5792, 31
    %v5795 = vsub.s32 32, %v5794
    %v5796 = vshrl.u32 683565275, %v5795
    %v5797 = vshll.u32 683565275, %v5794
    %v5798 = vshrl.u32 2475754826, %v5795
    %v5799 = vor.u32 %v5797, %v5798
    %v5800 = vshll.u32 2475754826, %v5794
    %v5801 = vshrl.u32 2131351028, %v5795
    %v5802 = vor.u32 %v5800, %v5801
    %v5803 = vshll.u32 2131351028, %v5794
    %v5804 = vshrl.u32 2102212464, %v5795
    %v5805 = vor.u32 %v5803, %v5804
    %v5806 = vshll.u32 2102212464, %v5794
    %v5807 = vshrl.u32 920167782, %v5795
    %v5808 = vor.u32 %v5806, %v5807
    %v5809 = vshll.u32 920167782, %v5794
    %v5810 = vshrl.u32 1326507024, %v5795
    %v5811 = vor.u32 %v5809, %v5810
    %vm5812 = vcmp.lt.s32.totalorder %v5793, 1
    %vm5813 = vcmp.lt.s32.totalorder %v5793, 2
    %vm5814 = vcmp.lt.s32.totalorder %v5793, 3
    %vm5815 = vcmp.lt.s32.totalorder %v5793, 4
    %v5816 = vsel %vm5812, %v5796, %v5799
    %v5817 = vsel %vm5815, %v5805, 2102212464
    %v5818 = vsel %vm5814, %v5802, %v5817
    %v5819 = vsel %vm5813, %v5816, %v5818
    %v5820 = vsel %vm5812, %v5799, %v5802
    %v5821 = vsel %vm5815, %v5808, 920167782
    %v5822 = vsel %vm5814, %v5805, %v5821
    %v5823 = vsel %vm5813, %v5820, %v5822
    %v5824 = vsel %vm5812, %v5802, %v5805
    %v5825 = vsel %vm5815, %v5811, 1326507024
    %v5826 = vsel %vm5814, %v5808, %v5825
    %v5827 = vsel %vm5813, %v5824, %v5826
    %v5828 = vshll.u32 %v5788, 8
    %v5829 = vmul.u32.u64.compose %v5828, %v5827
    %v5830 = vextract.low.u32 %v5829
    %v5831 = vextract.high.u32 %v5829
    %v5832 = vmul.u32.u64.compose %v5828, %v5823
    %v5833 = vextract.low.u32 %v5832
    %v5834 = vextract.high.u32 %v5832
    %v5835 = vmul.u32 %v5828, %v5819
    %v5836 = vadd.s32 %v5831, %v5833
    %vm5837 = vc.u32 %v5831, %v5833
    %v5838 = vadd.s32 %v5834, 1
    %v5839 = vsel %vm5837, %v5838, %v5834
    %v5840 = vadd.s32 %v5835, %v5839
    %v5841 = vadd.s32 %v5840, 536870912
    %v5842 = vshrl.u32 %v5841, 30
    %v5843 = vshll.u32 %v5842, 30
    %v5844 = vsub.s32 %v5840, %v5843
    %vm5845 = vcmp.lt.s32.totalorder %v5844, 0
    %v5846 = vsub.s32 0, %v5844
    %v5847 = vsel %vm5845, %v5846, %v5844
    %v5848 = vclz %v5847
    %v5849 = vsub.s32 %v5848, 2
    %vm5850 = vcmp.gt.s32.totalorder 0, %v5849
    %v5851 = vsel %vm5850, 0, %v5849
    %v5852 = vsub.s32 32, %v5851
    %v5853 = vshll.u32 %v5844, %v5851
    %v5854 = vshrl.u32 %v5836, %v5852
    %v5855 = vor.u32 %v5853, %v5854
    %v5856 = vsub.s32 4294967266, %v5851
    %v5857 = vadd.s32 %v5856, 127
    %v5858 = vshll.u32 %v5857, 23
    %v5859 = vor.u32 4788187, %v5858
    %v5860 = vand.u32 2147483647, %v5859
    %v5862 = vcvt.s32.f32 %v5855
    %v5863 = vmul.f32 %v5862, %v5860
    %v5864 = vxor.u32 %v5863, 2147483648
    %v5865 = vsel %vm5782, %v5864, %v5863
    %v5866 = vsub.s32 4, %v5842
    %v5867 = vsel %vm5782, %v5866, %v5842
    %v5868 = vsel %vm5781, %v4821, %v5865
    %v5869 = vsel %vm5781, 0, %v5867
    %v5870 = vcosq.f32.pop %v5868
    %v5871 = vsinq.f32.pop %v5868
    %vm5872 = vweird.f32 %v4821
    %v5873 = vadd.s32 %v5869, 3
    %v5874 = vand.u32 %v5873, 3
    %vm5875 = vcmp.lt.s32.totalorder %v5874, 2
    %vm5876 = vcmp.eq.s32.totalorder %v5874, 0
    %v5877 = vxor.u32 %v5871, 2147483648
    %v5878 = vsel %vm5876, %v5870, %v5877
    %vm5879 = vcmp.eq.s32.totalorder %v5874, 2
    %v5880 = vxor.u32 %v5870, 2147483648
    %v5881 = vsel %vm5879, %v5880, %v5871
    %v5882 = vsel %vm5875, %v5878, %v5881
    %v5883 = vsel %vm5872, nan, %v5882
    %v5884 = vand.u32 2147483647, %v4822
    %vm5885 = vcmp.le.f32.partialorder %v5884, 0.7853982
    %vm5886 = vcmp.lt.s32.totalorder %v4822, 0
    %v5887 = vand.u32 %v4822, 2139095040
    %v5888 = vshrl.u32 %v5887, 23
    %v5889 = vsub.s32 %v5888, 127
    %v5890 = vand.u32 2147483647, %v4822
    %v5891 = vand.u32 %v5890, 8388607
    %v5892 = vor.u32 %v5891, 8388608
    %v5893 = vsub.s32 0, %v5892
    %v5894 = vadd.s32 %v5889, 1
    %vm5895 = vcmp.gt.s32.totalorder %v5894, 0
    %v5896 = vsel %vm5895, %v5894, 0
    %v5897 = vshrl.u32 %v5896, 5
    %v5898 = vand.u32 %v5896, 31
    %v5899 = vsub.s32 32, %v5898
    %v5900 = vshrl.u32 683565275, %v5899
    %v5901 = vshll.u32 683565275, %v5898
    %v5902 = vshrl.u32 2475754826, %v5899
    %v5903 = vor.u32 %v5901, %v5902
    %v5904 = vshll.u32 2475754826, %v5898
    %v5905 = vshrl.u32 2131351028, %v5899
    %v5906 = vor.u32 %v5904, %v5905
    %v5907 = vshll.u32 2131351028, %v5898
    %v5908 = vshrl.u32 2102212464, %v5899
    %v5909 = vor.u32 %v5907, %v5908
    %v5910 = vshll.u32 2102212464, %v5898
    %v5911 = vshrl.u32 920167782, %v5899
    %v5912 = vor.u32 %v5910, %v5911
    %v5913 = vshll.u32 920167782, %v5898
    %v5914 = vshrl.u32 1326507024, %v5899
    %v5915 = vor.u32 %v5913, %v5914
    %vm5916 = vcmp.lt.s32.totalorder %v5897, 1
    %vm5917 = vcmp.lt.s32.totalorder %v5897, 2
    %vm5918 = vcmp.lt.s32.totalorder %v5897, 3
    %vm5919 = vcmp.lt.s32.totalorder %v5897, 4
    %v5920 = vsel %vm5916, %v5900, %v5903
    %v5921 = vsel %vm5919, %v5909, 2102212464
    %v5922 = vsel %vm5918, %v5906, %v5921
    %v5923 = vsel %vm5917, %v5920, %v5922
    %v5924 = vsel %vm5916, %v5903, %v5906
    %v5925 = vsel %vm5919, %v5912, 920167782
    %v5926 = vsel %vm5918, %v5909, %v5925
    %v5927 = vsel %vm5917, %v5924, %v5926
    %v5928 = vsel %vm5916, %v5906, %v5909
    %v5929 = vsel %vm5919, %v5915, 1326507024
    %v5930 = vsel %vm5918, %v5912, %v5929
    %v5931 = vsel %vm5917, %v5928, %v5930
    %v5932 = vshll.u32 %v5892, 8
    %v5933 = vmul.u32.u64.compose %v5932, %v5931
    %v5934 = vextract.low.u32 %v5933
    %v5935 = vextract.high.u32 %v5933
    %v5936 = vmul.u32.u64.compose %v5932, %v5927
    %v5937 = vextract.low.u32 %v5936
    %v5938 = vextract.high.u32 %v5936
    %v5939 = vmul.u32 %v5932, %v5923
    %v5940 = vadd.s32 %v5935, %v5937
    %vm5941 = vc.u32 %v5935, %v5937
    %v5942 = vadd.s32 %v5938, 1
    %v5943 = vsel %vm5941, %v5942, %v5938
    %v5944 = vadd.s32 %v5939, %v5943
    %v5945 = vadd.s32 %v5944, 536870912
    %v5946 = vshrl.u32 %v5945, 30
    %v5947 = vshll.u32 %v5946, 30
    %v5948 = vsub.s32 %v5944, %v5947
    %vm5949 = vcmp.lt.s32.totalorder %v5948, 0
    %v5950 = vsub.s32 0, %v5948
    %v5951 = vsel %vm5949, %v5950, %v5948
    %v5952 = vclz %v5951
    %v5953 = vsub.s32 %v5952, 2
    %vm5954 = vcmp.gt.s32.totalorder 0, %v5953
    %v5955 = vsel %vm5954, 0, %v5953
    %v5956 = vsub.s32 32, %v5955
    %v5957 = vshll.u32 %v5948, %v5955
    %v5958 = vshrl.u32 %v5940, %v5956
    %v5959 = vor.u32 %v5957, %v5958
    %v5960 = vsub.s32 4294967266, %v5955
    %v5961 = vadd.s32 %v5960, 127
    %v5962 = vshll.u32 %v5961, 23
    %v5963 = vor.u32 4788187, %v5962
    %v5964 = vand.u32 2147483647, %v5963
    %v5966 = vcvt.s32.f32 %v5959
    %v5967 = vmul.f32 %v5966, %v5964
    %v5968 = vxor.u32 %v5967, 2147483648
    %v5969 = vsel %vm5886, %v5968, %v5967
    %v5970 = vsub.s32 4, %v5946
    %v5971 = vsel %vm5886, %v5970, %v5946
    %v5972 = vsel %vm5885, %v4822, %v5969
    %v5973 = vsel %vm5885, 0, %v5971
    %v5974 = vcosq.f32.pop %v5972
    %v5975 = vsinq.f32.pop %v5972
    %vm5976 = vweird.f32 %v4822
    %v5977 = vadd.s32 %v5973, 3
    %v5978 = vand.u32 %v5977, 3
    %vm5979 = vcmp.lt.s32.totalorder %v5978, 2
    %vm5980 = vcmp.eq.s32.totalorder %v5978, 0
    %v5981 = vxor.u32 %v5975, 2147483648
    %v5982 = vsel %vm5980, %v5974, %v5981
    %vm5983 = vcmp.eq.s32.totalorder %v5978, 2
    %v5984 = vxor.u32 %v5974, 2147483648
    %v5985 = vsel %vm5983, %v5984, %v5975
    %v5986 = vsel %vm5979, %v5982, %v5985
    %v5987 = vsel %vm5976, nan, %v5986
    %v5988 = vand.u32 2147483647, %v4823
    %vm5989 = vcmp.le.f32.partialorder %v5988, 0.7853982
    %vm5990 = vcmp.lt.s32.totalorder %v4823, 0
    %v5991 = vand.u32 %v4823, 2139095040
    %v5992 = vshrl.u32 %v5991, 23
    %v5993 = vsub.s32 %v5992, 127
    %v5994 = vand.u32 2147483647, %v4823
    %v5995 = vand.u32 %v5994, 8388607
    %v5996 = vor.u32 %v5995, 8388608
    %v5997 = vsub.s32 0, %v5996
    %v5998 = vadd.s32 %v5993, 1
    %vm5999 = vcmp.gt.s32.totalorder %v5998, 0
    %v6000 = vsel %vm5999, %v5998, 0
    %v6001 = vshrl.u32 %v6000, 5
    %v6002 = vand.u32 %v6000, 31
    %v6003 = vsub.s32 32, %v6002
    %v6004 = vshrl.u32 683565275, %v6003
    %v6005 = vshll.u32 683565275, %v6002
    %v6006 = vshrl.u32 2475754826, %v6003
    %v6007 = vor.u32 %v6005, %v6006
    %v6008 = vshll.u32 2475754826, %v6002
    %v6009 = vshrl.u32 2131351028, %v6003
    %v6010 = vor.u32 %v6008, %v6009
    %v6011 = vshll.u32 2131351028, %v6002
    %v6012 = vshrl.u32 2102212464, %v6003
    %v6013 = vor.u32 %v6011, %v6012
    %v6014 = vshll.u32 2102212464, %v6002
    %v6015 = vshrl.u32 920167782, %v6003
    %v6016 = vor.u32 %v6014, %v6015
    %v6017 = vshll.u32 920167782, %v6002
    %v6018 = vshrl.u32 1326507024, %v6003
    %v6019 = vor.u32 %v6017, %v6018
    %vm6020 = vcmp.lt.s32.totalorder %v6001, 1
    %vm6021 = vcmp.lt.s32.totalorder %v6001, 2
    %vm6022 = vcmp.lt.s32.totalorder %v6001, 3
    %vm6023 = vcmp.lt.s32.totalorder %v6001, 4
    %v6024 = vsel %vm6020, %v6004, %v6007
    %v6025 = vsel %vm6023, %v6013, 2102212464
    %v6026 = vsel %vm6022, %v6010, %v6025
    %v6027 = vsel %vm6021, %v6024, %v6026
    %v6028 = vsel %vm6020, %v6007, %v6010
    %v6029 = vsel %vm6023, %v6016, 920167782
    %v6030 = vsel %vm6022, %v6013, %v6029
    %v6031 = vsel %vm6021, %v6028, %v6030
    %v6032 = vsel %vm6020, %v6010, %v6013
    %v6033 = vsel %vm6023, %v6019, 1326507024
    %v6034 = vsel %vm6022, %v6016, %v6033
    %v6035 = vsel %vm6021, %v6032, %v6034
    %v6036 = vshll.u32 %v5996, 8
    %v6037 = vmul.u32.u64.compose %v6036, %v6035
    %v6038 = vextract.low.u32 %v6037
    %v6039 = vextract.high.u32 %v6037
    %v6040 = vmul.u32.u64.compose %v6036, %v6031
    %v6041 = vextract.low.u32 %v6040
    %v6042 = vextract.high.u32 %v6040
    %v6043 = vmul.u32 %v6036, %v6027
    %v6044 = vadd.s32 %v6039, %v6041
    %vm6045 = vc.u32 %v6039, %v6041
    %v6046 = vadd.s32 %v6042, 1
    %v6047 = vsel %vm6045, %v6046, %v6042
    %v6048 = vadd.s32 %v6043, %v6047
    %v6049 = vadd.s32 %v6048, 536870912
    %v6050 = vshrl.u32 %v6049, 30
    %v6051 = vshll.u32 %v6050, 30
    %v6052 = vsub.s32 %v6048, %v6051
    %vm6053 = vcmp.lt.s32.totalorder %v6052, 0
    %v6054 = vsub.s32 0, %v6052
    %v6055 = vsel %vm6053, %v6054, %v6052
    %v6056 = vclz %v6055
    %v6057 = vsub.s32 %v6056, 2
    %vm6058 = vcmp.gt.s32.totalorder 0, %v6057
    %v6059 = vsel %vm6058, 0, %v6057
    %v6060 = vsub.s32 32, %v6059
    %v6061 = vshll.u32 %v6052, %v6059
    %v6062 = vshrl.u32 %v6044, %v6060
    %v6063 = vor.u32 %v6061, %v6062
    %v6064 = vsub.s32 4294967266, %v6059
    %v6065 = vadd.s32 %v6064, 127
    %v6066 = vshll.u32 %v6065, 23
    %v6067 = vor.u32 4788187, %v6066
    %v6068 = vand.u32 2147483647, %v6067
    %v6070 = vcvt.s32.f32 %v6063
    %v6071 = vmul.f32 %v6070, %v6068
    %v6072 = vxor.u32 %v6071, 2147483648
    %v6073 = vsel %vm5990, %v6072, %v6071
    %v6074 = vsub.s32 4, %v6050
    %v6075 = vsel %vm5990, %v6074, %v6050
    %v6076 = vsel %vm5989, %v4823, %v6073
    %v6077 = vsel %vm5989, 0, %v6075
    %v6078 = vcosq.f32.pop %v6076
    %v6079 = vsinq.f32.pop %v6076
    %vm6080 = vweird.f32 %v4823
    %v6081 = vadd.s32 %v6077, 3
    %v6082 = vand.u32 %v6081, 3
    %vm6083 = vcmp.lt.s32.totalorder %v6082, 2
    %vm6084 = vcmp.eq.s32.totalorder %v6082, 0
    %v6085 = vxor.u32 %v6079, 2147483648
    %v6086 = vsel %vm6084, %v6078, %v6085
    %vm6087 = vcmp.eq.s32.totalorder %v6082, 2
    %v6088 = vxor.u32 %v6078, 2147483648
    %v6089 = vsel %vm6087, %v6088, %v6079
    %v6090 = vsel %vm6083, %v6086, %v6089
    %v6091 = vsel %vm6080, nan, %v6090
    %v6092 = vand.u32 2147483647, %v4824
    %vm6093 = vcmp.le.f32.partialorder %v6092, 0.7853982
    %vm6094 = vcmp.lt.s32.totalorder %v4824, 0
    %v6095 = vand.u32 %v4824, 2139095040
    %v6096 = vshrl.u32 %v6095, 23
    %v6097 = vsub.s32 %v6096, 127
    %v6098 = vand.u32 2147483647, %v4824
    %v6099 = vand.u32 %v6098, 8388607
    %v6100 = vor.u32 %v6099, 8388608
    %v6101 = vsub.s32 0, %v6100
    %v6102 = vadd.s32 %v6097, 1
    %vm6103 = vcmp.gt.s32.totalorder %v6102, 0
    %v6104 = vsel %vm6103, %v6102, 0
    %v6105 = vshrl.u32 %v6104, 5
    %v6106 = vand.u32 %v6104, 31
    %v6107 = vsub.s32 32, %v6106
    %v6108 = vshrl.u32 683565275, %v6107
    %v6109 = vshll.u32 683565275, %v6106
    %v6110 = vshrl.u32 2475754826, %v6107
    %v6111 = vor.u32 %v6109, %v6110
    %v6112 = vshll.u32 2475754826, %v6106
    %v6113 = vshrl.u32 2131351028, %v6107
    %v6114 = vor.u32 %v6112, %v6113
    %v6115 = vshll.u32 2131351028, %v6106
    %v6116 = vshrl.u32 2102212464, %v6107
    %v6117 = vor.u32 %v6115, %v6116
    %v6118 = vshll.u32 2102212464, %v6106
    %v6119 = vshrl.u32 920167782, %v6107
    %v6120 = vor.u32 %v6118, %v6119
    %v6121 = vshll.u32 920167782, %v6106
    %v6122 = vshrl.u32 1326507024, %v6107
    %v6123 = vor.u32 %v6121, %v6122
    %vm6124 = vcmp.lt.s32.totalorder %v6105, 1
    %vm6125 = vcmp.lt.s32.totalorder %v6105, 2
    %vm6126 = vcmp.lt.s32.totalorder %v6105, 3
    %vm6127 = vcmp.lt.s32.totalorder %v6105, 4
    %v6128 = vsel %vm6124, %v6108, %v6111
    %v6129 = vsel %vm6127, %v6117, 2102212464
    %v6130 = vsel %vm6126, %v6114, %v6129
    %v6131 = vsel %vm6125, %v6128, %v6130
    %v6132 = vsel %vm6124, %v6111, %v6114
    %v6133 = vsel %vm6127, %v6120, 920167782
    %v6134 = vsel %vm6126, %v6117, %v6133
    %v6135 = vsel %vm6125, %v6132, %v6134
    %v6136 = vsel %vm6124, %v6114, %v6117
    %v6137 = vsel %vm6127, %v6123, 1326507024
    %v6138 = vsel %vm6126, %v6120, %v6137
    %v6139 = vsel %vm6125, %v6136, %v6138
    %v6140 = vshll.u32 %v6100, 8
    %v6141 = vmul.u32.u64.compose %v6140, %v6139
    %v6142 = vextract.low.u32 %v6141
    %v6143 = vextract.high.u32 %v6141
    %v6144 = vmul.u32.u64.compose %v6140, %v6135
    %v6145 = vextract.low.u32 %v6144
    %v6146 = vextract.high.u32 %v6144
    %v6147 = vmul.u32 %v6140, %v6131
    %v6148 = vadd.s32 %v6143, %v6145
    %vm6149 = vc.u32 %v6143, %v6145
    %v6150 = vadd.s32 %v6146, 1
    %v6151 = vsel %vm6149, %v6150, %v6146
    %v6152 = vadd.s32 %v6147, %v6151
    %v6153 = vadd.s32 %v6152, 536870912
    %v6154 = vshrl.u32 %v6153, 30
    %v6155 = vshll.u32 %v6154, 30
    %v6156 = vsub.s32 %v6152, %v6155
    %vm6157 = vcmp.lt.s32.totalorder %v6156, 0
    %v6158 = vsub.s32 0, %v6156
    %v6159 = vsel %vm6157, %v6158, %v6156
    %v6160 = vclz %v6159
    %v6161 = vsub.s32 %v6160, 2
    %vm6162 = vcmp.gt.s32.totalorder 0, %v6161
    %v6163 = vsel %vm6162, 0, %v6161
    %v6164 = vsub.s32 32, %v6163
    %v6165 = vshll.u32 %v6156, %v6163
    %v6166 = vshrl.u32 %v6148, %v6164
    %v6167 = vor.u32 %v6165, %v6166
    %v6168 = vsub.s32 4294967266, %v6163
    %v6169 = vadd.s32 %v6168, 127
    %v6170 = vshll.u32 %v6169, 23
    %v6171 = vor.u32 4788187, %v6170
    %v6172 = vand.u32 2147483647, %v6171
    %v6174 = vcvt.s32.f32 %v6167
    %v6175 = vmul.f32 %v6174, %v6172
    %v6176 = vxor.u32 %v6175, 2147483648
    %v6177 = vsel %vm6094, %v6176, %v6175
    %v6178 = vsub.s32 4, %v6154
    %v6179 = vsel %vm6094, %v6178, %v6154
    %v6180 = vsel %vm6093, %v4824, %v6177
    %v6181 = vsel %vm6093, 0, %v6179
    %v6182 = vcosq.f32.pop %v6180
    %v6183 = vsinq.f32.pop %v6180
    %vm6184 = vweird.f32 %v4824
    %v6185 = vadd.s32 %v6181, 3
    %v6186 = vand.u32 %v6185, 3
    %vm6187 = vcmp.lt.s32.totalorder %v6186, 2
    %vm6188 = vcmp.eq.s32.totalorder %v6186, 0
    %v6189 = vxor.u32 %v6183, 2147483648
    %v6190 = vsel %vm6188, %v6182, %v6189
    %vm6191 = vcmp.eq.s32.totalorder %v6186, 2
    %v6192 = vxor.u32 %v6182, 2147483648
    %v6193 = vsel %vm6191, %v6192, %v6183
    %v6194 = vsel %vm6187, %v6190, %v6193
    %v6195 = vsel %vm6184, nan, %v6194
    %v6196 = vand.u32 2147483647, %v4825
    %vm6197 = vcmp.le.f32.partialorder %v6196, 0.7853982
    %vm6198 = vcmp.lt.s32.totalorder %v4825, 0
    %v6199 = vand.u32 %v4825, 2139095040
    %v6200 = vshrl.u32 %v6199, 23
    %v6201 = vsub.s32 %v6200, 127
    %v6202 = vand.u32 2147483647, %v4825
    %v6203 = vand.u32 %v6202, 8388607
    %v6204 = vor.u32 %v6203, 8388608
    %v6205 = vsub.s32 0, %v6204
    %v6206 = vadd.s32 %v6201, 1
    %vm6207 = vcmp.gt.s32.totalorder %v6206, 0
    %v6208 = vsel %vm6207, %v6206, 0
    %v6209 = vshrl.u32 %v6208, 5
    %v6210 = vand.u32 %v6208, 31
    %v6211 = vsub.s32 32, %v6210
    %v6212 = vshrl.u32 683565275, %v6211
    %v6213 = vshll.u32 683565275, %v6210
    %v6214 = vshrl.u32 2475754826, %v6211
    %v6215 = vor.u32 %v6213, %v6214
    %v6216 = vshll.u32 2475754826, %v6210
    %v6217 = vshrl.u32 2131351028, %v6211
    %v6218 = vor.u32 %v6216, %v6217
    %v6219 = vshll.u32 2131351028, %v6210
    %v6220 = vshrl.u32 2102212464, %v6211
    %v6221 = vor.u32 %v6219, %v6220
    %v6222 = vshll.u32 2102212464, %v6210
    %v6223 = vshrl.u32 920167782, %v6211
    %v6224 = vor.u32 %v6222, %v6223
    %v6225 = vshll.u32 920167782, %v6210
    %v6226 = vshrl.u32 1326507024, %v6211
    %v6227 = vor.u32 %v6225, %v6226
    %vm6228 = vcmp.lt.s32.totalorder %v6209, 1
    %vm6229 = vcmp.lt.s32.totalorder %v6209, 2
    %vm6230 = vcmp.lt.s32.totalorder %v6209, 3
    %vm6231 = vcmp.lt.s32.totalorder %v6209, 4
    %v6232 = vsel %vm6228, %v6212, %v6215
    %v6233 = vsel %vm6231, %v6221, 2102212464
    %v6234 = vsel %vm6230, %v6218, %v6233
    %v6235 = vsel %vm6229, %v6232, %v6234
    %v6236 = vsel %vm6228, %v6215, %v6218
    %v6237 = vsel %vm6231, %v6224, 920167782
    %v6238 = vsel %vm6230, %v6221, %v6237
    %v6239 = vsel %vm6229, %v6236, %v6238
    %v6240 = vsel %vm6228, %v6218, %v6221
    %v6241 = vsel %vm6231, %v6227, 1326507024
    %v6242 = vsel %vm6230, %v6224, %v6241
    %v6243 = vsel %vm6229, %v6240, %v6242
    %v6244 = vshll.u32 %v6204, 8
    %v6245 = vmul.u32.u64.compose %v6244, %v6243
    %v6246 = vextract.low.u32 %v6245
    %v6247 = vextract.high.u32 %v6245
    %v6248 = vmul.u32.u64.compose %v6244, %v6239
    %v6249 = vextract.low.u32 %v6248
    %v6250 = vextract.high.u32 %v6248
    %v6251 = vmul.u32 %v6244, %v6235
    %v6252 = vadd.s32 %v6247, %v6249
    %vm6253 = vc.u32 %v6247, %v6249
    %v6254 = vadd.s32 %v6250, 1
    %v6255 = vsel %vm6253, %v6254, %v6250
    %v6256 = vadd.s32 %v6251, %v6255
    %v6257 = vadd.s32 %v6256, 536870912
    %v6258 = vshrl.u32 %v6257, 30
    %v6259 = vshll.u32 %v6258, 30
    %v6260 = vsub.s32 %v6256, %v6259
    %vm6261 = vcmp.lt.s32.totalorder %v6260, 0
    %v6262 = vsub.s32 0, %v6260
    %v6263 = vsel %vm6261, %v6262, %v6260
    %v6264 = vclz %v6263
    %v6265 = vsub.s32 %v6264, 2
    %vm6266 = vcmp.gt.s32.totalorder 0, %v6265
    %v6267 = vsel %vm6266, 0, %v6265
    %v6268 = vsub.s32 32, %v6267
    %v6269 = vshll.u32 %v6260, %v6267
    %v6270 = vshrl.u32 %v6252, %v6268
    %v6271 = vor.u32 %v6269, %v6270
    %v6272 = vsub.s32 4294967266, %v6267
    %v6273 = vadd.s32 %v6272, 127
    %v6274 = vshll.u32 %v6273, 23
    %v6275 = vor.u32 4788187, %v6274
    %v6276 = vand.u32 2147483647, %v6275
    %v6278 = vcvt.s32.f32 %v6271
    %v6279 = vmul.f32 %v6278, %v6276
    %v6280 = vxor.u32 %v6279, 2147483648
    %v6281 = vsel %vm6198, %v6280, %v6279
    %v6282 = vsub.s32 4, %v6258
    %v6283 = vsel %vm6198, %v6282, %v6258
    %v6284 = vsel %vm6197, %v4825, %v6281
    %v6285 = vsel %vm6197, 0, %v6283
    %v6286 = vcosq.f32.pop %v6284
    %v6287 = vsinq.f32.pop %v6284
    %vm6288 = vweird.f32 %v4825
    %v6289 = vadd.s32 %v6285, 3
    %v6290 = vand.u32 %v6289, 3
    %vm6291 = vcmp.lt.s32.totalorder %v6290, 2
    %vm6292 = vcmp.eq.s32.totalorder %v6290, 0
    %v6293 = vxor.u32 %v6287, 2147483648
    %v6294 = vsel %vm6292, %v6286, %v6293
    %vm6295 = vcmp.eq.s32.totalorder %v6290, 2
    %v6296 = vxor.u32 %v6286, 2147483648
    %v6297 = vsel %vm6295, %v6296, %v6287
    %v6298 = vsel %vm6291, %v6294, %v6297
    %v6299 = vsel %vm6288, nan, %v6298
    %v6300 = vand.u32 2147483647, %v4826
    %vm6301 = vcmp.le.f32.partialorder %v6300, 0.7853982
    %vm6302 = vcmp.lt.s32.totalorder %v4826, 0
    %v6303 = vand.u32 %v4826, 2139095040
    %v6304 = vshrl.u32 %v6303, 23
    %v6305 = vsub.s32 %v6304, 127
    %v6306 = vand.u32 2147483647, %v4826
    %v6307 = vand.u32 %v6306, 8388607
    %v6308 = vor.u32 %v6307, 8388608
    %v6309 = vsub.s32 0, %v6308
    %v6310 = vadd.s32 %v6305, 1
    %vm6311 = vcmp.gt.s32.totalorder %v6310, 0
    %v6312 = vsel %vm6311, %v6310, 0
    %v6313 = vshrl.u32 %v6312, 5
    %v6314 = vand.u32 %v6312, 31
    %v6315 = vsub.s32 32, %v6314
    %v6316 = vshrl.u32 683565275, %v6315
    %v6317 = vshll.u32 683565275, %v6314
    %v6318 = vshrl.u32 2475754826, %v6315
    %v6319 = vor.u32 %v6317, %v6318
    %v6320 = vshll.u32 2475754826, %v6314
    %v6321 = vshrl.u32 2131351028, %v6315
    %v6322 = vor.u32 %v6320, %v6321
    %v6323 = vshll.u32 2131351028, %v6314
    %v6324 = vshrl.u32 2102212464, %v6315
    %v6325 = vor.u32 %v6323, %v6324
    %v6326 = vshll.u32 2102212464, %v6314
    %v6327 = vshrl.u32 920167782, %v6315
    %v6328 = vor.u32 %v6326, %v6327
    %v6329 = vshll.u32 920167782, %v6314
    %v6330 = vshrl.u32 1326507024, %v6315
    %v6331 = vor.u32 %v6329, %v6330
    %vm6332 = vcmp.lt.s32.totalorder %v6313, 1
    %vm6333 = vcmp.lt.s32.totalorder %v6313, 2
    %vm6334 = vcmp.lt.s32.totalorder %v6313, 3
    %vm6335 = vcmp.lt.s32.totalorder %v6313, 4
    %v6336 = vsel %vm6332, %v6316, %v6319
    %v6337 = vsel %vm6335, %v6325, 2102212464
    %v6338 = vsel %vm6334, %v6322, %v6337
    %v6339 = vsel %vm6333, %v6336, %v6338
    %v6340 = vsel %vm6332, %v6319, %v6322
    %v6341 = vsel %vm6335, %v6328, 920167782
    %v6342 = vsel %vm6334, %v6325, %v6341
    %v6343 = vsel %vm6333, %v6340, %v6342
    %v6344 = vsel %vm6332, %v6322, %v6325
    %v6345 = vsel %vm6335, %v6331, 1326507024
    %v6346 = vsel %vm6334, %v6328, %v6345
    %v6347 = vsel %vm6333, %v6344, %v6346
    %v6348 = vshll.u32 %v6308, 8
    %v6349 = vmul.u32.u64.compose %v6348, %v6347
    %v6350 = vextract.low.u32 %v6349
    %v6351 = vextract.high.u32 %v6349
    %v6352 = vmul.u32.u64.compose %v6348, %v6343
    %v6353 = vextract.low.u32 %v6352
    %v6354 = vextract.high.u32 %v6352
    %v6355 = vmul.u32 %v6348, %v6339
    %v6356 = vadd.s32 %v6351, %v6353
    %vm6357 = vc.u32 %v6351, %v6353
    %v6358 = vadd.s32 %v6354, 1
    %v6359 = vsel %vm6357, %v6358, %v6354
    %v6360 = vadd.s32 %v6355, %v6359
    %v6361 = vadd.s32 %v6360, 536870912
    %v6362 = vshrl.u32 %v6361, 30
    %v6363 = vshll.u32 %v6362, 30
    %v6364 = vsub.s32 %v6360, %v6363
    %vm6365 = vcmp.lt.s32.totalorder %v6364, 0
    %v6366 = vsub.s32 0, %v6364
    %v6367 = vsel %vm6365, %v6366, %v6364
    %v6368 = vclz %v6367
    %v6369 = vsub.s32 %v6368, 2
    %vm6370 = vcmp.gt.s32.totalorder 0, %v6369
    %v6371 = vsel %vm6370, 0, %v6369
    %v6372 = vsub.s32 32, %v6371
    %v6373 = vshll.u32 %v6364, %v6371
    %v6374 = vshrl.u32 %v6356, %v6372
    %v6375 = vor.u32 %v6373, %v6374
    %v6376 = vsub.s32 4294967266, %v6371
    %v6377 = vadd.s32 %v6376, 127
    %v6378 = vshll.u32 %v6377, 23
    %v6379 = vor.u32 4788187, %v6378
    %v6380 = vand.u32 2147483647, %v6379
    %v6382 = vcvt.s32.f32 %v6375
    %v6383 = vmul.f32 %v6382, %v6380
    %v6384 = vxor.u32 %v6383, 2147483648
    %v6385 = vsel %vm6302, %v6384, %v6383
    %v6386 = vsub.s32 4, %v6362
    %v6387 = vsel %vm6302, %v6386, %v6362
    %v6388 = vsel %vm6301, %v4826, %v6385
    %v6389 = vsel %vm6301, 0, %v6387
    %v6390 = vcosq.f32.pop %v6388
    %v6391 = vsinq.f32.pop %v6388
    %vm6392 = vweird.f32 %v4826
    %v6393 = vadd.s32 %v6389, 3
    %v6394 = vand.u32 %v6393, 3
    %vm6395 = vcmp.lt.s32.totalorder %v6394, 2
    %vm6396 = vcmp.eq.s32.totalorder %v6394, 0
    %v6397 = vxor.u32 %v6391, 2147483648
    %v6398 = vsel %vm6396, %v6390, %v6397
    %vm6399 = vcmp.eq.s32.totalorder %v6394, 2
    %v6400 = vxor.u32 %v6390, 2147483648
    %v6401 = vsel %vm6399, %v6400, %v6391
    %v6402 = vsel %vm6395, %v6398, %v6401
    %v6403 = vsel %vm6392, nan, %v6402
    %v6404 = vand.u32 2147483647, %v4827
    %vm6405 = vcmp.le.f32.partialorder %v6404, 0.7853982
    %vm6406 = vcmp.lt.s32.totalorder %v4827, 0
    %v6407 = vand.u32 %v4827, 2139095040
    %v6408 = vshrl.u32 %v6407, 23
    %v6409 = vsub.s32 %v6408, 127
    %v6410 = vand.u32 2147483647, %v4827
    %v6411 = vand.u32 %v6410, 8388607
    %v6412 = vor.u32 %v6411, 8388608
    %v6413 = vsub.s32 0, %v6412
    %v6414 = vadd.s32 %v6409, 1
    %vm6415 = vcmp.gt.s32.totalorder %v6414, 0
    %v6416 = vsel %vm6415, %v6414, 0
    %v6417 = vshrl.u32 %v6416, 5
    %v6418 = vand.u32 %v6416, 31
    %v6419 = vsub.s32 32, %v6418
    %v6420 = vshrl.u32 683565275, %v6419
    %v6421 = vshll.u32 683565275, %v6418
    %v6422 = vshrl.u32 2475754826, %v6419
    %v6423 = vor.u32 %v6421, %v6422
    %v6424 = vshll.u32 2475754826, %v6418
    %v6425 = vshrl.u32 2131351028, %v6419
    %v6426 = vor.u32 %v6424, %v6425
    %v6427 = vshll.u32 2131351028, %v6418
    %v6428 = vshrl.u32 2102212464, %v6419
    %v6429 = vor.u32 %v6427, %v6428
    %v6430 = vshll.u32 2102212464, %v6418
    %v6431 = vshrl.u32 920167782, %v6419
    %v6432 = vor.u32 %v6430, %v6431
    %v6433 = vshll.u32 920167782, %v6418
    %v6434 = vshrl.u32 1326507024, %v6419
    %v6435 = vor.u32 %v6433, %v6434
    %vm6436 = vcmp.lt.s32.totalorder %v6417, 1
    %vm6437 = vcmp.lt.s32.totalorder %v6417, 2
    %vm6438 = vcmp.lt.s32.totalorder %v6417, 3
    %vm6439 = vcmp.lt.s32.totalorder %v6417, 4
    %v6440 = vsel %vm6436, %v6420, %v6423
    %v6441 = vsel %vm6439, %v6429, 2102212464
    %v6442 = vsel %vm6438, %v6426, %v6441
    %v6443 = vsel %vm6437, %v6440, %v6442
    %v6444 = vsel %vm6436, %v6423, %v6426
    %v6445 = vsel %vm6439, %v6432, 920167782
    %v6446 = vsel %vm6438, %v6429, %v6445
    %v6447 = vsel %vm6437, %v6444, %v6446
    %v6448 = vsel %vm6436, %v6426, %v6429
    %v6449 = vsel %vm6439, %v6435, 1326507024
    %v6450 = vsel %vm6438, %v6432, %v6449
    %v6451 = vsel %vm6437, %v6448, %v6450
    %v6452 = vshll.u32 %v6412, 8
    %v6453 = vmul.u32.u64.compose %v6452, %v6451
    %v6454 = vextract.low.u32 %v6453
    %v6455 = vextract.high.u32 %v6453
    %v6456 = vmul.u32.u64.compose %v6452, %v6447
    %v6457 = vextract.low.u32 %v6456
    %v6458 = vextract.high.u32 %v6456
    %v6459 = vmul.u32 %v6452, %v6443
    %v6460 = vadd.s32 %v6455, %v6457
    %vm6461 = vc.u32 %v6455, %v6457
    %v6462 = vadd.s32 %v6458, 1
    %v6463 = vsel %vm6461, %v6462, %v6458
    %v6464 = vadd.s32 %v6459, %v6463
    %v6465 = vadd.s32 %v6464, 536870912
    %v6466 = vshrl.u32 %v6465, 30
    %v6467 = vshll.u32 %v6466, 30
    %v6468 = vsub.s32 %v6464, %v6467
    %vm6469 = vcmp.lt.s32.totalorder %v6468, 0
    %v6470 = vsub.s32 0, %v6468
    %v6471 = vsel %vm6469, %v6470, %v6468
    %v6472 = vclz %v6471
    %v6473 = vsub.s32 %v6472, 2
    %vm6474 = vcmp.gt.s32.totalorder 0, %v6473
    %v6475 = vsel %vm6474, 0, %v6473
    %v6476 = vsub.s32 32, %v6475
    %v6477 = vshll.u32 %v6468, %v6475
    %v6478 = vshrl.u32 %v6460, %v6476
    %v6479 = vor.u32 %v6477, %v6478
    %v6480 = vsub.s32 4294967266, %v6475
    %v6481 = vadd.s32 %v6480, 127
    %v6482 = vshll.u32 %v6481, 23
    %v6483 = vor.u32 4788187, %v6482
    %v6484 = vand.u32 2147483647, %v6483
    %v6486 = vcvt.s32.f32 %v6479
    %v6487 = vmul.f32 %v6486, %v6484
    %v6488 = vxor.u32 %v6487, 2147483648
    %v6489 = vsel %vm6406, %v6488, %v6487
    %v6490 = vsub.s32 4, %v6466
    %v6491 = vsel %vm6406, %v6490, %v6466
    %v6492 = vsel %vm6405, %v4827, %v6489
    %v6493 = vsel %vm6405, 0, %v6491
    %v6494 = vcosq.f32.pop %v6492
    %v6495 = vsinq.f32.pop %v6492
    %vm6496 = vweird.f32 %v4827
    %v6497 = vadd.s32 %v6493, 3
    %v6498 = vand.u32 %v6497, 3
    %vm6499 = vcmp.lt.s32.totalorder %v6498, 2
    %vm6500 = vcmp.eq.s32.totalorder %v6498, 0
    %v6501 = vxor.u32 %v6495, 2147483648
    %v6502 = vsel %vm6500, %v6494, %v6501
    %vm6503 = vcmp.eq.s32.totalorder %v6498, 2
    %v6504 = vxor.u32 %v6494, 2147483648
    %v6505 = vsel %vm6503, %v6504, %v6495
    %v6506 = vsel %vm6499, %v6502, %v6505
    %v6507 = vsel %vm6496, nan, %v6506
    %v6508 = vand.u32 2147483647, %v4828
    %vm6509 = vcmp.le.f32.partialorder %v6508, 0.7853982
    %vm6510 = vcmp.lt.s32.totalorder %v4828, 0
    %v6511 = vand.u32 %v4828, 2139095040
    %v6512 = vshrl.u32 %v6511, 23
    %v6513 = vsub.s32 %v6512, 127
    %v6514 = vand.u32 2147483647, %v4828
    %v6515 = vand.u32 %v6514, 8388607
    %v6516 = vor.u32 %v6515, 8388608
    %v6517 = vsub.s32 0, %v6516
    %v6518 = vadd.s32 %v6513, 1
    %vm6519 = vcmp.gt.s32.totalorder %v6518, 0
    %v6520 = vsel %vm6519, %v6518, 0
    %v6521 = vshrl.u32 %v6520, 5
    %v6522 = vand.u32 %v6520, 31
    %v6523 = vsub.s32 32, %v6522
    %v6524 = vshrl.u32 683565275, %v6523
    %v6525 = vshll.u32 683565275, %v6522
    %v6526 = vshrl.u32 2475754826, %v6523
    %v6527 = vor.u32 %v6525, %v6526
    %v6528 = vshll.u32 2475754826, %v6522
    %v6529 = vshrl.u32 2131351028, %v6523
    %v6530 = vor.u32 %v6528, %v6529
    %v6531 = vshll.u32 2131351028, %v6522
    %v6532 = vshrl.u32 2102212464, %v6523
    %v6533 = vor.u32 %v6531, %v6532
    %v6534 = vshll.u32 2102212464, %v6522
    %v6535 = vshrl.u32 920167782, %v6523
    %v6536 = vor.u32 %v6534, %v6535
    %v6537 = vshll.u32 920167782, %v6522
    %v6538 = vshrl.u32 1326507024, %v6523
    %v6539 = vor.u32 %v6537, %v6538
    %vm6540 = vcmp.lt.s32.totalorder %v6521, 1
    %vm6541 = vcmp.lt.s32.totalorder %v6521, 2
    %vm6542 = vcmp.lt.s32.totalorder %v6521, 3
    %vm6543 = vcmp.lt.s32.totalorder %v6521, 4
    %v6544 = vsel %vm6540, %v6524, %v6527
    %v6545 = vsel %vm6543, %v6533, 2102212464
    %v6546 = vsel %vm6542, %v6530, %v6545
    %v6547 = vsel %vm6541, %v6544, %v6546
    %v6548 = vsel %vm6540, %v6527, %v6530
    %v6549 = vsel %vm6543, %v6536, 920167782
    %v6550 = vsel %vm6542, %v6533, %v6549
    %v6551 = vsel %vm6541, %v6548, %v6550
    %v6552 = vsel %vm6540, %v6530, %v6533
    %v6553 = vsel %vm6543, %v6539, 1326507024
    %v6554 = vsel %vm6542, %v6536, %v6553
    %v6555 = vsel %vm6541, %v6552, %v6554
    %v6556 = vshll.u32 %v6516, 8
    %v6557 = vmul.u32.u64.compose %v6556, %v6555
    %v6558 = vextract.low.u32 %v6557
    %v6559 = vextract.high.u32 %v6557
    %v6560 = vmul.u32.u64.compose %v6556, %v6551
    %v6561 = vextract.low.u32 %v6560
    %v6562 = vextract.high.u32 %v6560
    %v6563 = vmul.u32 %v6556, %v6547
    %v6564 = vadd.s32 %v6559, %v6561
    %vm6565 = vc.u32 %v6559, %v6561
    %v6566 = vadd.s32 %v6562, 1
    %v6567 = vsel %vm6565, %v6566, %v6562
    %v6568 = vadd.s32 %v6563, %v6567
    %v6569 = vadd.s32 %v6568, 536870912
    %v6570 = vshrl.u32 %v6569, 30
    %v6571 = vshll.u32 %v6570, 30
    %v6572 = vsub.s32 %v6568, %v6571
    %vm6573 = vcmp.lt.s32.totalorder %v6572, 0
    %v6574 = vsub.s32 0, %v6572
    %v6575 = vsel %vm6573, %v6574, %v6572
    %v6576 = vclz %v6575
    %v6577 = vsub.s32 %v6576, 2
    %vm6578 = vcmp.gt.s32.totalorder 0, %v6577
    %v6579 = vsel %vm6578, 0, %v6577
    %v6580 = vsub.s32 32, %v6579
    %v6581 = vshll.u32 %v6572, %v6579
    %v6582 = vshrl.u32 %v6564, %v6580
    %v6583 = vor.u32 %v6581, %v6582
    %v6584 = vsub.s32 4294967266, %v6579
    %v6585 = vadd.s32 %v6584, 127
    %v6586 = vshll.u32 %v6585, 23
    %v6587 = vor.u32 4788187, %v6586
    %v6588 = vand.u32 2147483647, %v6587
    %v6590 = vcvt.s32.f32 %v6583
    %v6591 = vmul.f32 %v6590, %v6588
    %v6592 = vxor.u32 %v6591, 2147483648
    %v6593 = vsel %vm6510, %v6592, %v6591
    %v6594 = vsub.s32 4, %v6570
    %v6595 = vsel %vm6510, %v6594, %v6570
    %v6596 = vsel %vm6509, %v4828, %v6593
    %v6597 = vsel %vm6509, 0, %v6595
    %v6598 = vcosq.f32.pop %v6596
    %v6599 = vsinq.f32.pop %v6596
    %vm6600 = vweird.f32 %v4828
    %v6601 = vadd.s32 %v6597, 3
    %v6602 = vand.u32 %v6601, 3
    %vm6603 = vcmp.lt.s32.totalorder %v6602, 2
    %vm6604 = vcmp.eq.s32.totalorder %v6602, 0
    %v6605 = vxor.u32 %v6599, 2147483648
    %v6606 = vsel %vm6604, %v6598, %v6605
    %vm6607 = vcmp.eq.s32.totalorder %v6602, 2
    %v6608 = vxor.u32 %v6598, 2147483648
    %v6609 = vsel %vm6607, %v6608, %v6599
    %v6610 = vsel %vm6603, %v6606, %v6609
    %v6611 = vsel %vm6600, nan, %v6610
    %v6612 = vand.u32 2147483647, %v4829
    %vm6613 = vcmp.le.f32.partialorder %v6612, 0.7853982
    %vm6614 = vcmp.lt.s32.totalorder %v4829, 0
    %v6615 = vand.u32 %v4829, 2139095040
    %v6616 = vshrl.u32 %v6615, 23
    %v6617 = vsub.s32 %v6616, 127
    %v6618 = vand.u32 2147483647, %v4829
    %v6619 = vand.u32 %v6618, 8388607
    %v6620 = vor.u32 %v6619, 8388608
    %v6621 = vsub.s32 0, %v6620
    %v6622 = vadd.s32 %v6617, 1
    %vm6623 = vcmp.gt.s32.totalorder %v6622, 0
    %v6624 = vsel %vm6623, %v6622, 0
    %v6625 = vshrl.u32 %v6624, 5
    %v6626 = vand.u32 %v6624, 31
    %v6627 = vsub.s32 32, %v6626
    %v6628 = vshrl.u32 683565275, %v6627
    %v6629 = vshll.u32 683565275, %v6626
    %v6630 = vshrl.u32 2475754826, %v6627
    %v6631 = vor.u32 %v6629, %v6630
    %v6632 = vshll.u32 2475754826, %v6626
    %v6633 = vshrl.u32 2131351028, %v6627
    %v6634 = vor.u32 %v6632, %v6633
    %v6635 = vshll.u32 2131351028, %v6626
    %v6636 = vshrl.u32 2102212464, %v6627
    %v6637 = vor.u32 %v6635, %v6636
    %v6638 = vshll.u32 2102212464, %v6626
    %v6639 = vshrl.u32 920167782, %v6627
    %v6640 = vor.u32 %v6638, %v6639
    %v6641 = vshll.u32 920167782, %v6626
    %v6642 = vshrl.u32 1326507024, %v6627
    %v6643 = vor.u32 %v6641, %v6642
    %vm6644 = vcmp.lt.s32.totalorder %v6625, 1
    %vm6645 = vcmp.lt.s32.totalorder %v6625, 2
    %vm6646 = vcmp.lt.s32.totalorder %v6625, 3
    %vm6647 = vcmp.lt.s32.totalorder %v6625, 4
    %v6648 = vsel %vm6644, %v6628, %v6631
    %v6649 = vsel %vm6647, %v6637, 2102212464
    %v6650 = vsel %vm6646, %v6634, %v6649
    %v6651 = vsel %vm6645, %v6648, %v6650
    %v6652 = vsel %vm6644, %v6631, %v6634
    %v6653 = vsel %vm6647, %v6640, 920167782
    %v6654 = vsel %vm6646, %v6637, %v6653
    %v6655 = vsel %vm6645, %v6652, %v6654
    %v6656 = vsel %vm6644, %v6634, %v6637
    %v6657 = vsel %vm6647, %v6643, 1326507024
    %v6658 = vsel %vm6646, %v6640, %v6657
    %v6659 = vsel %vm6645, %v6656, %v6658
    %v6660 = vshll.u32 %v6620, 8
    %v6661 = vmul.u32.u64.compose %v6660, %v6659
    %v6662 = vextract.low.u32 %v6661
    %v6663 = vextract.high.u32 %v6661
    %v6664 = vmul.u32.u64.compose %v6660, %v6655
    %v6665 = vextract.low.u32 %v6664
    %v6666 = vextract.high.u32 %v6664
    %v6667 = vmul.u32 %v6660, %v6651
    %v6668 = vadd.s32 %v6663, %v6665
    %vm6669 = vc.u32 %v6663, %v6665
    %v6670 = vadd.s32 %v6666, 1
    %v6671 = vsel %vm6669, %v6670, %v6666
    %v6672 = vadd.s32 %v6667, %v6671
    %v6673 = vadd.s32 %v6672, 536870912
    %v6674 = vshrl.u32 %v6673, 30
    %v6675 = vshll.u32 %v6674, 30
    %v6676 = vsub.s32 %v6672, %v6675
    %vm6677 = vcmp.lt.s32.totalorder %v6676, 0
    %v6678 = vsub.s32 0, %v6676
    %v6679 = vsel %vm6677, %v6678, %v6676
    %v6680 = vclz %v6679
    %v6681 = vsub.s32 %v6680, 2
    %vm6682 = vcmp.gt.s32.totalorder 0, %v6681
    %v6683 = vsel %vm6682, 0, %v6681
    %v6684 = vsub.s32 32, %v6683
    %v6685 = vshll.u32 %v6676, %v6683
    %v6686 = vshrl.u32 %v6668, %v6684
    %v6687 = vor.u32 %v6685, %v6686
    %v6688 = vsub.s32 4294967266, %v6683
    %v6689 = vadd.s32 %v6688, 127
    %v6690 = vshll.u32 %v6689, 23
    %v6691 = vor.u32 4788187, %v6690
    %v6692 = vand.u32 2147483647, %v6691
    %v6694 = vcvt.s32.f32 %v6687
    %v6695 = vmul.f32 %v6694, %v6692
    %v6696 = vxor.u32 %v6695, 2147483648
    %v6697 = vsel %vm6614, %v6696, %v6695
    %v6698 = vsub.s32 4, %v6674
    %v6699 = vsel %vm6614, %v6698, %v6674
    %v6700 = vsel %vm6613, %v4829, %v6697
    %v6701 = vsel %vm6613, 0, %v6699
    %v6702 = vcosq.f32.pop %v6700
    %v6703 = vsinq.f32.pop %v6700
    %vm6704 = vweird.f32 %v4829
    %v6705 = vadd.s32 %v6701, 3
    %v6706 = vand.u32 %v6705, 3
    %vm6707 = vcmp.lt.s32.totalorder %v6706, 2
    %vm6708 = vcmp.eq.s32.totalorder %v6706, 0
    %v6709 = vxor.u32 %v6703, 2147483648
    %v6710 = vsel %vm6708, %v6702, %v6709
    %vm6711 = vcmp.eq.s32.totalorder %v6706, 2
    %v6712 = vxor.u32 %v6702, 2147483648
    %v6713 = vsel %vm6711, %v6712, %v6703
    %v6714 = vsel %vm6707, %v6710, %v6713
    %v6715 = vsel %vm6704, nan, %v6714
    %v6716 = vand.u32 2147483647, %v4830
    %vm6717 = vcmp.le.f32.partialorder %v6716, 0.7853982
    %vm6718 = vcmp.lt.s32.totalorder %v4830, 0
    %v6719 = vand.u32 %v4830, 2139095040
    %v6720 = vshrl.u32 %v6719, 23
    %v6721 = vsub.s32 %v6720, 127
    %v6722 = vand.u32 2147483647, %v4830
    %v6723 = vand.u32 %v6722, 8388607
    %v6724 = vor.u32 %v6723, 8388608
    %v6725 = vsub.s32 0, %v6724
    %v6726 = vadd.s32 %v6721, 1
    %vm6727 = vcmp.gt.s32.totalorder %v6726, 0
    %v6728 = vsel %vm6727, %v6726, 0
    %v6729 = vshrl.u32 %v6728, 5
    %v6730 = vand.u32 %v6728, 31
    %v6731 = vsub.s32 32, %v6730
    %v6732 = vshrl.u32 683565275, %v6731
    %v6733 = vshll.u32 683565275, %v6730
    %v6734 = vshrl.u32 2475754826, %v6731
    %v6735 = vor.u32 %v6733, %v6734
    %v6736 = vshll.u32 2475754826, %v6730
    %v6737 = vshrl.u32 2131351028, %v6731
    %v6738 = vor.u32 %v6736, %v6737
    %v6739 = vshll.u32 2131351028, %v6730
    %v6740 = vshrl.u32 2102212464, %v6731
    %v6741 = vor.u32 %v6739, %v6740
    %v6742 = vshll.u32 2102212464, %v6730
    %v6743 = vshrl.u32 920167782, %v6731
    %v6744 = vor.u32 %v6742, %v6743
    %v6745 = vshll.u32 920167782, %v6730
    %v6746 = vshrl.u32 1326507024, %v6731
    %v6747 = vor.u32 %v6745, %v6746
    %vm6748 = vcmp.lt.s32.totalorder %v6729, 1
    %vm6749 = vcmp.lt.s32.totalorder %v6729, 2
    %vm6750 = vcmp.lt.s32.totalorder %v6729, 3
    %vm6751 = vcmp.lt.s32.totalorder %v6729, 4
    %v6752 = vsel %vm6748, %v6732, %v6735
    %v6753 = vsel %vm6751, %v6741, 2102212464
    %v6754 = vsel %vm6750, %v6738, %v6753
    %v6755 = vsel %vm6749, %v6752, %v6754
    %v6756 = vsel %vm6748, %v6735, %v6738
    %v6757 = vsel %vm6751, %v6744, 920167782
    %v6758 = vsel %vm6750, %v6741, %v6757
    %v6759 = vsel %vm6749, %v6756, %v6758
    %v6760 = vsel %vm6748, %v6738, %v6741
    %v6761 = vsel %vm6751, %v6747, 1326507024
    %v6762 = vsel %vm6750, %v6744, %v6761
    %v6763 = vsel %vm6749, %v6760, %v6762
    %v6764 = vshll.u32 %v6724, 8
    %v6765 = vmul.u32.u64.compose %v6764, %v6763
    %v6766 = vextract.low.u32 %v6765
    %v6767 = vextract.high.u32 %v6765
    %v6768 = vmul.u32.u64.compose %v6764, %v6759
    %v6769 = vextract.low.u32 %v6768
    %v6770 = vextract.high.u32 %v6768
    %v6771 = vmul.u32 %v6764, %v6755
    %v6772 = vadd.s32 %v6767, %v6769
    %vm6773 = vc.u32 %v6767, %v6769
    %v6774 = vadd.s32 %v6770, 1
    %v6775 = vsel %vm6773, %v6774, %v6770
    %v6776 = vadd.s32 %v6771, %v6775
    %v6777 = vadd.s32 %v6776, 536870912
    %v6778 = vshrl.u32 %v6777, 30
    %v6779 = vshll.u32 %v6778, 30
    %v6780 = vsub.s32 %v6776, %v6779
    %vm6781 = vcmp.lt.s32.totalorder %v6780, 0
    %v6782 = vsub.s32 0, %v6780
    %v6783 = vsel %vm6781, %v6782, %v6780
    %v6784 = vclz %v6783
    %v6785 = vsub.s32 %v6784, 2
    %vm6786 = vcmp.gt.s32.totalorder 0, %v6785
    %v6787 = vsel %vm6786, 0, %v6785
    %v6788 = vsub.s32 32, %v6787
    %v6789 = vshll.u32 %v6780, %v6787
    %v6790 = vshrl.u32 %v6772, %v6788
    %v6791 = vor.u32 %v6789, %v6790
    %v6792 = vsub.s32 4294967266, %v6787
    %v6793 = vadd.s32 %v6792, 127
    %v6794 = vshll.u32 %v6793, 23
    %v6795 = vor.u32 4788187, %v6794
    %v6796 = vand.u32 2147483647, %v6795
    %v6798 = vcvt.s32.f32 %v6791
    %v6799 = vmul.f32 %v6798, %v6796
    %v6800 = vxor.u32 %v6799, 2147483648
    %v6801 = vsel %vm6718, %v6800, %v6799
    %v6802 = vsub.s32 4, %v6778
    %v6803 = vsel %vm6718, %v6802, %v6778
    %v6804 = vsel %vm6717, %v4830, %v6801
    %v6805 = vsel %vm6717, 0, %v6803
    %v6806 = vcosq.f32.pop %v6804
    %v6807 = vsinq.f32.pop %v6804
    %vm6808 = vweird.f32 %v4830
    %v6809 = vadd.s32 %v6805, 3
    %v6810 = vand.u32 %v6809, 3
    %vm6811 = vcmp.lt.s32.totalorder %v6810, 2
    %vm6812 = vcmp.eq.s32.totalorder %v6810, 0
    %v6813 = vxor.u32 %v6807, 2147483648
    %v6814 = vsel %vm6812, %v6806, %v6813
    %vm6815 = vcmp.eq.s32.totalorder %v6810, 2
    %v6816 = vxor.u32 %v6806, 2147483648
    %v6817 = vsel %vm6815, %v6816, %v6807
    %v6818 = vsel %vm6811, %v6814, %v6817
    %v6819 = vsel %vm6808, nan, %v6818
    %v6820 = vand.u32 2147483647, %v4831
    %vm6821 = vcmp.le.f32.partialorder %v6820, 0.7853982
    %vm6822 = vcmp.lt.s32.totalorder %v4831, 0
    %v6823 = vand.u32 %v4831, 2139095040
    %v6824 = vshrl.u32 %v6823, 23
    %v6825 = vsub.s32 %v6824, 127
    %v6826 = vand.u32 2147483647, %v4831
    %v6827 = vand.u32 %v6826, 8388607
    %v6828 = vor.u32 %v6827, 8388608
    %v6829 = vsub.s32 0, %v6828
    %v6830 = vadd.s32 %v6825, 1
    %vm6831 = vcmp.gt.s32.totalorder %v6830, 0
    %v6832 = vsel %vm6831, %v6830, 0
    %v6833 = vshrl.u32 %v6832, 5
    %v6834 = vand.u32 %v6832, 31
    %v6835 = vsub.s32 32, %v6834
    %v6836 = vshrl.u32 683565275, %v6835
    %v6837 = vshll.u32 683565275, %v6834
    %v6838 = vshrl.u32 2475754826, %v6835
    %v6839 = vor.u32 %v6837, %v6838
    %v6840 = vshll.u32 2475754826, %v6834
    %v6841 = vshrl.u32 2131351028, %v6835
    %v6842 = vor.u32 %v6840, %v6841
    %v6843 = vshll.u32 2131351028, %v6834
    %v6844 = vshrl.u32 2102212464, %v6835
    %v6845 = vor.u32 %v6843, %v6844
    %v6846 = vshll.u32 2102212464, %v6834
    %v6847 = vshrl.u32 920167782, %v6835
    %v6848 = vor.u32 %v6846, %v6847
    %v6849 = vshll.u32 920167782, %v6834
    %v6850 = vshrl.u32 1326507024, %v6835
    %v6851 = vor.u32 %v6849, %v6850
    %vm6852 = vcmp.lt.s32.totalorder %v6833, 1
    %vm6853 = vcmp.lt.s32.totalorder %v6833, 2
    %vm6854 = vcmp.lt.s32.totalorder %v6833, 3
    %vm6855 = vcmp.lt.s32.totalorder %v6833, 4
    %v6856 = vsel %vm6852, %v6836, %v6839
    %v6857 = vsel %vm6855, %v6845, 2102212464
    %v6858 = vsel %vm6854, %v6842, %v6857
    %v6859 = vsel %vm6853, %v6856, %v6858
    %v6860 = vsel %vm6852, %v6839, %v6842
    %v6861 = vsel %vm6855, %v6848, 920167782
    %v6862 = vsel %vm6854, %v6845, %v6861
    %v6863 = vsel %vm6853, %v6860, %v6862
    %v6864 = vsel %vm6852, %v6842, %v6845
    %v6865 = vsel %vm6855, %v6851, 1326507024
    %v6866 = vsel %vm6854, %v6848, %v6865
    %v6867 = vsel %vm6853, %v6864, %v6866
    %v6868 = vshll.u32 %v6828, 8
    %v6869 = vmul.u32.u64.compose %v6868, %v6867
    %v6870 = vextract.low.u32 %v6869
    %v6871 = vextract.high.u32 %v6869
    %v6872 = vmul.u32.u64.compose %v6868, %v6863
    %v6873 = vextract.low.u32 %v6872
    %v6874 = vextract.high.u32 %v6872
    %v6875 = vmul.u32 %v6868, %v6859
    %v6876 = vadd.s32 %v6871, %v6873
    %vm6877 = vc.u32 %v6871, %v6873
    %v6878 = vadd.s32 %v6874, 1
    %v6879 = vsel %vm6877, %v6878, %v6874
    %v6880 = vadd.s32 %v6875, %v6879
    %v6881 = vadd.s32 %v6880, 536870912
    %v6882 = vshrl.u32 %v6881, 30
    %v6883 = vshll.u32 %v6882, 30
    %v6884 = vsub.s32 %v6880, %v6883
    %vm6885 = vcmp.lt.s32.totalorder %v6884, 0
    %v6886 = vsub.s32 0, %v6884
    %v6887 = vsel %vm6885, %v6886, %v6884
    %v6888 = vclz %v6887
    %v6889 = vsub.s32 %v6888, 2
    %vm6890 = vcmp.gt.s32.totalorder 0, %v6889
    %v6891 = vsel %vm6890, 0, %v6889
    %v6892 = vsub.s32 32, %v6891
    %v6893 = vshll.u32 %v6884, %v6891
    %v6894 = vshrl.u32 %v6876, %v6892
    %v6895 = vor.u32 %v6893, %v6894
    %v6896 = vsub.s32 4294967266, %v6891
    %v6897 = vadd.s32 %v6896, 127
    %v6898 = vshll.u32 %v6897, 23
    %v6899 = vor.u32 4788187, %v6898
    %v6900 = vand.u32 2147483647, %v6899
    %v6902 = vcvt.s32.f32 %v6895
    %v6903 = vmul.f32 %v6902, %v6900
    %v6904 = vxor.u32 %v6903, 2147483648
    %v6905 = vsel %vm6822, %v6904, %v6903
    %v6906 = vsub.s32 4, %v6882
    %v6907 = vsel %vm6822, %v6906, %v6882
    %v6908 = vsel %vm6821, %v4831, %v6905
    %v6909 = vsel %vm6821, 0, %v6907
    %v6910 = vcosq.f32.pop %v6908
    %v6911 = vsinq.f32.pop %v6908
    %vm6912 = vweird.f32 %v4831
    %v6913 = vadd.s32 %v6909, 3
    %v6914 = vand.u32 %v6913, 3
    %vm6915 = vcmp.lt.s32.totalorder %v6914, 2
    %vm6916 = vcmp.eq.s32.totalorder %v6914, 0
    %v6917 = vxor.u32 %v6911, 2147483648
    %v6918 = vsel %vm6916, %v6910, %v6917
    %vm6919 = vcmp.eq.s32.totalorder %v6914, 2
    %v6920 = vxor.u32 %v6910, 2147483648
    %v6921 = vsel %vm6919, %v6920, %v6911
    %v6922 = vsel %vm6915, %v6918, %v6921
    %v6923 = vsel %vm6912, nan, %v6922
    %v6924 = vand.u32 2147483647, %v4832
    %vm6925 = vcmp.le.f32.partialorder %v6924, 0.7853982
    %vm6926 = vcmp.lt.s32.totalorder %v4832, 0
    %v6927 = vand.u32 %v4832, 2139095040
    %v6928 = vshrl.u32 %v6927, 23
    %v6929 = vsub.s32 %v6928, 127
    %v6930 = vand.u32 2147483647, %v4832
    %v6931 = vand.u32 %v6930, 8388607
    %v6932 = vor.u32 %v6931, 8388608
    %v6933 = vsub.s32 0, %v6932
    %v6934 = vadd.s32 %v6929, 1
    %vm6935 = vcmp.gt.s32.totalorder %v6934, 0
    %v6936 = vsel %vm6935, %v6934, 0
    %v6937 = vshrl.u32 %v6936, 5
    %v6938 = vand.u32 %v6936, 31
    %v6939 = vsub.s32 32, %v6938
    %v6940 = vshrl.u32 683565275, %v6939
    %v6941 = vshll.u32 683565275, %v6938
    %v6942 = vshrl.u32 2475754826, %v6939
    %v6943 = vor.u32 %v6941, %v6942
    %v6944 = vshll.u32 2475754826, %v6938
    %v6945 = vshrl.u32 2131351028, %v6939
    %v6946 = vor.u32 %v6944, %v6945
    %v6947 = vshll.u32 2131351028, %v6938
    %v6948 = vshrl.u32 2102212464, %v6939
    %v6949 = vor.u32 %v6947, %v6948
    %v6950 = vshll.u32 2102212464, %v6938
    %v6951 = vshrl.u32 920167782, %v6939
    %v6952 = vor.u32 %v6950, %v6951
    %v6953 = vshll.u32 920167782, %v6938
    %v6954 = vshrl.u32 1326507024, %v6939
    %v6955 = vor.u32 %v6953, %v6954
    %vm6956 = vcmp.lt.s32.totalorder %v6937, 1
    %vm6957 = vcmp.lt.s32.totalorder %v6937, 2
    %vm6958 = vcmp.lt.s32.totalorder %v6937, 3
    %vm6959 = vcmp.lt.s32.totalorder %v6937, 4
    %v6960 = vsel %vm6956, %v6940, %v6943
    %v6961 = vsel %vm6959, %v6949, 2102212464
    %v6962 = vsel %vm6958, %v6946, %v6961
    %v6963 = vsel %vm6957, %v6960, %v6962
    %v6964 = vsel %vm6956, %v6943, %v6946
    %v6965 = vsel %vm6959, %v6952, 920167782
    %v6966 = vsel %vm6958, %v6949, %v6965
    %v6967 = vsel %vm6957, %v6964, %v6966
    %v6968 = vsel %vm6956, %v6946, %v6949
    %v6969 = vsel %vm6959, %v6955, 1326507024
    %v6970 = vsel %vm6958, %v6952, %v6969
    %v6971 = vsel %vm6957, %v6968, %v6970
    %v6972 = vshll.u32 %v6932, 8
    %v6973 = vmul.u32.u64.compose %v6972, %v6971
    %v6974 = vextract.low.u32 %v6973
    %v6975 = vextract.high.u32 %v6973
    %v6976 = vmul.u32.u64.compose %v6972, %v6967
    %v6977 = vextract.low.u32 %v6976
    %v6978 = vextract.high.u32 %v6976
    %v6979 = vmul.u32 %v6972, %v6963
    %v6980 = vadd.s32 %v6975, %v6977
    %vm6981 = vc.u32 %v6975, %v6977
    %v6982 = vadd.s32 %v6978, 1
    %v6983 = vsel %vm6981, %v6982, %v6978
    %v6984 = vadd.s32 %v6979, %v6983
    %v6985 = vadd.s32 %v6984, 536870912
    %v6986 = vshrl.u32 %v6985, 30
    %v6987 = vshll.u32 %v6986, 30
    %v6988 = vsub.s32 %v6984, %v6987
    %vm6989 = vcmp.lt.s32.totalorder %v6988, 0
    %v6990 = vsub.s32 0, %v6988
    %v6991 = vsel %vm6989, %v6990, %v6988
    %v6992 = vclz %v6991
    %v6993 = vsub.s32 %v6992, 2
    %vm6994 = vcmp.gt.s32.totalorder 0, %v6993
    %v6995 = vsel %vm6994, 0, %v6993
    %v6996 = vsub.s32 32, %v6995
    %v6997 = vshll.u32 %v6988, %v6995
    %v6998 = vshrl.u32 %v6980, %v6996
    %v6999 = vor.u32 %v6997, %v6998
    %v7000 = vsub.s32 4294967266, %v6995
    %v7001 = vadd.s32 %v7000, 127
    %v7002 = vshll.u32 %v7001, 23
    %v7003 = vor.u32 4788187, %v7002
    %v7004 = vand.u32 2147483647, %v7003
    %v7006 = vcvt.s32.f32 %v6999
    %v7007 = vmul.f32 %v7006, %v7004
    %v7008 = vxor.u32 %v7007, 2147483648
    %v7009 = vsel %vm6926, %v7008, %v7007
    %v7010 = vsub.s32 4, %v6986
    %v7011 = vsel %vm6926, %v7010, %v6986
    %v7012 = vsel %vm6925, %v4832, %v7009
    %v7013 = vsel %vm6925, 0, %v7011
    %v7014 = vcosq.f32.pop %v7012
    %v7015 = vsinq.f32.pop %v7012
    %vm7016 = vweird.f32 %v4832
    %v7017 = vadd.s32 %v7013, 3
    %v7018 = vand.u32 %v7017, 3
    %vm7019 = vcmp.lt.s32.totalorder %v7018, 2
    %vm7020 = vcmp.eq.s32.totalorder %v7018, 0
    %v7021 = vxor.u32 %v7015, 2147483648
    %v7022 = vsel %vm7020, %v7014, %v7021
    %vm7023 = vcmp.eq.s32.totalorder %v7018, 2
    %v7024 = vxor.u32 %v7014, 2147483648
    %v7025 = vsel %vm7023, %v7024, %v7015
    %v7026 = vsel %vm7019, %v7022, %v7025
    %v7027 = vsel %vm7016, nan, %v7026
    %v7028 = vand.u32 2147483647, %v4833
    %vm7029 = vcmp.le.f32.partialorder %v7028, 0.7853982
    %vm7030 = vcmp.lt.s32.totalorder %v4833, 0
    %v7031 = vand.u32 %v4833, 2139095040
    %v7032 = vshrl.u32 %v7031, 23
    %v7033 = vsub.s32 %v7032, 127
    %v7034 = vand.u32 2147483647, %v4833
    %v7035 = vand.u32 %v7034, 8388607
    %v7036 = vor.u32 %v7035, 8388608
    %v7037 = vsub.s32 0, %v7036
    %v7038 = vadd.s32 %v7033, 1
    %vm7039 = vcmp.gt.s32.totalorder %v7038, 0
    %v7040 = vsel %vm7039, %v7038, 0
    %v7041 = vshrl.u32 %v7040, 5
    %v7042 = vand.u32 %v7040, 31
    %v7043 = vsub.s32 32, %v7042
    %v7044 = vshrl.u32 683565275, %v7043
    %v7045 = vshll.u32 683565275, %v7042
    %v7046 = vshrl.u32 2475754826, %v7043
    %v7047 = vor.u32 %v7045, %v7046
    %v7048 = vshll.u32 2475754826, %v7042
    %v7049 = vshrl.u32 2131351028, %v7043
    %v7050 = vor.u32 %v7048, %v7049
    %v7051 = vshll.u32 2131351028, %v7042
    %v7052 = vshrl.u32 2102212464, %v7043
    %v7053 = vor.u32 %v7051, %v7052
    %v7054 = vshll.u32 2102212464, %v7042
    %v7055 = vshrl.u32 920167782, %v7043
    %v7056 = vor.u32 %v7054, %v7055
    %v7057 = vshll.u32 920167782, %v7042
    %v7058 = vshrl.u32 1326507024, %v7043
    %v7059 = vor.u32 %v7057, %v7058
    %vm7060 = vcmp.lt.s32.totalorder %v7041, 1
    %vm7061 = vcmp.lt.s32.totalorder %v7041, 2
    %vm7062 = vcmp.lt.s32.totalorder %v7041, 3
    %vm7063 = vcmp.lt.s32.totalorder %v7041, 4
    %v7064 = vsel %vm7060, %v7044, %v7047
    %v7065 = vsel %vm7063, %v7053, 2102212464
    %v7066 = vsel %vm7062, %v7050, %v7065
    %v7067 = vsel %vm7061, %v7064, %v7066
    %v7068 = vsel %vm7060, %v7047, %v7050
    %v7069 = vsel %vm7063, %v7056, 920167782
    %v7070 = vsel %vm7062, %v7053, %v7069
    %v7071 = vsel %vm7061, %v7068, %v7070
    %v7072 = vsel %vm7060, %v7050, %v7053
    %v7073 = vsel %vm7063, %v7059, 1326507024
    %v7074 = vsel %vm7062, %v7056, %v7073
    %v7075 = vsel %vm7061, %v7072, %v7074
    %v7076 = vshll.u32 %v7036, 8
    %v7077 = vmul.u32.u64.compose %v7076, %v7075
    %v7078 = vextract.low.u32 %v7077
    %v7079 = vextract.high.u32 %v7077
    %v7080 = vmul.u32.u64.compose %v7076, %v7071
    %v7081 = vextract.low.u32 %v7080
    %v7082 = vextract.high.u32 %v7080
    %v7083 = vmul.u32 %v7076, %v7067
    %v7084 = vadd.s32 %v7079, %v7081
    %vm7085 = vc.u32 %v7079, %v7081
    %v7086 = vadd.s32 %v7082, 1
    %v7087 = vsel %vm7085, %v7086, %v7082
    %v7088 = vadd.s32 %v7083, %v7087
    %v7089 = vadd.s32 %v7088, 536870912
    %v7090 = vshrl.u32 %v7089, 30
    %v7091 = vshll.u32 %v7090, 30
    %v7092 = vsub.s32 %v7088, %v7091
    %vm7093 = vcmp.lt.s32.totalorder %v7092, 0
    %v7094 = vsub.s32 0, %v7092
    %v7095 = vsel %vm7093, %v7094, %v7092
    %v7096 = vclz %v7095
    %v7097 = vsub.s32 %v7096, 2
    %vm7098 = vcmp.gt.s32.totalorder 0, %v7097
    %v7099 = vsel %vm7098, 0, %v7097
    %v7100 = vsub.s32 32, %v7099
    %v7101 = vshll.u32 %v7092, %v7099
    %v7102 = vshrl.u32 %v7084, %v7100
    %v7103 = vor.u32 %v7101, %v7102
    %v7104 = vsub.s32 4294967266, %v7099
    %v7105 = vadd.s32 %v7104, 127
    %v7106 = vshll.u32 %v7105, 23
    %v7107 = vor.u32 4788187, %v7106
    %v7108 = vand.u32 2147483647, %v7107
    %v7110 = vcvt.s32.f32 %v7103
    %v7111 = vmul.f32 %v7110, %v7108
    %v7112 = vxor.u32 %v7111, 2147483648
    %v7113 = vsel %vm7030, %v7112, %v7111
    %v7114 = vsub.s32 4, %v7090
    %v7115 = vsel %vm7030, %v7114, %v7090
    %v7116 = vsel %vm7029, %v4833, %v7113
    %v7117 = vsel %vm7029, 0, %v7115
    %v7118 = vcosq.f32.pop %v7116
    %v7119 = vsinq.f32.pop %v7116
    %vm7120 = vweird.f32 %v4833
    %v7121 = vadd.s32 %v7117, 3
    %v7122 = vand.u32 %v7121, 3
    %vm7123 = vcmp.lt.s32.totalorder %v7122, 2
    %vm7124 = vcmp.eq.s32.totalorder %v7122, 0
    %v7125 = vxor.u32 %v7119, 2147483648
    %v7126 = vsel %vm7124, %v7118, %v7125
    %vm7127 = vcmp.eq.s32.totalorder %v7122, 2
    %v7128 = vxor.u32 %v7118, 2147483648
    %v7129 = vsel %vm7127, %v7128, %v7119
    %v7130 = vsel %vm7123, %v7126, %v7129
    %v7131 = vsel %vm7120, nan, %v7130
    %v7132 = vand.u32 2147483647, %v4834
    %vm7133 = vcmp.le.f32.partialorder %v7132, 0.7853982
    %vm7134 = vcmp.lt.s32.totalorder %v4834, 0
    %v7135 = vand.u32 %v4834, 2139095040
    %v7136 = vshrl.u32 %v7135, 23
    %v7137 = vsub.s32 %v7136, 127
    %v7138 = vand.u32 2147483647, %v4834
    %v7139 = vand.u32 %v7138, 8388607
    %v7140 = vor.u32 %v7139, 8388608
    %v7141 = vsub.s32 0, %v7140
    %v7142 = vadd.s32 %v7137, 1
    %vm7143 = vcmp.gt.s32.totalorder %v7142, 0
    %v7144 = vsel %vm7143, %v7142, 0
    %v7145 = vshrl.u32 %v7144, 5
    %v7146 = vand.u32 %v7144, 31
    %v7147 = vsub.s32 32, %v7146
    %v7148 = vshrl.u32 683565275, %v7147
    %v7149 = vshll.u32 683565275, %v7146
    %v7150 = vshrl.u32 2475754826, %v7147
    %v7151 = vor.u32 %v7149, %v7150
    %v7152 = vshll.u32 2475754826, %v7146
    %v7153 = vshrl.u32 2131351028, %v7147
    %v7154 = vor.u32 %v7152, %v7153
    %v7155 = vshll.u32 2131351028, %v7146
    %v7156 = vshrl.u32 2102212464, %v7147
    %v7157 = vor.u32 %v7155, %v7156
    %v7158 = vshll.u32 2102212464, %v7146
    %v7159 = vshrl.u32 920167782, %v7147
    %v7160 = vor.u32 %v7158, %v7159
    %v7161 = vshll.u32 920167782, %v7146
    %v7162 = vshrl.u32 1326507024, %v7147
    %v7163 = vor.u32 %v7161, %v7162
    %vm7164 = vcmp.lt.s32.totalorder %v7145, 1
    %vm7165 = vcmp.lt.s32.totalorder %v7145, 2
    %vm7166 = vcmp.lt.s32.totalorder %v7145, 3
    %vm7167 = vcmp.lt.s32.totalorder %v7145, 4
    %v7168 = vsel %vm7164, %v7148, %v7151
    %v7169 = vsel %vm7167, %v7157, 2102212464
    %v7170 = vsel %vm7166, %v7154, %v7169
    %v7171 = vsel %vm7165, %v7168, %v7170
    %v7172 = vsel %vm7164, %v7151, %v7154
    %v7173 = vsel %vm7167, %v7160, 920167782
    %v7174 = vsel %vm7166, %v7157, %v7173
    %v7175 = vsel %vm7165, %v7172, %v7174
    %v7176 = vsel %vm7164, %v7154, %v7157
    %v7177 = vsel %vm7167, %v7163, 1326507024
    %v7178 = vsel %vm7166, %v7160, %v7177
    %v7179 = vsel %vm7165, %v7176, %v7178
    %v7180 = vshll.u32 %v7140, 8
    %v7181 = vmul.u32.u64.compose %v7180, %v7179
    %v7182 = vextract.low.u32 %v7181
    %v7183 = vextract.high.u32 %v7181
    %v7184 = vmul.u32.u64.compose %v7180, %v7175
    %v7185 = vextract.low.u32 %v7184
    %v7186 = vextract.high.u32 %v7184
    %v7187 = vmul.u32 %v7180, %v7171
    %v7188 = vadd.s32 %v7183, %v7185
    %vm7189 = vc.u32 %v7183, %v7185
    %v7190 = vadd.s32 %v7186, 1
    %v7191 = vsel %vm7189, %v7190, %v7186
    %v7192 = vadd.s32 %v7187, %v7191
    %v7193 = vadd.s32 %v7192, 536870912
    %v7194 = vshrl.u32 %v7193, 30
    %v7195 = vshll.u32 %v7194, 30
    %v7196 = vsub.s32 %v7192, %v7195
    %vm7197 = vcmp.lt.s32.totalorder %v7196, 0
    %v7198 = vsub.s32 0, %v7196
    %v7199 = vsel %vm7197, %v7198, %v7196
    %v7200 = vclz %v7199
    %v7201 = vsub.s32 %v7200, 2
    %vm7202 = vcmp.gt.s32.totalorder 0, %v7201
    %v7203 = vsel %vm7202, 0, %v7201
    %v7204 = vsub.s32 32, %v7203
    %v7205 = vshll.u32 %v7196, %v7203
    %v7206 = vshrl.u32 %v7188, %v7204
    %v7207 = vor.u32 %v7205, %v7206
    %v7208 = vsub.s32 4294967266, %v7203
    %v7209 = vadd.s32 %v7208, 127
    %v7210 = vshll.u32 %v7209, 23
    %v7211 = vor.u32 4788187, %v7210
    %v7212 = vand.u32 2147483647, %v7211
    %v7214 = vcvt.s32.f32 %v7207
    %v7215 = vmul.f32 %v7214, %v7212
    %v7216 = vxor.u32 %v7215, 2147483648
    %v7217 = vsel %vm7134, %v7216, %v7215
    %v7218 = vsub.s32 4, %v7194
    %v7219 = vsel %vm7134, %v7218, %v7194
    %v7220 = vsel %vm7133, %v4834, %v7217
    %v7221 = vsel %vm7133, 0, %v7219
    %v7222 = vcosq.f32.pop %v7220
    %v7223 = vsinq.f32.pop %v7220
    %vm7224 = vweird.f32 %v4834
    %v7225 = vadd.s32 %v7221, 3
    %v7226 = vand.u32 %v7225, 3
    %vm7227 = vcmp.lt.s32.totalorder %v7226, 2
    %vm7228 = vcmp.eq.s32.totalorder %v7226, 0
    %v7229 = vxor.u32 %v7223, 2147483648
    %v7230 = vsel %vm7228, %v7222, %v7229
    %vm7231 = vcmp.eq.s32.totalorder %v7226, 2
    %v7232 = vxor.u32 %v7222, 2147483648
    %v7233 = vsel %vm7231, %v7232, %v7223
    %v7234 = vsel %vm7227, %v7230, %v7233
    %v7235 = vsel %vm7224, nan, %v7234
    %v7236 = vand.u32 2147483647, %v4835
    %vm7237 = vcmp.le.f32.partialorder %v7236, 0.7853982
    %vm7238 = vcmp.lt.s32.totalorder %v4835, 0
    %v7239 = vand.u32 %v4835, 2139095040
    %v7240 = vshrl.u32 %v7239, 23
    %v7241 = vsub.s32 %v7240, 127
    %v7242 = vand.u32 2147483647, %v4835
    %v7243 = vand.u32 %v7242, 8388607
    %v7244 = vor.u32 %v7243, 8388608
    %v7245 = vsub.s32 0, %v7244
    %v7246 = vadd.s32 %v7241, 1
    %vm7247 = vcmp.gt.s32.totalorder %v7246, 0
    %v7248 = vsel %vm7247, %v7246, 0
    %v7249 = vshrl.u32 %v7248, 5
    %v7250 = vand.u32 %v7248, 31
    %v7251 = vsub.s32 32, %v7250
    %v7252 = vshrl.u32 683565275, %v7251
    %v7253 = vshll.u32 683565275, %v7250
    %v7254 = vshrl.u32 2475754826, %v7251
    %v7255 = vor.u32 %v7253, %v7254
    %v7256 = vshll.u32 2475754826, %v7250
    %v7257 = vshrl.u32 2131351028, %v7251
    %v7258 = vor.u32 %v7256, %v7257
    %v7259 = vshll.u32 2131351028, %v7250
    %v7260 = vshrl.u32 2102212464, %v7251
    %v7261 = vor.u32 %v7259, %v7260
    %v7262 = vshll.u32 2102212464, %v7250
    %v7263 = vshrl.u32 920167782, %v7251
    %v7264 = vor.u32 %v7262, %v7263
    %v7265 = vshll.u32 920167782, %v7250
    %v7266 = vshrl.u32 1326507024, %v7251
    %v7267 = vor.u32 %v7265, %v7266
    %vm7268 = vcmp.lt.s32.totalorder %v7249, 1
    %vm7269 = vcmp.lt.s32.totalorder %v7249, 2
    %vm7270 = vcmp.lt.s32.totalorder %v7249, 3
    %vm7271 = vcmp.lt.s32.totalorder %v7249, 4
    %v7272 = vsel %vm7268, %v7252, %v7255
    %v7273 = vsel %vm7271, %v7261, 2102212464
    %v7274 = vsel %vm7270, %v7258, %v7273
    %v7275 = vsel %vm7269, %v7272, %v7274
    %v7276 = vsel %vm7268, %v7255, %v7258
    %v7277 = vsel %vm7271, %v7264, 920167782
    %v7278 = vsel %vm7270, %v7261, %v7277
    %v7279 = vsel %vm7269, %v7276, %v7278
    %v7280 = vsel %vm7268, %v7258, %v7261
    %v7281 = vsel %vm7271, %v7267, 1326507024
    %v7282 = vsel %vm7270, %v7264, %v7281
    %v7283 = vsel %vm7269, %v7280, %v7282
    %v7284 = vshll.u32 %v7244, 8
    %v7285 = vmul.u32.u64.compose %v7284, %v7283
    %v7286 = vextract.low.u32 %v7285
    %v7287 = vextract.high.u32 %v7285
    %v7288 = vmul.u32.u64.compose %v7284, %v7279
    %v7289 = vextract.low.u32 %v7288
    %v7290 = vextract.high.u32 %v7288
    %v7291 = vmul.u32 %v7284, %v7275
    %v7292 = vadd.s32 %v7287, %v7289
    %vm7293 = vc.u32 %v7287, %v7289
    %v7294 = vadd.s32 %v7290, 1
    %v7295 = vsel %vm7293, %v7294, %v7290
    %v7296 = vadd.s32 %v7291, %v7295
    %v7297 = vadd.s32 %v7296, 536870912
    %v7298 = vshrl.u32 %v7297, 30
    %v7299 = vshll.u32 %v7298, 30
    %v7300 = vsub.s32 %v7296, %v7299
    %vm7301 = vcmp.lt.s32.totalorder %v7300, 0
    %v7302 = vsub.s32 0, %v7300
    %v7303 = vsel %vm7301, %v7302, %v7300
    %v7304 = vclz %v7303
    %v7305 = vsub.s32 %v7304, 2
    %vm7306 = vcmp.gt.s32.totalorder 0, %v7305
    %v7307 = vsel %vm7306, 0, %v7305
    %v7308 = vsub.s32 32, %v7307
    %v7309 = vshll.u32 %v7300, %v7307
    %v7310 = vshrl.u32 %v7292, %v7308
    %v7311 = vor.u32 %v7309, %v7310
    %v7312 = vsub.s32 4294967266, %v7307
    %v7313 = vadd.s32 %v7312, 127
    %v7314 = vshll.u32 %v7313, 23
    %v7315 = vor.u32 4788187, %v7314
    %v7316 = vand.u32 2147483647, %v7315
    %v7318 = vcvt.s32.f32 %v7311
    %v7319 = vmul.f32 %v7318, %v7316
    %v7320 = vxor.u32 %v7319, 2147483648
    %v7321 = vsel %vm7238, %v7320, %v7319
    %v7322 = vsub.s32 4, %v7298
    %v7323 = vsel %vm7238, %v7322, %v7298
    %v7324 = vsel %vm7237, %v4835, %v7321
    %v7325 = vsel %vm7237, 0, %v7323
    %v7326 = vcosq.f32.pop %v7324
    %v7327 = vsinq.f32.pop %v7324
    %vm7328 = vweird.f32 %v4835
    %v7329 = vadd.s32 %v7325, 3
    %v7330 = vand.u32 %v7329, 3
    %vm7331 = vcmp.lt.s32.totalorder %v7330, 2
    %vm7332 = vcmp.eq.s32.totalorder %v7330, 0
    %v7333 = vxor.u32 %v7327, 2147483648
    %v7334 = vsel %vm7332, %v7326, %v7333
    %vm7335 = vcmp.eq.s32.totalorder %v7330, 2
    %v7336 = vxor.u32 %v7326, 2147483648
    %v7337 = vsel %vm7335, %v7336, %v7327
    %v7338 = vsel %vm7331, %v7334, %v7337
    %v7339 = vsel %vm7328, nan, %v7338
    %v7340 = vand.u32 2147483647, %v4836
    %vm7341 = vcmp.le.f32.partialorder %v7340, 0.7853982
    %vm7342 = vcmp.lt.s32.totalorder %v4836, 0
    %v7343 = vand.u32 %v4836, 2139095040
    %v7344 = vshrl.u32 %v7343, 23
    %v7345 = vsub.s32 %v7344, 127
    %v7346 = vand.u32 2147483647, %v4836
    %v7347 = vand.u32 %v7346, 8388607
    %v7348 = vor.u32 %v7347, 8388608
    %v7349 = vsub.s32 0, %v7348
    %v7350 = vadd.s32 %v7345, 1
    %vm7351 = vcmp.gt.s32.totalorder %v7350, 0
    %v7352 = vsel %vm7351, %v7350, 0
    %v7353 = vshrl.u32 %v7352, 5
    %v7354 = vand.u32 %v7352, 31
    %v7355 = vsub.s32 32, %v7354
    %v7356 = vshrl.u32 683565275, %v7355
    %v7357 = vshll.u32 683565275, %v7354
    %v7358 = vshrl.u32 2475754826, %v7355
    %v7359 = vor.u32 %v7357, %v7358
    %v7360 = vshll.u32 2475754826, %v7354
    %v7361 = vshrl.u32 2131351028, %v7355
    %v7362 = vor.u32 %v7360, %v7361
    %v7363 = vshll.u32 2131351028, %v7354
    %v7364 = vshrl.u32 2102212464, %v7355
    %v7365 = vor.u32 %v7363, %v7364
    %v7366 = vshll.u32 2102212464, %v7354
    %v7367 = vshrl.u32 920167782, %v7355
    %v7368 = vor.u32 %v7366, %v7367
    %v7369 = vshll.u32 920167782, %v7354
    %v7370 = vshrl.u32 1326507024, %v7355
    %v7371 = vor.u32 %v7369, %v7370
    %vm7372 = vcmp.lt.s32.totalorder %v7353, 1
    %vm7373 = vcmp.lt.s32.totalorder %v7353, 2
    %vm7374 = vcmp.lt.s32.totalorder %v7353, 3
    %vm7375 = vcmp.lt.s32.totalorder %v7353, 4
    %v7376 = vsel %vm7372, %v7356, %v7359
    %v7377 = vsel %vm7375, %v7365, 2102212464
    %v7378 = vsel %vm7374, %v7362, %v7377
    %v7379 = vsel %vm7373, %v7376, %v7378
    %v7380 = vsel %vm7372, %v7359, %v7362
    %v7381 = vsel %vm7375, %v7368, 920167782
    %v7382 = vsel %vm7374, %v7365, %v7381
    %v7383 = vsel %vm7373, %v7380, %v7382
    %v7384 = vsel %vm7372, %v7362, %v7365
    %v7385 = vsel %vm7375, %v7371, 1326507024
    %v7386 = vsel %vm7374, %v7368, %v7385
    %v7387 = vsel %vm7373, %v7384, %v7386
    %v7388 = vshll.u32 %v7348, 8
    %v7389 = vmul.u32.u64.compose %v7388, %v7387
    %v7390 = vextract.low.u32 %v7389
    %v7391 = vextract.high.u32 %v7389
    %v7392 = vmul.u32.u64.compose %v7388, %v7383
    %v7393 = vextract.low.u32 %v7392
    %v7394 = vextract.high.u32 %v7392
    %v7395 = vmul.u32 %v7388, %v7379
    %v7396 = vadd.s32 %v7391, %v7393
    %vm7397 = vc.u32 %v7391, %v7393
    %v7398 = vadd.s32 %v7394, 1
    %v7399 = vsel %vm7397, %v7398, %v7394
    %v7400 = vadd.s32 %v7395, %v7399
    %v7401 = vadd.s32 %v7400, 536870912
    %v7402 = vshrl.u32 %v7401, 30
    %v7403 = vshll.u32 %v7402, 30
    %v7404 = vsub.s32 %v7400, %v7403
    %vm7405 = vcmp.lt.s32.totalorder %v7404, 0
    %v7406 = vsub.s32 0, %v7404
    %v7407 = vsel %vm7405, %v7406, %v7404
    %v7408 = vclz %v7407
    %v7409 = vsub.s32 %v7408, 2
    %vm7410 = vcmp.gt.s32.totalorder 0, %v7409
    %v7411 = vsel %vm7410, 0, %v7409
    %v7412 = vsub.s32 32, %v7411
    %v7413 = vshll.u32 %v7404, %v7411
    %v7414 = vshrl.u32 %v7396, %v7412
    %v7415 = vor.u32 %v7413, %v7414
    %v7416 = vsub.s32 4294967266, %v7411
    %v7417 = vadd.s32 %v7416, 127
    %v7418 = vshll.u32 %v7417, 23
    %v7419 = vor.u32 4788187, %v7418
    %v7420 = vand.u32 2147483647, %v7419
    %v7422 = vcvt.s32.f32 %v7415
    %v7423 = vmul.f32 %v7422, %v7420
    %v7424 = vxor.u32 %v7423, 2147483648
    %v7425 = vsel %vm7342, %v7424, %v7423
    %v7426 = vsub.s32 4, %v7402
    %v7427 = vsel %vm7342, %v7426, %v7402
    %v7428 = vsel %vm7341, %v4836, %v7425
    %v7429 = vsel %vm7341, 0, %v7427
    %v7430 = vcosq.f32.pop %v7428
    %v7431 = vsinq.f32.pop %v7428
    %vm7432 = vweird.f32 %v4836
    %v7433 = vadd.s32 %v7429, 3
    %v7434 = vand.u32 %v7433, 3
    %vm7435 = vcmp.lt.s32.totalorder %v7434, 2
    %vm7436 = vcmp.eq.s32.totalorder %v7434, 0
    %v7437 = vxor.u32 %v7431, 2147483648
    %v7438 = vsel %vm7436, %v7430, %v7437
    %vm7439 = vcmp.eq.s32.totalorder %v7434, 2
    %v7440 = vxor.u32 %v7430, 2147483648
    %v7441 = vsel %vm7439, %v7440, %v7431
    %v7442 = vsel %vm7435, %v7438, %v7441
    %v7443 = vsel %vm7432, nan, %v7442
    %v7444 = vand.u32 2147483647, %v4837
    %vm7445 = vcmp.le.f32.partialorder %v7444, 0.7853982
    %vm7446 = vcmp.lt.s32.totalorder %v4837, 0
    %v7447 = vand.u32 %v4837, 2139095040
    %v7448 = vshrl.u32 %v7447, 23
    %v7449 = vsub.s32 %v7448, 127
    %v7450 = vand.u32 2147483647, %v4837
    %v7451 = vand.u32 %v7450, 8388607
    %v7452 = vor.u32 %v7451, 8388608
    %v7453 = vsub.s32 0, %v7452
    %v7454 = vadd.s32 %v7449, 1
    %vm7455 = vcmp.gt.s32.totalorder %v7454, 0
    %v7456 = vsel %vm7455, %v7454, 0
    %v7457 = vshrl.u32 %v7456, 5
    %v7458 = vand.u32 %v7456, 31
    %v7459 = vsub.s32 32, %v7458
    %v7460 = vshrl.u32 683565275, %v7459
    %v7461 = vshll.u32 683565275, %v7458
    %v7462 = vshrl.u32 2475754826, %v7459
    %v7463 = vor.u32 %v7461, %v7462
    %v7464 = vshll.u32 2475754826, %v7458
    %v7465 = vshrl.u32 2131351028, %v7459
    %v7466 = vor.u32 %v7464, %v7465
    %v7467 = vshll.u32 2131351028, %v7458
    %v7468 = vshrl.u32 2102212464, %v7459
    %v7469 = vor.u32 %v7467, %v7468
    %v7470 = vshll.u32 2102212464, %v7458
    %v7471 = vshrl.u32 920167782, %v7459
    %v7472 = vor.u32 %v7470, %v7471
    %v7473 = vshll.u32 920167782, %v7458
    %v7474 = vshrl.u32 1326507024, %v7459
    %v7475 = vor.u32 %v7473, %v7474
    %vm7476 = vcmp.lt.s32.totalorder %v7457, 1
    %vm7477 = vcmp.lt.s32.totalorder %v7457, 2
    %vm7478 = vcmp.lt.s32.totalorder %v7457, 3
    %vm7479 = vcmp.lt.s32.totalorder %v7457, 4
    %v7480 = vsel %vm7476, %v7460, %v7463
    %v7481 = vsel %vm7479, %v7469, 2102212464
    %v7482 = vsel %vm7478, %v7466, %v7481
    %v7483 = vsel %vm7477, %v7480, %v7482
    %v7484 = vsel %vm7476, %v7463, %v7466
    %v7485 = vsel %vm7479, %v7472, 920167782
    %v7486 = vsel %vm7478, %v7469, %v7485
    %v7487 = vsel %vm7477, %v7484, %v7486
    %v7488 = vsel %vm7476, %v7466, %v7469
    %v7489 = vsel %vm7479, %v7475, 1326507024
    %v7490 = vsel %vm7478, %v7472, %v7489
    %v7491 = vsel %vm7477, %v7488, %v7490
    %v7492 = vshll.u32 %v7452, 8
    %v7493 = vmul.u32.u64.compose %v7492, %v7491
    %v7494 = vextract.low.u32 %v7493
    %v7495 = vextract.high.u32 %v7493
    %v7496 = vmul.u32.u64.compose %v7492, %v7487
    %v7497 = vextract.low.u32 %v7496
    %v7498 = vextract.high.u32 %v7496
    %v7499 = vmul.u32 %v7492, %v7483
    %v7500 = vadd.s32 %v7495, %v7497
    %vm7501 = vc.u32 %v7495, %v7497
    %v7502 = vadd.s32 %v7498, 1
    %v7503 = vsel %vm7501, %v7502, %v7498
    %v7504 = vadd.s32 %v7499, %v7503
    %v7505 = vadd.s32 %v7504, 536870912
    %v7506 = vshrl.u32 %v7505, 30
    %v7507 = vshll.u32 %v7506, 30
    %v7508 = vsub.s32 %v7504, %v7507
    %vm7509 = vcmp.lt.s32.totalorder %v7508, 0
    %v7510 = vsub.s32 0, %v7508
    %v7511 = vsel %vm7509, %v7510, %v7508
    %v7512 = vclz %v7511
    %v7513 = vsub.s32 %v7512, 2
    %vm7514 = vcmp.gt.s32.totalorder 0, %v7513
    %v7515 = vsel %vm7514, 0, %v7513
    %v7516 = vsub.s32 32, %v7515
    %v7517 = vshll.u32 %v7508, %v7515
    %v7518 = vshrl.u32 %v7500, %v7516
    %v7519 = vor.u32 %v7517, %v7518
    %v7520 = vsub.s32 4294967266, %v7515
    %v7521 = vadd.s32 %v7520, 127
    %v7522 = vshll.u32 %v7521, 23
    %v7523 = vor.u32 4788187, %v7522
    %v7524 = vand.u32 2147483647, %v7523
    %v7526 = vcvt.s32.f32 %v7519
    %v7527 = vmul.f32 %v7526, %v7524
    %v7528 = vxor.u32 %v7527, 2147483648
    %v7529 = vsel %vm7446, %v7528, %v7527
    %v7530 = vsub.s32 4, %v7506
    %v7531 = vsel %vm7446, %v7530, %v7506
    %v7532 = vsel %vm7445, %v4837, %v7529
    %v7533 = vsel %vm7445, 0, %v7531
    %v7534 = vcosq.f32.pop %v7532
    %v7535 = vsinq.f32.pop %v7532
    %vm7536 = vweird.f32 %v4837
    %v7537 = vadd.s32 %v7533, 3
    %v7538 = vand.u32 %v7537, 3
    %vm7539 = vcmp.lt.s32.totalorder %v7538, 2
    %vm7540 = vcmp.eq.s32.totalorder %v7538, 0
    %v7541 = vxor.u32 %v7535, 2147483648
    %v7542 = vsel %vm7540, %v7534, %v7541
    %vm7543 = vcmp.eq.s32.totalorder %v7538, 2
    %v7544 = vxor.u32 %v7534, 2147483648
    %v7545 = vsel %vm7543, %v7544, %v7535
    %v7546 = vsel %vm7539, %v7542, %v7545
    %v7547 = vsel %vm7536, nan, %v7546
    %v7548 = vand.u32 2147483647, %v4838
    %vm7549 = vcmp.le.f32.partialorder %v7548, 0.7853982
    %vm7550 = vcmp.lt.s32.totalorder %v4838, 0
    %v7551 = vand.u32 %v4838, 2139095040
    %v7552 = vshrl.u32 %v7551, 23
    %v7553 = vsub.s32 %v7552, 127
    %v7554 = vand.u32 2147483647, %v4838
    %v7555 = vand.u32 %v7554, 8388607
    %v7556 = vor.u32 %v7555, 8388608
    %v7557 = vsub.s32 0, %v7556
    %v7558 = vadd.s32 %v7553, 1
    %vm7559 = vcmp.gt.s32.totalorder %v7558, 0
    %v7560 = vsel %vm7559, %v7558, 0
    %v7561 = vshrl.u32 %v7560, 5
    %v7562 = vand.u32 %v7560, 31
    %v7563 = vsub.s32 32, %v7562
    %v7564 = vshrl.u32 683565275, %v7563
    %v7565 = vshll.u32 683565275, %v7562
    %v7566 = vshrl.u32 2475754826, %v7563
    %v7567 = vor.u32 %v7565, %v7566
    %v7568 = vshll.u32 2475754826, %v7562
    %v7569 = vshrl.u32 2131351028, %v7563
    %v7570 = vor.u32 %v7568, %v7569
    %v7571 = vshll.u32 2131351028, %v7562
    %v7572 = vshrl.u32 2102212464, %v7563
    %v7573 = vor.u32 %v7571, %v7572
    %v7574 = vshll.u32 2102212464, %v7562
    %v7575 = vshrl.u32 920167782, %v7563
    %v7576 = vor.u32 %v7574, %v7575
    %v7577 = vshll.u32 920167782, %v7562
    %v7578 = vshrl.u32 1326507024, %v7563
    %v7579 = vor.u32 %v7577, %v7578
    %vm7580 = vcmp.lt.s32.totalorder %v7561, 1
    %vm7581 = vcmp.lt.s32.totalorder %v7561, 2
    %vm7582 = vcmp.lt.s32.totalorder %v7561, 3
    %vm7583 = vcmp.lt.s32.totalorder %v7561, 4
    %v7584 = vsel %vm7580, %v7564, %v7567
    %v7585 = vsel %vm7583, %v7573, 2102212464
    %v7586 = vsel %vm7582, %v7570, %v7585
    %v7587 = vsel %vm7581, %v7584, %v7586
    %v7588 = vsel %vm7580, %v7567, %v7570
    %v7589 = vsel %vm7583, %v7576, 920167782
    %v7590 = vsel %vm7582, %v7573, %v7589
    %v7591 = vsel %vm7581, %v7588, %v7590
    %v7592 = vsel %vm7580, %v7570, %v7573
    %v7593 = vsel %vm7583, %v7579, 1326507024
    %v7594 = vsel %vm7582, %v7576, %v7593
    %v7595 = vsel %vm7581, %v7592, %v7594
    %v7596 = vshll.u32 %v7556, 8
    %v7597 = vmul.u32.u64.compose %v7596, %v7595
    %v7598 = vextract.low.u32 %v7597
    %v7599 = vextract.high.u32 %v7597
    %v7600 = vmul.u32.u64.compose %v7596, %v7591
    %v7601 = vextract.low.u32 %v7600
    %v7602 = vextract.high.u32 %v7600
    %v7603 = vmul.u32 %v7596, %v7587
    %v7604 = vadd.s32 %v7599, %v7601
    %vm7605 = vc.u32 %v7599, %v7601
    %v7606 = vadd.s32 %v7602, 1
    %v7607 = vsel %vm7605, %v7606, %v7602
    %v7608 = vadd.s32 %v7603, %v7607
    %v7609 = vadd.s32 %v7608, 536870912
    %v7610 = vshrl.u32 %v7609, 30
    %v7611 = vshll.u32 %v7610, 30
    %v7612 = vsub.s32 %v7608, %v7611
    %vm7613 = vcmp.lt.s32.totalorder %v7612, 0
    %v7614 = vsub.s32 0, %v7612
    %v7615 = vsel %vm7613, %v7614, %v7612
    %v7616 = vclz %v7615
    %v7617 = vsub.s32 %v7616, 2
    %vm7618 = vcmp.gt.s32.totalorder 0, %v7617
    %v7619 = vsel %vm7618, 0, %v7617
    %v7620 = vsub.s32 32, %v7619
    %v7621 = vshll.u32 %v7612, %v7619
    %v7622 = vshrl.u32 %v7604, %v7620
    %v7623 = vor.u32 %v7621, %v7622
    %v7624 = vsub.s32 4294967266, %v7619
    %v7625 = vadd.s32 %v7624, 127
    %v7626 = vshll.u32 %v7625, 23
    %v7627 = vor.u32 4788187, %v7626
    %v7628 = vand.u32 2147483647, %v7627
    %v7630 = vcvt.s32.f32 %v7623
    %v7631 = vmul.f32 %v7630, %v7628
    %v7632 = vxor.u32 %v7631, 2147483648
    %v7633 = vsel %vm7550, %v7632, %v7631
    %v7634 = vsub.s32 4, %v7610
    %v7635 = vsel %vm7550, %v7634, %v7610
    %v7636 = vsel %vm7549, %v4838, %v7633
    %v7637 = vsel %vm7549, 0, %v7635
    %v7638 = vcosq.f32.pop %v7636
    %v7639 = vsinq.f32.pop %v7636
    %vm7640 = vweird.f32 %v4838
    %v7641 = vadd.s32 %v7637, 3
    %v7642 = vand.u32 %v7641, 3
    %vm7643 = vcmp.lt.s32.totalorder %v7642, 2
    %vm7644 = vcmp.eq.s32.totalorder %v7642, 0
    %v7645 = vxor.u32 %v7639, 2147483648
    %v7646 = vsel %vm7644, %v7638, %v7645
    %vm7647 = vcmp.eq.s32.totalorder %v7642, 2
    %v7648 = vxor.u32 %v7638, 2147483648
    %v7649 = vsel %vm7647, %v7648, %v7639
    %v7650 = vsel %vm7643, %v7646, %v7649
    %v7651 = vsel %vm7640, nan, %v7650
    %v7652 = vand.u32 2147483647, %v4839
    %vm7653 = vcmp.le.f32.partialorder %v7652, 0.7853982
    %vm7654 = vcmp.lt.s32.totalorder %v4839, 0
    %v7655 = vand.u32 %v4839, 2139095040
    %v7656 = vshrl.u32 %v7655, 23
    %v7657 = vsub.s32 %v7656, 127
    %v7658 = vand.u32 2147483647, %v4839
    %v7659 = vand.u32 %v7658, 8388607
    %v7660 = vor.u32 %v7659, 8388608
    %v7661 = vsub.s32 0, %v7660
    %v7662 = vadd.s32 %v7657, 1
    %vm7663 = vcmp.gt.s32.totalorder %v7662, 0
    %v7664 = vsel %vm7663, %v7662, 0
    %v7665 = vshrl.u32 %v7664, 5
    %v7666 = vand.u32 %v7664, 31
    %v7667 = vsub.s32 32, %v7666
    %v7668 = vshrl.u32 683565275, %v7667
    %v7669 = vshll.u32 683565275, %v7666
    %v7670 = vshrl.u32 2475754826, %v7667
    %v7671 = vor.u32 %v7669, %v7670
    %v7672 = vshll.u32 2475754826, %v7666
    %v7673 = vshrl.u32 2131351028, %v7667
    %v7674 = vor.u32 %v7672, %v7673
    %v7675 = vshll.u32 2131351028, %v7666
    %v7676 = vshrl.u32 2102212464, %v7667
    %v7677 = vor.u32 %v7675, %v7676
    %v7678 = vshll.u32 2102212464, %v7666
    %v7679 = vshrl.u32 920167782, %v7667
    %v7680 = vor.u32 %v7678, %v7679
    %v7681 = vshll.u32 920167782, %v7666
    %v7682 = vshrl.u32 1326507024, %v7667
    %v7683 = vor.u32 %v7681, %v7682
    %vm7684 = vcmp.lt.s32.totalorder %v7665, 1
    %vm7685 = vcmp.lt.s32.totalorder %v7665, 2
    %vm7686 = vcmp.lt.s32.totalorder %v7665, 3
    %vm7687 = vcmp.lt.s32.totalorder %v7665, 4
    %v7688 = vsel %vm7684, %v7668, %v7671
    %v7689 = vsel %vm7687, %v7677, 2102212464
    %v7690 = vsel %vm7686, %v7674, %v7689
    %v7691 = vsel %vm7685, %v7688, %v7690
    %v7692 = vsel %vm7684, %v7671, %v7674
    %v7693 = vsel %vm7687, %v7680, 920167782
    %v7694 = vsel %vm7686, %v7677, %v7693
    %v7695 = vsel %vm7685, %v7692, %v7694
    %v7696 = vsel %vm7684, %v7674, %v7677
    %v7697 = vsel %vm7687, %v7683, 1326507024
    %v7698 = vsel %vm7686, %v7680, %v7697
    %v7699 = vsel %vm7685, %v7696, %v7698
    %v7700 = vshll.u32 %v7660, 8
    %v7701 = vmul.u32.u64.compose %v7700, %v7699
    %v7702 = vextract.low.u32 %v7701
    %v7703 = vextract.high.u32 %v7701
    %v7704 = vmul.u32.u64.compose %v7700, %v7695
    %v7705 = vextract.low.u32 %v7704
    %v7706 = vextract.high.u32 %v7704
    %v7707 = vmul.u32 %v7700, %v7691
    %v7708 = vadd.s32 %v7703, %v7705
    %vm7709 = vc.u32 %v7703, %v7705
    %v7710 = vadd.s32 %v7706, 1
    %v7711 = vsel %vm7709, %v7710, %v7706
    %v7712 = vadd.s32 %v7707, %v7711
    %v7713 = vadd.s32 %v7712, 536870912
    %v7714 = vshrl.u32 %v7713, 30
    %v7715 = vshll.u32 %v7714, 30
    %v7716 = vsub.s32 %v7712, %v7715
    %vm7717 = vcmp.lt.s32.totalorder %v7716, 0
    %v7718 = vsub.s32 0, %v7716
    %v7719 = vsel %vm7717, %v7718, %v7716
    %v7720 = vclz %v7719
    %v7721 = vsub.s32 %v7720, 2
    %vm7722 = vcmp.gt.s32.totalorder 0, %v7721
    %v7723 = vsel %vm7722, 0, %v7721
    %v7724 = vsub.s32 32, %v7723
    %v7725 = vshll.u32 %v7716, %v7723
    %v7726 = vshrl.u32 %v7708, %v7724
    %v7727 = vor.u32 %v7725, %v7726
    %v7728 = vsub.s32 4294967266, %v7723
    %v7729 = vadd.s32 %v7728, 127
    %v7730 = vshll.u32 %v7729, 23
    %v7731 = vor.u32 4788187, %v7730
    %v7732 = vand.u32 2147483647, %v7731
    %v7734 = vcvt.s32.f32 %v7727
    %v7735 = vmul.f32 %v7734, %v7732
    %v7736 = vxor.u32 %v7735, 2147483648
    %v7737 = vsel %vm7654, %v7736, %v7735
    %v7738 = vsub.s32 4, %v7714
    %v7739 = vsel %vm7654, %v7738, %v7714
    %v7740 = vsel %vm7653, %v4839, %v7737
    %v7741 = vsel %vm7653, 0, %v7739
    %v7742 = vcosq.f32.pop %v7740
    %v7743 = vsinq.f32.pop %v7740
    %vm7744 = vweird.f32 %v4839
    %v7745 = vadd.s32 %v7741, 3
    %v7746 = vand.u32 %v7745, 3
    %vm7747 = vcmp.lt.s32.totalorder %v7746, 2
    %vm7748 = vcmp.eq.s32.totalorder %v7746, 0
    %v7749 = vxor.u32 %v7743, 2147483648
    %v7750 = vsel %vm7748, %v7742, %v7749
    %vm7751 = vcmp.eq.s32.totalorder %v7746, 2
    %v7752 = vxor.u32 %v7742, 2147483648
    %v7753 = vsel %vm7751, %v7752, %v7743
    %v7754 = vsel %vm7747, %v7750, %v7753
    %v7755 = vsel %vm7744, nan, %v7754
    %v7756 = vand.u32 2147483647, %v4840
    %vm7757 = vcmp.le.f32.partialorder %v7756, 0.7853982
    %vm7758 = vcmp.lt.s32.totalorder %v4840, 0
    %v7759 = vand.u32 %v4840, 2139095040
    %v7760 = vshrl.u32 %v7759, 23
    %v7761 = vsub.s32 %v7760, 127
    %v7762 = vand.u32 2147483647, %v4840
    %v7763 = vand.u32 %v7762, 8388607
    %v7764 = vor.u32 %v7763, 8388608
    %v7765 = vsub.s32 0, %v7764
    %v7766 = vadd.s32 %v7761, 1
    %vm7767 = vcmp.gt.s32.totalorder %v7766, 0
    %v7768 = vsel %vm7767, %v7766, 0
    %v7769 = vshrl.u32 %v7768, 5
    %v7770 = vand.u32 %v7768, 31
    %v7771 = vsub.s32 32, %v7770
    %v7772 = vshrl.u32 683565275, %v7771
    %v7773 = vshll.u32 683565275, %v7770
    %v7774 = vshrl.u32 2475754826, %v7771
    %v7775 = vor.u32 %v7773, %v7774
    %v7776 = vshll.u32 2475754826, %v7770
    %v7777 = vshrl.u32 2131351028, %v7771
    %v7778 = vor.u32 %v7776, %v7777
    %v7779 = vshll.u32 2131351028, %v7770
    %v7780 = vshrl.u32 2102212464, %v7771
    %v7781 = vor.u32 %v7779, %v7780
    %v7782 = vshll.u32 2102212464, %v7770
    %v7783 = vshrl.u32 920167782, %v7771
    %v7784 = vor.u32 %v7782, %v7783
    %v7785 = vshll.u32 920167782, %v7770
    %v7786 = vshrl.u32 1326507024, %v7771
    %v7787 = vor.u32 %v7785, %v7786
    %vm7788 = vcmp.lt.s32.totalorder %v7769, 1
    %vm7789 = vcmp.lt.s32.totalorder %v7769, 2
    %vm7790 = vcmp.lt.s32.totalorder %v7769, 3
    %vm7791 = vcmp.lt.s32.totalorder %v7769, 4
    %v7792 = vsel %vm7788, %v7772, %v7775
    %v7793 = vsel %vm7791, %v7781, 2102212464
    %v7794 = vsel %vm7790, %v7778, %v7793
    %v7795 = vsel %vm7789, %v7792, %v7794
    %v7796 = vsel %vm7788, %v7775, %v7778
    %v7797 = vsel %vm7791, %v7784, 920167782
    %v7798 = vsel %vm7790, %v7781, %v7797
    %v7799 = vsel %vm7789, %v7796, %v7798
    %v7800 = vsel %vm7788, %v7778, %v7781
    %v7801 = vsel %vm7791, %v7787, 1326507024
    %v7802 = vsel %vm7790, %v7784, %v7801
    %v7803 = vsel %vm7789, %v7800, %v7802
    %v7804 = vshll.u32 %v7764, 8
    %v7805 = vmul.u32.u64.compose %v7804, %v7803
    %v7806 = vextract.low.u32 %v7805
    %v7807 = vextract.high.u32 %v7805
    %v7808 = vmul.u32.u64.compose %v7804, %v7799
    %v7809 = vextract.low.u32 %v7808
    %v7810 = vextract.high.u32 %v7808
    %v7811 = vmul.u32 %v7804, %v7795
    %v7812 = vadd.s32 %v7807, %v7809
    %vm7813 = vc.u32 %v7807, %v7809
    %v7814 = vadd.s32 %v7810, 1
    %v7815 = vsel %vm7813, %v7814, %v7810
    %v7816 = vadd.s32 %v7811, %v7815
    %v7817 = vadd.s32 %v7816, 536870912
    %v7818 = vshrl.u32 %v7817, 30
    %v7819 = vshll.u32 %v7818, 30
    %v7820 = vsub.s32 %v7816, %v7819
    %vm7821 = vcmp.lt.s32.totalorder %v7820, 0
    %v7822 = vsub.s32 0, %v7820
    %v7823 = vsel %vm7821, %v7822, %v7820
    %v7824 = vclz %v7823
    %v7825 = vsub.s32 %v7824, 2
    %vm7826 = vcmp.gt.s32.totalorder 0, %v7825
    %v7827 = vsel %vm7826, 0, %v7825
    %v7828 = vsub.s32 32, %v7827
    %v7829 = vshll.u32 %v7820, %v7827
    %v7830 = vshrl.u32 %v7812, %v7828
    %v7831 = vor.u32 %v7829, %v7830
    %v7832 = vsub.s32 4294967266, %v7827
    %v7833 = vadd.s32 %v7832, 127
    %v7834 = vshll.u32 %v7833, 23
    %v7835 = vor.u32 4788187, %v7834
    %v7836 = vand.u32 2147483647, %v7835
    %v7838 = vcvt.s32.f32 %v7831
    %v7839 = vmul.f32 %v7838, %v7836
    %v7840 = vxor.u32 %v7839, 2147483648
    %v7841 = vsel %vm7758, %v7840, %v7839
    %v7842 = vsub.s32 4, %v7818
    %v7843 = vsel %vm7758, %v7842, %v7818
    %v7844 = vsel %vm7757, %v4840, %v7841
    %v7845 = vsel %vm7757, 0, %v7843
    %v7846 = vcosq.f32.pop %v7844
    %v7847 = vsinq.f32.pop %v7844
    %vm7848 = vweird.f32 %v4840
    %v7849 = vadd.s32 %v7845, 3
    %v7850 = vand.u32 %v7849, 3
    %vm7851 = vcmp.lt.s32.totalorder %v7850, 2
    %vm7852 = vcmp.eq.s32.totalorder %v7850, 0
    %v7853 = vxor.u32 %v7847, 2147483648
    %v7854 = vsel %vm7852, %v7846, %v7853
    %vm7855 = vcmp.eq.s32.totalorder %v7850, 2
    %v7856 = vxor.u32 %v7846, 2147483648
    %v7857 = vsel %vm7855, %v7856, %v7847
    %v7858 = vsel %vm7851, %v7854, %v7857
    %v7859 = vsel %vm7848, nan, %v7858
    %v7860 = vand.u32 2147483647, %v4841
    %vm7861 = vcmp.le.f32.partialorder %v7860, 0.7853982
    %vm7862 = vcmp.lt.s32.totalorder %v4841, 0
    %v7863 = vand.u32 %v4841, 2139095040
    %v7864 = vshrl.u32 %v7863, 23
    %v7865 = vsub.s32 %v7864, 127
    %v7866 = vand.u32 2147483647, %v4841
    %v7867 = vand.u32 %v7866, 8388607
    %v7868 = vor.u32 %v7867, 8388608
    %v7869 = vsub.s32 0, %v7868
    %v7870 = vadd.s32 %v7865, 1
    %vm7871 = vcmp.gt.s32.totalorder %v7870, 0
    %v7872 = vsel %vm7871, %v7870, 0
    %v7873 = vshrl.u32 %v7872, 5
    %v7874 = vand.u32 %v7872, 31
    %v7875 = vsub.s32 32, %v7874
    %v7876 = vshrl.u32 683565275, %v7875
    %v7877 = vshll.u32 683565275, %v7874
    %v7878 = vshrl.u32 2475754826, %v7875
    %v7879 = vor.u32 %v7877, %v7878
    %v7880 = vshll.u32 2475754826, %v7874
    %v7881 = vshrl.u32 2131351028, %v7875
    %v7882 = vor.u32 %v7880, %v7881
    %v7883 = vshll.u32 2131351028, %v7874
    %v7884 = vshrl.u32 2102212464, %v7875
    %v7885 = vor.u32 %v7883, %v7884
    %v7886 = vshll.u32 2102212464, %v7874
    %v7887 = vshrl.u32 920167782, %v7875
    %v7888 = vor.u32 %v7886, %v7887
    %v7889 = vshll.u32 920167782, %v7874
    %v7890 = vshrl.u32 1326507024, %v7875
    %v7891 = vor.u32 %v7889, %v7890
    %vm7892 = vcmp.lt.s32.totalorder %v7873, 1
    %vm7893 = vcmp.lt.s32.totalorder %v7873, 2
    %vm7894 = vcmp.lt.s32.totalorder %v7873, 3
    %vm7895 = vcmp.lt.s32.totalorder %v7873, 4
    %v7896 = vsel %vm7892, %v7876, %v7879
    %v7897 = vsel %vm7895, %v7885, 2102212464
    %v7898 = vsel %vm7894, %v7882, %v7897
    %v7899 = vsel %vm7893, %v7896, %v7898
    %v7900 = vsel %vm7892, %v7879, %v7882
    %v7901 = vsel %vm7895, %v7888, 920167782
    %v7902 = vsel %vm7894, %v7885, %v7901
    %v7903 = vsel %vm7893, %v7900, %v7902
    %v7904 = vsel %vm7892, %v7882, %v7885
    %v7905 = vsel %vm7895, %v7891, 1326507024
    %v7906 = vsel %vm7894, %v7888, %v7905
    %v7907 = vsel %vm7893, %v7904, %v7906
    %v7908 = vshll.u32 %v7868, 8
    %v7909 = vmul.u32.u64.compose %v7908, %v7907
    %v7910 = vextract.low.u32 %v7909
    %v7911 = vextract.high.u32 %v7909
    %v7912 = vmul.u32.u64.compose %v7908, %v7903
    %v7913 = vextract.low.u32 %v7912
    %v7914 = vextract.high.u32 %v7912
    %v7915 = vmul.u32 %v7908, %v7899
    %v7916 = vadd.s32 %v7911, %v7913
    %vm7917 = vc.u32 %v7911, %v7913
    %v7918 = vadd.s32 %v7914, 1
    %v7919 = vsel %vm7917, %v7918, %v7914
    %v7920 = vadd.s32 %v7915, %v7919
    %v7921 = vadd.s32 %v7920, 536870912
    %v7922 = vshrl.u32 %v7921, 30
    %v7923 = vshll.u32 %v7922, 30
    %v7924 = vsub.s32 %v7920, %v7923
    %vm7925 = vcmp.lt.s32.totalorder %v7924, 0
    %v7926 = vsub.s32 0, %v7924
    %v7927 = vsel %vm7925, %v7926, %v7924
    %v7928 = vclz %v7927
    %v7929 = vsub.s32 %v7928, 2
    %vm7930 = vcmp.gt.s32.totalorder 0, %v7929
    %v7931 = vsel %vm7930, 0, %v7929
    %v7932 = vsub.s32 32, %v7931
    %v7933 = vshll.u32 %v7924, %v7931
    %v7934 = vshrl.u32 %v7916, %v7932
    %v7935 = vor.u32 %v7933, %v7934
    %v7936 = vsub.s32 4294967266, %v7931
    %v7937 = vadd.s32 %v7936, 127
    %v7938 = vshll.u32 %v7937, 23
    %v7939 = vor.u32 4788187, %v7938
    %v7940 = vand.u32 2147483647, %v7939
    %v7942 = vcvt.s32.f32 %v7935
    %v7943 = vmul.f32 %v7942, %v7940
    %v7944 = vxor.u32 %v7943, 2147483648
    %v7945 = vsel %vm7862, %v7944, %v7943
    %v7946 = vsub.s32 4, %v7922
    %v7947 = vsel %vm7862, %v7946, %v7922
    %v7948 = vsel %vm7861, %v4841, %v7945
    %v7949 = vsel %vm7861, 0, %v7947
    %v7950 = vcosq.f32.pop %v7948
    %v7951 = vsinq.f32.pop %v7948
    %vm7952 = vweird.f32 %v4841
    %v7953 = vadd.s32 %v7949, 3
    %v7954 = vand.u32 %v7953, 3
    %vm7955 = vcmp.lt.s32.totalorder %v7954, 2
    %vm7956 = vcmp.eq.s32.totalorder %v7954, 0
    %v7957 = vxor.u32 %v7951, 2147483648
    %v7958 = vsel %vm7956, %v7950, %v7957
    %vm7959 = vcmp.eq.s32.totalorder %v7954, 2
    %v7960 = vxor.u32 %v7950, 2147483648
    %v7961 = vsel %vm7959, %v7960, %v7951
    %v7962 = vsel %vm7955, %v7958, %v7961
    %v7963 = vsel %vm7952, nan, %v7962
    %v7964 = vand.u32 2147483647, %v4842
    %vm7965 = vcmp.le.f32.partialorder %v7964, 0.7853982
    %vm7966 = vcmp.lt.s32.totalorder %v4842, 0
    %v7967 = vand.u32 %v4842, 2139095040
    %v7968 = vshrl.u32 %v7967, 23
    %v7969 = vsub.s32 %v7968, 127
    %v7970 = vand.u32 2147483647, %v4842
    %v7971 = vand.u32 %v7970, 8388607
    %v7972 = vor.u32 %v7971, 8388608
    %v7973 = vsub.s32 0, %v7972
    %v7974 = vadd.s32 %v7969, 1
    %vm7975 = vcmp.gt.s32.totalorder %v7974, 0
    %v7976 = vsel %vm7975, %v7974, 0
    %v7977 = vshrl.u32 %v7976, 5
    %v7978 = vand.u32 %v7976, 31
    %v7979 = vsub.s32 32, %v7978
    %v7980 = vshrl.u32 683565275, %v7979
    %v7981 = vshll.u32 683565275, %v7978
    %v7982 = vshrl.u32 2475754826, %v7979
    %v7983 = vor.u32 %v7981, %v7982
    %v7984 = vshll.u32 2475754826, %v7978
    %v7985 = vshrl.u32 2131351028, %v7979
    %v7986 = vor.u32 %v7984, %v7985
    %v7987 = vshll.u32 2131351028, %v7978
    %v7988 = vshrl.u32 2102212464, %v7979
    %v7989 = vor.u32 %v7987, %v7988
    %v7990 = vshll.u32 2102212464, %v7978
    %v7991 = vshrl.u32 920167782, %v7979
    %v7992 = vor.u32 %v7990, %v7991
    %v7993 = vshll.u32 920167782, %v7978
    %v7994 = vshrl.u32 1326507024, %v7979
    %v7995 = vor.u32 %v7993, %v7994
    %vm7996 = vcmp.lt.s32.totalorder %v7977, 1
    %vm7997 = vcmp.lt.s32.totalorder %v7977, 2
    %vm7998 = vcmp.lt.s32.totalorder %v7977, 3
    %vm7999 = vcmp.lt.s32.totalorder %v7977, 4
    %v8000 = vsel %vm7996, %v7980, %v7983
    %v8001 = vsel %vm7999, %v7989, 2102212464
    %v8002 = vsel %vm7998, %v7986, %v8001
    %v8003 = vsel %vm7997, %v8000, %v8002
    %v8004 = vsel %vm7996, %v7983, %v7986
    %v8005 = vsel %vm7999, %v7992, 920167782
    %v8006 = vsel %vm7998, %v7989, %v8005
    %v8007 = vsel %vm7997, %v8004, %v8006
    %v8008 = vsel %vm7996, %v7986, %v7989
    %v8009 = vsel %vm7999, %v7995, 1326507024
    %v8010 = vsel %vm7998, %v7992, %v8009
    %v8011 = vsel %vm7997, %v8008, %v8010
    %v8012 = vshll.u32 %v7972, 8
    %v8013 = vmul.u32.u64.compose %v8012, %v8011
    %v8014 = vextract.low.u32 %v8013
    %v8015 = vextract.high.u32 %v8013
    %v8016 = vmul.u32.u64.compose %v8012, %v8007
    %v8017 = vextract.low.u32 %v8016
    %v8018 = vextract.high.u32 %v8016
    %v8019 = vmul.u32 %v8012, %v8003
    %v8020 = vadd.s32 %v8015, %v8017
    %vm8021 = vc.u32 %v8015, %v8017
    %v8022 = vadd.s32 %v8018, 1
    %v8023 = vsel %vm8021, %v8022, %v8018
    %v8024 = vadd.s32 %v8019, %v8023
    %v8025 = vadd.s32 %v8024, 536870912
    %v8026 = vshrl.u32 %v8025, 30
    %v8027 = vshll.u32 %v8026, 30
    %v8028 = vsub.s32 %v8024, %v8027
    %vm8029 = vcmp.lt.s32.totalorder %v8028, 0
    %v8030 = vsub.s32 0, %v8028
    %v8031 = vsel %vm8029, %v8030, %v8028
    %v8032 = vclz %v8031
    %v8033 = vsub.s32 %v8032, 2
    %vm8034 = vcmp.gt.s32.totalorder 0, %v8033
    %v8035 = vsel %vm8034, 0, %v8033
    %v8036 = vsub.s32 32, %v8035
    %v8037 = vshll.u32 %v8028, %v8035
    %v8038 = vshrl.u32 %v8020, %v8036
    %v8039 = vor.u32 %v8037, %v8038
    %v8040 = vsub.s32 4294967266, %v8035
    %v8041 = vadd.s32 %v8040, 127
    %v8042 = vshll.u32 %v8041, 23
    %v8043 = vor.u32 4788187, %v8042
    %v8044 = vand.u32 2147483647, %v8043
    %v8046 = vcvt.s32.f32 %v8039
    %v8047 = vmul.f32 %v8046, %v8044
    %v8048 = vxor.u32 %v8047, 2147483648
    %v8049 = vsel %vm7966, %v8048, %v8047
    %v8050 = vsub.s32 4, %v8026
    %v8051 = vsel %vm7966, %v8050, %v8026
    %v8052 = vsel %vm7965, %v4842, %v8049
    %v8053 = vsel %vm7965, 0, %v8051
    %v8054 = vcosq.f32.pop %v8052
    %v8055 = vsinq.f32.pop %v8052
    %vm8056 = vweird.f32 %v4842
    %v8057 = vadd.s32 %v8053, 3
    %v8058 = vand.u32 %v8057, 3
    %vm8059 = vcmp.lt.s32.totalorder %v8058, 2
    %vm8060 = vcmp.eq.s32.totalorder %v8058, 0
    %v8061 = vxor.u32 %v8055, 2147483648
    %v8062 = vsel %vm8060, %v8054, %v8061
    %vm8063 = vcmp.eq.s32.totalorder %v8058, 2
    %v8064 = vxor.u32 %v8054, 2147483648
    %v8065 = vsel %vm8063, %v8064, %v8055
    %v8066 = vsel %vm8059, %v8062, %v8065
    %v8067 = vsel %vm8056, nan, %v8066
    %v8068 = vand.u32 2147483647, %v4843
    %vm8069 = vcmp.le.f32.partialorder %v8068, 0.7853982
    %vm8070 = vcmp.lt.s32.totalorder %v4843, 0
    %v8071 = vand.u32 %v4843, 2139095040
    %v8072 = vshrl.u32 %v8071, 23
    %v8073 = vsub.s32 %v8072, 127
    %v8074 = vand.u32 2147483647, %v4843
    %v8075 = vand.u32 %v8074, 8388607
    %v8076 = vor.u32 %v8075, 8388608
    %v8077 = vsub.s32 0, %v8076
    %v8078 = vadd.s32 %v8073, 1
    %vm8079 = vcmp.gt.s32.totalorder %v8078, 0
    %v8080 = vsel %vm8079, %v8078, 0
    %v8081 = vshrl.u32 %v8080, 5
    %v8082 = vand.u32 %v8080, 31
    %v8083 = vsub.s32 32, %v8082
    %v8084 = vshrl.u32 683565275, %v8083
    %v8085 = vshll.u32 683565275, %v8082
    %v8086 = vshrl.u32 2475754826, %v8083
    %v8087 = vor.u32 %v8085, %v8086
    %v8088 = vshll.u32 2475754826, %v8082
    %v8089 = vshrl.u32 2131351028, %v8083
    %v8090 = vor.u32 %v8088, %v8089
    %v8091 = vshll.u32 2131351028, %v8082
    %v8092 = vshrl.u32 2102212464, %v8083
    %v8093 = vor.u32 %v8091, %v8092
    %v8094 = vshll.u32 2102212464, %v8082
    %v8095 = vshrl.u32 920167782, %v8083
    %v8096 = vor.u32 %v8094, %v8095
    %v8097 = vshll.u32 920167782, %v8082
    %v8098 = vshrl.u32 1326507024, %v8083
    %v8099 = vor.u32 %v8097, %v8098
    %vm8100 = vcmp.lt.s32.totalorder %v8081, 1
    %vm8101 = vcmp.lt.s32.totalorder %v8081, 2
    %vm8102 = vcmp.lt.s32.totalorder %v8081, 3
    %vm8103 = vcmp.lt.s32.totalorder %v8081, 4
    %v8104 = vsel %vm8100, %v8084, %v8087
    %v8105 = vsel %vm8103, %v8093, 2102212464
    %v8106 = vsel %vm8102, %v8090, %v8105
    %v8107 = vsel %vm8101, %v8104, %v8106
    %v8108 = vsel %vm8100, %v8087, %v8090
    %v8109 = vsel %vm8103, %v8096, 920167782
    %v8110 = vsel %vm8102, %v8093, %v8109
    %v8111 = vsel %vm8101, %v8108, %v8110
    %v8112 = vsel %vm8100, %v8090, %v8093
    %v8113 = vsel %vm8103, %v8099, 1326507024
    %v8114 = vsel %vm8102, %v8096, %v8113
    %v8115 = vsel %vm8101, %v8112, %v8114
    %v8116 = vshll.u32 %v8076, 8
    %v8117 = vmul.u32.u64.compose %v8116, %v8115
    %v8118 = vextract.low.u32 %v8117
    %v8119 = vextract.high.u32 %v8117
    %v8120 = vmul.u32.u64.compose %v8116, %v8111
    %v8121 = vextract.low.u32 %v8120
    %v8122 = vextract.high.u32 %v8120
    %v8123 = vmul.u32 %v8116, %v8107
    %v8124 = vadd.s32 %v8119, %v8121
    %vm8125 = vc.u32 %v8119, %v8121
    %v8126 = vadd.s32 %v8122, 1
    %v8127 = vsel %vm8125, %v8126, %v8122
    %v8128 = vadd.s32 %v8123, %v8127
    %v8129 = vadd.s32 %v8128, 536870912
    %v8130 = vshrl.u32 %v8129, 30
    %v8131 = vshll.u32 %v8130, 30
    %v8132 = vsub.s32 %v8128, %v8131
    %vm8133 = vcmp.lt.s32.totalorder %v8132, 0
    %v8134 = vsub.s32 0, %v8132
    %v8135 = vsel %vm8133, %v8134, %v8132
    %v8136 = vclz %v8135
    %v8137 = vsub.s32 %v8136, 2
    %vm8138 = vcmp.gt.s32.totalorder 0, %v8137
    %v8139 = vsel %vm8138, 0, %v8137
    %v8140 = vsub.s32 32, %v8139
    %v8141 = vshll.u32 %v8132, %v8139
    %v8142 = vshrl.u32 %v8124, %v8140
    %v8143 = vor.u32 %v8141, %v8142
    %v8144 = vsub.s32 4294967266, %v8139
    %v8145 = vadd.s32 %v8144, 127
    %v8146 = vshll.u32 %v8145, 23
    %v8147 = vor.u32 4788187, %v8146
    %v8148 = vand.u32 2147483647, %v8147
    %v8150 = vcvt.s32.f32 %v8143
    %v8151 = vmul.f32 %v8150, %v8148
    %v8152 = vxor.u32 %v8151, 2147483648
    %v8153 = vsel %vm8070, %v8152, %v8151
    %v8154 = vsub.s32 4, %v8130
    %v8155 = vsel %vm8070, %v8154, %v8130
    %v8156 = vsel %vm8069, %v4843, %v8153
    %v8157 = vsel %vm8069, 0, %v8155
    %v8158 = vcosq.f32.pop %v8156
    %v8159 = vsinq.f32.pop %v8156
    %vm8160 = vweird.f32 %v4843
    %v8161 = vadd.s32 %v8157, 3
    %v8162 = vand.u32 %v8161, 3
    %vm8163 = vcmp.lt.s32.totalorder %v8162, 2
    %vm8164 = vcmp.eq.s32.totalorder %v8162, 0
    %v8165 = vxor.u32 %v8159, 2147483648
    %v8166 = vsel %vm8164, %v8158, %v8165
    %vm8167 = vcmp.eq.s32.totalorder %v8162, 2
    %v8168 = vxor.u32 %v8158, 2147483648
    %v8169 = vsel %vm8167, %v8168, %v8159
    %v8170 = vsel %vm8163, %v8166, %v8169
    %v8171 = vsel %vm8160, nan, %v8170
    %8172 = vst [vmem:[#allocation9] sm:$0xff] %v4947
    %8173 = vst [vmem:[#allocation9 + $0x8] sm:$0xff] %v5051
    %8174 = vst [vmem:[#allocation9 + $0x10] sm:$0xff] %v5155
    %8175 = vst [vmem:[#allocation9 + $0x18] sm:$0xff] %v5259
    %8176 = vst [vmem:[#allocation9 + $0x20] sm:$0xff] %v5363
    %8177 = vst [vmem:[#allocation9 + $0x28] sm:$0xff] %v5467
    %8178 = vst [vmem:[#allocation9 + $0x30] sm:$0xff] %v5571
    %8179 = vst [vmem:[#allocation9 + $0x38] sm:$0xff] %v5675
    %8180 = vst [vmem:[#allocation9 + $0x40] sm:$0xff] %v5779
    %8181 = vst [vmem:[#allocation9 + $0x48] sm:$0xff] %v5883
    %8182 = vst [vmem:[#allocation9 + $0x50] sm:$0xff] %v5987
    %8183 = vst [vmem:[#allocation9 + $0x58] sm:$0xff] %v6091
    %8184 = vst [vmem:[#allocation9 + $0x60] sm:$0xff] %v6195
    %8185 = vst [vmem:[#allocation9 + $0x68] sm:$0xff] %v6299
    %8186 = vst [vmem:[#allocation9 + $0x70] sm:$0xff] %v6403
    %8187 = vst [vmem:[#allocation9 + $0x78] sm:$0xff] %v6507
    %8188 = vst [vmem:[#allocation9 + $0x80] sm:$0xff] %v6611
    %8189 = vst [vmem:[#allocation9 + $0x88] sm:$0xff] %v6715
    %8190 = vst [vmem:[#allocation9 + $0x90] sm:$0xff] %v6819
    %8191 = vst [vmem:[#allocation9 + $0x98] sm:$0xff] %v6923
    %8192 = vst [vmem:[#allocation9 + $0xa0] sm:$0xff] %v7027
    %8193 = vst [vmem:[#allocation9 + $0xa8] sm:$0xff] %v7131
    %8194 = vst [vmem:[#allocation9 + $0xb0] sm:$0xff] %v7235
    %8195 = vst [vmem:[#allocation9 + $0xb8] sm:$0xff] %v7339
    %8196 = vst [vmem:[#allocation9 + $0xc0] sm:$0xff] %v7443
    %8197 = vst [vmem:[#allocation9 + $0xc8] sm:$0xff] %v7547
    %8198 = vst [vmem:[#allocation9 + $0xd0] sm:$0xff] %v7651
    %8199 = vst [vmem:[#allocation9 + $0xd8] sm:$0xff] %v7755
    %8200 = vst [vmem:[#allocation9 + $0xe0] sm:$0xff] %v7859
    %8201 = vst [vmem:[#allocation9 + $0xe8] sm:$0xff] %v7963
    %8202 = vst [vmem:[#allocation9 + $0xf0] sm:$0xff] %v8067
    %8203 = vst [vmem:[#allocation9 + $0xf8] sm:$0xff] %v8171
    // Predicated region
    $region22: #{tpu_custom_call.1} parent=1 // pred_check
      _
    $region23: #{tpu_custom_call.1} parent=1 // pred_check_branch
      %8205 = sbr.rel (0) target = $region25
    $region24: #{tpu_custom_call.1} parent=1 // pred_region
      %s8207 = ssub.s32 4096, 4096
      %8208 = vsyncadd [#allocation6], %s8207
      %s8209 = sshll.u32 [#allocation9], 4
      %s8210 = int_to_ptr.vmem [resolvable:$true] %s8209
      %8215 = dma.vmem_to_hbm [thread:$0]  %s8210, 4096, %s4, [#allocation6], 128, 128, 8
    $region25: #{tpu_custom_call.1} parent=1 // pred_fallthru
      _
    // Predicated region
    $region26: #{tpu_custom_call.1} parent=1 // pred_check
      _
    $region27: #{tpu_custom_call.1} parent=1 // pred_check_branch
      %8217 = sbr.rel (0) target = $region29
    $region28: #{tpu_custom_call.1} parent=1 // pred_region
      %8218 = dma.done [#allocation6], 4096
    $region29: #{tpu_custom_call.1} parent=1 // pred_fallthru
      _
    %8219 = vsyncpa [#allocation5], 1
    %8220 = vsyncpa [#allocation8], 1
    %8221 = vsyncpa [#allocation6], 1

</llo_original>
